<compile_context>
chip_gen: v7x
topology: tpu7x:2x2x1
jax: 0.10.0
libtpu: 0.0.40
codegen_flags: <defaults>
</compile_context>

<pallas_src>
import functools

import jax
import jax.numpy as jnp
from jax.experimental import pallas as pl
from jax.experimental.pallas import tpu as pltpu

EPS = 1e-6      # eps used by both GeM and L2N in cirtorch
GEM_P = 3.0     # GeM pooling exponent
LANE = 128


def _round_up(x, m):
    return (x + m - 1) // m * m


def _auto_row_tile(H, wp, target_rows=512):
    """Largest-needed divisor of H so each grid step sees >= target flat rows."""
    cands = [t for t in range(1, H + 1) if H % t == 0 and (t * wp) % 8 == 0]
    if not cands:
        raise ValueError("no row_tile divides H with (row_tile*(W+2)) % 8 == 0")
    for t in cands:
        if t * wp >= target_rows:
            return t
    return cands[-1]


# ---------------------------------------------------------------------------
# Fused kernel: conv3x3+ReLU -> GeM sum accumulate -> (finalize) GeM root,
# L2N, whiten matmul, L2N.
# ---------------------------------------------------------------------------
def _retrieval_kernel(xa_ref, hal_ref, mask_ref, wc_ref, cb_ref, ww_ref, wb_ref,
                      o_ref, acc_ref, *, rows, wp, cin, cout, inv_hw, fuse_taps):
    i = pl.program_id(1)                         # row-tile index (GeM reduction axis)

    @pl.when(i == 0)
    def _init():
        acc_ref[...] = jnp.zeros_like(acc_ref)

    # Contiguous slab = current row tile + small bottom halo (bf16 HBM -> f32 once).
    slab = jnp.concatenate(
        [xa_ref[0].astype(jnp.float32), hal_ref[0, 0].astype(jnp.float32)], axis=0)

    # conv3x3(pad=1) over the flattened (row, col) layout via 9 shifted-slab taps.
    if fuse_taps:
        # One MXU matmul with K = 9*Cin: accumulation over taps happens in the MXU,
        # not as 8 full-tile VALU adds.
        taps = [slab[dh * wp + dw:dh * wp + dw + rows, :]
                for dh in range(3) for dw in range(3)]
        a = jnp.concatenate(taps, axis=-1).astype(jnp.bfloat16)     # (rows, 9*Cin)
        y = jnp.dot(a, wc_ref[...], preferred_element_type=jnp.float32)
    else:
        # Fallback (previous revision's structure): 9 small dots + VALU adds.
        y = None
        for t in range(9):
            off = (t // 3) * wp + (t % 3)
            win = slab[off:off + rows, :].astype(jnp.bfloat16)
            part = jnp.dot(win, wc_ref[t * cin:(t + 1) * cin, :],
                           preferred_element_type=jnp.float32)
            y = part if y is None else y + part
    y = y + cb_ref[...]                                             # (rows, cout_pad)

    # ReLU fused with GeM clamp(min=eps); p=3 power on the VPU, W-padding mask folded
    # into the cube (one fewer full-tile VALU pass).
    xc = jnp.maximum(y, EPS)
    x3 = (xc * mask_ref[...]) * (xc * xc)
    acc_ref[...] += jnp.sum(x3, axis=0, keepdims=True)              # GeM running sum

    @pl.when(i == pl.num_programs(1) - 1)
    def _finalize():
        mean_pow = acc_ref[...] * inv_hw                            # (1, cout_pad) > 0
        pooled = jnp.exp(jnp.log(mean_pow) * (1.0 / GEM_P))         # GeM 1/p root (EUP)
        lane = jax.lax.broadcasted_iota(jnp.int32, pooled.shape, 1)
        pooled = jnp.where(lane < cout, pooled, 0.0)                # drop pad lanes exactly
        n1 = jnp.sqrt(jnp.sum(pooled * pooled, axis=-1, keepdims=True)) + EPS
        v = pooled / n1                                             # L2N (exact, once/sample)
        yw = jnp.dot(v.astype(jnp.bfloat16), ww_ref[...],
                     preferred_element_type=jnp.float32) + wb_ref[...]
        n2 = jnp.sqrt(jnp.sum(yw * yw, axis=-1, keepdims=True)) + EPS
        o_ref[...] = (yw / n2).reshape(o_ref.shape)                 # (1, 1, d_pad)


# ---------------------------------------------------------------------------
# Wrapper: layout prep (read x once in bf16, small halo array) + single pallas_call.
# ---------------------------------------------------------------------------
def image_retrieval_net_forward(x, conv_w, conv_b, whiten_w, whiten_b,
                                *, row_tile=None):
    N, Cin, H, W = x.shape
    Cout = conv_w.shape[0]
    D = whiten_w.shape[0]

    wp = W + 2                                   # width incl. left/right conv halo
    th = _auto_row_tile(H, wp) if row_tile is None else row_tile
    assert H % th == 0 and (th * wp) % 8 == 0, "row_tile must divide H; rows % 8 == 0"
    rows = th * wp                               # flat rows processed per grid step
    n_tiles = H // th
    hrows = _round_up(2 * wp + 2, 8)             # bottom halo flat rows (2 rows + spill)
    bpad = (hrows + wp - 1) // wp - 1            # bottom zero rows so halo slices exist

    cout_p = _round_up(Cout, LANE)               # lane-dense conv output channels
    d_p = _round_up(D, LANE)                     # lane-dense whitened output dim

    # x: NCHW -> NHWC, zero-pad conv halo, flatten spatial rows, store bf16 (1x HBM read).
    x_nhwc = jnp.transpose(x, (0, 2, 3, 1))
    xp = jnp.pad(x_nhwc, ((0, 0), (1, bpad), (1, 1), (0, 0))).astype(jnp.bfloat16)
    xp_flat = xp.reshape(N, (H + 1 + bpad) * wp, Cin)
    xa = xp_flat[:, :H * wp, :]                  # main row tiles (padded rows [0, H))
    halo = jnp.stack(                            # (N, n_tiles, hrows, Cin) bottom halos
        [xp_flat[:, (i + 1) * rows:(i + 1) * rows + hrows, :] for i in range(n_tiles)],
        axis=1)

    # Static validity mask for the W-padding columns of the flat layout.
    col = jnp.arange(rows, dtype=jnp.int32) % wp
    mask = (col < W).astype(jnp.float32).reshape(rows, 1)

    # conv weight (Cout, Cin, 3, 3) -> (9*Cin, Cout_pad) bf16 (tap-major, Cin-minor).
    wc = jnp.transpose(conv_w, (2, 3, 1, 0)).reshape(9 * Cin, Cout)
    wc = jnp.pad(wc, ((0, 0), (0, cout_p - Cout))).astype(jnp.bfloat16)
    cb = jnp.pad(conv_b, (0, cout_p - Cout)).reshape(1, cout_p).astype(jnp.float32)

    # whiten (PyTorch Linear y = v @ W.T + b): bf16 weights, f32 bias/accumulation.
    ww = jnp.pad(whiten_w.T, ((0, cout_p - Cout), (0, d_p - D))).astype(jnp.bfloat16)
    wb = jnp.pad(whiten_b, (0, d_p - D)).reshape(1, d_p).astype(jnp.float32)

    def run(fuse_taps):
        kernel = functools.partial(
            _retrieval_kernel, rows=rows, wp=wp, cin=Cin, cout=Cout,
            inv_hw=1.0 / float(H * W), fuse_taps=fuse_taps)
        return pl.pallas_call(
            kernel,
            out_shape=jax.ShapeDtypeStruct((N, 1, d_p), jnp.float32),
            grid_spec=pltpu.PrefetchScalarGridSpec(
                num_scalar_prefetch=0,
                grid=(N, n_tiles),
                in_specs=[
                    # current row tile of the flattened bf16 input
                    pl.BlockSpec((1, rows, Cin), lambda n, i: (n, i, 0)),
                    # tiny precomputed bottom halo for this tile
                    pl.BlockSpec((1, 1, hrows, Cin), lambda n, i: (n, i, 0, 0)),
                    # static column-validity mask (resident)
                    pl.BlockSpec((rows, 1), lambda n, i: (0, 0)),
                    # resident weights / biases (constant index_map -> no re-DMA)
                    pl.BlockSpec((9 * Cin, cout_p), lambda n, i: (0, 0)),
                    pl.BlockSpec((1, cout_p), lambda n, i: (0, 0)),
                    pl.BlockSpec((cout_p, d_p), lambda n, i: (0, 0)),
                    pl.BlockSpec((1, d_p), lambda n, i: (0, 0)),
                ],
                out_specs=pl.BlockSpec((1, 1, d_p), lambda n, i: (n, 0, 0)),
                scratch_shapes=[pltpu.VMEM((1, cout_p), jnp.float32)],  # GeM accumulator
            ),
            compiler_params=pltpu.CompilerParams(
                dimension_semantics=("parallel", "arbitrary"),
                vmem_limit_bytes=48 * 1024 * 1024,   # under v7x's 64 MiB physical VMEM
            ),
        )(xa, halo, mask, wc, cb, ww, wb)

    try:
        out = jax.block_until_ready(run(fuse_taps=True))
    except Exception:
        # Mosaic build without unaligned lane-concat support: identical math, 9 dots.
        out = jax.block_until_ready(run(fuse_taps=False))

    o = out[:, 0, :D]               # (N, D) lane-dense descriptors
    return o.T                      # o.permute(1, 0) -> (D, N), tiny transpose


if __name__ == "__main__":
    key = jax.random.PRNGKey(0)
    k1, k2, k3, k4, k5 = jax.random.split(key, 5)

    N, Cin, H, W = 2, 4, 16, 16
    Cout = 32        # backbone output channels
    D = 32           # whitening output dim (meta['outputdim'])

    x = jax.random.normal(k1, (N, Cin, H, W), dtype=jnp.float32)
    conv_w = 0.1 * jax.random.normal(k2, (Cout, Cin, 3, 3), dtype=jnp.float32)
    conv_b = 0.1 * jax.random.normal(k3, (Cout,), dtype=jnp.float32)
    whiten_w = 0.1 * jax.random.normal(k4, (D, Cout), dtype=jnp.float32)   # (out, in)
    whiten_b = 0.1 * jax.random.normal(k5, (D,), dtype=jnp.float32)

    # Pure-JAX f32 reference of the same forward pass.
    def reference(xin):
        y = jax.lax.conv_general_dilated(
            xin, conv_w, window_strides=(1, 1), padding="SAME",
            dimension_numbers=("NCHW", "OIHW", "NCHW"),
            precision=jax.lax.Precision.HIGHEST)
        y = jnp.maximum(y + conv_b[None, :, None, None], 0.0)              # backbone ReLU
        pooled = jnp.mean(jnp.maximum(y, EPS) ** GEM_P, axis=(2, 3)) ** (1.0 / GEM_P)
        v = pooled / (jnp.linalg.norm(pooled, axis=1, keepdims=True) + EPS)
        w = v @ whiten_w.T + whiten_b
        w = w / (jnp.linalg.norm(w, axis=1, keepdims=True) + EPS)
        return w.T                                                         # (D, N)

    ref = reference(x)

    # Run with the auto row tile (single step at this size) and with an explicit 2-tile
    # split that exercises the GeM accumulation / inter-tile halo path.
    for rt in (None, 8):
        out = image_retrieval_net_forward(x, conv_w, conv_b, whiten_w, whiten_b,
                                          row_tile=rt)
        out = jax.block_until_ready(out)
        assert out.shape == (D, N)
        norms = jnp.sqrt(jnp.sum(out * out, axis=0))
        assert bool(jnp.all(jnp.abs(norms - 1.0) < 1e-2)), norms
        err = jnp.max(jnp.abs(out - ref))
        assert bool(err < 3e-2), err     # bf16 MXU operands vs f32 reference

    print("KERNEL_OK")
</pallas_src>

<mosaic_0001>
module attributes {stable_mosaic.version = 11 : i64} {
  func.func @_retrieval_kernel(%arg0: i32, %arg1: i32, %arg2: memref<1x288x4xbf16, #tpu.memory_space<vmem>>, %arg3: memref<1x1x40x4xbf16, #tpu.memory_space<vmem>>, %arg4: memref<288x1xf32, #tpu.memory_space<vmem>>, %arg5: memref<36x128xbf16, #tpu.memory_space<vmem>>, %arg6: memref<1x128xf32, #tpu.memory_space<vmem>>, %arg7: memref<128x128xbf16, #tpu.memory_space<vmem>>, %arg8: memref<1x128xf32, #tpu.memory_space<vmem>>, %arg9: memref<1x1x128xf32, #tpu.memory_space<vmem>>, %arg10: memref<1x128xf32, #tpu.memory_space<vmem>>) attributes {dimension_semantics = [#tpu.dimension_semantics<parallel>, #tpu.dimension_semantics<arbitrary>], iteration_bounds = array<i64: 2, 1>, scalar_prefetch = 0 : i64, scratch_operands = 1 : i64, tpu.core_type = #tpu.core_type<tc>, window_params = [{transform_indices = @transform_0, window_bounds = array<i64: 1, 288, 4>}, {transform_indices = @transform_1, window_bounds = array<i64: 1, 1, 40, 4>}, {pipeline_mode = #tpu.pipeline_mode<synchronous>, transform_indices = @transform_2, window_bounds = array<i64: 288, 1>}, {pipeline_mode = #tpu.pipeline_mode<synchronous>, transform_indices = @transform_3, window_bounds = array<i64: 36, 128>}, {pipeline_mode = #tpu.pipeline_mode<synchronous>, transform_indices = @transform_4, window_bounds = array<i64: 1, 128>}, {pipeline_mode = #tpu.pipeline_mode<synchronous>, transform_indices = @transform_5, window_bounds = array<i64: 128, 128>}, {pipeline_mode = #tpu.pipeline_mode<synchronous>, transform_indices = @transform_6, window_bounds = array<i64: 1, 128>}, {transform_indices = @transform_7, window_bounds = array<i64: 1, 1, 128>}]} {
    %c0_i32 = arith.constant 0 : i32
    %0 = arith.cmpi eq, %arg1, %c0_i32 : i32
    %1 = arith.extui %0 : i1 to i32
    %c0_i32_0 = arith.constant 0 : i32
    %2 = arith.cmpi ne, %1, %c0_i32_0 : i32
    scf.if %2 {
      %cst_21 = arith.constant 0.000000e+00 : f32
      %41 = vector.broadcast %cst_21 : f32 to vector<1x128xf32>
      %c0_22 = arith.constant 0 : index
      %c0_23 = arith.constant 0 : index
      %42 = vector.load %arg10[%c0_22, %c0_23] : memref<1x128xf32, #tpu.memory_space<vmem>>, vector<1x128xf32>
      tpu.vector_store %arg10[%c0_22, %c0_23], %41 {strides = array<i32>} : memref<1x128xf32, #tpu.memory_space<vmem>>, vector<1x128xf32>,
    } else {
    }
    %c0 = arith.constant 0 : index
    %c0_1 = arith.constant 0 : index
    %c0_2 = arith.constant 0 : index
    %3 = vector.load %arg2[%c0, %c0_1, %c0_2] : memref<1x288x4xbf16, #tpu.memory_space<vmem>>, vector<1x288x4xbf16>
    %4 = vector.shape_cast %3 : vector<1x288x4xbf16> to vector<288x4xbf16>
    %5 = arith.extf %4 : vector<288x4xbf16> to vector<288x4xf32>
    %c0_3 = arith.constant 0 : index
    %c0_4 = arith.constant 0 : index
    %c0_5 = arith.constant 0 : index
    %c0_6 = arith.constant 0 : index
    %6 = vector.load %arg3[%c0_3, %c0_4, %c0_5, %c0_6] : memref<1x1x40x4xbf16, #tpu.memory_space<vmem>>, vector<1x1x40x4xbf16>
    %7 = vector.shape_cast %6 : vector<1x1x40x4xbf16> to vector<40x4xbf16>
    %8 = arith.extf %7 : vector<40x4xbf16> to vector<40x4xf32>
    %9 = tpu.concatenate %5, %8 in 0 : vector<288x4xf32>, vector<40x4xf32> -> vector<328x4xf32>
    %10 = vector.extract_strided_slice %9 {offsets = [0, 0], sizes = [288, 4], strides = [1, 1]} : vector<328x4xf32> to vector<288x4xf32>
    %11 = vector.extract_strided_slice %9 {offsets = [1, 0], sizes = [288, 4], strides = [1, 1]} : vector<328x4xf32> to vector<288x4xf32>
    %12 = vector.extract_strided_slice %9 {offsets = [2, 0], sizes = [288, 4], strides = [1, 1]} : vector<328x4xf32> to vector<288x4xf32>
    %13 = vector.extract_strided_slice %9 {offsets = [18, 0], sizes = [288, 4], strides = [1, 1]} : vector<328x4xf32> to vector<288x4xf32>
    %14 = vector.extract_strided_slice %9 {offsets = [19, 0], sizes = [288, 4], strides = [1, 1]} : vector<328x4xf32> to vector<288x4xf32>
    %15 = vector.extract_strided_slice %9 {offsets = [20, 0], sizes = [288, 4], strides = [1, 1]} : vector<328x4xf32> to vector<288x4xf32>
    %16 = vector.extract_strided_slice %9 {offsets = [36, 0], sizes = [288, 4], strides = [1, 1]} : vector<328x4xf32> to vector<288x4xf32>
    %17 = vector.extract_strided_slice %9 {offsets = [37, 0], sizes = [288, 4], strides = [1, 1]} : vector<328x4xf32> to vector<288x4xf32>
    %18 = vector.extract_strided_slice %9 {offsets = [38, 0], sizes = [288, 4], strides = [1, 1]} : vector<328x4xf32> to vector<288x4xf32>
    %19 = tpu.concatenate %10, %11, %12, %13, %14, %15, %16, %17, %18 in 1 : vector<288x4xf32>, vector<288x4xf32>, vector<288x4xf32>, vector<288x4xf32>, vector<288x4xf32>, vector<288x4xf32>, vector<288x4xf32>, vector<288x4xf32>, vector<288x4xf32> -> vector<288x36xf32>
    %20 = arith.truncf %19 : vector<288x36xf32> to vector<288x36xbf16>
    %c0_7 = arith.constant 0 : index
    %c0_8 = arith.constant 0 : index
    %21 = vector.load %arg5[%c0_7, %c0_8] : memref<36x128xbf16, #tpu.memory_space<vmem>>, vector<36x128xbf16>
    %cst = arith.constant dense<0.000000e+00> : vector<288x128xf32>
    %22 = tpu.matmul %20, %21, %cst {dimension_numbers = #tpu.dot_dimension_numbers<[1], [0], [0], [1], [0, 0, 1, 1], [], []>} : vector<288x36xbf16>, vector<36x128xbf16>, vector<288x128xf32> -> vector<288x128xf32>
    %c0_9 = arith.constant 0 : index
    %c0_10 = arith.constant 0 : index
    %23 = vector.load %arg6[%c0_9, %c0_10] : memref<1x128xf32, #tpu.memory_space<vmem>>, vector<1x128xf32>
    %24 = vector.broadcast %23 : vector<1x128xf32> to vector<288x128xf32>
    %25 = arith.addf %22, %24 : vector<288x128xf32>
    %cst_11 = arith.constant 9.99999997E-7 : f32
    %26 = vector.broadcast %cst_11 : f32 to vector<288x128xf32>
    %27 = arith.maximumf %25, %26 : vector<288x128xf32>
    %c0_12 = arith.constant 0 : index
    %c0_13 = arith.constant 0 : index
    %28 = vector.load %arg4[%c0_12, %c0_13] : memref<288x1xf32, #tpu.memory_space<vmem>>, vector<288x1xf32>
    %29 = vector.broadcast %28 : vector<288x1xf32> to vector<288x128xf32>
    %30 = arith.mulf %27, %29 : vector<288x128xf32>
    %31 = arith.mulf %27, %27 : vector<288x128xf32>
    %32 = arith.mulf %30, %31 : vector<288x128xf32>
    %c0_14 = arith.constant 0 : index
    %c0_15 = arith.constant 0 : index
    %33 = vector.load %arg10[%c0_14, %c0_15] : memref<1x128xf32, #tpu.memory_space<vmem>>, vector<1x128xf32>
    %cst_16 = arith.constant dense<0.000000e+00> : vector<128xf32>
    %34 = vector.multi_reduction <add>, %32, %cst_16 [0] : vector<288x128xf32> to vector<128xf32>
    %35 = vector.shape_cast %34 : vector<128xf32> to vector<1x128xf32>
    %36 = arith.addf %33, %35 : vector<1x128xf32>
    %c0_17 = arith.constant 0 : index
    %c0_18 = arith.constant 0 : index
    %37 = vector.load %arg10[%c0_17, %c0_18] : memref<1x128xf32, #tpu.memory_space<vmem>>, vector<1x128xf32>
    tpu.vector_store %arg10[%c0_17, %c0_18], %36 {strides = array<i32>} : memref<1x128xf32, #tpu.memory_space<vmem>>, vector<1x128xf32>,
    %c0_i32_19 = arith.constant 0 : i32
    %38 = arith.cmpi eq, %arg1, %c0_i32_19 : i32
    %39 = arith.extui %38 : i1 to i32
    %c0_i32_20 = arith.constant 0 : i32
    %40 = arith.cmpi ne, %39, %c0_i32_20 : i32
    scf.if %40 {
      %c0_21 = arith.constant 0 : index
      %c0_22 = arith.constant 0 : index
      %41 = vector.load %arg10[%c0_21, %c0_22] : memref<1x128xf32, #tpu.memory_space<vmem>>, vector<1x128xf32>
      %cst_23 = arith.constant 3.906250e-03 : f32
      %42 = vector.broadcast %cst_23 : f32 to vector<1x128xf32>
      %43 = arith.mulf %41, %42 : vector<1x128xf32>
      %44 = math.log %43 : vector<1x128xf32>
      %cst_24 = arith.constant 0.333333343 : f32
      %45 = vector.broadcast %cst_24 : f32 to vector<1x128xf32>
      %46 = arith.mulf %44, %45 : vector<1x128xf32>
      %47 = math.exp %46 : vector<1x128xf32>
      %48 = tpu.iota {dimensions = array<i32: 1>} : vector<1x128xi32>
      %c32_i32 = arith.constant 32 : i32
      %49 = vector.broadcast %c32_i32 : i32 to vector<1x128xi32>
      %50 = arith.cmpi slt, %48, %49 : vector<1x128xi32>
      %cst_25 = arith.constant 0.000000e+00 : f32
      %51 = vector.broadcast %cst_25 : f32 to vector<1x128xf32>
      %52 = arith.select %50, %47, %51 : vector<1x128xi1>, vector<1x128xf32>
      %53 = arith.mulf %52, %52 : vector<1x128xf32>
      %cst_26 = arith.constant dense<0.000000e+00> : vector<1xf32>
      %54 = vector.multi_reduction <add>, %53, %cst_26 [1] : vector<1x128xf32> to vector<1xf32>
      %55 = vector.shape_cast %54 : vector<1xf32> to vector<1x1xf32>
      %56 = math.sqrt %55 : vector<1x1xf32>
      %cst_27 = arith.constant 9.99999997E-7 : f32
      %57 = vector.broadcast %cst_27 : f32 to vector<1x1xf32>
      %58 = arith.addf %56, %57 : vector<1x1xf32>
      %59 = vector.broadcast %58 : vector<1x1xf32> to vector<1x128xf32>
      %60 = arith.divf %52, %59 : vector<1x128xf32>
      %61 = arith.truncf %60 : vector<1x128xf32> to vector<1x128xbf16>
      %c0_28 = arith.constant 0 : index
      %c0_29 = arith.constant 0 : index
      %62 = vector.load %arg7[%c0_28, %c0_29] : memref<128x128xbf16, #tpu.memory_space<vmem>>, vector<128x128xbf16>
      %cst_30 = arith.constant dense<0.000000e+00> : vector<1x128xf32>
      %63 = tpu.matmul %61, %62, %cst_30 {dimension_numbers = #tpu.dot_dimension_numbers<[1], [0], [0], [1], [0, 0, 1, 1], [], []>} : vector<1x128xbf16>, vector<128x128xbf16>, vector<1x128xf32> -> vector<1x128xf32>
      %c0_31 = arith.constant 0 : index
      %c0_32 = arith.constant 0 : index
      %64 = vector.load %arg8[%c0_31, %c0_32] : memref<1x128xf32, #tpu.memory_space<vmem>>, vector<1x128xf32>
      %65 = arith.addf %63, %64 : vector<1x128xf32>
      %66 = arith.mulf %65, %65 : vector<1x128xf32>
      %cst_33 = arith.constant dense<0.000000e+00> : vector<1xf32>
      %67 = vector.multi_reduction <add>, %66, %cst_33 [1] : vector<1x128xf32> to vector<1xf32>
      %68 = vector.shape_cast %67 : vector<1xf32> to vector<1x1xf32>
      %69 = math.sqrt %68 : vector<1x1xf32>
      %cst_34 = arith.constant 9.99999997E-7 : f32
      %70 = vector.broadcast %cst_34 : f32 to vector<1x1xf32>
      %71 = arith.addf %69, %70 : vector<1x1xf32>
      %72 = vector.broadcast %71 : vector<1x1xf32> to vector<1x128xf32>
      %73 = arith.divf %65, %72 : vector<1x128xf32>
      %74 = vector.shape_cast %73 : vector<1x128xf32> to vector<1x1x128xf32>
      %c0_35 = arith.constant 0 : index
      %c0_36 = arith.constant 0 : index
      %c0_37 = arith.constant 0 : index
      %75 = vector.load %arg9[%c0_35, %c0_36, %c0_37] : memref<1x1x128xf32, #tpu.memory_space<vmem>>, vector<1x1x128xf32>
      tpu.vector_store %arg9[%c0_35, %c0_36, %c0_37], %74 {strides = array<i32>} : memref<1x1x128xf32, #tpu.memory_space<vmem>>, vector<1x1x128xf32>,
    } else {
    }
    return
  }
  func.func @transform_0(%arg0: i32, %arg1: i32) -> (i32, i32, i32) {
    %c0_i32 = arith.constant 0 : i32
    %c0_i32_0 = arith.constant 0 : i32
    return %arg0, %arg1, %c0_i32 : i32, i32, i32
  }
  func.func @transform_1(%arg0: i32, %arg1: i32) -> (i32, i32, i32, i32) {
    %c0_i32 = arith.constant 0 : i32
    %c0_i32_0 = arith.constant 0 : i32
    %c0_i32_1 = arith.constant 0 : i32
    return %arg0, %arg1, %c0_i32, %c0_i32_0 : i32, i32, i32, i32
  }
  func.func @transform_2(%arg0: i32, %arg1: i32) -> (i32, i32) {
    %c0_i32 = arith.constant 0 : i32
    %c0_i32_0 = arith.constant 0 : i32
    %c0_i32_1 = arith.constant 0 : i32
    return %c0_i32, %c0_i32_0 : i32, i32
  }
  func.func @transform_3(%arg0: i32, %arg1: i32) -> (i32, i32) {
    %c0_i32 = arith.constant 0 : i32
    %c0_i32_0 = arith.constant 0 : i32
    %c0_i32_1 = arith.constant 0 : i32
    return %c0_i32, %c0_i32_0 : i32, i32
  }
  func.func @transform_4(%arg0: i32, %arg1: i32) -> (i32, i32) {
    %c0_i32 = arith.constant 0 : i32
    %c0_i32_0 = arith.constant 0 : i32
    %c0_i32_1 = arith.constant 0 : i32
    return %c0_i32, %c0_i32_0 : i32, i32
  }
  func.func @transform_5(%arg0: i32, %arg1: i32) -> (i32, i32) {
    %c0_i32 = arith.constant 0 : i32
    %c0_i32_0 = arith.constant 0 : i32
    %c0_i32_1 = arith.constant 0 : i32
    return %c0_i32, %c0_i32_0 : i32, i32
  }
  func.func @transform_6(%arg0: i32, %arg1: i32) -> (i32, i32) {
    %c0_i32 = arith.constant 0 : i32
    %c0_i32_0 = arith.constant 0 : i32
    %c0_i32_1 = arith.constant 0 : i32
    return %c0_i32, %c0_i32_0 : i32, i32
  }
  func.func @transform_7(%arg0: i32, %arg1: i32) -> (i32, i32, i32) {
    %c0_i32 = arith.constant 0 : i32
    %c0_i32_0 = arith.constant 0 : i32
    %c0_i32_1 = arith.constant 0 : i32
    return %arg0, %c0_i32, %c0_i32_0 : i32, i32, i32
  }
}

module attributes {stable_mosaic.version = 11 : i64} {
  func.func @_retrieval_kernel(%arg0: i32, %arg1: i32, %arg2: memref<1x288x4xbf16, #tpu.memory_space<vmem>>, %arg3: memref<1x1x40x4xbf16, #tpu.memory_space<vmem>>, %arg4: memref<288x1xf32, #tpu.memory_space<vmem>>, %arg5: memref<36x128xbf16, #tpu.memory_space<vmem>>, %arg6: memref<1x128xf32, #tpu.memory_space<vmem>>, %arg7: memref<128x128xbf16, #tpu.memory_space<vmem>>, %arg8: memref<1x128xf32, #tpu.memory_space<vmem>>, %arg9: memref<1x1x128xf32, #tpu.memory_space<vmem>>, %arg10: memref<1x128xf32, #tpu.memory_space<vmem>>) attributes {dimension_semantics = [#tpu.dimension_semantics<parallel>, #tpu.dimension_semantics<arbitrary>], iteration_bounds = array<i64: 2, 1>, scalar_prefetch = 0 : i64, scratch_operands = 1 : i64, tpu.core_type = #tpu.core_type<tc>, window_params = [{transform_indices = @transform_0, window_bounds = array<i64: 1, 288, 4>}, {transform_indices = @transform_1, window_bounds = array<i64: 1, 1, 40, 4>}, {pipeline_mode = #tpu.pipeline_mode<synchronous>, transform_indices = @transform_2, window_bounds = array<i64: 288, 1>}, {pipeline_mode = #tpu.pipeline_mode<synchronous>, transform_indices = @transform_3, window_bounds = array<i64: 36, 128>}, {pipeline_mode = #tpu.pipeline_mode<synchronous>, transform_indices = @transform_4, window_bounds = array<i64: 1, 128>}, {pipeline_mode = #tpu.pipeline_mode<synchronous>, transform_indices = @transform_5, window_bounds = array<i64: 128, 128>}, {pipeline_mode = #tpu.pipeline_mode<synchronous>, transform_indices = @transform_6, window_bounds = array<i64: 1, 128>}, {transform_indices = @transform_7, window_bounds = array<i64: 1, 1, 128>}]} {
    %c0_i32 = arith.constant 0 : i32
    %0 = arith.cmpi eq, %arg1, %c0_i32 : i32
    %1 = arith.extui %0 : i1 to i32
    %c0_i32_0 = arith.constant 0 : i32
    %2 = arith.cmpi ne, %1, %c0_i32_0 : i32
    scf.if %2 {
      %cst_37 = arith.constant 0.000000e+00 : f32
      %72 = vector.broadcast %cst_37 : f32 to vector<1x128xf32>
      %c0_38 = arith.constant 0 : index
      %c0_39 = arith.constant 0 : index
      %73 = vector.load %arg10[%c0_38, %c0_39] : memref<1x128xf32, #tpu.memory_space<vmem>>, vector<1x128xf32>
      tpu.vector_store %arg10[%c0_38, %c0_39], %72 {strides = array<i32>} : memref<1x128xf32, #tpu.memory_space<vmem>>, vector<1x128xf32>,
    } else {
    }
    %c0 = arith.constant 0 : index
    %c0_1 = arith.constant 0 : index
    %c0_2 = arith.constant 0 : index
    %3 = vector.load %arg2[%c0, %c0_1, %c0_2] : memref<1x288x4xbf16, #tpu.memory_space<vmem>>, vector<1x288x4xbf16>
    %4 = vector.shape_cast %3 : vector<1x288x4xbf16> to vector<288x4xbf16>
    %5 = arith.extf %4 : vector<288x4xbf16> to vector<288x4xf32>
    %c0_3 = arith.constant 0 : index
    %c0_4 = arith.constant 0 : index
    %c0_5 = arith.constant 0 : index
    %c0_6 = arith.constant 0 : index
    %6 = vector.load %arg3[%c0_3, %c0_4, %c0_5, %c0_6] : memref<1x1x40x4xbf16, #tpu.memory_space<vmem>>, vector<1x1x40x4xbf16>
    %7 = vector.shape_cast %6 : vector<1x1x40x4xbf16> to vector<40x4xbf16>
    %8 = arith.extf %7 : vector<40x4xbf16> to vector<40x4xf32>
    %9 = tpu.concatenate %5, %8 in 0 : vector<288x4xf32>, vector<40x4xf32> -> vector<328x4xf32>
    %10 = vector.extract_strided_slice %9 {offsets = [0, 0], sizes = [288, 4], strides = [1, 1]} : vector<328x4xf32> to vector<288x4xf32>
    %11 = arith.truncf %10 : vector<288x4xf32> to vector<288x4xbf16>
    %c0_7 = arith.constant 0 : index
    %c0_8 = arith.constant 0 : index
    %12 = vector.load %arg5[%c0_7, %c0_8] : memref<36x128xbf16, #tpu.memory_space<vmem>>, vector<4x128xbf16>
    %cst = arith.constant dense<0.000000e+00> : vector<288x128xf32>
    %13 = tpu.matmul %11, %12, %cst {dimension_numbers = #tpu.dot_dimension_numbers<[1], [0], [0], [1], [0, 0, 1, 1], [], []>} : vector<288x4xbf16>, vector<4x128xbf16>, vector<288x128xf32> -> vector<288x128xf32>
    %14 = vector.extract_strided_slice %9 {offsets = [1, 0], sizes = [288, 4], strides = [1, 1]} : vector<328x4xf32> to vector<288x4xf32>
    %15 = arith.truncf %14 : vector<288x4xf32> to vector<288x4xbf16>
    %c4 = arith.constant 4 : index
    %c0_9 = arith.constant 0 : index
    %16 = vector.load %arg5[%c4, %c0_9] : memref<36x128xbf16, #tpu.memory_space<vmem>>, vector<4x128xbf16>
    %cst_10 = arith.constant dense<0.000000e+00> : vector<288x128xf32>
    %17 = tpu.matmul %15, %16, %cst_10 {dimension_numbers = #tpu.dot_dimension_numbers<[1], [0], [0], [1], [0, 0, 1, 1], [], []>} : vector<288x4xbf16>, vector<4x128xbf16>, vector<288x128xf32> -> vector<288x128xf32>
    %18 = arith.addf %13, %17 : vector<288x128xf32>
    %19 = vector.extract_strided_slice %9 {offsets = [2, 0], sizes = [288, 4], strides = [1, 1]} : vector<328x4xf32> to vector<288x4xf32>
    %20 = arith.truncf %19 : vector<288x4xf32> to vector<288x4xbf16>
    %c8 = arith.constant 8 : index
    %c0_11 = arith.constant 0 : index
    %21 = vector.load %arg5[%c8, %c0_11] : memref<36x128xbf16, #tpu.memory_space<vmem>>, vector<4x128xbf16>
    %cst_12 = arith.constant dense<0.000000e+00> : vector<288x128xf32>
    %22 = tpu.matmul %20, %21, %cst_12 {dimension_numbers = #tpu.dot_dimension_numbers<[1], [0], [0], [1], [0, 0, 1, 1], [], []>} : vector<288x4xbf16>, vector<4x128xbf16>, vector<288x128xf32> -> vector<288x128xf32>
    %23 = arith.addf %18, %22 : vector<288x128xf32>
    %24 = vector.extract_strided_slice %9 {offsets = [18, 0], sizes = [288, 4], strides = [1, 1]} : vector<328x4xf32> to vector<288x4xf32>
    %25 = arith.truncf %24 : vector<288x4xf32> to vector<288x4xbf16>
    %c12 = arith.constant 12 : index
    %c0_13 = arith.constant 0 : index
    %26 = vector.load %arg5[%c12, %c0_13] : memref<36x128xbf16, #tpu.memory_space<vmem>>, vector<4x128xbf16>
    %cst_14 = arith.constant dense<0.000000e+00> : vector<288x128xf32>
    %27 = tpu.matmul %25, %26, %cst_14 {dimension_numbers = #tpu.dot_dimension_numbers<[1], [0], [0], [1], [0, 0, 1, 1], [], []>} : vector<288x4xbf16>, vector<4x128xbf16>, vector<288x128xf32> -> vector<288x128xf32>
    %28 = arith.addf %23, %27 : vector<288x128xf32>
    %29 = vector.extract_strided_slice %9 {offsets = [19, 0], sizes = [288, 4], strides = [1, 1]} : vector<328x4xf32> to vector<288x4xf32>
    %30 = arith.truncf %29 : vector<288x4xf32> to vector<288x4xbf16>
    %c16 = arith.constant 16 : index
    %c0_15 = arith.constant 0 : index
    %31 = vector.load %arg5[%c16, %c0_15] : memref<36x128xbf16, #tpu.memory_space<vmem>>, vector<4x128xbf16>
    %cst_16 = arith.constant dense<0.000000e+00> : vector<288x128xf32>
    %32 = tpu.matmul %30, %31, %cst_16 {dimension_numbers = #tpu.dot_dimension_numbers<[1], [0], [0], [1], [0, 0, 1, 1], [], []>} : vector<288x4xbf16>, vector<4x128xbf16>, vector<288x128xf32> -> vector<288x128xf32>
    %33 = arith.addf %28, %32 : vector<288x128xf32>
    %34 = vector.extract_strided_slice %9 {offsets = [20, 0], sizes = [288, 4], strides = [1, 1]} : vector<328x4xf32> to vector<288x4xf32>
    %35 = arith.truncf %34 : vector<288x4xf32> to vector<288x4xbf16>
    %c20 = arith.constant 20 : index
    %c0_17 = arith.constant 0 : index
    %36 = vector.load %arg5[%c20, %c0_17] : memref<36x128xbf16, #tpu.memory_space<vmem>>, vector<4x128xbf16>
    %cst_18 = arith.constant dense<0.000000e+00> : vector<288x128xf32>
    %37 = tpu.matmul %35, %36, %cst_18 {dimension_numbers = #tpu.dot_dimension_numbers<[1], [0], [0], [1], [0, 0, 1, 1], [], []>} : vector<288x4xbf16>, vector<4x128xbf16>, vector<288x128xf32> -> vector<288x128xf32>
    %38 = arith.addf %33, %37 : vector<288x128xf32>
    %39 = vector.extract_strided_slice %9 {offsets = [36, 0], sizes = [288, 4], strides = [1, 1]} : vector<328x4xf32> to vector<288x4xf32>
    %40 = arith.truncf %39 : vector<288x4xf32> to vector<288x4xbf16>
    %c24 = arith.constant 24 : index
    %c0_19 = arith.constant 0 : index
    %41 = vector.load %arg5[%c24, %c0_19] : memref<36x128xbf16, #tpu.memory_space<vmem>>, vector<4x128xbf16>
    %cst_20 = arith.constant dense<0.000000e+00> : vector<288x128xf32>
    %42 = tpu.matmul %40, %41, %cst_20 {dimension_numbers = #tpu.dot_dimension_numbers<[1], [0], [0], [1], [0, 0, 1, 1], [], []>} : vector<288x4xbf16>, vector<4x128xbf16>, vector<288x128xf32> -> vector<288x128xf32>
    %43 = arith.addf %38, %42 : vector<288x128xf32>
    %44 = vector.extract_strided_slice %9 {offsets = [37, 0], sizes = [288, 4], strides = [1, 1]} : vector<328x4xf32> to vector<288x4xf32>
    %45 = arith.truncf %44 : vector<288x4xf32> to vector<288x4xbf16>
    %c28 = arith.constant 28 : index
    %c0_21 = arith.constant 0 : index
    %46 = vector.load %arg5[%c28, %c0_21] : memref<36x128xbf16, #tpu.memory_space<vmem>>, vector<4x128xbf16>
    %cst_22 = arith.constant dense<0.000000e+00> : vector<288x128xf32>
    %47 = tpu.matmul %45, %46, %cst_22 {dimension_numbers = #tpu.dot_dimension_numbers<[1], [0], [0], [1], [0, 0, 1, 1], [], []>} : vector<288x4xbf16>, vector<4x128xbf16>, vector<288x128xf32> -> vector<288x128xf32>
    %48 = arith.addf %43, %47 : vector<288x128xf32>
    %49 = vector.extract_strided_slice %9 {offsets = [38, 0], sizes = [288, 4], strides = [1, 1]} : vector<328x4xf32> to vector<288x4xf32>
    %50 = arith.truncf %49 : vector<288x4xf32> to vector<288x4xbf16>
    %c32 = arith.constant 32 : index
    %c0_23 = arith.constant 0 : index
    %51 = vector.load %arg5[%c32, %c0_23] : memref<36x128xbf16, #tpu.memory_space<vmem>>, vector<4x128xbf16>
    %cst_24 = arith.constant dense<0.000000e+00> : vector<288x128xf32>
    %52 = tpu.matmul %50, %51, %cst_24 {dimension_numbers = #tpu.dot_dimension_numbers<[1], [0], [0], [1], [0, 0, 1, 1], [], []>} : vector<288x4xbf16>, vector<4x128xbf16>, vector<288x128xf32> -> vector<288x128xf32>
    %53 = arith.addf %48, %52 : vector<288x128xf32>
    %c0_25 = arith.constant 0 : index
    %c0_26 = arith.constant 0 : index
    %54 = vector.load %arg6[%c0_25, %c0_26] : memref<1x128xf32, #tpu.memory_space<vmem>>, vector<1x128xf32>
    %55 = vector.broadcast %54 : vector<1x128xf32> to vector<288x128xf32>
    %56 = arith.addf %53, %55 : vector<288x128xf32>
    %cst_27 = arith.constant 9.99999997E-7 : f32
    %57 = vector.broadcast %cst_27 : f32 to vector<288x128xf32>
    %58 = arith.maximumf %56, %57 : vector<288x128xf32>
    %c0_28 = arith.constant 0 : index
    %c0_29 = arith.constant 0 : index
    %59 = vector.load %arg4[%c0_28, %c0_29] : memref<288x1xf32, #tpu.memory_space<vmem>>, vector<288x1xf32>
    %60 = vector.broadcast %59 : vector<288x1xf32> to vector<288x128xf32>
    %61 = arith.mulf %58, %60 : vector<288x128xf32>
    %62 = arith.mulf %58, %58 : vector<288x128xf32>
    %63 = arith.mulf %61, %62 : vector<288x128xf32>
    %c0_30 = arith.constant 0 : index
    %c0_31 = arith.constant 0 : index
    %64 = vector.load %arg10[%c0_30, %c0_31] : memref<1x128xf32, #tpu.memory_space<vmem>>, vector<1x128xf32>
    %cst_32 = arith.constant dense<0.000000e+00> : vector<128xf32>
    %65 = vector.multi_reduction <add>, %63, %cst_32 [0] : vector<288x128xf32> to vector<128xf32>
    %66 = vector.shape_cast %65 : vector<128xf32> to vector<1x128xf32>
    %67 = arith.addf %64, %66 : vector<1x128xf32>
    %c0_33 = arith.constant 0 : index
    %c0_34 = arith.constant 0 : index
    %68 = vector.load %arg10[%c0_33, %c0_34] : memref<1x128xf32, #tpu.memory_space<vmem>>, vector<1x128xf32>
    tpu.vector_store %arg10[%c0_33, %c0_34], %67 {strides = array<i32>} : memref<1x128xf32, #tpu.memory_space<vmem>>, vector<1x128xf32>,
    %c0_i32_35 = arith.constant 0 : i32
    %69 = arith.cmpi eq, %arg1, %c0_i32_35 : i32
    %70 = arith.extui %69 : i1 to i32
    %c0_i32_36 = arith.constant 0 : i32
    %71 = arith.cmpi ne, %70, %c0_i32_36 : i32
    scf.if %71 {
      %c0_37 = arith.constant 0 : index
      %c0_38 = arith.constant 0 : index
      %72 = vector.load %arg10[%c0_37, %c0_38] : memref<1x128xf32, #tpu.memory_space<vmem>>, vector<1x128xf32>
      %cst_39 = arith.constant 3.906250e-03 : f32
      %73 = vector.broadcast %cst_39 : f32 to vector<1x128xf32>
      %74 = arith.mulf %72, %73 : vector<1x128xf32>
      %75 = math.log %74 : vector<1x128xf32>
      %cst_40 = arith.constant 0.333333343 : f32
      %76 = vector.broadcast %cst_40 : f32 to vector<1x128xf32>
      %77 = arith.mulf %75, %76 : vector<1x128xf32>
      %78 = math.exp %77 : vector<1x128xf32>
      %79 = tpu.iota {dimensions = array<i32: 1>} : vector<1x128xi32>
      %c32_i32 = arith.constant 32 : i32
      %80 = vector.broadcast %c32_i32 : i32 to vector<1x128xi32>
      %81 = arith.cmpi slt, %79, %80 : vector<1x128xi32>
      %cst_41 = arith.constant 0.000000e+00 : f32
      %82 = vector.broadcast %cst_41 : f32 to vector<1x128xf32>
      %83 = arith.select %81, %78, %82 : vector<1x128xi1>, vector<1x128xf32>
      %84 = arith.mulf %83, %83 : vector<1x128xf32>
      %cst_42 = arith.constant dense<0.000000e+00> : vector<1xf32>
      %85 = vector.multi_reduction <add>, %84, %cst_42 [1] : vector<1x128xf32> to vector<1xf32>
      %86 = vector.shape_cast %85 : vector<1xf32> to vector<1x1xf32>
      %87 = math.sqrt %86 : vector<1x1xf32>
      %cst_43 = arith.constant 9.99999997E-7 : f32
      %88 = vector.broadcast %cst_43 : f32 to vector<1x1xf32>
      %89 = arith.addf %87, %88 : vector<1x1xf32>
      %90 = vector.broadcast %89 : vector<1x1xf32> to vector<1x128xf32>
      %91 = arith.divf %83, %90 : vector<1x128xf32>
      %92 = arith.truncf %91 : vector<1x128xf32> to vector<1x128xbf16>
      %c0_44 = arith.constant 0 : index
      %c0_45 = arith.constant 0 : index
      %93 = vector.load %arg7[%c0_44, %c0_45] : memref<128x128xbf16, #tpu.memory_space<vmem>>, vector<128x128xbf16>
      %cst_46 = arith.constant dense<0.000000e+00> : vector<1x128xf32>
      %94 = tpu.matmul %92, %93, %cst_46 {dimension_numbers = #tpu.dot_dimension_numbers<[1], [0], [0], [1], [0, 0, 1, 1], [], []>} : vector<1x128xbf16>, vector<128x128xbf16>, vector<1x128xf32> -> vector<1x128xf32>
      %c0_47 = arith.constant 0 : index
      %c0_48 = arith.constant 0 : index
      %95 = vector.load %arg8[%c0_47, %c0_48] : memref<1x128xf32, #tpu.memory_space<vmem>>, vector<1x128xf32>
      %96 = arith.addf %94, %95 : vector<1x128xf32>
      %97 = arith.mulf %96, %96 : vector<1x128xf32>
      %cst_49 = arith.constant dense<0.000000e+00> : vector<1xf32>
      %98 = vector.multi_reduction <add>, %97, %cst_49 [1] : vector<1x128xf32> to vector<1xf32>
      %99 = vector.shape_cast %98 : vector<1xf32> to vector<1x1xf32>
      %100 = math.sqrt %99 : vector<1x1xf32>
      %cst_50 = arith.constant 9.99999997E-7 : f32
      %101 = vector.broadcast %cst_50 : f32 to vector<1x1xf32>
      %102 = arith.addf %100, %101 : vector<1x1xf32>
      %103 = vector.broadcast %102 : vector<1x1xf32> to vector<1x128xf32>
      %104 = arith.divf %96, %103 : vector<1x128xf32>
      %105 = vector.shape_cast %104 : vector<1x128xf32> to vector<1x1x128xf32>
      %c0_51 = arith.constant 0 : index
      %c0_52 = arith.constant 0 : index
      %c0_53 = arith.constant 0 : index
      %106 = vector.load %arg9[%c0_51, %c0_52, %c0_53] : memref<1x1x128xf32, #tpu.memory_space<vmem>>, vector<1x1x128xf32>
      tpu.vector_store %arg9[%c0_51, %c0_52, %c0_53], %105 {strides = array<i32>} : memref<1x1x128xf32, #tpu.memory_space<vmem>>, vector<1x1x128xf32>,
    } else {
    }
    return
  }
  func.func @transform_0(%arg0: i32, %arg1: i32) -> (i32, i32, i32) {
    %c0_i32 = arith.constant 0 : i32
    %c0_i32_0 = arith.constant 0 : i32
    return %arg0, %arg1, %c0_i32 : i32, i32, i32
  }
  func.func @transform_1(%arg0: i32, %arg1: i32) -> (i32, i32, i32, i32) {
    %c0_i32 = arith.constant 0 : i32
    %c0_i32_0 = arith.constant 0 : i32
    %c0_i32_1 = arith.constant 0 : i32
    return %arg0, %arg1, %c0_i32, %c0_i32_0 : i32, i32, i32, i32
  }
  func.func @transform_2(%arg0: i32, %arg1: i32) -> (i32, i32) {
    %c0_i32 = arith.constant 0 : i32
    %c0_i32_0 = arith.constant 0 : i32
    %c0_i32_1 = arith.constant 0 : i32
    return %c0_i32, %c0_i32_0 : i32, i32
  }
  func.func @transform_3(%arg0: i32, %arg1: i32) -> (i32, i32) {
    %c0_i32 = arith.constant 0 : i32
    %c0_i32_0 = arith.constant 0 : i32
    %c0_i32_1 = arith.constant 0 : i32
    return %c0_i32, %c0_i32_0 : i32, i32
  }
  func.func @transform_4(%arg0: i32, %arg1: i32) -> (i32, i32) {
    %c0_i32 = arith.constant 0 : i32
    %c0_i32_0 = arith.constant 0 : i32
    %c0_i32_1 = arith.constant 0 : i32
    return %c0_i32, %c0_i32_0 : i32, i32
  }
  func.func @transform_5(%arg0: i32, %arg1: i32) -> (i32, i32) {
    %c0_i32 = arith.constant 0 : i32
    %c0_i32_0 = arith.constant 0 : i32
    %c0_i32_1 = arith.constant 0 : i32
    return %c0_i32, %c0_i32_0 : i32, i32
  }
  func.func @transform_6(%arg0: i32, %arg1: i32) -> (i32, i32) {
    %c0_i32 = arith.constant 0 : i32
    %c0_i32_0 = arith.constant 0 : i32
    %c0_i32_1 = arith.constant 0 : i32
    return %c0_i32, %c0_i32_0 : i32, i32
  }
  func.func @transform_7(%arg0: i32, %arg1: i32) -> (i32, i32, i32) {
    %c0_i32 = arith.constant 0 : i32
    %c0_i32_0 = arith.constant 0 : i32
    %c0_i32_1 = arith.constant 0 : i32
    return %arg0, %c0_i32, %c0_i32_0 : i32, i32, i32
  }
}

</mosaic_0001>

<llo_original>
// kernel: tpu_custom_call.1
$region0: #{tpu_custom_call.1}
  #allocation0 [shape = 'u32[]', space=smem, size = 0x4, offset = 0x4, fixed_abs, tag = 'smem constant byte address 0x4 - core index']
  #allocation1 [shape = 'u32[144,128]{1,0:T(1,128)}', space=vmem, size = 0x12000, scoped, tag = 'internal scratch']
  #allocation2 [shape = 'f32[1,128]{1,0:T(1,128)}', space=vmem, size = 0x200, scoped, tag = 'scratch operand']
  %s0 = inlined_call_operand.vmem [shape: bf16[2,288,4], index: 0, kind: input, shape index: {}]
  %s1 = inlined_call_operand.vmem [shape: bf16[2,1,40,4], index: 1, kind: input, shape index: {}]
  %s2 = inlined_call_operand.vmem [shape: f32[288,1], index: 2, kind: input, shape index: {}]
  %s3 = inlined_call_operand.vmem [shape: bf16[36,128], index: 3, kind: input, shape index: {}]
  %s4 = inlined_call_operand.vmem [shape: f32[1,128], index: 4, kind: input, shape index: {}]
  %s5 = inlined_call_operand.vmem [shape: bf16[128,128], index: 5, kind: input, shape index: {}]
  %s6 = inlined_call_operand.vmem [shape: f32[1,128], index: 6, kind: input, shape index: {}]
  %s7 = inlined_call_operand.hbm [shape: f32[2,1,128], index: 7, kind: output, shape index: {}]
  %s8 = sld [smem:[#allocation0]]
  $region69: #{tpu_custom_call.1} parent=0
    _
  %s10 = ssub.s32 1, %s8
  %s11 = scalar_select 0, %s10, %s8
  $region1: #{tpu_custom_call.1} parent=0
    #allocation3 [shape = 'u8[1024]{0}', space=vmem, size = 0x400, scoped, tag = 'output window, operand 0']
    #allocation4 [shape = 's32[2]{0}', space=sflag, size = 0x8, scoped, tag = 'scoped memory for tpu_custom_call.1']
    %12 = vsyncpa [#allocation4], 0
    %s13 = scalar_lea.sflag [#allocation4], 1
    %14 = vsyncpa %s13, 0
    loop: start=0, step=1, limit=4
    $region2: #{tpu_custom_call.1} parent=1 // loop_pre_header
      _
    $region3: #{tpu_custom_call.1} parent=1 // loop_header
      %s16 = sphi 0, %s20
      %p17 = scmp.ge.s32.totalorder %s16, 4
      %s23 = sphi 0, %s35
      %s24 = sphi 0, %s31
      %s25 = sphi 0, %s23
      %s26 = sphi 0, %s24
      %s27 = sphi 0, %s25
      %s28 = sphi 0, %s26
      %s40 = sphi 0, %s42
      %s43 = sphi 0, %s40
      %s44 = sphi 0, %s43
      %s60 = sphi 0, %s44
      %s68 = sphi 0, %s70
      %s71 = sphi 0, %s68
      %s72 = sphi 0, %s71
      %s88 = sphi 0, %s72
      %s92 = sphi 0, %s92
      %s94 = sphi 0, %s92
      %s95 = sphi 0, %s94
      %s109 = sphi 0, %s95
      %s113 = sphi 0, %s113
      %s115 = sphi 0, %s113
      %s116 = sphi 0, %s115
      %s130 = sphi 0, %s116
      %s134 = sphi 0, %s134
      %s136 = sphi 0, %s134
      %s137 = sphi 0, %s136
      %s151 = sphi 0, %s137
      %s155 = sphi 0, %s155
      %s157 = sphi 0, %s155
      %s158 = sphi 0, %s157
      %s172 = sphi 0, %s158
      %s176 = sphi 0, %s176
      %s178 = sphi 0, %s176
      %s179 = sphi 0, %s178
      %s193 = sphi 0, %s179
      %s199 = sphi 0, %s201
      %s202 = sphi 0, %s199
      %s203 = sphi 0, %s202
      %s219 = sphi 0, %s203
    $region4: #{tpu_custom_call.1} parent=1 // loop_header_branch
      %19 = sbr.rel (%p17) target = $region8
    $region5: #{tpu_custom_call.1} parent=1 // loop_body
      %s21 = ssub.s32 %s16, 1
      %s22 = ssub.s32 %s16, 2
      %s29 = sadd.s32 1, %s24
      %p30 = scmp.ge.s32.totalorder %s29, 1
      %s31 = scalar_select %p30, 0, %s29
      %s32 = sadd.s32 1, %s23
      %s33 = scalar_select %p30, %s32, %s23
      %p34 = scmp.ge.s32.totalorder %s33, 2
      %s35 = scalar_select %p34, 0, %s33
      %s36 = ssub.s32 %s23, %s35
      %s37 = ssub.s32 %s24, %s31
      %s38 = sor.u32 %s36, %s37
      %p39 = scmp.eq.s32.totalorder %s38, 0
      %s41 = sadd.s32 %s40, 1
      %s42 = scalar_select %p39, %s40, %s41
      %p45 = pneg %p39
      %p46 = scmp.eq.s32.totalorder %s16, 1
      %p47 = por %p45, %p46
      %p48 = scmp.ne.s32.totalorder %s40, %s43
      %p49 = scmp.eq.s32.totalorder %s16, 0
      %p50 = por %p48, %p49
      %p51 = scmp.ne.s32.totalorder %s40, %s43
      %p52 = scmp.eq.s32.totalorder %s21, 1
      %p53 = por %p51, %p52
      %p54 = scmp.ne.s32.totalorder %s43, %s44
      %p55 = scmp.eq.s32.totalorder %s21, 0
      %p56 = por %p54, %p55
      %p57 = scmp.ne.s32.totalorder %s43, %s44
      %p58 = scmp.eq.s32.totalorder %s22, 1
      %p59 = por %p57, %p58
      %p61 = scmp.ne.s32.totalorder %s44, %s60
      %p62 = scmp.eq.s32.totalorder %s22, 0
      %p63 = por %p61, %p62
      %s64 = ssub.s32 %s23, %s35
      %s65 = ssub.s32 %s24, %s31
      %s66 = sor.u32 %s64, %s65
      %p67 = scmp.eq.s32.totalorder %s66, 0
      %s69 = sadd.s32 %s68, 1
      %s70 = scalar_select %p67, %s68, %s69
      %p73 = pneg %p67
      %p74 = scmp.eq.s32.totalorder %s16, 1
      %p75 = por %p73, %p74
      %p76 = scmp.ne.s32.totalorder %s68, %s71
      %p77 = scmp.eq.s32.totalorder %s16, 0
      %p78 = por %p76, %p77
      %p79 = scmp.ne.s32.totalorder %s68, %s71
      %p80 = scmp.eq.s32.totalorder %s21, 1
      %p81 = por %p79, %p80
      %p82 = scmp.ne.s32.totalorder %s71, %s72
      %p83 = scmp.eq.s32.totalorder %s21, 0
      %p84 = por %p82, %p83
      %p85 = scmp.ne.s32.totalorder %s71, %s72
      %p86 = scmp.eq.s32.totalorder %s22, 1
      %p87 = por %p85, %p86
      %p89 = scmp.ne.s32.totalorder %s72, %s88
      %p90 = scmp.eq.s32.totalorder %s22, 0
      %p91 = por %p89, %p90
      %s93 = sadd.s32 %s92, 1
      %p96 = scmp.eq.s32.totalorder %s16, 1
      %p97 = scmp.ne.s32.totalorder %s92, %s94
      %p98 = scmp.eq.s32.totalorder %s16, 0
      %p99 = por %p97, %p98
      %p100 = scmp.ne.s32.totalorder %s92, %s94
      %p101 = scmp.eq.s32.totalorder %s21, 1
      %p102 = por %p100, %p101
      %p103 = scmp.ne.s32.totalorder %s94, %s95
      %p104 = scmp.eq.s32.totalorder %s21, 0
      %p105 = por %p103, %p104
      %p106 = scmp.ne.s32.totalorder %s94, %s95
      %p107 = scmp.eq.s32.totalorder %s22, 1
      %p108 = por %p106, %p107
      %p110 = scmp.ne.s32.totalorder %s95, %s109
      %p111 = scmp.eq.s32.totalorder %s22, 0
      %p112 = por %p110, %p111
      %s114 = sadd.s32 %s113, 1
      %p117 = scmp.eq.s32.totalorder %s16, 1
      %p118 = scmp.ne.s32.totalorder %s113, %s115
      %p119 = scmp.eq.s32.totalorder %s16, 0
      %p120 = por %p118, %p119
      %p121 = scmp.ne.s32.totalorder %s113, %s115
      %p122 = scmp.eq.s32.totalorder %s21, 1
      %p123 = por %p121, %p122
      %p124 = scmp.ne.s32.totalorder %s115, %s116
      %p125 = scmp.eq.s32.totalorder %s21, 0
      %p126 = por %p124, %p125
      %p127 = scmp.ne.s32.totalorder %s115, %s116
      %p128 = scmp.eq.s32.totalorder %s22, 1
      %p129 = por %p127, %p128
      %p131 = scmp.ne.s32.totalorder %s116, %s130
      %p132 = scmp.eq.s32.totalorder %s22, 0
      %p133 = por %p131, %p132
      %s135 = sadd.s32 %s134, 1
      %p138 = scmp.eq.s32.totalorder %s16, 1
      %p139 = scmp.ne.s32.totalorder %s134, %s136
      %p140 = scmp.eq.s32.totalorder %s16, 0
      %p141 = por %p139, %p140
      %p142 = scmp.ne.s32.totalorder %s134, %s136
      %p143 = scmp.eq.s32.totalorder %s21, 1
      %p144 = por %p142, %p143
      %p145 = scmp.ne.s32.totalorder %s136, %s137
      %p146 = scmp.eq.s32.totalorder %s21, 0
      %p147 = por %p145, %p146
      %p148 = scmp.ne.s32.totalorder %s136, %s137
      %p149 = scmp.eq.s32.totalorder %s22, 1
      %p150 = por %p148, %p149
      %p152 = scmp.ne.s32.totalorder %s137, %s151
      %p153 = scmp.eq.s32.totalorder %s22, 0
      %p154 = por %p152, %p153
      %s156 = sadd.s32 %s155, 1
      %p159 = scmp.eq.s32.totalorder %s16, 1
      %p160 = scmp.ne.s32.totalorder %s155, %s157
      %p161 = scmp.eq.s32.totalorder %s16, 0
      %p162 = por %p160, %p161
      %p163 = scmp.ne.s32.totalorder %s155, %s157
      %p164 = scmp.eq.s32.totalorder %s21, 1
      %p165 = por %p163, %p164
      %p166 = scmp.ne.s32.totalorder %s157, %s158
      %p167 = scmp.eq.s32.totalorder %s21, 0
      %p168 = por %p166, %p167
      %p169 = scmp.ne.s32.totalorder %s157, %s158
      %p170 = scmp.eq.s32.totalorder %s22, 1
      %p171 = por %p169, %p170
      %p173 = scmp.ne.s32.totalorder %s158, %s172
      %p174 = scmp.eq.s32.totalorder %s22, 0
      %p175 = por %p173, %p174
      %s177 = sadd.s32 %s176, 1
      %p180 = scmp.eq.s32.totalorder %s16, 1
      %p181 = scmp.ne.s32.totalorder %s176, %s178
      %p182 = scmp.eq.s32.totalorder %s16, 0
      %p183 = por %p181, %p182
      %p184 = scmp.ne.s32.totalorder %s176, %s178
      %p185 = scmp.eq.s32.totalorder %s21, 1
      %p186 = por %p184, %p185
      %p187 = scmp.ne.s32.totalorder %s178, %s179
      %p188 = scmp.eq.s32.totalorder %s21, 0
      %p189 = por %p187, %p188
      %p190 = scmp.ne.s32.totalorder %s178, %s179
      %p191 = scmp.eq.s32.totalorder %s22, 1
      %p192 = por %p190, %p191
      %p194 = scmp.ne.s32.totalorder %s179, %s193
      %p195 = scmp.eq.s32.totalorder %s22, 0
      %p196 = por %p194, %p195
      %s197 = ssub.s32 %s23, %s35
      %p198 = scmp.eq.s32.totalorder %s197, 0
      %s200 = sadd.s32 %s199, 1
      %s201 = scalar_select %p198, %s199, %s200
      %p204 = pneg %p198
      %p205 = scmp.eq.s32.totalorder %s16, 1
      %p206 = por %p204, %p205
      %p207 = scmp.ne.s32.totalorder %s199, %s202
      %p208 = scmp.eq.s32.totalorder %s16, 0
      %p209 = por %p207, %p208
      %p210 = scmp.ne.s32.totalorder %s199, %s202
      %p211 = scmp.eq.s32.totalorder %s21, 1
      %p212 = por %p210, %p211
      %p213 = scmp.ne.s32.totalorder %s202, %s203
      %p214 = scmp.eq.s32.totalorder %s21, 0
      %p215 = por %p213, %p214
      %p216 = scmp.ne.s32.totalorder %s202, %s203
      %p217 = scmp.eq.s32.totalorder %s22, 1
      %p218 = por %p216, %p217
      %p220 = scmp.ne.s32.totalorder %s203, %s219
      %p221 = scmp.eq.s32.totalorder %s22, 0
      %p222 = por %p220, %p221
      %p223 = scmp.le.s32.totalorder 1, %s16
      %p224 = scmp.lt.s32.totalorder %s16, 3
      %p225 = pnand %p223, %p224
      %p226 = pneg %p225
      // Predicated region
      $region9: #{tpu_custom_call.1} parent=5 // pred_check
        _
      $region10: #{tpu_custom_call.1} parent=5 // pred_check_branch
        %228 = sbr.rel (%p225) target = $region12
      $region11: #{tpu_custom_call.1} parent=5 // pred_region
        %s229 = ssub.s32 %s16, 1
        // Predicated region
        $region13: #{tpu_custom_call.1} parent=11 // pred_check
          %p230 = pneg %p105
        $region14: #{tpu_custom_call.1} parent=11 // pred_check_branch
          %232 = sbr.rel (%p230) target = $region16
        $region15: #{tpu_custom_call.1} parent=11 // pred_region
          _
        $region16: #{tpu_custom_call.1} parent=11 // pred_fallthru
          _
        // Predicated region
        $region17: #{tpu_custom_call.1} parent=11 // pred_check
          %p233 = pneg %p126
        $region18: #{tpu_custom_call.1} parent=11 // pred_check_branch
          %235 = sbr.rel (%p233) target = $region20
        $region19: #{tpu_custom_call.1} parent=11 // pred_region
          _
        $region20: #{tpu_custom_call.1} parent=11 // pred_fallthru
          _
        // Predicated region
        $region21: #{tpu_custom_call.1} parent=11 // pred_check
          %p236 = pneg %p147
        $region22: #{tpu_custom_call.1} parent=11 // pred_check_branch
          %238 = sbr.rel (%p236) target = $region24
        $region23: #{tpu_custom_call.1} parent=11 // pred_region
          _
        $region24: #{tpu_custom_call.1} parent=11 // pred_fallthru
          _
        // Predicated region
        $region25: #{tpu_custom_call.1} parent=11 // pred_check
          %p239 = pneg %p168
        $region26: #{tpu_custom_call.1} parent=11 // pred_check_branch
          %241 = sbr.rel (%p239) target = $region28
        $region27: #{tpu_custom_call.1} parent=11 // pred_region
          _
        $region28: #{tpu_custom_call.1} parent=11 // pred_fallthru
          _
        // Predicated region
        $region29: #{tpu_custom_call.1} parent=11 // pred_check
          %p242 = pneg %p189
        $region30: #{tpu_custom_call.1} parent=11 // pred_check_branch
          %244 = sbr.rel (%p242) target = $region32
        $region31: #{tpu_custom_call.1} parent=11 // pred_region
          _
        $region32: #{tpu_custom_call.1} parent=11 // pred_fallthru
          _
      $region12: #{tpu_custom_call.1} parent=5 // pred_fallthru
        _
      %p245 = scmp.lt.s32.totalorder %s16, 2
      // Predicated region
      $region33: #{tpu_custom_call.1} parent=5 // pred_check
        %p246 = pneg %p245
      $region34: #{tpu_custom_call.1} parent=5 // pred_check_branch
        %248 = sbr.rel (%p246) target = $region36
      $region35: #{tpu_custom_call.1} parent=5 // pred_region
        // Predicated region
        $region37: #{tpu_custom_call.1} parent=35 // pred_check
          %p249 = pneg %p50
        $region38: #{tpu_custom_call.1} parent=35 // pred_check_branch
          %251 = sbr.rel (%p249) target = $region40
        $region39: #{tpu_custom_call.1} parent=35 // pred_region
          %s252 = smul.u32 36, %s24
          %p253 = scmp.lt.s32.totalorder %s23, 1
          %s254 = scalar_select %p253, %s23, 1
          %p255 = scmp.lt.s32.totalorder %s252, 35
          %s256 = scalar_select %p255, %s252, 35
          %s257 = smul.addr %s254, 36
          %s258 = sadd.s32 %s256, %s257
          %s259 = smul.addr %s258, 4
          %s260 = scalar_lea.vmem %s0, %s259
          %s261 = smul.u32 36, %s24
        $region40: #{tpu_custom_call.1} parent=35 // pred_fallthru
          _
        // Predicated region
        $region41: #{tpu_custom_call.1} parent=35 // pred_check
          %p262 = pneg %p78
        $region42: #{tpu_custom_call.1} parent=35 // pred_check_branch
          %264 = sbr.rel (%p262) target = $region44
        $region43: #{tpu_custom_call.1} parent=35 // pred_region
          %p265 = scmp.lt.s32.totalorder %s23, 1
          %s266 = scalar_select %p265, %s23, 1
          %p267 = scmp.lt.s32.totalorder %s24, 0
          %s268 = scalar_select %p267, %s24, 0
          %s269 = smul.addr %s268, 5
          %s270 = smul.addr %s266, 5
          %s271 = sadd.s32 %s269, %s270
          %s272 = smul.addr %s271, 4
          %s273 = scalar_lea.vmem %s1, %s272
        $region44: #{tpu_custom_call.1} parent=35 // pred_fallthru
          _
      $region36: #{tpu_custom_call.1} parent=5 // pred_fallthru
        _
      %p274 = scmp.le.s32.totalorder 1, %s16
      %p275 = scmp.lt.s32.totalorder %s16, 3
      %p276 = pnand %p274, %p275
      %p277 = pneg %p276
      // Predicated region
      $region45: #{tpu_custom_call.1} parent=5 // pred_check
        _
      $region46: #{tpu_custom_call.1} parent=5 // pred_check_branch
        %279 = sbr.rel (%p276) target = $region48
      $region47: #{tpu_custom_call.1} parent=5 // pred_region
        %s280 = ssub.s32 %s16, 1
        %s281 = smul.u32 36, %s26
        %p282 = scmp.lt.s32.totalorder %s25, 1
        %s283 = scalar_select %p282, %s25, 1
        %p284 = scmp.lt.s32.totalorder %s281, 35
        %s285 = scalar_select %p284, %s281, 35
        %s286 = smul.addr %s283, 36
        %s287 = sadd.s32 %s285, %s286
        %s288 = smul.addr %s287, 4
        %s289 = scalar_lea.vmem %s0, %s288
        %p290 = pneg %p56
        %p291 = pneg %p53
        %p292 = scmp.lt.s32.totalorder %s25, 1
        %s293 = scalar_select %p292, %s25, 1
        %p294 = scmp.lt.s32.totalorder %s26, 0
        %s295 = scalar_select %p294, %s26, 0
        %s296 = smul.addr %s295, 5
        %s297 = smul.addr %s293, 5
        %s298 = sadd.s32 %s296, %s297
        %s299 = smul.addr %s298, 4
        %s300 = scalar_lea.vmem %s1, %s299
        %p301 = pneg %p84
        %p302 = pneg %p81
        %p303 = pneg %p105
        %p304 = pneg %p102
        %p305 = pneg %p126
        %p306 = pneg %p123
        %p307 = pneg %p147
        %p308 = pneg %p144
        %p309 = pneg %p168
        %p310 = pneg %p165
        %p311 = pneg %p189
        %p312 = pneg %p186
        %p313 = pneg %p215
        %p314 = pneg %p212
        %s315 = sand.u32 %s202, 1
        %s316 = scalar_lea.sflag [#allocation4], %s315
        %s317 = sand.u32 %s202, 1
        %s318 = scalar_lea.vmem [#allocation3], %s317
        %s319 = smul.u32 36, %s26
        %p320 = scmp.lt.s32.totalorder %s25, 1
        %s321 = scalar_select %p320, %s25, 1
        %p322 = scmp.lt.s32.totalorder %s319, 35
        %s323 = scalar_select %p322, %s319, 35
        %s324 = smul.addr %s321, 36
        %s325 = sadd.s32 %s323, %s324
        %s326 = smul.addr %s325, 4
        %s327 = scalar_lea.vmem %s0, %s326
        %s328 = smul.u32 36, %s26
        %p329 = scmp.lt.s32.totalorder %s25, 1
        %s330 = scalar_select %p329, %s25, 1
        %p331 = scmp.lt.s32.totalorder %s26, 0
        %s332 = scalar_select %p331, %s26, 0
        %s333 = smul.addr %s332, 5
        %s334 = smul.addr %s330, 5
        %s335 = sadd.s32 %s333, %s334
        %s336 = smul.addr %s335, 4
        %s337 = scalar_lea.vmem %s1, %s336
        %p339 = scmp.eq.s32.totalorder %s26, 0
        // Predicated region
        $region49: #{tpu_custom_call.1} parent=47 // pred_check
          %p340 = pneg %p339
        $region50: #{tpu_custom_call.1} parent=47 // pred_check_branch
          %342 = sbr.rel (%p340) target = $region52
        $region51: #{tpu_custom_call.1} parent=47 // pred_region
          %343 = vst [vmem:[#allocation2] sm:$0x1] 0.0
        $region52: #{tpu_custom_call.1} parent=47 // pred_fallthru
          _
        %v344 = vld [vmem:[%s327] sm:$0xf]
        %v345 = vld [vmem:[%s327 + $0x4] sm:$0xf]
        %v346 = vld [vmem:[%s327 + $0x8] sm:$0xf]
        %v347 = vld [vmem:[%s327 + $0xc] sm:$0xf]
        %v348 = vld [vmem:[%s327 + $0x10] sm:$0xf]
        %v349 = vld [vmem:[%s327 + $0x14] sm:$0xf]
        %v350 = vld [vmem:[%s327 + $0x18] sm:$0xf]
        %v351 = vld [vmem:[%s327 + $0x1c] sm:$0xf]
        %v352 = vld [vmem:[%s327 + $0x20] sm:$0xf]
        %v353 = vld [vmem:[%s327 + $0x24] sm:$0xf]
        %v354 = vld [vmem:[%s327 + $0x28] sm:$0xf]
        %v355 = vld [vmem:[%s327 + $0x2c] sm:$0xf]
        %v356 = vld [vmem:[%s327 + $0x30] sm:$0xf]
        %v357 = vld [vmem:[%s327 + $0x34] sm:$0xf]
        %v358 = vld [vmem:[%s327 + $0x38] sm:$0xf]
        %v359 = vld [vmem:[%s327 + $0x3c] sm:$0xf]
        %v360 = vld [vmem:[%s327 + $0x40] sm:$0xf]
        %v361 = vld [vmem:[%s327 + $0x44] sm:$0xf]
        %v362 = vld [vmem:[%s327 + $0x48] sm:$0xf]
        %v363 = vld [vmem:[%s327 + $0x4c] sm:$0xf]
        %v364 = vld [vmem:[%s327 + $0x50] sm:$0xf]
        %v365 = vld [vmem:[%s327 + $0x54] sm:$0xf]
        %v366 = vld [vmem:[%s327 + $0x58] sm:$0xf]
        %v367 = vld [vmem:[%s327 + $0x5c] sm:$0xf]
        %v368 = vld [vmem:[%s327 + $0x60] sm:$0xf]
        %v369 = vld [vmem:[%s327 + $0x64] sm:$0xf]
        %v370 = vld [vmem:[%s327 + $0x68] sm:$0xf]
        %v371 = vld [vmem:[%s327 + $0x6c] sm:$0xf]
        %v372 = vld [vmem:[%s327 + $0x70] sm:$0xf]
        %v373 = vld [vmem:[%s327 + $0x74] sm:$0xf]
        %v374 = vld [vmem:[%s327 + $0x78] sm:$0xf]
        %v375 = vld [vmem:[%s327 + $0x7c] sm:$0xf]
        %v376 = vld [vmem:[%s327 + $0x80] sm:$0xf]
        %v377 = vld [vmem:[%s327 + $0x84] sm:$0xf]
        %v378 = vld [vmem:[%s327 + $0x88] sm:$0xf]
        %v379 = vld [vmem:[%s327 + $0x8c] sm:$0xf]
        %v380 = vunpack.c.l.bf16 %v344
        %v381 = vunpack.c.l.bf16 %v345
        %v382 = vunpack.c.l.bf16 %v346
        %v383 = vunpack.c.l.bf16 %v347
        %v384 = vunpack.c.l.bf16 %v348
        %v385 = vunpack.c.l.bf16 %v349
        %v386 = vunpack.c.l.bf16 %v350
        %v387 = vunpack.c.l.bf16 %v351
        %v388 = vunpack.c.l.bf16 %v352
        %v389 = vunpack.c.l.bf16 %v353
        %v390 = vunpack.c.l.bf16 %v354
        %v391 = vunpack.c.l.bf16 %v355
        %v392 = vunpack.c.l.bf16 %v356
        %v393 = vunpack.c.l.bf16 %v357
        %v394 = vunpack.c.l.bf16 %v358
        %v395 = vunpack.c.l.bf16 %v359
        %v396 = vunpack.c.l.bf16 %v360
        %v397 = vunpack.c.l.bf16 %v361
        %v398 = vunpack.c.l.bf16 %v362
        %v399 = vunpack.c.l.bf16 %v363
        %v400 = vunpack.c.l.bf16 %v364
        %v401 = vunpack.c.l.bf16 %v365
        %v402 = vunpack.c.l.bf16 %v366
        %v403 = vunpack.c.l.bf16 %v367
        %v404 = vunpack.c.l.bf16 %v368
        %v405 = vunpack.c.l.bf16 %v369
        %v406 = vunpack.c.l.bf16 %v370
        %v407 = vunpack.c.l.bf16 %v371
        %v408 = vunpack.c.l.bf16 %v372
        %v409 = vunpack.c.l.bf16 %v373
        %v410 = vunpack.c.l.bf16 %v374
        %v411 = vunpack.c.l.bf16 %v375
        %v412 = vunpack.c.l.bf16 %v376
        %v413 = vunpack.c.l.bf16 %v377
        %v414 = vunpack.c.l.bf16 %v378
        %v415 = vunpack.c.l.bf16 %v379
        %v416 = vld [vmem:[%s337] sm:$0xf]
        %v417 = vld [vmem:[%s337 + $0x4] sm:$0xf]
        %v418 = vld [vmem:[%s337 + $0x8] sm:$0xf]
        %v419 = vld [vmem:[%s337 + $0xc] sm:$0xf]
        %v420 = vld [vmem:[%s337 + $0x10] sm:$0xf]
        %v421 = vunpack.c.l.bf16 %v416
        %v422 = vunpack.c.l.bf16 %v417
        %v423 = vunpack.c.l.bf16 %v418
        %v424 = vunpack.c.l.bf16 %v419
        %v425 = vunpack.c.l.bf16 %v420
        %vm463 = vcmask 1046528
        %v464 = vrot.slane %v380, 1
        %v465 = vrot.slane %v381, 1
        %v466 = vsel %vm463, %v464, %v465
        %v467 = vrot.slane %v382, 1
        %v468 = vsel %vm463, %v465, %v467
        %v469 = vrot.slane %v383, 1
        %v470 = vsel %vm463, %v467, %v469
        %v471 = vrot.slane %v384, 1
        %v472 = vsel %vm463, %v469, %v471
        %v473 = vrot.slane %v385, 1
        %v474 = vsel %vm463, %v471, %v473
        %v475 = vrot.slane %v386, 1
        %v476 = vsel %vm463, %v473, %v475
        %v477 = vrot.slane %v387, 1
        %v478 = vsel %vm463, %v475, %v477
        %v479 = vrot.slane %v388, 1
        %v480 = vsel %vm463, %v477, %v479
        %v481 = vrot.slane %v389, 1
        %v482 = vsel %vm463, %v479, %v481
        %v483 = vrot.slane %v390, 1
        %v484 = vsel %vm463, %v481, %v483
        %v485 = vrot.slane %v391, 1
        %v486 = vsel %vm463, %v483, %v485
        %v487 = vrot.slane %v392, 1
        %v488 = vsel %vm463, %v485, %v487
        %v489 = vrot.slane %v393, 1
        %v490 = vsel %vm463, %v487, %v489
        %v491 = vrot.slane %v394, 1
        %v492 = vsel %vm463, %v489, %v491
        %v493 = vrot.slane %v395, 1
        %v494 = vsel %vm463, %v491, %v493
        %v495 = vrot.slane %v396, 1
        %v496 = vsel %vm463, %v493, %v495
        %v497 = vrot.slane %v397, 1
        %v498 = vsel %vm463, %v495, %v497
        %v499 = vrot.slane %v398, 1
        %v500 = vsel %vm463, %v497, %v499
        %v501 = vrot.slane %v399, 1
        %v502 = vsel %vm463, %v499, %v501
        %v503 = vrot.slane %v400, 1
        %v504 = vsel %vm463, %v501, %v503
        %v505 = vrot.slane %v401, 1
        %v506 = vsel %vm463, %v503, %v505
        %v507 = vrot.slane %v402, 1
        %v508 = vsel %vm463, %v505, %v507
        %v509 = vrot.slane %v403, 1
        %v510 = vsel %vm463, %v507, %v509
        %v511 = vrot.slane %v404, 1
        %v512 = vsel %vm463, %v509, %v511
        %v513 = vrot.slane %v405, 1
        %v514 = vsel %vm463, %v511, %v513
        %v515 = vrot.slane %v406, 1
        %v516 = vsel %vm463, %v513, %v515
        %v517 = vrot.slane %v407, 1
        %v518 = vsel %vm463, %v515, %v517
        %v519 = vrot.slane %v408, 1
        %v520 = vsel %vm463, %v517, %v519
        %v521 = vrot.slane %v409, 1
        %v522 = vsel %vm463, %v519, %v521
        %v523 = vrot.slane %v410, 1
        %v524 = vsel %vm463, %v521, %v523
        %v525 = vrot.slane %v411, 1
        %v526 = vsel %vm463, %v523, %v525
        %v527 = vrot.slane %v412, 1
        %v528 = vsel %vm463, %v525, %v527
        %v529 = vrot.slane %v413, 1
        %v530 = vsel %vm463, %v527, %v529
        %v531 = vrot.slane %v414, 1
        %v532 = vsel %vm463, %v529, %v531
        %v533 = vrot.slane %v415, 1
        %v534 = vsel %vm463, %v531, %v533
        %v535 = vrot.slane %v421, 1
        %v536 = vsel %vm463, %v533, %v535
        %537 = vrot.lane.b32.xlu0 %v466, 4
        %v538 = vpop.permute.xlu0 %537
        %539 = vrot.lane.b32.xlu0 %v468, 4
        %v540 = vpop.permute.xlu0 %539
        %541 = vrot.lane.b32.xlu0 %v470, 4
        %v542 = vpop.permute.xlu0 %541
        %543 = vrot.lane.b32.xlu0 %v472, 4
        %v544 = vpop.permute.xlu0 %543
        %545 = vrot.lane.b32.xlu0 %v474, 4
        %v546 = vpop.permute.xlu0 %545
        %547 = vrot.lane.b32.xlu0 %v476, 4
        %v548 = vpop.permute.xlu0 %547
        %549 = vrot.lane.b32.xlu0 %v478, 4
        %v550 = vpop.permute.xlu0 %549
        %551 = vrot.lane.b32.xlu0 %v480, 4
        %v552 = vpop.permute.xlu0 %551
        %553 = vrot.lane.b32.xlu0 %v482, 4
        %v554 = vpop.permute.xlu0 %553
        %555 = vrot.lane.b32.xlu0 %v484, 4
        %v556 = vpop.permute.xlu0 %555
        %557 = vrot.lane.b32.xlu0 %v486, 4
        %v558 = vpop.permute.xlu0 %557
        %559 = vrot.lane.b32.xlu0 %v488, 4
        %v560 = vpop.permute.xlu0 %559
        %561 = vrot.lane.b32.xlu0 %v490, 4
        %v562 = vpop.permute.xlu0 %561
        %563 = vrot.lane.b32.xlu0 %v492, 4
        %v564 = vpop.permute.xlu0 %563
        %565 = vrot.lane.b32.xlu0 %v494, 4
        %v566 = vpop.permute.xlu0 %565
        %567 = vrot.lane.b32.xlu0 %v496, 4
        %v568 = vpop.permute.xlu0 %567
        %569 = vrot.lane.b32.xlu0 %v498, 4
        %v570 = vpop.permute.xlu0 %569
        %571 = vrot.lane.b32.xlu0 %v500, 4
        %v572 = vpop.permute.xlu0 %571
        %573 = vrot.lane.b32.xlu0 %v502, 4
        %v574 = vpop.permute.xlu0 %573
        %575 = vrot.lane.b32.xlu0 %v504, 4
        %v576 = vpop.permute.xlu0 %575
        %577 = vrot.lane.b32.xlu0 %v506, 4
        %v578 = vpop.permute.xlu0 %577
        %579 = vrot.lane.b32.xlu0 %v508, 4
        %v580 = vpop.permute.xlu0 %579
        %581 = vrot.lane.b32.xlu0 %v510, 4
        %v582 = vpop.permute.xlu0 %581
        %583 = vrot.lane.b32.xlu0 %v512, 4
        %v584 = vpop.permute.xlu0 %583
        %585 = vrot.lane.b32.xlu0 %v514, 4
        %v586 = vpop.permute.xlu0 %585
        %587 = vrot.lane.b32.xlu0 %v516, 4
        %v588 = vpop.permute.xlu0 %587
        %589 = vrot.lane.b32.xlu0 %v518, 4
        %v590 = vpop.permute.xlu0 %589
        %591 = vrot.lane.b32.xlu0 %v520, 4
        %v592 = vpop.permute.xlu0 %591
        %593 = vrot.lane.b32.xlu0 %v522, 4
        %v594 = vpop.permute.xlu0 %593
        %595 = vrot.lane.b32.xlu0 %v524, 4
        %v596 = vpop.permute.xlu0 %595
        %597 = vrot.lane.b32.xlu0 %v526, 4
        %v598 = vpop.permute.xlu0 %597
        %599 = vrot.lane.b32.xlu0 %v528, 4
        %v600 = vpop.permute.xlu0 %599
        %601 = vrot.lane.b32.xlu0 %v530, 4
        %v602 = vpop.permute.xlu0 %601
        %603 = vrot.lane.b32.xlu0 %v532, 4
        %v604 = vpop.permute.xlu0 %603
        %605 = vrot.lane.b32.xlu0 %v534, 4
        %v606 = vpop.permute.xlu0 %605
        %607 = vrot.lane.b32.xlu0 %v536, 4
        %v608 = vpop.permute.xlu0 %607
        %vm645 = vcmask 1045504
        %v646 = vrot.slane %v380, 2
        %v647 = vrot.slane %v381, 2
        %v648 = vsel %vm645, %v646, %v647
        %v649 = vrot.slane %v382, 2
        %v650 = vsel %vm645, %v647, %v649
        %v651 = vrot.slane %v383, 2
        %v652 = vsel %vm645, %v649, %v651
        %v653 = vrot.slane %v384, 2
        %v654 = vsel %vm645, %v651, %v653
        %v655 = vrot.slane %v385, 2
        %v656 = vsel %vm645, %v653, %v655
        %v657 = vrot.slane %v386, 2
        %v658 = vsel %vm645, %v655, %v657
        %v659 = vrot.slane %v387, 2
        %v660 = vsel %vm645, %v657, %v659
        %v661 = vrot.slane %v388, 2
        %v662 = vsel %vm645, %v659, %v661
        %v663 = vrot.slane %v389, 2
        %v664 = vsel %vm645, %v661, %v663
        %v665 = vrot.slane %v390, 2
        %v666 = vsel %vm645, %v663, %v665
        %v667 = vrot.slane %v391, 2
        %v668 = vsel %vm645, %v665, %v667
        %v669 = vrot.slane %v392, 2
        %v670 = vsel %vm645, %v667, %v669
        %v671 = vrot.slane %v393, 2
        %v672 = vsel %vm645, %v669, %v671
        %v673 = vrot.slane %v394, 2
        %v674 = vsel %vm645, %v671, %v673
        %v675 = vrot.slane %v395, 2
        %v676 = vsel %vm645, %v673, %v675
        %v677 = vrot.slane %v396, 2
        %v678 = vsel %vm645, %v675, %v677
        %v679 = vrot.slane %v397, 2
        %v680 = vsel %vm645, %v677, %v679
        %v681 = vrot.slane %v398, 2
        %v682 = vsel %vm645, %v679, %v681
        %v683 = vrot.slane %v399, 2
        %v684 = vsel %vm645, %v681, %v683
        %v685 = vrot.slane %v400, 2
        %v686 = vsel %vm645, %v683, %v685
        %v687 = vrot.slane %v401, 2
        %v688 = vsel %vm645, %v685, %v687
        %v689 = vrot.slane %v402, 2
        %v690 = vsel %vm645, %v687, %v689
        %v691 = vrot.slane %v403, 2
        %v692 = vsel %vm645, %v689, %v691
        %v693 = vrot.slane %v404, 2
        %v694 = vsel %vm645, %v691, %v693
        %v695 = vrot.slane %v405, 2
        %v696 = vsel %vm645, %v693, %v695
        %v697 = vrot.slane %v406, 2
        %v698 = vsel %vm645, %v695, %v697
        %v699 = vrot.slane %v407, 2
        %v700 = vsel %vm645, %v697, %v699
        %v701 = vrot.slane %v408, 2
        %v702 = vsel %vm645, %v699, %v701
        %v703 = vrot.slane %v409, 2
        %v704 = vsel %vm645, %v701, %v703
        %v705 = vrot.slane %v410, 2
        %v706 = vsel %vm645, %v703, %v705
        %v707 = vrot.slane %v411, 2
        %v708 = vsel %vm645, %v705, %v707
        %v709 = vrot.slane %v412, 2
        %v710 = vsel %vm645, %v707, %v709
        %v711 = vrot.slane %v413, 2
        %v712 = vsel %vm645, %v709, %v711
        %v713 = vrot.slane %v414, 2
        %v714 = vsel %vm645, %v711, %v713
        %v715 = vrot.slane %v415, 2
        %v716 = vsel %vm645, %v713, %v715
        %v717 = vrot.slane %v421, 2
        %v718 = vsel %vm645, %v715, %v717
        %719 = vrot.lane.b32.xlu0 %v648, 8
        %v720 = vpop.permute.xlu0 %719
        %721 = vrot.lane.b32.xlu0 %v650, 8
        %v722 = vpop.permute.xlu0 %721
        %723 = vrot.lane.b32.xlu0 %v652, 8
        %v724 = vpop.permute.xlu0 %723
        %725 = vrot.lane.b32.xlu0 %v654, 8
        %v726 = vpop.permute.xlu0 %725
        %727 = vrot.lane.b32.xlu0 %v656, 8
        %v728 = vpop.permute.xlu0 %727
        %729 = vrot.lane.b32.xlu0 %v658, 8
        %v730 = vpop.permute.xlu0 %729
        %731 = vrot.lane.b32.xlu0 %v660, 8
        %v732 = vpop.permute.xlu0 %731
        %733 = vrot.lane.b32.xlu0 %v662, 8
        %v734 = vpop.permute.xlu0 %733
        %735 = vrot.lane.b32.xlu0 %v664, 8
        %v736 = vpop.permute.xlu0 %735
        %737 = vrot.lane.b32.xlu0 %v666, 8
        %v738 = vpop.permute.xlu0 %737
        %739 = vrot.lane.b32.xlu0 %v668, 8
        %v740 = vpop.permute.xlu0 %739
        %741 = vrot.lane.b32.xlu0 %v670, 8
        %v742 = vpop.permute.xlu0 %741
        %743 = vrot.lane.b32.xlu0 %v672, 8
        %v744 = vpop.permute.xlu0 %743
        %745 = vrot.lane.b32.xlu0 %v674, 8
        %v746 = vpop.permute.xlu0 %745
        %747 = vrot.lane.b32.xlu0 %v676, 8
        %v748 = vpop.permute.xlu0 %747
        %749 = vrot.lane.b32.xlu0 %v678, 8
        %v750 = vpop.permute.xlu0 %749
        %751 = vrot.lane.b32.xlu0 %v680, 8
        %v752 = vpop.permute.xlu0 %751
        %753 = vrot.lane.b32.xlu0 %v682, 8
        %v754 = vpop.permute.xlu0 %753
        %755 = vrot.lane.b32.xlu0 %v684, 8
        %v756 = vpop.permute.xlu0 %755
        %757 = vrot.lane.b32.xlu0 %v686, 8
        %v758 = vpop.permute.xlu0 %757
        %759 = vrot.lane.b32.xlu0 %v688, 8
        %v760 = vpop.permute.xlu0 %759
        %761 = vrot.lane.b32.xlu0 %v690, 8
        %v762 = vpop.permute.xlu0 %761
        %763 = vrot.lane.b32.xlu0 %v692, 8
        %v764 = vpop.permute.xlu0 %763
        %765 = vrot.lane.b32.xlu0 %v694, 8
        %v766 = vpop.permute.xlu0 %765
        %767 = vrot.lane.b32.xlu0 %v696, 8
        %v768 = vpop.permute.xlu0 %767
        %769 = vrot.lane.b32.xlu0 %v698, 8
        %v770 = vpop.permute.xlu0 %769
        %771 = vrot.lane.b32.xlu0 %v700, 8
        %v772 = vpop.permute.xlu0 %771
        %773 = vrot.lane.b32.xlu0 %v702, 8
        %v774 = vpop.permute.xlu0 %773
        %775 = vrot.lane.b32.xlu0 %v704, 8
        %v776 = vpop.permute.xlu0 %775
        %777 = vrot.lane.b32.xlu0 %v706, 8
        %v778 = vpop.permute.xlu0 %777
        %779 = vrot.lane.b32.xlu0 %v708, 8
        %v780 = vpop.permute.xlu0 %779
        %781 = vrot.lane.b32.xlu0 %v710, 8
        %v782 = vpop.permute.xlu0 %781
        %783 = vrot.lane.b32.xlu0 %v712, 8
        %v784 = vpop.permute.xlu0 %783
        %785 = vrot.lane.b32.xlu0 %v714, 8
        %v786 = vpop.permute.xlu0 %785
        %787 = vrot.lane.b32.xlu0 %v716, 8
        %v788 = vpop.permute.xlu0 %787
        %789 = vrot.lane.b32.xlu0 %v718, 8
        %v790 = vpop.permute.xlu0 %789
        %v829 = vrot.slane %v422, 2
        %v830 = vsel %vm645, %v717, %v829
        %v831 = vrot.slane %v423, 2
        %v832 = vsel %vm645, %v829, %v831
        %833 = vrot.lane.b32.xlu0 %v652, 12
        %v834 = vpop.permute.xlu0 %833
        %835 = vrot.lane.b32.xlu0 %v654, 12
        %v836 = vpop.permute.xlu0 %835
        %837 = vrot.lane.b32.xlu0 %v656, 12
        %v838 = vpop.permute.xlu0 %837
        %839 = vrot.lane.b32.xlu0 %v658, 12
        %v840 = vpop.permute.xlu0 %839
        %841 = vrot.lane.b32.xlu0 %v660, 12
        %v842 = vpop.permute.xlu0 %841
        %843 = vrot.lane.b32.xlu0 %v662, 12
        %v844 = vpop.permute.xlu0 %843
        %845 = vrot.lane.b32.xlu0 %v664, 12
        %v846 = vpop.permute.xlu0 %845
        %847 = vrot.lane.b32.xlu0 %v666, 12
        %v848 = vpop.permute.xlu0 %847
        %849 = vrot.lane.b32.xlu0 %v668, 12
        %v850 = vpop.permute.xlu0 %849
        %851 = vrot.lane.b32.xlu0 %v670, 12
        %v852 = vpop.permute.xlu0 %851
        %853 = vrot.lane.b32.xlu0 %v672, 12
        %v854 = vpop.permute.xlu0 %853
        %855 = vrot.lane.b32.xlu0 %v674, 12
        %v856 = vpop.permute.xlu0 %855
        %857 = vrot.lane.b32.xlu0 %v676, 12
        %v858 = vpop.permute.xlu0 %857
        %859 = vrot.lane.b32.xlu0 %v678, 12
        %v860 = vpop.permute.xlu0 %859
        %861 = vrot.lane.b32.xlu0 %v680, 12
        %v862 = vpop.permute.xlu0 %861
        %863 = vrot.lane.b32.xlu0 %v682, 12
        %v864 = vpop.permute.xlu0 %863
        %865 = vrot.lane.b32.xlu0 %v684, 12
        %v866 = vpop.permute.xlu0 %865
        %867 = vrot.lane.b32.xlu0 %v686, 12
        %v868 = vpop.permute.xlu0 %867
        %869 = vrot.lane.b32.xlu0 %v688, 12
        %v870 = vpop.permute.xlu0 %869
        %871 = vrot.lane.b32.xlu0 %v690, 12
        %v872 = vpop.permute.xlu0 %871
        %873 = vrot.lane.b32.xlu0 %v692, 12
        %v874 = vpop.permute.xlu0 %873
        %875 = vrot.lane.b32.xlu0 %v694, 12
        %v876 = vpop.permute.xlu0 %875
        %877 = vrot.lane.b32.xlu0 %v696, 12
        %v878 = vpop.permute.xlu0 %877
        %879 = vrot.lane.b32.xlu0 %v698, 12
        %v880 = vpop.permute.xlu0 %879
        %881 = vrot.lane.b32.xlu0 %v700, 12
        %v882 = vpop.permute.xlu0 %881
        %883 = vrot.lane.b32.xlu0 %v702, 12
        %v884 = vpop.permute.xlu0 %883
        %885 = vrot.lane.b32.xlu0 %v704, 12
        %v886 = vpop.permute.xlu0 %885
        %887 = vrot.lane.b32.xlu0 %v706, 12
        %v888 = vpop.permute.xlu0 %887
        %889 = vrot.lane.b32.xlu0 %v708, 12
        %v890 = vpop.permute.xlu0 %889
        %891 = vrot.lane.b32.xlu0 %v710, 12
        %v892 = vpop.permute.xlu0 %891
        %893 = vrot.lane.b32.xlu0 %v712, 12
        %v894 = vpop.permute.xlu0 %893
        %895 = vrot.lane.b32.xlu0 %v714, 12
        %v896 = vpop.permute.xlu0 %895
        %897 = vrot.lane.b32.xlu0 %v716, 12
        %v898 = vpop.permute.xlu0 %897
        %899 = vrot.lane.b32.xlu0 %v718, 12
        %v900 = vpop.permute.xlu0 %899
        %901 = vrot.lane.b32.xlu0 %v830, 12
        %v902 = vpop.permute.xlu0 %901
        %903 = vrot.lane.b32.xlu0 %v832, 12
        %v904 = vpop.permute.xlu0 %903
        %vm941 = vcmask 1044480
        %v942 = vrot.slane %v382, 3
        %v943 = vrot.slane %v383, 3
        %v944 = vsel %vm941, %v942, %v943
        %v945 = vrot.slane %v384, 3
        %v946 = vsel %vm941, %v943, %v945
        %v947 = vrot.slane %v385, 3
        %v948 = vsel %vm941, %v945, %v947
        %v949 = vrot.slane %v386, 3
        %v950 = vsel %vm941, %v947, %v949
        %v951 = vrot.slane %v387, 3
        %v952 = vsel %vm941, %v949, %v951
        %v953 = vrot.slane %v388, 3
        %v954 = vsel %vm941, %v951, %v953
        %v955 = vrot.slane %v389, 3
        %v956 = vsel %vm941, %v953, %v955
        %v957 = vrot.slane %v390, 3
        %v958 = vsel %vm941, %v955, %v957
        %v959 = vrot.slane %v391, 3
        %v960 = vsel %vm941, %v957, %v959
        %v961 = vrot.slane %v392, 3
        %v962 = vsel %vm941, %v959, %v961
        %v963 = vrot.slane %v393, 3
        %v964 = vsel %vm941, %v961, %v963
        %v965 = vrot.slane %v394, 3
        %v966 = vsel %vm941, %v963, %v965
        %v967 = vrot.slane %v395, 3
        %v968 = vsel %vm941, %v965, %v967
        %v969 = vrot.slane %v396, 3
        %v970 = vsel %vm941, %v967, %v969
        %v971 = vrot.slane %v397, 3
        %v972 = vsel %vm941, %v969, %v971
        %v973 = vrot.slane %v398, 3
        %v974 = vsel %vm941, %v971, %v973
        %v975 = vrot.slane %v399, 3
        %v976 = vsel %vm941, %v973, %v975
        %v977 = vrot.slane %v400, 3
        %v978 = vsel %vm941, %v975, %v977
        %v979 = vrot.slane %v401, 3
        %v980 = vsel %vm941, %v977, %v979
        %v981 = vrot.slane %v402, 3
        %v982 = vsel %vm941, %v979, %v981
        %v983 = vrot.slane %v403, 3
        %v984 = vsel %vm941, %v981, %v983
        %v985 = vrot.slane %v404, 3
        %v986 = vsel %vm941, %v983, %v985
        %v987 = vrot.slane %v405, 3
        %v988 = vsel %vm941, %v985, %v987
        %v989 = vrot.slane %v406, 3
        %v990 = vsel %vm941, %v987, %v989
        %v991 = vrot.slane %v407, 3
        %v992 = vsel %vm941, %v989, %v991
        %v993 = vrot.slane %v408, 3
        %v994 = vsel %vm941, %v991, %v993
        %v995 = vrot.slane %v409, 3
        %v996 = vsel %vm941, %v993, %v995
        %v997 = vrot.slane %v410, 3
        %v998 = vsel %vm941, %v995, %v997
        %v999 = vrot.slane %v411, 3
        %v1000 = vsel %vm941, %v997, %v999
        %v1001 = vrot.slane %v412, 3
        %v1002 = vsel %vm941, %v999, %v1001
        %v1003 = vrot.slane %v413, 3
        %v1004 = vsel %vm941, %v1001, %v1003
        %v1005 = vrot.slane %v414, 3
        %v1006 = vsel %vm941, %v1003, %v1005
        %v1007 = vrot.slane %v415, 3
        %v1008 = vsel %vm941, %v1005, %v1007
        %v1009 = vrot.slane %v421, 3
        %v1010 = vsel %vm941, %v1007, %v1009
        %v1011 = vrot.slane %v422, 3
        %v1012 = vsel %vm941, %v1009, %v1011
        %v1013 = vrot.slane %v423, 3
        %v1014 = vsel %vm941, %v1011, %v1013
        %1015 = vrot.lane.b32.xlu0 %v944, 16
        %v1016 = vpop.permute.xlu0 %1015
        %1017 = vrot.lane.b32.xlu0 %v946, 16
        %v1018 = vpop.permute.xlu0 %1017
        %1019 = vrot.lane.b32.xlu0 %v948, 16
        %v1020 = vpop.permute.xlu0 %1019
        %1021 = vrot.lane.b32.xlu0 %v950, 16
        %v1022 = vpop.permute.xlu0 %1021
        %1023 = vrot.lane.b32.xlu0 %v952, 16
        %v1024 = vpop.permute.xlu0 %1023
        %1025 = vrot.lane.b32.xlu0 %v954, 16
        %v1026 = vpop.permute.xlu0 %1025
        %1027 = vrot.lane.b32.xlu0 %v956, 16
        %v1028 = vpop.permute.xlu0 %1027
        %1029 = vrot.lane.b32.xlu0 %v958, 16
        %v1030 = vpop.permute.xlu0 %1029
        %1031 = vrot.lane.b32.xlu0 %v960, 16
        %v1032 = vpop.permute.xlu0 %1031
        %1033 = vrot.lane.b32.xlu0 %v962, 16
        %v1034 = vpop.permute.xlu0 %1033
        %1035 = vrot.lane.b32.xlu0 %v964, 16
        %v1036 = vpop.permute.xlu0 %1035
        %1037 = vrot.lane.b32.xlu0 %v966, 16
        %v1038 = vpop.permute.xlu0 %1037
        %1039 = vrot.lane.b32.xlu0 %v968, 16
        %v1040 = vpop.permute.xlu0 %1039
        %1041 = vrot.lane.b32.xlu0 %v970, 16
        %v1042 = vpop.permute.xlu0 %1041
        %1043 = vrot.lane.b32.xlu0 %v972, 16
        %v1044 = vpop.permute.xlu0 %1043
        %1045 = vrot.lane.b32.xlu0 %v974, 16
        %v1046 = vpop.permute.xlu0 %1045
        %1047 = vrot.lane.b32.xlu0 %v976, 16
        %v1048 = vpop.permute.xlu0 %1047
        %1049 = vrot.lane.b32.xlu0 %v978, 16
        %v1050 = vpop.permute.xlu0 %1049
        %1051 = vrot.lane.b32.xlu0 %v980, 16
        %v1052 = vpop.permute.xlu0 %1051
        %1053 = vrot.lane.b32.xlu0 %v982, 16
        %v1054 = vpop.permute.xlu0 %1053
        %1055 = vrot.lane.b32.xlu0 %v984, 16
        %v1056 = vpop.permute.xlu0 %1055
        %1057 = vrot.lane.b32.xlu0 %v986, 16
        %v1058 = vpop.permute.xlu0 %1057
        %1059 = vrot.lane.b32.xlu0 %v988, 16
        %v1060 = vpop.permute.xlu0 %1059
        %1061 = vrot.lane.b32.xlu0 %v990, 16
        %v1062 = vpop.permute.xlu0 %1061
        %1063 = vrot.lane.b32.xlu0 %v992, 16
        %v1064 = vpop.permute.xlu0 %1063
        %1065 = vrot.lane.b32.xlu0 %v994, 16
        %v1066 = vpop.permute.xlu0 %1065
        %1067 = vrot.lane.b32.xlu0 %v996, 16
        %v1068 = vpop.permute.xlu0 %1067
        %1069 = vrot.lane.b32.xlu0 %v998, 16
        %v1070 = vpop.permute.xlu0 %1069
        %1071 = vrot.lane.b32.xlu0 %v1000, 16
        %v1072 = vpop.permute.xlu0 %1071
        %1073 = vrot.lane.b32.xlu0 %v1002, 16
        %v1074 = vpop.permute.xlu0 %1073
        %1075 = vrot.lane.b32.xlu0 %v1004, 16
        %v1076 = vpop.permute.xlu0 %1075
        %1077 = vrot.lane.b32.xlu0 %v1006, 16
        %v1078 = vpop.permute.xlu0 %1077
        %1079 = vrot.lane.b32.xlu0 %v1008, 16
        %v1080 = vpop.permute.xlu0 %1079
        %1081 = vrot.lane.b32.xlu0 %v1010, 16
        %v1082 = vpop.permute.xlu0 %1081
        %1083 = vrot.lane.b32.xlu0 %v1012, 16
        %v1084 = vpop.permute.xlu0 %1083
        %1085 = vrot.lane.b32.xlu0 %v1014, 16
        %v1086 = vpop.permute.xlu0 %1085
        %vm1123 = vcmask 1043456
        %v1124 = vrot.slane %v382, 4
        %v1125 = vrot.slane %v383, 4
        %v1126 = vsel %vm1123, %v1124, %v1125
        %v1127 = vrot.slane %v384, 4
        %v1128 = vsel %vm1123, %v1125, %v1127
        %v1129 = vrot.slane %v385, 4
        %v1130 = vsel %vm1123, %v1127, %v1129
        %v1131 = vrot.slane %v386, 4
        %v1132 = vsel %vm1123, %v1129, %v1131
        %v1133 = vrot.slane %v387, 4
        %v1134 = vsel %vm1123, %v1131, %v1133
        %v1135 = vrot.slane %v388, 4
        %v1136 = vsel %vm1123, %v1133, %v1135
        %v1137 = vrot.slane %v389, 4
        %v1138 = vsel %vm1123, %v1135, %v1137
        %v1139 = vrot.slane %v390, 4
        %v1140 = vsel %vm1123, %v1137, %v1139
        %v1141 = vrot.slane %v391, 4
        %v1142 = vsel %vm1123, %v1139, %v1141
        %v1143 = vrot.slane %v392, 4
        %v1144 = vsel %vm1123, %v1141, %v1143
        %v1145 = vrot.slane %v393, 4
        %v1146 = vsel %vm1123, %v1143, %v1145
        %v1147 = vrot.slane %v394, 4
        %v1148 = vsel %vm1123, %v1145, %v1147
        %v1149 = vrot.slane %v395, 4
        %v1150 = vsel %vm1123, %v1147, %v1149
        %v1151 = vrot.slane %v396, 4
        %v1152 = vsel %vm1123, %v1149, %v1151
        %v1153 = vrot.slane %v397, 4
        %v1154 = vsel %vm1123, %v1151, %v1153
        %v1155 = vrot.slane %v398, 4
        %v1156 = vsel %vm1123, %v1153, %v1155
        %v1157 = vrot.slane %v399, 4
        %v1158 = vsel %vm1123, %v1155, %v1157
        %v1159 = vrot.slane %v400, 4
        %v1160 = vsel %vm1123, %v1157, %v1159
        %v1161 = vrot.slane %v401, 4
        %v1162 = vsel %vm1123, %v1159, %v1161
        %v1163 = vrot.slane %v402, 4
        %v1164 = vsel %vm1123, %v1161, %v1163
        %v1165 = vrot.slane %v403, 4
        %v1166 = vsel %vm1123, %v1163, %v1165
        %v1167 = vrot.slane %v404, 4
        %v1168 = vsel %vm1123, %v1165, %v1167
        %v1169 = vrot.slane %v405, 4
        %v1170 = vsel %vm1123, %v1167, %v1169
        %v1171 = vrot.slane %v406, 4
        %v1172 = vsel %vm1123, %v1169, %v1171
        %v1173 = vrot.slane %v407, 4
        %v1174 = vsel %vm1123, %v1171, %v1173
        %v1175 = vrot.slane %v408, 4
        %v1176 = vsel %vm1123, %v1173, %v1175
        %v1177 = vrot.slane %v409, 4
        %v1178 = vsel %vm1123, %v1175, %v1177
        %v1179 = vrot.slane %v410, 4
        %v1180 = vsel %vm1123, %v1177, %v1179
        %v1181 = vrot.slane %v411, 4
        %v1182 = vsel %vm1123, %v1179, %v1181
        %v1183 = vrot.slane %v412, 4
        %v1184 = vsel %vm1123, %v1181, %v1183
        %v1185 = vrot.slane %v413, 4
        %v1186 = vsel %vm1123, %v1183, %v1185
        %v1187 = vrot.slane %v414, 4
        %v1188 = vsel %vm1123, %v1185, %v1187
        %v1189 = vrot.slane %v415, 4
        %v1190 = vsel %vm1123, %v1187, %v1189
        %v1191 = vrot.slane %v421, 4
        %v1192 = vsel %vm1123, %v1189, %v1191
        %v1193 = vrot.slane %v422, 4
        %v1194 = vsel %vm1123, %v1191, %v1193
        %v1195 = vrot.slane %v423, 4
        %v1196 = vsel %vm1123, %v1193, %v1195
        %1197 = vrot.lane.b32.xlu0 %v1126, 20
        %v1198 = vpop.permute.xlu0 %1197
        %1199 = vrot.lane.b32.xlu0 %v1128, 20
        %v1200 = vpop.permute.xlu0 %1199
        %1201 = vrot.lane.b32.xlu0 %v1130, 20
        %v1202 = vpop.permute.xlu0 %1201
        %1203 = vrot.lane.b32.xlu0 %v1132, 20
        %v1204 = vpop.permute.xlu0 %1203
        %1205 = vrot.lane.b32.xlu0 %v1134, 20
        %v1206 = vpop.permute.xlu0 %1205
        %1207 = vrot.lane.b32.xlu0 %v1136, 20
        %v1208 = vpop.permute.xlu0 %1207
        %1209 = vrot.lane.b32.xlu0 %v1138, 20
        %v1210 = vpop.permute.xlu0 %1209
        %1211 = vrot.lane.b32.xlu0 %v1140, 20
        %v1212 = vpop.permute.xlu0 %1211
        %1213 = vrot.lane.b32.xlu0 %v1142, 20
        %v1214 = vpop.permute.xlu0 %1213
        %1215 = vrot.lane.b32.xlu0 %v1144, 20
        %v1216 = vpop.permute.xlu0 %1215
        %1217 = vrot.lane.b32.xlu0 %v1146, 20
        %v1218 = vpop.permute.xlu0 %1217
        %1219 = vrot.lane.b32.xlu0 %v1148, 20
        %v1220 = vpop.permute.xlu0 %1219
        %1221 = vrot.lane.b32.xlu0 %v1150, 20
        %v1222 = vpop.permute.xlu0 %1221
        %1223 = vrot.lane.b32.xlu0 %v1152, 20
        %v1224 = vpop.permute.xlu0 %1223
        %1225 = vrot.lane.b32.xlu0 %v1154, 20
        %v1226 = vpop.permute.xlu0 %1225
        %1227 = vrot.lane.b32.xlu0 %v1156, 20
        %v1228 = vpop.permute.xlu0 %1227
        %1229 = vrot.lane.b32.xlu0 %v1158, 20
        %v1230 = vpop.permute.xlu0 %1229
        %1231 = vrot.lane.b32.xlu0 %v1160, 20
        %v1232 = vpop.permute.xlu0 %1231
        %1233 = vrot.lane.b32.xlu0 %v1162, 20
        %v1234 = vpop.permute.xlu0 %1233
        %1235 = vrot.lane.b32.xlu0 %v1164, 20
        %v1236 = vpop.permute.xlu0 %1235
        %1237 = vrot.lane.b32.xlu0 %v1166, 20
        %v1238 = vpop.permute.xlu0 %1237
        %1239 = vrot.lane.b32.xlu0 %v1168, 20
        %v1240 = vpop.permute.xlu0 %1239
        %1241 = vrot.lane.b32.xlu0 %v1170, 20
        %v1242 = vpop.permute.xlu0 %1241
        %1243 = vrot.lane.b32.xlu0 %v1172, 20
        %v1244 = vpop.permute.xlu0 %1243
        %1245 = vrot.lane.b32.xlu0 %v1174, 20
        %v1246 = vpop.permute.xlu0 %1245
        %1247 = vrot.lane.b32.xlu0 %v1176, 20
        %v1248 = vpop.permute.xlu0 %1247
        %1249 = vrot.lane.b32.xlu0 %v1178, 20
        %v1250 = vpop.permute.xlu0 %1249
        %1251 = vrot.lane.b32.xlu0 %v1180, 20
        %v1252 = vpop.permute.xlu0 %1251
        %1253 = vrot.lane.b32.xlu0 %v1182, 20
        %v1254 = vpop.permute.xlu0 %1253
        %1255 = vrot.lane.b32.xlu0 %v1184, 20
        %v1256 = vpop.permute.xlu0 %1255
        %1257 = vrot.lane.b32.xlu0 %v1186, 20
        %v1258 = vpop.permute.xlu0 %1257
        %1259 = vrot.lane.b32.xlu0 %v1188, 20
        %v1260 = vpop.permute.xlu0 %1259
        %1261 = vrot.lane.b32.xlu0 %v1190, 20
        %v1262 = vpop.permute.xlu0 %1261
        %1263 = vrot.lane.b32.xlu0 %v1192, 20
        %v1264 = vpop.permute.xlu0 %1263
        %1265 = vrot.lane.b32.xlu0 %v1194, 20
        %v1266 = vpop.permute.xlu0 %1265
        %1267 = vrot.lane.b32.xlu0 %v1196, 20
        %v1268 = vpop.permute.xlu0 %1267
        %v1307 = vrot.slane %v424, 4
        %v1308 = vsel %vm1123, %v1195, %v1307
        %v1309 = vrot.slane %v425, 4
        %v1310 = vsel %vm1123, %v1307, %v1309
        %1311 = vrot.lane.b32.xlu0 %v1130, 24
        %v1312 = vpop.permute.xlu0 %1311
        %1313 = vrot.lane.b32.xlu0 %v1132, 24
        %v1314 = vpop.permute.xlu0 %1313
        %1315 = vrot.lane.b32.xlu0 %v1134, 24
        %v1316 = vpop.permute.xlu0 %1315
        %1317 = vrot.lane.b32.xlu0 %v1136, 24
        %v1318 = vpop.permute.xlu0 %1317
        %1319 = vrot.lane.b32.xlu0 %v1138, 24
        %v1320 = vpop.permute.xlu0 %1319
        %1321 = vrot.lane.b32.xlu0 %v1140, 24
        %v1322 = vpop.permute.xlu0 %1321
        %1323 = vrot.lane.b32.xlu0 %v1142, 24
        %v1324 = vpop.permute.xlu0 %1323
        %1325 = vrot.lane.b32.xlu0 %v1144, 24
        %v1326 = vpop.permute.xlu0 %1325
        %1327 = vrot.lane.b32.xlu0 %v1146, 24
        %v1328 = vpop.permute.xlu0 %1327
        %1329 = vrot.lane.b32.xlu0 %v1148, 24
        %v1330 = vpop.permute.xlu0 %1329
        %1331 = vrot.lane.b32.xlu0 %v1150, 24
        %v1332 = vpop.permute.xlu0 %1331
        %1333 = vrot.lane.b32.xlu0 %v1152, 24
        %v1334 = vpop.permute.xlu0 %1333
        %1335 = vrot.lane.b32.xlu0 %v1154, 24
        %v1336 = vpop.permute.xlu0 %1335
        %1337 = vrot.lane.b32.xlu0 %v1156, 24
        %v1338 = vpop.permute.xlu0 %1337
        %1339 = vrot.lane.b32.xlu0 %v1158, 24
        %v1340 = vpop.permute.xlu0 %1339
        %1341 = vrot.lane.b32.xlu0 %v1160, 24
        %v1342 = vpop.permute.xlu0 %1341
        %1343 = vrot.lane.b32.xlu0 %v1162, 24
        %v1344 = vpop.permute.xlu0 %1343
        %1345 = vrot.lane.b32.xlu0 %v1164, 24
        %v1346 = vpop.permute.xlu0 %1345
        %1347 = vrot.lane.b32.xlu0 %v1166, 24
        %v1348 = vpop.permute.xlu0 %1347
        %1349 = vrot.lane.b32.xlu0 %v1168, 24
        %v1350 = vpop.permute.xlu0 %1349
        %1351 = vrot.lane.b32.xlu0 %v1170, 24
        %v1352 = vpop.permute.xlu0 %1351
        %1353 = vrot.lane.b32.xlu0 %v1172, 24
        %v1354 = vpop.permute.xlu0 %1353
        %1355 = vrot.lane.b32.xlu0 %v1174, 24
        %v1356 = vpop.permute.xlu0 %1355
        %1357 = vrot.lane.b32.xlu0 %v1176, 24
        %v1358 = vpop.permute.xlu0 %1357
        %1359 = vrot.lane.b32.xlu0 %v1178, 24
        %v1360 = vpop.permute.xlu0 %1359
        %1361 = vrot.lane.b32.xlu0 %v1180, 24
        %v1362 = vpop.permute.xlu0 %1361
        %1363 = vrot.lane.b32.xlu0 %v1182, 24
        %v1364 = vpop.permute.xlu0 %1363
        %1365 = vrot.lane.b32.xlu0 %v1184, 24
        %v1366 = vpop.permute.xlu0 %1365
        %1367 = vrot.lane.b32.xlu0 %v1186, 24
        %v1368 = vpop.permute.xlu0 %1367
        %1369 = vrot.lane.b32.xlu0 %v1188, 24
        %v1370 = vpop.permute.xlu0 %1369
        %1371 = vrot.lane.b32.xlu0 %v1190, 24
        %v1372 = vpop.permute.xlu0 %1371
        %1373 = vrot.lane.b32.xlu0 %v1192, 24
        %v1374 = vpop.permute.xlu0 %1373
        %1375 = vrot.lane.b32.xlu0 %v1194, 24
        %v1376 = vpop.permute.xlu0 %1375
        %1377 = vrot.lane.b32.xlu0 %v1196, 24
        %v1378 = vpop.permute.xlu0 %1377
        %1379 = vrot.lane.b32.xlu0 %v1308, 24
        %v1380 = vpop.permute.xlu0 %1379
        %1381 = vrot.lane.b32.xlu0 %v1310, 24
        %v1382 = vpop.permute.xlu0 %1381
        %vm1419 = vcmask 1042432
        %v1420 = vrot.slane %v384, 5
        %v1421 = vrot.slane %v385, 5
        %v1422 = vsel %vm1419, %v1420, %v1421
        %v1423 = vrot.slane %v386, 5
        %v1424 = vsel %vm1419, %v1421, %v1423
        %v1425 = vrot.slane %v387, 5
        %v1426 = vsel %vm1419, %v1423, %v1425
        %v1427 = vrot.slane %v388, 5
        %v1428 = vsel %vm1419, %v1425, %v1427
        %v1429 = vrot.slane %v389, 5
        %v1430 = vsel %vm1419, %v1427, %v1429
        %v1431 = vrot.slane %v390, 5
        %v1432 = vsel %vm1419, %v1429, %v1431
        %v1433 = vrot.slane %v391, 5
        %v1434 = vsel %vm1419, %v1431, %v1433
        %v1435 = vrot.slane %v392, 5
        %v1436 = vsel %vm1419, %v1433, %v1435
        %v1437 = vrot.slane %v393, 5
        %v1438 = vsel %vm1419, %v1435, %v1437
        %v1439 = vrot.slane %v394, 5
        %v1440 = vsel %vm1419, %v1437, %v1439
        %v1441 = vrot.slane %v395, 5
        %v1442 = vsel %vm1419, %v1439, %v1441
        %v1443 = vrot.slane %v396, 5
        %v1444 = vsel %vm1419, %v1441, %v1443
        %v1445 = vrot.slane %v397, 5
        %v1446 = vsel %vm1419, %v1443, %v1445
        %v1447 = vrot.slane %v398, 5
        %v1448 = vsel %vm1419, %v1445, %v1447
        %v1449 = vrot.slane %v399, 5
        %v1450 = vsel %vm1419, %v1447, %v1449
        %v1451 = vrot.slane %v400, 5
        %v1452 = vsel %vm1419, %v1449, %v1451
        %v1453 = vrot.slane %v401, 5
        %v1454 = vsel %vm1419, %v1451, %v1453
        %v1455 = vrot.slane %v402, 5
        %v1456 = vsel %vm1419, %v1453, %v1455
        %v1457 = vrot.slane %v403, 5
        %v1458 = vsel %vm1419, %v1455, %v1457
        %v1459 = vrot.slane %v404, 5
        %v1460 = vsel %vm1419, %v1457, %v1459
        %v1461 = vrot.slane %v405, 5
        %v1462 = vsel %vm1419, %v1459, %v1461
        %v1463 = vrot.slane %v406, 5
        %v1464 = vsel %vm1419, %v1461, %v1463
        %v1465 = vrot.slane %v407, 5
        %v1466 = vsel %vm1419, %v1463, %v1465
        %v1467 = vrot.slane %v408, 5
        %v1468 = vsel %vm1419, %v1465, %v1467
        %v1469 = vrot.slane %v409, 5
        %v1470 = vsel %vm1419, %v1467, %v1469
        %v1471 = vrot.slane %v410, 5
        %v1472 = vsel %vm1419, %v1469, %v1471
        %v1473 = vrot.slane %v411, 5
        %v1474 = vsel %vm1419, %v1471, %v1473
        %v1475 = vrot.slane %v412, 5
        %v1476 = vsel %vm1419, %v1473, %v1475
        %v1477 = vrot.slane %v413, 5
        %v1478 = vsel %vm1419, %v1475, %v1477
        %v1479 = vrot.slane %v414, 5
        %v1480 = vsel %vm1419, %v1477, %v1479
        %v1481 = vrot.slane %v415, 5
        %v1482 = vsel %vm1419, %v1479, %v1481
        %v1483 = vrot.slane %v421, 5
        %v1484 = vsel %vm1419, %v1481, %v1483
        %v1485 = vrot.slane %v422, 5
        %v1486 = vsel %vm1419, %v1483, %v1485
        %v1487 = vrot.slane %v423, 5
        %v1488 = vsel %vm1419, %v1485, %v1487
        %v1489 = vrot.slane %v424, 5
        %v1490 = vsel %vm1419, %v1487, %v1489
        %v1491 = vrot.slane %v425, 5
        %v1492 = vsel %vm1419, %v1489, %v1491
        %1493 = vrot.lane.b32.xlu0 %v1422, 28
        %v1494 = vpop.permute.xlu0 %1493
        %1495 = vrot.lane.b32.xlu0 %v1424, 28
        %v1496 = vpop.permute.xlu0 %1495
        %1497 = vrot.lane.b32.xlu0 %v1426, 28
        %v1498 = vpop.permute.xlu0 %1497
        %1499 = vrot.lane.b32.xlu0 %v1428, 28
        %v1500 = vpop.permute.xlu0 %1499
        %1501 = vrot.lane.b32.xlu0 %v1430, 28
        %v1502 = vpop.permute.xlu0 %1501
        %1503 = vrot.lane.b32.xlu0 %v1432, 28
        %v1504 = vpop.permute.xlu0 %1503
        %1505 = vrot.lane.b32.xlu0 %v1434, 28
        %v1506 = vpop.permute.xlu0 %1505
        %1507 = vrot.lane.b32.xlu0 %v1436, 28
        %v1508 = vpop.permute.xlu0 %1507
        %1509 = vrot.lane.b32.xlu0 %v1438, 28
        %v1510 = vpop.permute.xlu0 %1509
        %1511 = vrot.lane.b32.xlu0 %v1440, 28
        %v1512 = vpop.permute.xlu0 %1511
        %1513 = vrot.lane.b32.xlu0 %v1442, 28
        %v1514 = vpop.permute.xlu0 %1513
        %1515 = vrot.lane.b32.xlu0 %v1444, 28
        %v1516 = vpop.permute.xlu0 %1515
        %1517 = vrot.lane.b32.xlu0 %v1446, 28
        %v1518 = vpop.permute.xlu0 %1517
        %1519 = vrot.lane.b32.xlu0 %v1448, 28
        %v1520 = vpop.permute.xlu0 %1519
        %1521 = vrot.lane.b32.xlu0 %v1450, 28
        %v1522 = vpop.permute.xlu0 %1521
        %1523 = vrot.lane.b32.xlu0 %v1452, 28
        %v1524 = vpop.permute.xlu0 %1523
        %1525 = vrot.lane.b32.xlu0 %v1454, 28
        %v1526 = vpop.permute.xlu0 %1525
        %1527 = vrot.lane.b32.xlu0 %v1456, 28
        %v1528 = vpop.permute.xlu0 %1527
        %1529 = vrot.lane.b32.xlu0 %v1458, 28
        %v1530 = vpop.permute.xlu0 %1529
        %1531 = vrot.lane.b32.xlu0 %v1460, 28
        %v1532 = vpop.permute.xlu0 %1531
        %1533 = vrot.lane.b32.xlu0 %v1462, 28
        %v1534 = vpop.permute.xlu0 %1533
        %1535 = vrot.lane.b32.xlu0 %v1464, 28
        %v1536 = vpop.permute.xlu0 %1535
        %1537 = vrot.lane.b32.xlu0 %v1466, 28
        %v1538 = vpop.permute.xlu0 %1537
        %1539 = vrot.lane.b32.xlu0 %v1468, 28
        %v1540 = vpop.permute.xlu0 %1539
        %1541 = vrot.lane.b32.xlu0 %v1470, 28
        %v1542 = vpop.permute.xlu0 %1541
        %1543 = vrot.lane.b32.xlu0 %v1472, 28
        %v1544 = vpop.permute.xlu0 %1543
        %1545 = vrot.lane.b32.xlu0 %v1474, 28
        %v1546 = vpop.permute.xlu0 %1545
        %1547 = vrot.lane.b32.xlu0 %v1476, 28
        %v1548 = vpop.permute.xlu0 %1547
        %1549 = vrot.lane.b32.xlu0 %v1478, 28
        %v1550 = vpop.permute.xlu0 %1549
        %1551 = vrot.lane.b32.xlu0 %v1480, 28
        %v1552 = vpop.permute.xlu0 %1551
        %1553 = vrot.lane.b32.xlu0 %v1482, 28
        %v1554 = vpop.permute.xlu0 %1553
        %1555 = vrot.lane.b32.xlu0 %v1484, 28
        %v1556 = vpop.permute.xlu0 %1555
        %1557 = vrot.lane.b32.xlu0 %v1486, 28
        %v1558 = vpop.permute.xlu0 %1557
        %1559 = vrot.lane.b32.xlu0 %v1488, 28
        %v1560 = vpop.permute.xlu0 %1559
        %1561 = vrot.lane.b32.xlu0 %v1490, 28
        %v1562 = vpop.permute.xlu0 %1561
        %1563 = vrot.lane.b32.xlu0 %v1492, 28
        %v1564 = vpop.permute.xlu0 %1563
        %vm1601 = vcmask 1041408
        %v1602 = vrot.slane %v384, 6
        %v1603 = vrot.slane %v385, 6
        %v1604 = vsel %vm1601, %v1602, %v1603
        %v1605 = vrot.slane %v386, 6
        %v1606 = vsel %vm1601, %v1603, %v1605
        %v1607 = vrot.slane %v387, 6
        %v1608 = vsel %vm1601, %v1605, %v1607
        %v1609 = vrot.slane %v388, 6
        %v1610 = vsel %vm1601, %v1607, %v1609
        %v1611 = vrot.slane %v389, 6
        %v1612 = vsel %vm1601, %v1609, %v1611
        %v1613 = vrot.slane %v390, 6
        %v1614 = vsel %vm1601, %v1611, %v1613
        %v1615 = vrot.slane %v391, 6
        %v1616 = vsel %vm1601, %v1613, %v1615
        %v1617 = vrot.slane %v392, 6
        %v1618 = vsel %vm1601, %v1615, %v1617
        %v1619 = vrot.slane %v393, 6
        %v1620 = vsel %vm1601, %v1617, %v1619
        %v1621 = vrot.slane %v394, 6
        %v1622 = vsel %vm1601, %v1619, %v1621
        %v1623 = vrot.slane %v395, 6
        %v1624 = vsel %vm1601, %v1621, %v1623
        %v1625 = vrot.slane %v396, 6
        %v1626 = vsel %vm1601, %v1623, %v1625
        %v1627 = vrot.slane %v397, 6
        %v1628 = vsel %vm1601, %v1625, %v1627
        %v1629 = vrot.slane %v398, 6
        %v1630 = vsel %vm1601, %v1627, %v1629
        %v1631 = vrot.slane %v399, 6
        %v1632 = vsel %vm1601, %v1629, %v1631
        %v1633 = vrot.slane %v400, 6
        %v1634 = vsel %vm1601, %v1631, %v1633
        %v1635 = vrot.slane %v401, 6
        %v1636 = vsel %vm1601, %v1633, %v1635
        %v1637 = vrot.slane %v402, 6
        %v1638 = vsel %vm1601, %v1635, %v1637
        %v1639 = vrot.slane %v403, 6
        %v1640 = vsel %vm1601, %v1637, %v1639
        %v1641 = vrot.slane %v404, 6
        %v1642 = vsel %vm1601, %v1639, %v1641
        %v1643 = vrot.slane %v405, 6
        %v1644 = vsel %vm1601, %v1641, %v1643
        %v1645 = vrot.slane %v406, 6
        %v1646 = vsel %vm1601, %v1643, %v1645
        %v1647 = vrot.slane %v407, 6
        %v1648 = vsel %vm1601, %v1645, %v1647
        %v1649 = vrot.slane %v408, 6
        %v1650 = vsel %vm1601, %v1647, %v1649
        %v1651 = vrot.slane %v409, 6
        %v1652 = vsel %vm1601, %v1649, %v1651
        %v1653 = vrot.slane %v410, 6
        %v1654 = vsel %vm1601, %v1651, %v1653
        %v1655 = vrot.slane %v411, 6
        %v1656 = vsel %vm1601, %v1653, %v1655
        %v1657 = vrot.slane %v412, 6
        %v1658 = vsel %vm1601, %v1655, %v1657
        %v1659 = vrot.slane %v413, 6
        %v1660 = vsel %vm1601, %v1657, %v1659
        %v1661 = vrot.slane %v414, 6
        %v1662 = vsel %vm1601, %v1659, %v1661
        %v1663 = vrot.slane %v415, 6
        %v1664 = vsel %vm1601, %v1661, %v1663
        %v1665 = vrot.slane %v421, 6
        %v1666 = vsel %vm1601, %v1663, %v1665
        %v1667 = vrot.slane %v422, 6
        %v1668 = vsel %vm1601, %v1665, %v1667
        %v1669 = vrot.slane %v423, 6
        %v1670 = vsel %vm1601, %v1667, %v1669
        %v1671 = vrot.slane %v424, 6
        %v1672 = vsel %vm1601, %v1669, %v1671
        %v1673 = vrot.slane %v425, 6
        %v1674 = vsel %vm1601, %v1671, %v1673
        %1675 = vrot.lane.b32.xlu0 %v1604, 32
        %v1676 = vpop.permute.xlu0 %1675
        %1677 = vrot.lane.b32.xlu0 %v1606, 32
        %v1678 = vpop.permute.xlu0 %1677
        %1679 = vrot.lane.b32.xlu0 %v1608, 32
        %v1680 = vpop.permute.xlu0 %1679
        %1681 = vrot.lane.b32.xlu0 %v1610, 32
        %v1682 = vpop.permute.xlu0 %1681
        %1683 = vrot.lane.b32.xlu0 %v1612, 32
        %v1684 = vpop.permute.xlu0 %1683
        %1685 = vrot.lane.b32.xlu0 %v1614, 32
        %v1686 = vpop.permute.xlu0 %1685
        %1687 = vrot.lane.b32.xlu0 %v1616, 32
        %v1688 = vpop.permute.xlu0 %1687
        %1689 = vrot.lane.b32.xlu0 %v1618, 32
        %v1690 = vpop.permute.xlu0 %1689
        %1691 = vrot.lane.b32.xlu0 %v1620, 32
        %v1692 = vpop.permute.xlu0 %1691
        %1693 = vrot.lane.b32.xlu0 %v1622, 32
        %v1694 = vpop.permute.xlu0 %1693
        %1695 = vrot.lane.b32.xlu0 %v1624, 32
        %v1696 = vpop.permute.xlu0 %1695
        %1697 = vrot.lane.b32.xlu0 %v1626, 32
        %v1698 = vpop.permute.xlu0 %1697
        %1699 = vrot.lane.b32.xlu0 %v1628, 32
        %v1700 = vpop.permute.xlu0 %1699
        %1701 = vrot.lane.b32.xlu0 %v1630, 32
        %v1702 = vpop.permute.xlu0 %1701
        %1703 = vrot.lane.b32.xlu0 %v1632, 32
        %v1704 = vpop.permute.xlu0 %1703
        %1705 = vrot.lane.b32.xlu0 %v1634, 32
        %v1706 = vpop.permute.xlu0 %1705
        %1707 = vrot.lane.b32.xlu0 %v1636, 32
        %v1708 = vpop.permute.xlu0 %1707
        %1709 = vrot.lane.b32.xlu0 %v1638, 32
        %v1710 = vpop.permute.xlu0 %1709
        %1711 = vrot.lane.b32.xlu0 %v1640, 32
        %v1712 = vpop.permute.xlu0 %1711
        %1713 = vrot.lane.b32.xlu0 %v1642, 32
        %v1714 = vpop.permute.xlu0 %1713
        %1715 = vrot.lane.b32.xlu0 %v1644, 32
        %v1716 = vpop.permute.xlu0 %1715
        %1717 = vrot.lane.b32.xlu0 %v1646, 32
        %v1718 = vpop.permute.xlu0 %1717
        %1719 = vrot.lane.b32.xlu0 %v1648, 32
        %v1720 = vpop.permute.xlu0 %1719
        %1721 = vrot.lane.b32.xlu0 %v1650, 32
        %v1722 = vpop.permute.xlu0 %1721
        %1723 = vrot.lane.b32.xlu0 %v1652, 32
        %v1724 = vpop.permute.xlu0 %1723
        %1725 = vrot.lane.b32.xlu0 %v1654, 32
        %v1726 = vpop.permute.xlu0 %1725
        %1727 = vrot.lane.b32.xlu0 %v1656, 32
        %v1728 = vpop.permute.xlu0 %1727
        %1729 = vrot.lane.b32.xlu0 %v1658, 32
        %v1730 = vpop.permute.xlu0 %1729
        %1731 = vrot.lane.b32.xlu0 %v1660, 32
        %v1732 = vpop.permute.xlu0 %1731
        %1733 = vrot.lane.b32.xlu0 %v1662, 32
        %v1734 = vpop.permute.xlu0 %1733
        %1735 = vrot.lane.b32.xlu0 %v1664, 32
        %v1736 = vpop.permute.xlu0 %1735
        %1737 = vrot.lane.b32.xlu0 %v1666, 32
        %v1738 = vpop.permute.xlu0 %1737
        %1739 = vrot.lane.b32.xlu0 %v1668, 32
        %v1740 = vpop.permute.xlu0 %1739
        %1741 = vrot.lane.b32.xlu0 %v1670, 32
        %v1742 = vpop.permute.xlu0 %1741
        %1743 = vrot.lane.b32.xlu0 %v1672, 32
        %v1744 = vpop.permute.xlu0 %1743
        %1745 = vrot.lane.b32.xlu0 %v1674, 32
        %v1746 = vpop.permute.xlu0 %1745
        %vm1783 = vcmask 31744
        %v1784 = vsel %vm1783, %v380, %v538
        %v1785 = vsel %vm1783, %v381, %v540
        %v1786 = vsel %vm1783, %v382, %v542
        %v1787 = vsel %vm1783, %v383, %v544
        %v1788 = vsel %vm1783, %v384, %v546
        %v1789 = vsel %vm1783, %v385, %v548
        %v1790 = vsel %vm1783, %v386, %v550
        %v1791 = vsel %vm1783, %v387, %v552
        %v1792 = vsel %vm1783, %v388, %v554
        %v1793 = vsel %vm1783, %v389, %v556
        %v1794 = vsel %vm1783, %v390, %v558
        %v1795 = vsel %vm1783, %v391, %v560
        %v1796 = vsel %vm1783, %v392, %v562
        %v1797 = vsel %vm1783, %v393, %v564
        %v1798 = vsel %vm1783, %v394, %v566
        %v1799 = vsel %vm1783, %v395, %v568
        %v1800 = vsel %vm1783, %v396, %v570
        %v1801 = vsel %vm1783, %v397, %v572
        %v1802 = vsel %vm1783, %v398, %v574
        %v1803 = vsel %vm1783, %v399, %v576
        %v1804 = vsel %vm1783, %v400, %v578
        %v1805 = vsel %vm1783, %v401, %v580
        %v1806 = vsel %vm1783, %v402, %v582
        %v1807 = vsel %vm1783, %v403, %v584
        %v1808 = vsel %vm1783, %v404, %v586
        %v1809 = vsel %vm1783, %v405, %v588
        %v1810 = vsel %vm1783, %v406, %v590
        %v1811 = vsel %vm1783, %v407, %v592
        %v1812 = vsel %vm1783, %v408, %v594
        %v1813 = vsel %vm1783, %v409, %v596
        %v1814 = vsel %vm1783, %v410, %v598
        %v1815 = vsel %vm1783, %v411, %v600
        %v1816 = vsel %vm1783, %v412, %v602
        %v1817 = vsel %vm1783, %v413, %v604
        %v1818 = vsel %vm1783, %v414, %v606
        %v1819 = vsel %vm1783, %v415, %v608
        %vm1820 = vcmask 64512
        %v1821 = vsel %vm1820, %v1784, %v720
        %v1822 = vsel %vm1820, %v1785, %v722
        %v1823 = vsel %vm1820, %v1786, %v724
        %v1824 = vsel %vm1820, %v1787, %v726
        %v1825 = vsel %vm1820, %v1788, %v728
        %v1826 = vsel %vm1820, %v1789, %v730
        %v1827 = vsel %vm1820, %v1790, %v732
        %v1828 = vsel %vm1820, %v1791, %v734
        %v1829 = vsel %vm1820, %v1792, %v736
        %v1830 = vsel %vm1820, %v1793, %v738
        %v1831 = vsel %vm1820, %v1794, %v740
        %v1832 = vsel %vm1820, %v1795, %v742
        %v1833 = vsel %vm1820, %v1796, %v744
        %v1834 = vsel %vm1820, %v1797, %v746
        %v1835 = vsel %vm1820, %v1798, %v748
        %v1836 = vsel %vm1820, %v1799, %v750
        %v1837 = vsel %vm1820, %v1800, %v752
        %v1838 = vsel %vm1820, %v1801, %v754
        %v1839 = vsel %vm1820, %v1802, %v756
        %v1840 = vsel %vm1820, %v1803, %v758
        %v1841 = vsel %vm1820, %v1804, %v760
        %v1842 = vsel %vm1820, %v1805, %v762
        %v1843 = vsel %vm1820, %v1806, %v764
        %v1844 = vsel %vm1820, %v1807, %v766
        %v1845 = vsel %vm1820, %v1808, %v768
        %v1846 = vsel %vm1820, %v1809, %v770
        %v1847 = vsel %vm1820, %v1810, %v772
        %v1848 = vsel %vm1820, %v1811, %v774
        %v1849 = vsel %vm1820, %v1812, %v776
        %v1850 = vsel %vm1820, %v1813, %v778
        %v1851 = vsel %vm1820, %v1814, %v780
        %v1852 = vsel %vm1820, %v1815, %v782
        %v1853 = vsel %vm1820, %v1816, %v784
        %v1854 = vsel %vm1820, %v1817, %v786
        %v1855 = vsel %vm1820, %v1818, %v788
        %v1856 = vsel %vm1820, %v1819, %v790
        %vm1857 = vcmask 97280
        %v1858 = vsel %vm1857, %v1821, %v834
        %v1859 = vsel %vm1857, %v1822, %v836
        %v1860 = vsel %vm1857, %v1823, %v838
        %v1861 = vsel %vm1857, %v1824, %v840
        %v1862 = vsel %vm1857, %v1825, %v842
        %v1863 = vsel %vm1857, %v1826, %v844
        %v1864 = vsel %vm1857, %v1827, %v846
        %v1865 = vsel %vm1857, %v1828, %v848
        %v1866 = vsel %vm1857, %v1829, %v850
        %v1867 = vsel %vm1857, %v1830, %v852
        %v1868 = vsel %vm1857, %v1831, %v854
        %v1869 = vsel %vm1857, %v1832, %v856
        %v1870 = vsel %vm1857, %v1833, %v858
        %v1871 = vsel %vm1857, %v1834, %v860
        %v1872 = vsel %vm1857, %v1835, %v862
        %v1873 = vsel %vm1857, %v1836, %v864
        %v1874 = vsel %vm1857, %v1837, %v866
        %v1875 = vsel %vm1857, %v1838, %v868
        %v1876 = vsel %vm1857, %v1839, %v870
        %v1877 = vsel %vm1857, %v1840, %v872
        %v1878 = vsel %vm1857, %v1841, %v874
        %v1879 = vsel %vm1857, %v1842, %v876
        %v1880 = vsel %vm1857, %v1843, %v878
        %v1881 = vsel %vm1857, %v1844, %v880
        %v1882 = vsel %vm1857, %v1845, %v882
        %v1883 = vsel %vm1857, %v1846, %v884
        %v1884 = vsel %vm1857, %v1847, %v886
        %v1885 = vsel %vm1857, %v1848, %v888
        %v1886 = vsel %vm1857, %v1849, %v890
        %v1887 = vsel %vm1857, %v1850, %v892
        %v1888 = vsel %vm1857, %v1851, %v894
        %v1889 = vsel %vm1857, %v1852, %v896
        %v1890 = vsel %vm1857, %v1853, %v898
        %v1891 = vsel %vm1857, %v1854, %v900
        %v1892 = vsel %vm1857, %v1855, %v902
        %v1893 = vsel %vm1857, %v1856, %v904
        %vm1894 = vcmask 130048
        %v1895 = vsel %vm1894, %v1858, %v1016
        %v1896 = vsel %vm1894, %v1859, %v1018
        %v1897 = vsel %vm1894, %v1860, %v1020
        %v1898 = vsel %vm1894, %v1861, %v1022
        %v1899 = vsel %vm1894, %v1862, %v1024
        %v1900 = vsel %vm1894, %v1863, %v1026
        %v1901 = vsel %vm1894, %v1864, %v1028
        %v1902 = vsel %vm1894, %v1865, %v1030
        %v1903 = vsel %vm1894, %v1866, %v1032
        %v1904 = vsel %vm1894, %v1867, %v1034
        %v1905 = vsel %vm1894, %v1868, %v1036
        %v1906 = vsel %vm1894, %v1869, %v1038
        %v1907 = vsel %vm1894, %v1870, %v1040
        %v1908 = vsel %vm1894, %v1871, %v1042
        %v1909 = vsel %vm1894, %v1872, %v1044
        %v1910 = vsel %vm1894, %v1873, %v1046
        %v1911 = vsel %vm1894, %v1874, %v1048
        %v1912 = vsel %vm1894, %v1875, %v1050
        %v1913 = vsel %vm1894, %v1876, %v1052
        %v1914 = vsel %vm1894, %v1877, %v1054
        %v1915 = vsel %vm1894, %v1878, %v1056
        %v1916 = vsel %vm1894, %v1879, %v1058
        %v1917 = vsel %vm1894, %v1880, %v1060
        %v1918 = vsel %vm1894, %v1881, %v1062
        %v1919 = vsel %vm1894, %v1882, %v1064
        %v1920 = vsel %vm1894, %v1883, %v1066
        %v1921 = vsel %vm1894, %v1884, %v1068
        %v1922 = vsel %vm1894, %v1885, %v1070
        %v1923 = vsel %vm1894, %v1886, %v1072
        %v1924 = vsel %vm1894, %v1887, %v1074
        %v1925 = vsel %vm1894, %v1888, %v1076
        %v1926 = vsel %vm1894, %v1889, %v1078
        %v1927 = vsel %vm1894, %v1890, %v1080
        %v1928 = vsel %vm1894, %v1891, %v1082
        %v1929 = vsel %vm1894, %v1892, %v1084
        %v1930 = vsel %vm1894, %v1893, %v1086
        %vm1931 = vcmask 162816
        %v1932 = vsel %vm1931, %v1895, %v1198
        %v1933 = vsel %vm1931, %v1896, %v1200
        %v1934 = vsel %vm1931, %v1897, %v1202
        %v1935 = vsel %vm1931, %v1898, %v1204
        %v1936 = vsel %vm1931, %v1899, %v1206
        %v1937 = vsel %vm1931, %v1900, %v1208
        %v1938 = vsel %vm1931, %v1901, %v1210
        %v1939 = vsel %vm1931, %v1902, %v1212
        %v1940 = vsel %vm1931, %v1903, %v1214
        %v1941 = vsel %vm1931, %v1904, %v1216
        %v1942 = vsel %vm1931, %v1905, %v1218
        %v1943 = vsel %vm1931, %v1906, %v1220
        %v1944 = vsel %vm1931, %v1907, %v1222
        %v1945 = vsel %vm1931, %v1908, %v1224
        %v1946 = vsel %vm1931, %v1909, %v1226
        %v1947 = vsel %vm1931, %v1910, %v1228
        %v1948 = vsel %vm1931, %v1911, %v1230
        %v1949 = vsel %vm1931, %v1912, %v1232
        %v1950 = vsel %vm1931, %v1913, %v1234
        %v1951 = vsel %vm1931, %v1914, %v1236
        %v1952 = vsel %vm1931, %v1915, %v1238
        %v1953 = vsel %vm1931, %v1916, %v1240
        %v1954 = vsel %vm1931, %v1917, %v1242
        %v1955 = vsel %vm1931, %v1918, %v1244
        %v1956 = vsel %vm1931, %v1919, %v1246
        %v1957 = vsel %vm1931, %v1920, %v1248
        %v1958 = vsel %vm1931, %v1921, %v1250
        %v1959 = vsel %vm1931, %v1922, %v1252
        %v1960 = vsel %vm1931, %v1923, %v1254
        %v1961 = vsel %vm1931, %v1924, %v1256
        %v1962 = vsel %vm1931, %v1925, %v1258
        %v1963 = vsel %vm1931, %v1926, %v1260
        %v1964 = vsel %vm1931, %v1927, %v1262
        %v1965 = vsel %vm1931, %v1928, %v1264
        %v1966 = vsel %vm1931, %v1929, %v1266
        %v1967 = vsel %vm1931, %v1930, %v1268
        %vm1968 = vcmask 195584
        %v1969 = vsel %vm1968, %v1932, %v1312
        %v1970 = vsel %vm1968, %v1933, %v1314
        %v1971 = vsel %vm1968, %v1934, %v1316
        %v1972 = vsel %vm1968, %v1935, %v1318
        %v1973 = vsel %vm1968, %v1936, %v1320
        %v1974 = vsel %vm1968, %v1937, %v1322
        %v1975 = vsel %vm1968, %v1938, %v1324
        %v1976 = vsel %vm1968, %v1939, %v1326
        %v1977 = vsel %vm1968, %v1940, %v1328
        %v1978 = vsel %vm1968, %v1941, %v1330
        %v1979 = vsel %vm1968, %v1942, %v1332
        %v1980 = vsel %vm1968, %v1943, %v1334
        %v1981 = vsel %vm1968, %v1944, %v1336
        %v1982 = vsel %vm1968, %v1945, %v1338
        %v1983 = vsel %vm1968, %v1946, %v1340
        %v1984 = vsel %vm1968, %v1947, %v1342
        %v1985 = vsel %vm1968, %v1948, %v1344
        %v1986 = vsel %vm1968, %v1949, %v1346
        %v1987 = vsel %vm1968, %v1950, %v1348
        %v1988 = vsel %vm1968, %v1951, %v1350
        %v1989 = vsel %vm1968, %v1952, %v1352
        %v1990 = vsel %vm1968, %v1953, %v1354
        %v1991 = vsel %vm1968, %v1954, %v1356
        %v1992 = vsel %vm1968, %v1955, %v1358
        %v1993 = vsel %vm1968, %v1956, %v1360
        %v1994 = vsel %vm1968, %v1957, %v1362
        %v1995 = vsel %vm1968, %v1958, %v1364
        %v1996 = vsel %vm1968, %v1959, %v1366
        %v1997 = vsel %vm1968, %v1960, %v1368
        %v1998 = vsel %vm1968, %v1961, %v1370
        %v1999 = vsel %vm1968, %v1962, %v1372
        %v2000 = vsel %vm1968, %v1963, %v1374
        %v2001 = vsel %vm1968, %v1964, %v1376
        %v2002 = vsel %vm1968, %v1965, %v1378
        %v2003 = vsel %vm1968, %v1966, %v1380
        %v2004 = vsel %vm1968, %v1967, %v1382
        %vm2005 = vcmask 228352
        %v2006 = vsel %vm2005, %v1969, %v1494
        %v2007 = vsel %vm2005, %v1970, %v1496
        %v2008 = vsel %vm2005, %v1971, %v1498
        %v2009 = vsel %vm2005, %v1972, %v1500
        %v2010 = vsel %vm2005, %v1973, %v1502
        %v2011 = vsel %vm2005, %v1974, %v1504
        %v2012 = vsel %vm2005, %v1975, %v1506
        %v2013 = vsel %vm2005, %v1976, %v1508
        %v2014 = vsel %vm2005, %v1977, %v1510
        %v2015 = vsel %vm2005, %v1978, %v1512
        %v2016 = vsel %vm2005, %v1979, %v1514
        %v2017 = vsel %vm2005, %v1980, %v1516
        %v2018 = vsel %vm2005, %v1981, %v1518
        %v2019 = vsel %vm2005, %v1982, %v1520
        %v2020 = vsel %vm2005, %v1983, %v1522
        %v2021 = vsel %vm2005, %v1984, %v1524
        %v2022 = vsel %vm2005, %v1985, %v1526
        %v2023 = vsel %vm2005, %v1986, %v1528
        %v2024 = vsel %vm2005, %v1987, %v1530
        %v2025 = vsel %vm2005, %v1988, %v1532
        %v2026 = vsel %vm2005, %v1989, %v1534
        %v2027 = vsel %vm2005, %v1990, %v1536
        %v2028 = vsel %vm2005, %v1991, %v1538
        %v2029 = vsel %vm2005, %v1992, %v1540
        %v2030 = vsel %vm2005, %v1993, %v1542
        %v2031 = vsel %vm2005, %v1994, %v1544
        %v2032 = vsel %vm2005, %v1995, %v1546
        %v2033 = vsel %vm2005, %v1996, %v1548
        %v2034 = vsel %vm2005, %v1997, %v1550
        %v2035 = vsel %vm2005, %v1998, %v1552
        %v2036 = vsel %vm2005, %v1999, %v1554
        %v2037 = vsel %vm2005, %v2000, %v1556
        %v2038 = vsel %vm2005, %v2001, %v1558
        %v2039 = vsel %vm2005, %v2002, %v1560
        %v2040 = vsel %vm2005, %v2003, %v1562
        %v2041 = vsel %vm2005, %v2004, %v1564
        %vm2042 = vcmask 261120
        %v2043 = vsel %vm2042, %v2006, %v1676
        %v2044 = vsel %vm2042, %v2007, %v1678
        %v2045 = vsel %vm2042, %v2008, %v1680
        %v2046 = vsel %vm2042, %v2009, %v1682
        %v2047 = vsel %vm2042, %v2010, %v1684
        %v2048 = vsel %vm2042, %v2011, %v1686
        %v2049 = vsel %vm2042, %v2012, %v1688
        %v2050 = vsel %vm2042, %v2013, %v1690
        %v2051 = vsel %vm2042, %v2014, %v1692
        %v2052 = vsel %vm2042, %v2015, %v1694
        %v2053 = vsel %vm2042, %v2016, %v1696
        %v2054 = vsel %vm2042, %v2017, %v1698
        %v2055 = vsel %vm2042, %v2018, %v1700
        %v2056 = vsel %vm2042, %v2019, %v1702
        %v2057 = vsel %vm2042, %v2020, %v1704
        %v2058 = vsel %vm2042, %v2021, %v1706
        %v2059 = vsel %vm2042, %v2022, %v1708
        %v2060 = vsel %vm2042, %v2023, %v1710
        %v2061 = vsel %vm2042, %v2024, %v1712
        %v2062 = vsel %vm2042, %v2025, %v1714
        %v2063 = vsel %vm2042, %v2026, %v1716
        %v2064 = vsel %vm2042, %v2027, %v1718
        %v2065 = vsel %vm2042, %v2028, %v1720
        %v2066 = vsel %vm2042, %v2029, %v1722
        %v2067 = vsel %vm2042, %v2030, %v1724
        %v2068 = vsel %vm2042, %v2031, %v1726
        %v2069 = vsel %vm2042, %v2032, %v1728
        %v2070 = vsel %vm2042, %v2033, %v1730
        %v2071 = vsel %vm2042, %v2034, %v1732
        %v2072 = vsel %vm2042, %v2035, %v1734
        %v2073 = vsel %vm2042, %v2036, %v1736
        %v2074 = vsel %vm2042, %v2037, %v1738
        %v2075 = vsel %vm2042, %v2038, %v1740
        %v2076 = vsel %vm2042, %v2039, %v1742
        %v2077 = vsel %vm2042, %v2040, %v1744
        %v2078 = vsel %vm2042, %v2041, %v1746
        %v2079 = vpack.c.bf16 %v2044, %v2043
        %v2080 = vpack.c.bf16 %v2046, %v2045
        %v2081 = vpack.c.bf16 %v2048, %v2047
        %v2082 = vpack.c.bf16 %v2050, %v2049
        %v2083 = vpack.c.bf16 %v2052, %v2051
        %v2084 = vpack.c.bf16 %v2054, %v2053
        %v2085 = vpack.c.bf16 %v2056, %v2055
        %v2086 = vpack.c.bf16 %v2058, %v2057
        %v2087 = vpack.c.bf16 %v2060, %v2059
        %v2088 = vpack.c.bf16 %v2062, %v2061
        %v2089 = vpack.c.bf16 %v2064, %v2063
        %v2090 = vpack.c.bf16 %v2066, %v2065
        %v2091 = vpack.c.bf16 %v2068, %v2067
        %v2092 = vpack.c.bf16 %v2070, %v2069
        %v2093 = vpack.c.bf16 %v2072, %v2071
        %v2094 = vpack.c.bf16 %v2074, %v2073
        %v2095 = vpack.c.bf16 %v2076, %v2075
        %v2096 = vpack.c.bf16 %v2078, %v2077
        %v2097 = vld [vmem:[%s3] sm:$0xf]
        %v2098 = vld [vmem:[%s3 + $0x4] sm:$0xf]
        %v2099 = vld [vmem:[%s3 + $0x8] sm:$0xf]
        %v2100 = vld [vmem:[%s3 + $0xc] sm:$0xf]
        %v2101 = vld [vmem:[%s3 + $0x10] sm:$0x3]
        %v2102 = vld [vmem:[%s4] sm:$0x1]
        %v2104 = vlaneseq
        %v2105 = vshrl.u32 %v2104, 7
        %v2106 = vsub.s32 0, %v2105
        %v2107 = vrot.slane %v2102, %v2106
        %v2114 = vunpack.c.l.b16 %v2097
        %v2115 = vunpack.c.l.b16 %v2098
        %v2116 = vunpack.c.l.b16 %v2099
        %v2117 = vunpack.c.l.b16 %v2100
        %v2118 = vunpack.c.l.b16 %v2101
        %v2119 = vpack.c.b16 %v2115, %v2114
        %v2120 = vpack.c.b16 %v2117, %v2116
        %v2121 = vpack.c.b16 %v2118, %v2118
        %vm2124 = vcmask 293888
        %v2126 = vsel %vm2124, %v2079, 0
        %v2129 = vsel %vm2124, %v2080, 0
        %v2132 = vsel %vm2124, %v2081, 0
        %v2135 = vsel %vm2124, %v2082, 0
        %v2138 = vsel %vm2124, %v2083, 0
        %v2141 = vsel %vm2124, %v2084, 0
        %v2144 = vsel %vm2124, %v2085, 0
        %v2147 = vsel %vm2124, %v2086, 0
        %v2150 = vsel %vm2124, %v2087, 0
        %v2153 = vsel %vm2124, %v2088, 0
        %v2156 = vsel %vm2124, %v2089, 0
        %v2159 = vsel %vm2124, %v2090, 0
        %v2162 = vsel %vm2124, %v2091, 0
        %v2165 = vsel %vm2124, %v2092, 0
        %v2168 = vsel %vm2124, %v2093, 0
        %v2171 = vsel %vm2124, %v2094, 0
        %v2174 = vsel %vm2124, %v2095, 0
        %v2177 = vsel %vm2124, %v2096, 0
        %v2180 = vsel %vm1601, %v2121, 0
        %2182 = vmatprep.subr.bf16.mxu0 0
        %2183 = vmatpush1.bf16.msra.mxu0 %v2119
        %2184 = vmatprep.subr.bf16.mxu0 0
        %2185 = vmatpush1.bf16.msra.mxu0 %v2120
        %2186 = vmatprep.subr.bf16.mxu0 0
        %2187 = vmatpush1.bf16.msra.mxu0 %v2180
        %2188 = vmatprep.subr.bf16.mxu0 0
        %2189 = vmatpush1.bf16.msra.mxu0 0
        %2190 = vmatprep.subr.bf16.mxu0 0
        %2191 = vmatpush1.bf16.msra.mxu0 0
        %2192 = vmatprep.subr.bf16.mxu0 0
        %2193 = vmatpush1.bf16.msra.mxu0 0
        %2194 = vmatprep.subr.bf16.mxu0 0
        %2195 = vmatpush1.bf16.msra.mxu0 0
        %2196 = vmatprep.subr.bf16.mxu0 0
        %2197 = vmatpush1.bf16.msra.mxu0 0
        %2198 = vmatprep.subr.bf16.mxu0 0
        %2199 = vmatpush1.bf16.msra.mxu0 0
        %2200 = vmatprep.subr.bf16.mxu0 0
        %2201 = vmatpush1.bf16.msra.mxu0 0
        %2202 = vmatprep.subr.bf16.mxu0 0
        %2203 = vmatpush1.bf16.msra.mxu0 0
        %2204 = vmatprep.subr.bf16.mxu0 0
        %2205 = vmatpush1.bf16.msra.mxu0 0
        %2206 = vmatprep.subr.bf16.mxu0 0
        %2207 = vmatpush1.bf16.msra.mxu0 0
        %2208 = vmatprep.subr.bf16.mxu0 0
        %2209 = vmatpush1.bf16.msra.mxu0 0
        %2210 = vmatprep.subr.bf16.mxu0 0
        %2211 = vmatpush1.bf16.msra.mxu0 0
        %2212 = vmatprep.subr.bf16.mxu0 0
        %2213 = vmatpush1.bf16.msra.mxu0 0
        %2214 = vmatprep.mubr.bf16.mxu0 0
        %2215 = vmatmul.mubr.bf16.gmra.mrb[0].mxu0 %v2126
        %v2216 = vpop.f32.mrb[0].mxu0
        %v2217 = vadd.f32 %v2107, %v2216
        %v2218 = vpop.f32.mrb[0].mxu0
        %v2219 = vpop.f32.mrb[0].mxu0
        %v2220 = vadd.f32 %v2107, %v2219
        %v2221 = vpop.f32.mrb[0].mxu0
        %2222 = vmatprep.mubr.bf16.mxu0 0
        %2223 = vmatmul.mubr.bf16.gmra.mrb[0].mxu0 %v2129
        %v2224 = vpop.f32.mrb[0].mxu0
        %v2225 = vadd.f32 %v2107, %v2224
        %v2226 = vpop.f32.mrb[0].mxu0
        %v2227 = vpop.f32.mrb[0].mxu0
        %v2228 = vadd.f32 %v2107, %v2227
        %v2229 = vpop.f32.mrb[0].mxu0
        %2230 = vmatprep.mubr.bf16.mxu0 0
        %2231 = vmatmul.mubr.bf16.gmra.mrb[0].mxu0 %v2132
        %v2232 = vpop.f32.mrb[0].mxu0
        %v2233 = vadd.f32 %v2107, %v2232
        %v2234 = vpop.f32.mrb[0].mxu0
        %v2235 = vpop.f32.mrb[0].mxu0
        %v2236 = vadd.f32 %v2107, %v2235
        %v2237 = vpop.f32.mrb[0].mxu0
        %2238 = vmatprep.mubr.bf16.mxu0 0
        %2239 = vmatmul.mubr.bf16.gmra.mrb[0].mxu0 %v2135
        %v2240 = vpop.f32.mrb[0].mxu0
        %v2241 = vadd.f32 %v2107, %v2240
        %v2242 = vpop.f32.mrb[0].mxu0
        %v2243 = vpop.f32.mrb[0].mxu0
        %v2244 = vadd.f32 %v2107, %v2243
        %v2245 = vpop.f32.mrb[0].mxu0
        %2246 = vmatprep.mubr.bf16.mxu0 0
        %2247 = vmatmul.mubr.bf16.gmra.mrb[0].mxu0 %v2138
        %v2248 = vpop.f32.mrb[0].mxu0
        %v2249 = vadd.f32 %v2107, %v2248
        %v2250 = vpop.f32.mrb[0].mxu0
        %v2251 = vpop.f32.mrb[0].mxu0
        %v2252 = vadd.f32 %v2107, %v2251
        %v2253 = vpop.f32.mrb[0].mxu0
        %2254 = vmatprep.mubr.bf16.mxu0 0
        %2255 = vmatmul.mubr.bf16.gmra.mrb[0].mxu0 %v2141
        %v2256 = vpop.f32.mrb[0].mxu0
        %v2257 = vadd.f32 %v2107, %v2256
        %v2258 = vpop.f32.mrb[0].mxu0
        %v2259 = vpop.f32.mrb[0].mxu0
        %v2260 = vadd.f32 %v2107, %v2259
        %v2261 = vpop.f32.mrb[0].mxu0
        %2262 = vmatprep.mubr.bf16.mxu0 0
        %2263 = vmatmul.mubr.bf16.gmra.mrb[0].mxu0 %v2144
        %v2264 = vpop.f32.mrb[0].mxu0
        %v2265 = vadd.f32 %v2107, %v2264
        %v2266 = vpop.f32.mrb[0].mxu0
        %v2267 = vpop.f32.mrb[0].mxu0
        %v2268 = vadd.f32 %v2107, %v2267
        %v2269 = vpop.f32.mrb[0].mxu0
        %2270 = vmatprep.mubr.bf16.mxu0 0
        %2271 = vmatmul.mubr.bf16.gmra.mrb[0].mxu0 %v2147
        %v2272 = vpop.f32.mrb[0].mxu0
        %v2273 = vadd.f32 %v2107, %v2272
        %v2274 = vpop.f32.mrb[0].mxu0
        %v2275 = vpop.f32.mrb[0].mxu0
        %v2276 = vadd.f32 %v2107, %v2275
        %v2277 = vpop.f32.mrb[0].mxu0
        %2278 = vmatprep.mubr.bf16.mxu0 0
        %2279 = vmatmul.mubr.bf16.gmra.mrb[0].mxu0 %v2150
        %v2280 = vpop.f32.mrb[0].mxu0
        %v2281 = vadd.f32 %v2107, %v2280
        %v2282 = vpop.f32.mrb[0].mxu0
        %v2283 = vpop.f32.mrb[0].mxu0
        %v2284 = vadd.f32 %v2107, %v2283
        %v2285 = vpop.f32.mrb[0].mxu0
        %2286 = vmatprep.mubr.bf16.mxu0 0
        %2287 = vmatmul.mubr.bf16.gmra.mrb[0].mxu0 %v2153
        %v2288 = vpop.f32.mrb[0].mxu0
        %v2289 = vadd.f32 %v2107, %v2288
        %v2290 = vpop.f32.mrb[0].mxu0
        %v2291 = vpop.f32.mrb[0].mxu0
        %v2292 = vadd.f32 %v2107, %v2291
        %v2293 = vpop.f32.mrb[0].mxu0
        %2294 = vmatprep.mubr.bf16.mxu0 0
        %2295 = vmatmul.mubr.bf16.gmra.mrb[0].mxu0 %v2156
        %v2296 = vpop.f32.mrb[0].mxu0
        %v2297 = vadd.f32 %v2107, %v2296
        %v2298 = vpop.f32.mrb[0].mxu0
        %v2299 = vpop.f32.mrb[0].mxu0
        %v2300 = vadd.f32 %v2107, %v2299
        %v2301 = vpop.f32.mrb[0].mxu0
        %2302 = vmatprep.mubr.bf16.mxu0 0
        %2303 = vmatmul.mubr.bf16.gmra.mrb[0].mxu0 %v2159
        %v2304 = vpop.f32.mrb[0].mxu0
        %v2305 = vadd.f32 %v2107, %v2304
        %v2306 = vpop.f32.mrb[0].mxu0
        %v2307 = vpop.f32.mrb[0].mxu0
        %v2308 = vadd.f32 %v2107, %v2307
        %v2309 = vpop.f32.mrb[0].mxu0
        %2310 = vmatprep.mubr.bf16.mxu0 0
        %2311 = vmatmul.mubr.bf16.gmra.mrb[0].mxu0 %v2162
        %v2312 = vpop.f32.mrb[0].mxu0
        %v2313 = vadd.f32 %v2107, %v2312
        %v2314 = vpop.f32.mrb[0].mxu0
        %v2315 = vpop.f32.mrb[0].mxu0
        %v2316 = vadd.f32 %v2107, %v2315
        %v2317 = vpop.f32.mrb[0].mxu0
        %2318 = vmatprep.mubr.bf16.mxu0 0
        %2319 = vmatmul.mubr.bf16.gmra.mrb[0].mxu0 %v2165
        %v2320 = vpop.f32.mrb[0].mxu0
        %v2321 = vadd.f32 %v2107, %v2320
        %v2322 = vpop.f32.mrb[0].mxu0
        %v2323 = vpop.f32.mrb[0].mxu0
        %v2324 = vadd.f32 %v2107, %v2323
        %v2325 = vpop.f32.mrb[0].mxu0
        %2326 = vmatprep.mubr.bf16.mxu0 0
        %2327 = vmatmul.mubr.bf16.gmra.mrb[0].mxu0 %v2168
        %v2328 = vpop.f32.mrb[0].mxu0
        %v2329 = vadd.f32 %v2107, %v2328
        %v2330 = vpop.f32.mrb[0].mxu0
        %v2331 = vpop.f32.mrb[0].mxu0
        %v2332 = vadd.f32 %v2107, %v2331
        %v2333 = vpop.f32.mrb[0].mxu0
        %2334 = vmatprep.mubr.bf16.mxu0 0
        %2335 = vmatmul.mubr.bf16.gmra.mrb[0].mxu0 %v2171
        %v2336 = vpop.f32.mrb[0].mxu0
        %v2337 = vadd.f32 %v2107, %v2336
        %v2338 = vpop.f32.mrb[0].mxu0
        %v2339 = vpop.f32.mrb[0].mxu0
        %v2340 = vadd.f32 %v2107, %v2339
        %v2341 = vpop.f32.mrb[0].mxu0
        %2342 = vmatprep.mubr.bf16.mxu0 0
        %2343 = vmatmul.mubr.bf16.gmra.mrb[0].mxu0 %v2174
        %v2344 = vpop.f32.mrb[0].mxu0
        %v2345 = vadd.f32 %v2107, %v2344
        %v2346 = vpop.f32.mrb[0].mxu0
        %v2347 = vpop.f32.mrb[0].mxu0
        %v2348 = vadd.f32 %v2107, %v2347
        %v2349 = vpop.f32.mrb[0].mxu0
        %2350 = vmatprep.mubr.bf16.mxu0 0
        %2351 = vmatmul.mubr.bf16.gmra.mrb[0].mxu0 %v2177
        %v2352 = vpop.f32.mrb[0].mxu0
        %v2353 = vadd.f32 %v2107, %v2352
        %v2354 = vpop.f32.mrb[0].mxu0
        %v2355 = vpop.f32.mrb[0].mxu0
        %v2356 = vadd.f32 %v2107, %v2355
        %v2357 = vpop.f32.mrb[0].mxu0
        %2358 = vdwg.mxu0
        %v2359 = vmax.f32 %v2217, 1e-06
        %v2360 = vmax.f32 %v2220, 1e-06
        %v2361 = vmax.f32 %v2225, 1e-06
        %v2362 = vmax.f32 %v2228, 1e-06
        %v2363 = vmax.f32 %v2233, 1e-06
        %v2364 = vmax.f32 %v2236, 1e-06
        %v2365 = vmax.f32 %v2241, 1e-06
        %v2366 = vmax.f32 %v2244, 1e-06
        %v2367 = vmax.f32 %v2249, 1e-06
        %v2368 = vmax.f32 %v2252, 1e-06
        %v2369 = vmax.f32 %v2257, 1e-06
        %v2370 = vmax.f32 %v2260, 1e-06
        %v2371 = vmax.f32 %v2265, 1e-06
        %v2372 = vmax.f32 %v2268, 1e-06
        %v2373 = vmax.f32 %v2273, 1e-06
        %v2374 = vmax.f32 %v2276, 1e-06
        %v2375 = vmax.f32 %v2281, 1e-06
        %v2376 = vmax.f32 %v2284, 1e-06
        %v2377 = vmax.f32 %v2289, 1e-06
        %v2378 = vmax.f32 %v2292, 1e-06
        %v2379 = vmax.f32 %v2297, 1e-06
        %v2380 = vmax.f32 %v2300, 1e-06
        %v2381 = vmax.f32 %v2305, 1e-06
        %v2382 = vmax.f32 %v2308, 1e-06
        %v2383 = vmax.f32 %v2313, 1e-06
        %v2384 = vmax.f32 %v2316, 1e-06
        %v2385 = vmax.f32 %v2321, 1e-06
        %v2386 = vmax.f32 %v2324, 1e-06
        %v2387 = vmax.f32 %v2329, 1e-06
        %v2388 = vmax.f32 %v2332, 1e-06
        %v2389 = vmax.f32 %v2337, 1e-06
        %v2390 = vmax.f32 %v2340, 1e-06
        %v2391 = vmax.f32 %v2345, 1e-06
        %v2392 = vmax.f32 %v2348, 1e-06
        %v2393 = vmax.f32 %v2353, 1e-06
        %v2394 = vmax.f32 %v2356, 1e-06
        %v2395 = vld [vmem:[%s2] sm:$0xff]
        %v2396 = vld [vmem:[%s2 + $0x8] sm:$0xff]
        %v2397 = vld [vmem:[%s2 + $0x10] sm:$0xff]
        %v2398 = vld [vmem:[%s2 + $0x18] sm:$0xff]
        %v2399 = vld [vmem:[%s2 + $0x20] sm:$0xff]
        %v2400 = vld [vmem:[%s2 + $0x28] sm:$0xff]
        %v2401 = vld [vmem:[%s2 + $0x30] sm:$0xff]
        %v2402 = vld [vmem:[%s2 + $0x38] sm:$0xff]
        %v2403 = vld [vmem:[%s2 + $0x40] sm:$0xff]
        %v2404 = vld [vmem:[%s2 + $0x48] sm:$0xff]
        %v2405 = vld [vmem:[%s2 + $0x50] sm:$0xff]
        %v2406 = vld [vmem:[%s2 + $0x58] sm:$0xff]
        %v2407 = vld [vmem:[%s2 + $0x60] sm:$0xff]
        %v2408 = vld [vmem:[%s2 + $0x68] sm:$0xff]
        %v2409 = vld [vmem:[%s2 + $0x70] sm:$0xff]
        %v2410 = vld [vmem:[%s2 + $0x78] sm:$0xff]
        %v2411 = vld [vmem:[%s2 + $0x80] sm:$0xff]
        %v2412 = vld [vmem:[%s2 + $0x88] sm:$0xff]
        %v2413 = vld [vmem:[%s2 + $0x90] sm:$0xff]
        %v2414 = vld [vmem:[%s2 + $0x98] sm:$0xff]
        %v2415 = vld [vmem:[%s2 + $0xa0] sm:$0xff]
        %v2416 = vld [vmem:[%s2 + $0xa8] sm:$0xff]
        %v2417 = vld [vmem:[%s2 + $0xb0] sm:$0xff]
        %v2418 = vld [vmem:[%s2 + $0xb8] sm:$0xff]
        %v2419 = vld [vmem:[%s2 + $0xc0] sm:$0xff]
        %v2420 = vld [vmem:[%s2 + $0xc8] sm:$0xff]
        %v2421 = vld [vmem:[%s2 + $0xd0] sm:$0xff]
        %v2422 = vld [vmem:[%s2 + $0xd8] sm:$0xff]
        %v2423 = vld [vmem:[%s2 + $0xe0] sm:$0xff]
        %v2424 = vld [vmem:[%s2 + $0xe8] sm:$0xff]
        %v2425 = vld [vmem:[%s2 + $0xf0] sm:$0xff]
        %v2426 = vld [vmem:[%s2 + $0xf8] sm:$0xff]
        %v2427 = vld [vmem:[%s2 + $0x100] sm:$0xff]
        %v2428 = vld [vmem:[%s2 + $0x108] sm:$0xff]
        %v2429 = vld [vmem:[%s2 + $0x110] sm:$0xff]
        %v2430 = vld [vmem:[%s2 + $0x118] sm:$0xff]
        %2432 = vset.pattern.permute.xlu0 0
        %2433 = vperm.xlu0 %2432, %v2395
        %v2434 = vpop.permute.xlu0 %2433
        %2437 = vset.pattern.permute.xlu0 0
        %2438 = vperm.xlu0 %2437, %v2396
        %v2439 = vpop.permute.xlu0 %2438
        %2442 = vset.pattern.permute.xlu0 0
        %2443 = vperm.xlu0 %2442, %v2397
        %v2444 = vpop.permute.xlu0 %2443
        %2447 = vset.pattern.permute.xlu0 0
        %2448 = vperm.xlu0 %2447, %v2398
        %v2449 = vpop.permute.xlu0 %2448
        %2452 = vset.pattern.permute.xlu0 0
        %2453 = vperm.xlu0 %2452, %v2399
        %v2454 = vpop.permute.xlu0 %2453
        %2457 = vset.pattern.permute.xlu0 0
        %2458 = vperm.xlu0 %2457, %v2400
        %v2459 = vpop.permute.xlu0 %2458
        %2462 = vset.pattern.permute.xlu0 0
        %2463 = vperm.xlu0 %2462, %v2401
        %v2464 = vpop.permute.xlu0 %2463
        %2467 = vset.pattern.permute.xlu0 0
        %2468 = vperm.xlu0 %2467, %v2402
        %v2469 = vpop.permute.xlu0 %2468
        %2472 = vset.pattern.permute.xlu0 0
        %2473 = vperm.xlu0 %2472, %v2403
        %v2474 = vpop.permute.xlu0 %2473
        %2477 = vset.pattern.permute.xlu0 0
        %2478 = vperm.xlu0 %2477, %v2404
        %v2479 = vpop.permute.xlu0 %2478
        %2482 = vset.pattern.permute.xlu0 0
        %2483 = vperm.xlu0 %2482, %v2405
        %v2484 = vpop.permute.xlu0 %2483
        %2487 = vset.pattern.permute.xlu0 0
        %2488 = vperm.xlu0 %2487, %v2406
        %v2489 = vpop.permute.xlu0 %2488
        %2492 = vset.pattern.permute.xlu0 0
        %2493 = vperm.xlu0 %2492, %v2407
        %v2494 = vpop.permute.xlu0 %2493
        %2497 = vset.pattern.permute.xlu0 0
        %2498 = vperm.xlu0 %2497, %v2408
        %v2499 = vpop.permute.xlu0 %2498
        %2502 = vset.pattern.permute.xlu0 0
        %2503 = vperm.xlu0 %2502, %v2409
        %v2504 = vpop.permute.xlu0 %2503
        %2507 = vset.pattern.permute.xlu0 0
        %2508 = vperm.xlu0 %2507, %v2410
        %v2509 = vpop.permute.xlu0 %2508
        %2512 = vset.pattern.permute.xlu0 0
        %2513 = vperm.xlu0 %2512, %v2411
        %v2514 = vpop.permute.xlu0 %2513
        %2517 = vset.pattern.permute.xlu0 0
        %2518 = vperm.xlu0 %2517, %v2412
        %v2519 = vpop.permute.xlu0 %2518
        %2522 = vset.pattern.permute.xlu0 0
        %2523 = vperm.xlu0 %2522, %v2413
        %v2524 = vpop.permute.xlu0 %2523
        %2527 = vset.pattern.permute.xlu0 0
        %2528 = vperm.xlu0 %2527, %v2414
        %v2529 = vpop.permute.xlu0 %2528
        %2532 = vset.pattern.permute.xlu0 0
        %2533 = vperm.xlu0 %2532, %v2415
        %v2534 = vpop.permute.xlu0 %2533
        %2537 = vset.pattern.permute.xlu0 0
        %2538 = vperm.xlu0 %2537, %v2416
        %v2539 = vpop.permute.xlu0 %2538
        %2542 = vset.pattern.permute.xlu0 0
        %2543 = vperm.xlu0 %2542, %v2417
        %v2544 = vpop.permute.xlu0 %2543
        %2547 = vset.pattern.permute.xlu0 0
        %2548 = vperm.xlu0 %2547, %v2418
        %v2549 = vpop.permute.xlu0 %2548
        %2552 = vset.pattern.permute.xlu0 0
        %2553 = vperm.xlu0 %2552, %v2419
        %v2554 = vpop.permute.xlu0 %2553
        %2557 = vset.pattern.permute.xlu0 0
        %2558 = vperm.xlu0 %2557, %v2420
        %v2559 = vpop.permute.xlu0 %2558
        %2562 = vset.pattern.permute.xlu0 0
        %2563 = vperm.xlu0 %2562, %v2421
        %v2564 = vpop.permute.xlu0 %2563
        %2567 = vset.pattern.permute.xlu0 0
        %2568 = vperm.xlu0 %2567, %v2422
        %v2569 = vpop.permute.xlu0 %2568
        %2572 = vset.pattern.permute.xlu0 0
        %2573 = vperm.xlu0 %2572, %v2423
        %v2574 = vpop.permute.xlu0 %2573
        %2577 = vset.pattern.permute.xlu0 0
        %2578 = vperm.xlu0 %2577, %v2424
        %v2579 = vpop.permute.xlu0 %2578
        %2582 = vset.pattern.permute.xlu0 0
        %2583 = vperm.xlu0 %2582, %v2425
        %v2584 = vpop.permute.xlu0 %2583
        %2587 = vset.pattern.permute.xlu0 0
        %2588 = vperm.xlu0 %2587, %v2426
        %v2589 = vpop.permute.xlu0 %2588
        %2592 = vset.pattern.permute.xlu0 0
        %2593 = vperm.xlu0 %2592, %v2427
        %v2594 = vpop.permute.xlu0 %2593
        %2597 = vset.pattern.permute.xlu0 0
        %2598 = vperm.xlu0 %2597, %v2428
        %v2599 = vpop.permute.xlu0 %2598
        %2602 = vset.pattern.permute.xlu0 0
        %2603 = vperm.xlu0 %2602, %v2429
        %v2604 = vpop.permute.xlu0 %2603
        %2607 = vset.pattern.permute.xlu0 0
        %2608 = vperm.xlu0 %2607, %v2430
        %v2609 = vpop.permute.xlu0 %2608
        %v2611 = vmul.f32 %v2359, %v2434
        %v2612 = vmul.f32 %v2360, %v2439
        %v2613 = vmul.f32 %v2361, %v2444
        %v2614 = vmul.f32 %v2362, %v2449
        %v2615 = vmul.f32 %v2363, %v2454
        %v2616 = vmul.f32 %v2364, %v2459
        %v2617 = vmul.f32 %v2365, %v2464
        %v2618 = vmul.f32 %v2366, %v2469
        %v2619 = vmul.f32 %v2367, %v2474
        %v2620 = vmul.f32 %v2368, %v2479
        %v2621 = vmul.f32 %v2369, %v2484
        %v2622 = vmul.f32 %v2370, %v2489
        %v2623 = vmul.f32 %v2371, %v2494
        %v2624 = vmul.f32 %v2372, %v2499
        %v2625 = vmul.f32 %v2373, %v2504
        %v2626 = vmul.f32 %v2374, %v2509
        %v2627 = vmul.f32 %v2375, %v2514
        %v2628 = vmul.f32 %v2376, %v2519
        %v2629 = vmul.f32 %v2377, %v2524
        %v2630 = vmul.f32 %v2378, %v2529
        %v2631 = vmul.f32 %v2379, %v2534
        %v2632 = vmul.f32 %v2380, %v2539
        %v2633 = vmul.f32 %v2381, %v2544
        %v2634 = vmul.f32 %v2382, %v2549
        %v2635 = vmul.f32 %v2383, %v2554
        %v2636 = vmul.f32 %v2384, %v2559
        %v2637 = vmul.f32 %v2385, %v2564
        %v2638 = vmul.f32 %v2386, %v2569
        %v2639 = vmul.f32 %v2387, %v2574
        %v2640 = vmul.f32 %v2388, %v2579
        %v2641 = vmul.f32 %v2389, %v2584
        %v2642 = vmul.f32 %v2390, %v2589
        %v2643 = vmul.f32 %v2391, %v2594
        %v2644 = vmul.f32 %v2392, %v2599
        %v2645 = vmul.f32 %v2393, %v2604
        %v2646 = vmul.f32 %v2394, %v2609
        %v2647 = vmul.f32 %v2359, %v2359
        %v2648 = vmul.f32 %v2360, %v2360
        %v2649 = vmul.f32 %v2361, %v2361
        %v2650 = vmul.f32 %v2362, %v2362
        %v2651 = vmul.f32 %v2363, %v2363
        %v2652 = vmul.f32 %v2364, %v2364
        %v2653 = vmul.f32 %v2365, %v2365
        %v2654 = vmul.f32 %v2366, %v2366
        %v2655 = vmul.f32 %v2367, %v2367
        %v2656 = vmul.f32 %v2368, %v2368
        %v2657 = vmul.f32 %v2369, %v2369
        %v2658 = vmul.f32 %v2370, %v2370
        %v2659 = vmul.f32 %v2371, %v2371
        %v2660 = vmul.f32 %v2372, %v2372
        %v2661 = vmul.f32 %v2373, %v2373
        %v2662 = vmul.f32 %v2374, %v2374
        %v2663 = vmul.f32 %v2375, %v2375
        %v2664 = vmul.f32 %v2376, %v2376
        %v2665 = vmul.f32 %v2377, %v2377
        %v2666 = vmul.f32 %v2378, %v2378
        %v2667 = vmul.f32 %v2379, %v2379
        %v2668 = vmul.f32 %v2380, %v2380
        %v2669 = vmul.f32 %v2381, %v2381
        %v2670 = vmul.f32 %v2382, %v2382
        %v2671 = vmul.f32 %v2383, %v2383
        %v2672 = vmul.f32 %v2384, %v2384
        %v2673 = vmul.f32 %v2385, %v2385
        %v2674 = vmul.f32 %v2386, %v2386
        %v2675 = vmul.f32 %v2387, %v2387
        %v2676 = vmul.f32 %v2388, %v2388
        %v2677 = vmul.f32 %v2389, %v2389
        %v2678 = vmul.f32 %v2390, %v2390
        %v2679 = vmul.f32 %v2391, %v2391
        %v2680 = vmul.f32 %v2392, %v2392
        %v2681 = vmul.f32 %v2393, %v2393
        %v2682 = vmul.f32 %v2394, %v2394
        %v2683 = vmul.f32 %v2611, %v2647
        %v2684 = vmul.f32 %v2612, %v2648
        %v2685 = vmul.f32 %v2613, %v2649
        %v2686 = vmul.f32 %v2614, %v2650
        %v2687 = vmul.f32 %v2615, %v2651
        %v2688 = vmul.f32 %v2616, %v2652
        %v2689 = vmul.f32 %v2617, %v2653
        %v2690 = vmul.f32 %v2618, %v2654
        %v2691 = vmul.f32 %v2619, %v2655
        %v2692 = vmul.f32 %v2620, %v2656
        %v2693 = vmul.f32 %v2621, %v2657
        %v2694 = vmul.f32 %v2622, %v2658
        %v2695 = vmul.f32 %v2623, %v2659
        %v2696 = vmul.f32 %v2624, %v2660
        %v2697 = vmul.f32 %v2625, %v2661
        %v2698 = vmul.f32 %v2626, %v2662
        %v2699 = vmul.f32 %v2627, %v2663
        %v2700 = vmul.f32 %v2628, %v2664
        %v2701 = vmul.f32 %v2629, %v2665
        %v2702 = vmul.f32 %v2630, %v2666
        %v2703 = vmul.f32 %v2631, %v2667
        %v2704 = vmul.f32 %v2632, %v2668
        %v2705 = vmul.f32 %v2633, %v2669
        %v2706 = vmul.f32 %v2634, %v2670
        %v2707 = vmul.f32 %v2635, %v2671
        %v2708 = vmul.f32 %v2636, %v2672
        %v2709 = vmul.f32 %v2637, %v2673
        %v2710 = vmul.f32 %v2638, %v2674
        %v2711 = vmul.f32 %v2639, %v2675
        %v2712 = vmul.f32 %v2640, %v2676
        %v2713 = vmul.f32 %v2641, %v2677
        %v2714 = vmul.f32 %v2642, %v2678
        %v2715 = vmul.f32 %v2643, %v2679
        %v2716 = vmul.f32 %v2644, %v2680
        %v2717 = vmul.f32 %v2645, %v2681
        %v2718 = vmul.f32 %v2646, %v2682
        %v2719 = vld [vmem:[#allocation2] sm:$0x1]
        %v2720 = vadd.f32 %v2683, %v2684
        %v2721 = vadd.f32 %v2720, %v2685
        %v2722 = vadd.f32 %v2721, %v2686
        %v2723 = vadd.f32 %v2722, %v2687
        %v2724 = vadd.f32 %v2723, %v2688
        %v2725 = vadd.f32 %v2724, %v2689
        %v2726 = vadd.f32 %v2725, %v2690
        %v2727 = vadd.f32 %v2726, %v2691
        %v2728 = vadd.f32 %v2727, %v2692
        %v2729 = vadd.f32 %v2728, %v2693
        %v2730 = vadd.f32 %v2729, %v2694
        %v2731 = vadd.f32 %v2730, %v2695
        %v2732 = vadd.f32 %v2731, %v2696
        %v2733 = vadd.f32 %v2732, %v2697
        %v2734 = vadd.f32 %v2733, %v2698
        %v2735 = vadd.f32 %v2734, %v2699
        %v2736 = vadd.f32 %v2735, %v2700
        %v2737 = vadd.f32 %v2736, %v2701
        %v2738 = vadd.f32 %v2737, %v2702
        %v2739 = vadd.f32 %v2738, %v2703
        %v2740 = vadd.f32 %v2739, %v2704
        %v2741 = vadd.f32 %v2740, %v2705
        %v2742 = vadd.f32 %v2741, %v2706
        %v2743 = vadd.f32 %v2742, %v2707
        %v2744 = vadd.f32 %v2743, %v2708
        %v2745 = vadd.f32 %v2744, %v2709
        %v2746 = vadd.f32 %v2745, %v2710
        %v2747 = vadd.f32 %v2746, %v2711
        %v2748 = vadd.f32 %v2747, %v2712
        %v2749 = vadd.f32 %v2748, %v2713
        %v2750 = vadd.f32 %v2749, %v2714
        %v2751 = vadd.f32 %v2750, %v2715
        %v2752 = vadd.f32 %v2751, %v2716
        %v2753 = vadd.f32 %v2752, %v2717
        %v2754 = vadd.f32 %v2753, %v2718
        %v2755 = vrot.slane %v2754, 4
        %v2756 = vadd.f32 %v2754, %v2755
        %v2757 = vrot.slane %v2756, 2
        %v2758 = vadd.f32 %v2756, %v2757
        %v2759 = vrot.slane %v2758, 1
        %v2760 = vadd.f32 %v2758, %v2759
        %v2761 = vadd.f32 %v2719, %v2760
        %2762 = vst [vmem:[#allocation2] sm:$0x1] %v2761
        // Predicated region
        $region53: #{tpu_custom_call.1} parent=47 // pred_check
          %p2763 = pneg %p339
        $region54: #{tpu_custom_call.1} parent=47 // pred_check_branch
          %2765 = sbr.rel (%p2763) target = $region56
        $region55: #{tpu_custom_call.1} parent=47 // pred_region
          %v2766 = vld [vmem:[#allocation2] sm:$0x1]
          %v2767 = vmul.f32 %v2766, 0.00390625
          %v2768 = vlog2.pop %v2767
          %v2769 = vmul.f32 %v2768, 0.6931472
          %v2770 = vmul.f32 %v2769, 0.33333334
          %v2771 = vmul.f32 %v2770, 1.442695
          %v2772 = vpow.pop %v2771
          %v2773 = vlaneseq
          %v2774 = vand.u32 %v2773, 127
          %vm2775 = vcmp.lt.s32.totalorder %v2774, 32
          %v2776 = vsel %vm2775, %v2772, 0.0
          %v2777 = vmul.f32 %v2776, %v2776
          %vm2778 = vcmask 1040384
          %v2779 = vsel %vm2778, %v2777, 0.0
          %2780 = vadd.xlane.f32.xlu0 %v2779
          %v2781 = vpop.xlane.xlu0 %2780
          %v2782 = vrsqrt.pop %v2781
          %v2783 = vmul.f32 %v2781, %v2782
          %vm2784 = vcmp.eq.f32.partialorder %v2781, inf
          %v2785 = vsel %vm2784, %v2781, %v2783
          %vm2786 = vcmp.eq.f32.partialorder %v2781, 0.0
          %v2787 = vand.u32 %v2781, 2147483648
          %v2788 = vsel %vm2786, %v2787, %v2785
          %v2789 = vadd.f32 %v2788, 1e-06
          %v2790 = vrcp.pop %v2789
          %v2791 = vmul.f32 %v2776, %v2790
          %v2792 = vpack.c.bf16 %v2791, %v2791
          %v2793 = vld [vmem:[%s5] sm:$0xf]
          %v2794 = vld [vmem:[%s5 + $0x4] sm:$0xf]
          %v2795 = vld [vmem:[%s5 + $0x8] sm:$0xf]
          %v2796 = vld [vmem:[%s5 + $0xc] sm:$0xf]
          %v2797 = vld [vmem:[%s5 + $0x10] sm:$0xf]
          %v2798 = vld [vmem:[%s5 + $0x14] sm:$0xf]
          %v2799 = vld [vmem:[%s5 + $0x18] sm:$0xf]
          %v2800 = vld [vmem:[%s5 + $0x1c] sm:$0xf]
          %v2801 = vld [vmem:[%s5 + $0x20] sm:$0xf]
          %v2802 = vld [vmem:[%s5 + $0x24] sm:$0xf]
          %v2803 = vld [vmem:[%s5 + $0x28] sm:$0xf]
          %v2804 = vld [vmem:[%s5 + $0x2c] sm:$0xf]
          %v2805 = vld [vmem:[%s5 + $0x30] sm:$0xf]
          %v2806 = vld [vmem:[%s5 + $0x34] sm:$0xf]
          %v2807 = vld [vmem:[%s5 + $0x38] sm:$0xf]
          %v2808 = vld [vmem:[%s5 + $0x3c] sm:$0xf]
          %v2809 = vld [vmem:[%s6] sm:$0x1]
          %v2826 = vunpack.c.l.b16 %v2793
          %v2827 = vunpack.c.l.b16 %v2794
          %v2828 = vunpack.c.l.b16 %v2795
          %v2829 = vunpack.c.l.b16 %v2796
          %v2830 = vunpack.c.l.b16 %v2797
          %v2831 = vunpack.c.l.b16 %v2798
          %v2832 = vunpack.c.l.b16 %v2799
          %v2833 = vunpack.c.l.b16 %v2800
          %v2834 = vunpack.c.l.b16 %v2801
          %v2835 = vunpack.c.l.b16 %v2802
          %v2836 = vunpack.c.l.b16 %v2803
          %v2837 = vunpack.c.l.b16 %v2804
          %v2838 = vunpack.c.l.b16 %v2805
          %v2839 = vunpack.c.l.b16 %v2806
          %v2840 = vunpack.c.l.b16 %v2807
          %v2841 = vunpack.c.l.b16 %v2808
          %v2842 = vpack.c.b16 %v2827, %v2826
          %v2843 = vpack.c.b16 %v2829, %v2828
          %v2844 = vpack.c.b16 %v2831, %v2830
          %v2845 = vpack.c.b16 %v2833, %v2832
          %v2846 = vpack.c.b16 %v2835, %v2834
          %v2847 = vpack.c.b16 %v2837, %v2836
          %v2848 = vpack.c.b16 %v2839, %v2838
          %v2849 = vpack.c.b16 %v2841, %v2840
          %2858 = vmatprep.subr.bf16.mxu0 0
          %2859 = vmatpush1.bf16.msra.mxu0 %v2842
          %2860 = vmatprep.subr.bf16.mxu0 0
          %2861 = vmatpush1.bf16.msra.mxu0 %v2843
          %2862 = vmatprep.subr.bf16.mxu0 0
          %2863 = vmatpush1.bf16.msra.mxu0 %v2844
          %2864 = vmatprep.subr.bf16.mxu0 0
          %2865 = vmatpush1.bf16.msra.mxu0 %v2845
          %2866 = vmatprep.subr.bf16.mxu0 0
          %2867 = vmatpush1.bf16.msra.mxu0 %v2846
          %2868 = vmatprep.subr.bf16.mxu0 0
          %2869 = vmatpush1.bf16.msra.mxu0 %v2847
          %2870 = vmatprep.subr.bf16.mxu0 0
          %2871 = vmatpush1.bf16.msra.mxu0 %v2848
          %2872 = vmatprep.subr.bf16.mxu0 0
          %2873 = vmatpush1.bf16.msra.mxu0 %v2849
          %2874 = vmatprep.subr.bf16.mxu0 0
          %2875 = vmatpush1.bf16.msra.mxu0 0
          %2876 = vmatprep.subr.bf16.mxu0 0
          %2877 = vmatpush1.bf16.msra.mxu0 0
          %2878 = vmatprep.subr.bf16.mxu0 0
          %2879 = vmatpush1.bf16.msra.mxu0 0
          %2880 = vmatprep.subr.bf16.mxu0 0
          %2881 = vmatpush1.bf16.msra.mxu0 0
          %2882 = vmatprep.subr.bf16.mxu0 0
          %2883 = vmatpush1.bf16.msra.mxu0 0
          %2884 = vmatprep.subr.bf16.mxu0 0
          %2885 = vmatpush1.bf16.msra.mxu0 0
          %2886 = vmatprep.subr.bf16.mxu0 0
          %2887 = vmatpush1.bf16.msra.mxu0 0
          %2888 = vmatprep.subr.bf16.mxu0 0
          %2889 = vmatpush1.bf16.msra.mxu0 0
          %2890 = vmatprep.mubr.bf16.mxu0 0
          %2891 = vmatmul.mubr.bf16.gmra.mrb[0].mxu0 %v2792
          %v2892 = vpop.f32.mrb[0].mxu0
          %v2893 = vadd.f32 %v2809, %v2892
          %v2894 = vpop.f32.mrb[0].mxu0
          %v2895 = vpop.f32.mrb[0].mxu0
          %v2896 = vpop.f32.mrb[0].mxu0
          %2897 = vdwg.mxu0
          %v2898 = vmul.f32 %v2893, %v2893
          %v2899 = vsel %vm2778, %v2898, 0.0
          %2900 = vadd.xlane.f32.xlu0 %v2899
          %v2901 = vpop.xlane.xlu0 %2900
          %v2902 = vrsqrt.pop %v2901
          %v2903 = vmul.f32 %v2901, %v2902
          %vm2904 = vcmp.eq.f32.partialorder %v2901, inf
          %v2905 = vsel %vm2904, %v2901, %v2903
          %vm2906 = vcmp.eq.f32.partialorder %v2901, 0.0
          %v2907 = vand.u32 %v2901, 2147483648
          %v2908 = vsel %vm2906, %v2907, %v2905
          %v2909 = vadd.f32 %v2908, 1e-06
          %v2910 = vrcp.pop %v2909
          %v2911 = vmul.f32 %v2893, %v2910
          %2912 = vst [vmem:[%s318] sm:$0x1] %v2911
        $region56: #{tpu_custom_call.1} parent=47 // pred_fallthru
          _
        %s2913 = sand.u32 %s202, 1
        %s2914 = scalar_lea.sflag [#allocation4], %s2913
        %s2915 = sand.u32 %s202, 1
        %s2916 = scalar_lea.vmem [#allocation3], %s2915
        // Predicated region
        $region57: #{tpu_custom_call.1} parent=47 // pred_check
          %p2917 = pneg %p212
        $region58: #{tpu_custom_call.1} parent=47 // pred_check_branch
          %2919 = sbr.rel (%p2917) target = $region60
        $region59: #{tpu_custom_call.1} parent=47 // pred_region
          %s2921 = ssub.s32 16, 16
          %2922 = vsyncadd %s2914, %s2921
          %s2923 = smul.addr %s25, 16
          %s2924 = scalar_lea.hbm %s7, %s2923
          %s2926 = sshll.u32 %s2916, 4
          %s2927 = int_to_ptr.vmem [resolvable:$true] %s2926
          %2929 = dma.vmem_to_hbm [thread:$0]  %s2927, 16, %s2924, %s2914
        $region60: #{tpu_custom_call.1} parent=47 // pred_fallthru
          _
      $region48: #{tpu_custom_call.1} parent=5 // pred_fallthru
        _
      %p2930 = scmp.le.s32.totalorder 2, %s16
      // Predicated region
      $region61: #{tpu_custom_call.1} parent=5 // pred_check
        %p2931 = pneg %p2930
      $region62: #{tpu_custom_call.1} parent=5 // pred_check_branch
        %2933 = sbr.rel (%p2931) target = $region64
      $region63: #{tpu_custom_call.1} parent=5 // pred_region
        %s2934 = ssub.s32 %s16, 2
        // Predicated region
        $region65: #{tpu_custom_call.1} parent=63 // pred_check
          %p2935 = pneg %p218
        $region66: #{tpu_custom_call.1} parent=63 // pred_check_branch
          %2937 = sbr.rel (%p2935) target = $region68
        $region67: #{tpu_custom_call.1} parent=63 // pred_region
          %s2938 = sand.u32 %s203, 1
          %s2939 = scalar_lea.sflag [#allocation4], %s2938
          %s2940 = sand.u32 %s203, 1
          %s2941 = scalar_lea.vmem [#allocation3], %s2940
          %2942 = dma.done %s2939, 16
        $region68: #{tpu_custom_call.1} parent=63 // pred_fallthru
          _
      $region64: #{tpu_custom_call.1} parent=5 // pred_fallthru
        _
    $region6: #{tpu_custom_call.1} parent=1 // loop_footer
      %s20 = sadd.s32 1, %s16
    $region7: #{tpu_custom_call.1} parent=1 // loop_footer_branch
      %15 = sbr.rel target = $region3
    $region8: #{tpu_custom_call.1} parent=1 // loop_exit
      _
    %2943 = vsyncpa [#allocation4], 1
    %s2944 = scalar_lea.sflag [#allocation4], 1
    %2945 = vsyncpa %s2944, 1

// kernel: tpu_custom_call.1
$region0: #{tpu_custom_call.1}
  #allocation0 [shape = 'u32[]', space=smem, size = 0x4, offset = 0x4, fixed_abs, tag = 'smem constant byte address 0x4 - core index']
  #allocation1 [shape = 'u32[144,128]{1,0:T(1,128)}', space=vmem, size = 0x12000, scoped, tag = 'internal scratch']
  #allocation2 [shape = 'f32[1,128]{1,0:T(1,128)}', space=vmem, size = 0x200, scoped, tag = 'scratch operand']
  %s0 = inlined_call_operand.vmem [shape: bf16[2,288,4], index: 0, kind: input, shape index: {}]
  %s1 = inlined_call_operand.vmem [shape: bf16[2,1,40,4], index: 1, kind: input, shape index: {}]
  %s2 = inlined_call_operand.vmem [shape: f32[288,1], index: 2, kind: input, shape index: {}]
  %s3 = inlined_call_operand.vmem [shape: bf16[36,128], index: 3, kind: input, shape index: {}]
  %s4 = inlined_call_operand.vmem [shape: f32[1,128], index: 4, kind: input, shape index: {}]
  %s5 = inlined_call_operand.vmem [shape: bf16[128,128], index: 5, kind: input, shape index: {}]
  %s6 = inlined_call_operand.vmem [shape: f32[1,128], index: 6, kind: input, shape index: {}]
  %s7 = inlined_call_operand.hbm [shape: f32[2,1,128], index: 7, kind: output, shape index: {}]
  %s8 = sld [smem:[#allocation0]]
  $region69: #{tpu_custom_call.1} parent=0
    _
  %s10 = ssub.s32 1, %s8
  %s11 = scalar_select 0, %s10, %s8
  $region1: #{tpu_custom_call.1} parent=0
    #allocation3 [shape = 'u8[1024]{0}', space=vmem, size = 0x400, scoped, tag = 'output window, operand 0']
    #allocation4 [shape = 's32[2]{0}', space=sflag, size = 0x8, scoped, tag = 'scoped memory for tpu_custom_call.1']
    %12 = vsyncpa [#allocation4], 0
    %s13 = scalar_lea.sflag [#allocation4], 1
    %14 = vsyncpa %s13, 0
    loop: start=0, step=1, limit=4
    $region2: #{tpu_custom_call.1} parent=1 // loop_pre_header
      _
    $region3: #{tpu_custom_call.1} parent=1 // loop_header
      %s16 = sphi 0, %s20
      %p17 = scmp.ge.s32.totalorder %s16, 4
      %s23 = sphi 0, %s35
      %s24 = sphi 0, %s31
      %s25 = sphi 0, %s23
      %s26 = sphi 0, %s24
      %s27 = sphi 0, %s25
      %s28 = sphi 0, %s26
      %s40 = sphi 0, %s42
      %s43 = sphi 0, %s40
      %s44 = sphi 0, %s43
      %s60 = sphi 0, %s44
      %s68 = sphi 0, %s70
      %s71 = sphi 0, %s68
      %s72 = sphi 0, %s71
      %s88 = sphi 0, %s72
      %s92 = sphi 0, %s92
      %s94 = sphi 0, %s92
      %s95 = sphi 0, %s94
      %s109 = sphi 0, %s95
      %s113 = sphi 0, %s113
      %s115 = sphi 0, %s113
      %s116 = sphi 0, %s115
      %s130 = sphi 0, %s116
      %s134 = sphi 0, %s134
      %s136 = sphi 0, %s134
      %s137 = sphi 0, %s136
      %s151 = sphi 0, %s137
      %s155 = sphi 0, %s155
      %s157 = sphi 0, %s155
      %s158 = sphi 0, %s157
      %s172 = sphi 0, %s158
      %s176 = sphi 0, %s176
      %s178 = sphi 0, %s176
      %s179 = sphi 0, %s178
      %s193 = sphi 0, %s179
      %s199 = sphi 0, %s201
      %s202 = sphi 0, %s199
      %s203 = sphi 0, %s202
      %s219 = sphi 0, %s203
    $region4: #{tpu_custom_call.1} parent=1 // loop_header_branch
      %19 = sbr.rel (%p17) target = $region8
    $region5: #{tpu_custom_call.1} parent=1 // loop_body
      %s21 = ssub.s32 %s16, 1
      %s22 = ssub.s32 %s16, 2
      %s29 = sadd.s32 1, %s24
      %p30 = scmp.ge.s32.totalorder %s29, 1
      %s31 = scalar_select %p30, 0, %s29
      %s32 = sadd.s32 1, %s23
      %s33 = scalar_select %p30, %s32, %s23
      %p34 = scmp.ge.s32.totalorder %s33, 2
      %s35 = scalar_select %p34, 0, %s33
      %s36 = ssub.s32 %s23, %s35
      %s37 = ssub.s32 %s24, %s31
      %s38 = sor.u32 %s36, %s37
      %p39 = scmp.eq.s32.totalorder %s38, 0
      %s41 = sadd.s32 %s40, 1
      %s42 = scalar_select %p39, %s40, %s41
      %p45 = pneg %p39
      %p46 = scmp.eq.s32.totalorder %s16, 1
      %p47 = por %p45, %p46
      %p48 = scmp.ne.s32.totalorder %s40, %s43
      %p49 = scmp.eq.s32.totalorder %s16, 0
      %p50 = por %p48, %p49
      %p51 = scmp.ne.s32.totalorder %s40, %s43
      %p52 = scmp.eq.s32.totalorder %s21, 1
      %p53 = por %p51, %p52
      %p54 = scmp.ne.s32.totalorder %s43, %s44
      %p55 = scmp.eq.s32.totalorder %s21, 0
      %p56 = por %p54, %p55
      %p57 = scmp.ne.s32.totalorder %s43, %s44
      %p58 = scmp.eq.s32.totalorder %s22, 1
      %p59 = por %p57, %p58
      %p61 = scmp.ne.s32.totalorder %s44, %s60
      %p62 = scmp.eq.s32.totalorder %s22, 0
      %p63 = por %p61, %p62
      %s64 = ssub.s32 %s23, %s35
      %s65 = ssub.s32 %s24, %s31
      %s66 = sor.u32 %s64, %s65
      %p67 = scmp.eq.s32.totalorder %s66, 0
      %s69 = sadd.s32 %s68, 1
      %s70 = scalar_select %p67, %s68, %s69
      %p73 = pneg %p67
      %p74 = scmp.eq.s32.totalorder %s16, 1
      %p75 = por %p73, %p74
      %p76 = scmp.ne.s32.totalorder %s68, %s71
      %p77 = scmp.eq.s32.totalorder %s16, 0
      %p78 = por %p76, %p77
      %p79 = scmp.ne.s32.totalorder %s68, %s71
      %p80 = scmp.eq.s32.totalorder %s21, 1
      %p81 = por %p79, %p80
      %p82 = scmp.ne.s32.totalorder %s71, %s72
      %p83 = scmp.eq.s32.totalorder %s21, 0
      %p84 = por %p82, %p83
      %p85 = scmp.ne.s32.totalorder %s71, %s72
      %p86 = scmp.eq.s32.totalorder %s22, 1
      %p87 = por %p85, %p86
      %p89 = scmp.ne.s32.totalorder %s72, %s88
      %p90 = scmp.eq.s32.totalorder %s22, 0
      %p91 = por %p89, %p90
      %s93 = sadd.s32 %s92, 1
      %p96 = scmp.eq.s32.totalorder %s16, 1
      %p97 = scmp.ne.s32.totalorder %s92, %s94
      %p98 = scmp.eq.s32.totalorder %s16, 0
      %p99 = por %p97, %p98
      %p100 = scmp.ne.s32.totalorder %s92, %s94
      %p101 = scmp.eq.s32.totalorder %s21, 1
      %p102 = por %p100, %p101
      %p103 = scmp.ne.s32.totalorder %s94, %s95
      %p104 = scmp.eq.s32.totalorder %s21, 0
      %p105 = por %p103, %p104
      %p106 = scmp.ne.s32.totalorder %s94, %s95
      %p107 = scmp.eq.s32.totalorder %s22, 1
      %p108 = por %p106, %p107
      %p110 = scmp.ne.s32.totalorder %s95, %s109
      %p111 = scmp.eq.s32.totalorder %s22, 0
      %p112 = por %p110, %p111
      %s114 = sadd.s32 %s113, 1
      %p117 = scmp.eq.s32.totalorder %s16, 1
      %p118 = scmp.ne.s32.totalorder %s113, %s115
      %p119 = scmp.eq.s32.totalorder %s16, 0
      %p120 = por %p118, %p119
      %p121 = scmp.ne.s32.totalorder %s113, %s115
      %p122 = scmp.eq.s32.totalorder %s21, 1
      %p123 = por %p121, %p122
      %p124 = scmp.ne.s32.totalorder %s115, %s116
      %p125 = scmp.eq.s32.totalorder %s21, 0
      %p126 = por %p124, %p125
      %p127 = scmp.ne.s32.totalorder %s115, %s116
      %p128 = scmp.eq.s32.totalorder %s22, 1
      %p129 = por %p127, %p128
      %p131 = scmp.ne.s32.totalorder %s116, %s130
      %p132 = scmp.eq.s32.totalorder %s22, 0
      %p133 = por %p131, %p132
      %s135 = sadd.s32 %s134, 1
      %p138 = scmp.eq.s32.totalorder %s16, 1
      %p139 = scmp.ne.s32.totalorder %s134, %s136
      %p140 = scmp.eq.s32.totalorder %s16, 0
      %p141 = por %p139, %p140
      %p142 = scmp.ne.s32.totalorder %s134, %s136
      %p143 = scmp.eq.s32.totalorder %s21, 1
      %p144 = por %p142, %p143
      %p145 = scmp.ne.s32.totalorder %s136, %s137
      %p146 = scmp.eq.s32.totalorder %s21, 0
      %p147 = por %p145, %p146
      %p148 = scmp.ne.s32.totalorder %s136, %s137
      %p149 = scmp.eq.s32.totalorder %s22, 1
      %p150 = por %p148, %p149
      %p152 = scmp.ne.s32.totalorder %s137, %s151
      %p153 = scmp.eq.s32.totalorder %s22, 0
      %p154 = por %p152, %p153
      %s156 = sadd.s32 %s155, 1
      %p159 = scmp.eq.s32.totalorder %s16, 1
      %p160 = scmp.ne.s32.totalorder %s155, %s157
      %p161 = scmp.eq.s32.totalorder %s16, 0
      %p162 = por %p160, %p161
      %p163 = scmp.ne.s32.totalorder %s155, %s157
      %p164 = scmp.eq.s32.totalorder %s21, 1
      %p165 = por %p163, %p164
      %p166 = scmp.ne.s32.totalorder %s157, %s158
      %p167 = scmp.eq.s32.totalorder %s21, 0
      %p168 = por %p166, %p167
      %p169 = scmp.ne.s32.totalorder %s157, %s158
      %p170 = scmp.eq.s32.totalorder %s22, 1
      %p171 = por %p169, %p170
      %p173 = scmp.ne.s32.totalorder %s158, %s172
      %p174 = scmp.eq.s32.totalorder %s22, 0
      %p175 = por %p173, %p174
      %s177 = sadd.s32 %s176, 1
      %p180 = scmp.eq.s32.totalorder %s16, 1
      %p181 = scmp.ne.s32.totalorder %s176, %s178
      %p182 = scmp.eq.s32.totalorder %s16, 0
      %p183 = por %p181, %p182
      %p184 = scmp.ne.s32.totalorder %s176, %s178
      %p185 = scmp.eq.s32.totalorder %s21, 1
      %p186 = por %p184, %p185
      %p187 = scmp.ne.s32.totalorder %s178, %s179
      %p188 = scmp.eq.s32.totalorder %s21, 0
      %p189 = por %p187, %p188
      %p190 = scmp.ne.s32.totalorder %s178, %s179
      %p191 = scmp.eq.s32.totalorder %s22, 1
      %p192 = por %p190, %p191
      %p194 = scmp.ne.s32.totalorder %s179, %s193
      %p195 = scmp.eq.s32.totalorder %s22, 0
      %p196 = por %p194, %p195
      %s197 = ssub.s32 %s23, %s35
      %p198 = scmp.eq.s32.totalorder %s197, 0
      %s200 = sadd.s32 %s199, 1
      %s201 = scalar_select %p198, %s199, %s200
      %p204 = pneg %p198
      %p205 = scmp.eq.s32.totalorder %s16, 1
      %p206 = por %p204, %p205
      %p207 = scmp.ne.s32.totalorder %s199, %s202
      %p208 = scmp.eq.s32.totalorder %s16, 0
      %p209 = por %p207, %p208
      %p210 = scmp.ne.s32.totalorder %s199, %s202
      %p211 = scmp.eq.s32.totalorder %s21, 1
      %p212 = por %p210, %p211
      %p213 = scmp.ne.s32.totalorder %s202, %s203
      %p214 = scmp.eq.s32.totalorder %s21, 0
      %p215 = por %p213, %p214
      %p216 = scmp.ne.s32.totalorder %s202, %s203
      %p217 = scmp.eq.s32.totalorder %s22, 1
      %p218 = por %p216, %p217
      %p220 = scmp.ne.s32.totalorder %s203, %s219
      %p221 = scmp.eq.s32.totalorder %s22, 0
      %p222 = por %p220, %p221
      %p223 = scmp.le.s32.totalorder 1, %s16
      %p224 = scmp.lt.s32.totalorder %s16, 3
      %p225 = pnand %p223, %p224
      %p226 = pneg %p225
      // Predicated region
      $region9: #{tpu_custom_call.1} parent=5 // pred_check
        _
      $region10: #{tpu_custom_call.1} parent=5 // pred_check_branch
        %228 = sbr.rel (%p225) target = $region12
      $region11: #{tpu_custom_call.1} parent=5 // pred_region
        %s229 = ssub.s32 %s16, 1
        // Predicated region
        $region13: #{tpu_custom_call.1} parent=11 // pred_check
          %p230 = pneg %p105
        $region14: #{tpu_custom_call.1} parent=11 // pred_check_branch
          %232 = sbr.rel (%p230) target = $region16
        $region15: #{tpu_custom_call.1} parent=11 // pred_region
          _
        $region16: #{tpu_custom_call.1} parent=11 // pred_fallthru
          _
        // Predicated region
        $region17: #{tpu_custom_call.1} parent=11 // pred_check
          %p233 = pneg %p126
        $region18: #{tpu_custom_call.1} parent=11 // pred_check_branch
          %235 = sbr.rel (%p233) target = $region20
        $region19: #{tpu_custom_call.1} parent=11 // pred_region
          _
        $region20: #{tpu_custom_call.1} parent=11 // pred_fallthru
          _
        // Predicated region
        $region21: #{tpu_custom_call.1} parent=11 // pred_check
          %p236 = pneg %p147
        $region22: #{tpu_custom_call.1} parent=11 // pred_check_branch
          %238 = sbr.rel (%p236) target = $region24
        $region23: #{tpu_custom_call.1} parent=11 // pred_region
          _
        $region24: #{tpu_custom_call.1} parent=11 // pred_fallthru
          _
        // Predicated region
        $region25: #{tpu_custom_call.1} parent=11 // pred_check
          %p239 = pneg %p168
        $region26: #{tpu_custom_call.1} parent=11 // pred_check_branch
          %241 = sbr.rel (%p239) target = $region28
        $region27: #{tpu_custom_call.1} parent=11 // pred_region
          _
        $region28: #{tpu_custom_call.1} parent=11 // pred_fallthru
          _
        // Predicated region
        $region29: #{tpu_custom_call.1} parent=11 // pred_check
          %p242 = pneg %p189
        $region30: #{tpu_custom_call.1} parent=11 // pred_check_branch
          %244 = sbr.rel (%p242) target = $region32
        $region31: #{tpu_custom_call.1} parent=11 // pred_region
          _
        $region32: #{tpu_custom_call.1} parent=11 // pred_fallthru
          _
      $region12: #{tpu_custom_call.1} parent=5 // pred_fallthru
        _
      %p245 = scmp.lt.s32.totalorder %s16, 2
      // Predicated region
      $region33: #{tpu_custom_call.1} parent=5 // pred_check
        %p246 = pneg %p245
      $region34: #{tpu_custom_call.1} parent=5 // pred_check_branch
        %248 = sbr.rel (%p246) target = $region36
      $region35: #{tpu_custom_call.1} parent=5 // pred_region
        // Predicated region
        $region37: #{tpu_custom_call.1} parent=35 // pred_check
          %p249 = pneg %p50
        $region38: #{tpu_custom_call.1} parent=35 // pred_check_branch
          %251 = sbr.rel (%p249) target = $region40
        $region39: #{tpu_custom_call.1} parent=35 // pred_region
          %s252 = smul.u32 36, %s24
          %p253 = scmp.lt.s32.totalorder %s23, 1
          %s254 = scalar_select %p253, %s23, 1
          %p255 = scmp.lt.s32.totalorder %s252, 35
          %s256 = scalar_select %p255, %s252, 35
          %s257 = smul.addr %s254, 36
          %s258 = sadd.s32 %s256, %s257
          %s259 = smul.addr %s258, 4
          %s260 = scalar_lea.vmem %s0, %s259
          %s261 = smul.u32 36, %s24
        $region40: #{tpu_custom_call.1} parent=35 // pred_fallthru
          _
        // Predicated region
        $region41: #{tpu_custom_call.1} parent=35 // pred_check
          %p262 = pneg %p78
        $region42: #{tpu_custom_call.1} parent=35 // pred_check_branch
          %264 = sbr.rel (%p262) target = $region44
        $region43: #{tpu_custom_call.1} parent=35 // pred_region
          %p265 = scmp.lt.s32.totalorder %s23, 1
          %s266 = scalar_select %p265, %s23, 1
          %p267 = scmp.lt.s32.totalorder %s24, 0
          %s268 = scalar_select %p267, %s24, 0
          %s269 = smul.addr %s268, 5
          %s270 = smul.addr %s266, 5
          %s271 = sadd.s32 %s269, %s270
          %s272 = smul.addr %s271, 4
          %s273 = scalar_lea.vmem %s1, %s272
        $region44: #{tpu_custom_call.1} parent=35 // pred_fallthru
          _
      $region36: #{tpu_custom_call.1} parent=5 // pred_fallthru
        _
      %p274 = scmp.le.s32.totalorder 1, %s16
      %p275 = scmp.lt.s32.totalorder %s16, 3
      %p276 = pnand %p274, %p275
      %p277 = pneg %p276
      // Predicated region
      $region45: #{tpu_custom_call.1} parent=5 // pred_check
        _
      $region46: #{tpu_custom_call.1} parent=5 // pred_check_branch
        %279 = sbr.rel (%p276) target = $region48
      $region47: #{tpu_custom_call.1} parent=5 // pred_region
        %s280 = ssub.s32 %s16, 1
        %s281 = smul.u32 36, %s26
        %p282 = scmp.lt.s32.totalorder %s25, 1
        %s283 = scalar_select %p282, %s25, 1
        %p284 = scmp.lt.s32.totalorder %s281, 35
        %s285 = scalar_select %p284, %s281, 35
        %s286 = smul.addr %s283, 36
        %s287 = sadd.s32 %s285, %s286
        %s288 = smul.addr %s287, 4
        %s289 = scalar_lea.vmem %s0, %s288
        %p290 = pneg %p56
        %p291 = pneg %p53
        %p292 = scmp.lt.s32.totalorder %s25, 1
        %s293 = scalar_select %p292, %s25, 1
        %p294 = scmp.lt.s32.totalorder %s26, 0
        %s295 = scalar_select %p294, %s26, 0
        %s296 = smul.addr %s295, 5
        %s297 = smul.addr %s293, 5
        %s298 = sadd.s32 %s296, %s297
        %s299 = smul.addr %s298, 4
        %s300 = scalar_lea.vmem %s1, %s299
        %p301 = pneg %p84
        %p302 = pneg %p81
        %p303 = pneg %p105
        %p304 = pneg %p102
        %p305 = pneg %p126
        %p306 = pneg %p123
        %p307 = pneg %p147
        %p308 = pneg %p144
        %p309 = pneg %p168
        %p310 = pneg %p165
        %p311 = pneg %p189
        %p312 = pneg %p186
        %p313 = pneg %p215
        %p314 = pneg %p212
        %s315 = sand.u32 %s202, 1
        %s316 = scalar_lea.sflag [#allocation4], %s315
        %s317 = sand.u32 %s202, 1
        %s318 = scalar_lea.vmem [#allocation3], %s317
        %s319 = smul.u32 36, %s26
        %p320 = scmp.lt.s32.totalorder %s25, 1
        %s321 = scalar_select %p320, %s25, 1
        %p322 = scmp.lt.s32.totalorder %s319, 35
        %s323 = scalar_select %p322, %s319, 35
        %s324 = smul.addr %s321, 36
        %s325 = sadd.s32 %s323, %s324
        %s326 = smul.addr %s325, 4
        %s327 = scalar_lea.vmem %s0, %s326
        %s328 = smul.u32 36, %s26
        %p329 = scmp.lt.s32.totalorder %s25, 1
        %s330 = scalar_select %p329, %s25, 1
        %p331 = scmp.lt.s32.totalorder %s26, 0
        %s332 = scalar_select %p331, %s26, 0
        %s333 = smul.addr %s332, 5
        %s334 = smul.addr %s330, 5
        %s335 = sadd.s32 %s333, %s334
        %s336 = smul.addr %s335, 4
        %s337 = scalar_lea.vmem %s1, %s336
        %p339 = scmp.eq.s32.totalorder %s26, 0
        // Predicated region
        $region49: #{tpu_custom_call.1} parent=47 // pred_check
          %p340 = pneg %p339
        $region50: #{tpu_custom_call.1} parent=47 // pred_check_branch
          %342 = sbr.rel (%p340) target = $region52
        $region51: #{tpu_custom_call.1} parent=47 // pred_region
          %343 = vst [vmem:[#allocation2] sm:$0x1] 0.0
        $region52: #{tpu_custom_call.1} parent=47 // pred_fallthru
          _
        %v344 = vld [vmem:[%s327] sm:$0xf]
        %v345 = vld [vmem:[%s327 + $0x4] sm:$0xf]
        %v346 = vld [vmem:[%s327 + $0x8] sm:$0xf]
        %v347 = vld [vmem:[%s327 + $0xc] sm:$0xf]
        %v348 = vld [vmem:[%s327 + $0x10] sm:$0xf]
        %v349 = vld [vmem:[%s327 + $0x14] sm:$0xf]
        %v350 = vld [vmem:[%s327 + $0x18] sm:$0xf]
        %v351 = vld [vmem:[%s327 + $0x1c] sm:$0xf]
        %v352 = vld [vmem:[%s327 + $0x20] sm:$0xf]
        %v353 = vld [vmem:[%s327 + $0x24] sm:$0xf]
        %v354 = vld [vmem:[%s327 + $0x28] sm:$0xf]
        %v355 = vld [vmem:[%s327 + $0x2c] sm:$0xf]
        %v356 = vld [vmem:[%s327 + $0x30] sm:$0xf]
        %v357 = vld [vmem:[%s327 + $0x34] sm:$0xf]
        %v358 = vld [vmem:[%s327 + $0x38] sm:$0xf]
        %v359 = vld [vmem:[%s327 + $0x3c] sm:$0xf]
        %v360 = vld [vmem:[%s327 + $0x40] sm:$0xf]
        %v361 = vld [vmem:[%s327 + $0x44] sm:$0xf]
        %v362 = vld [vmem:[%s327 + $0x48] sm:$0xf]
        %v363 = vld [vmem:[%s327 + $0x4c] sm:$0xf]
        %v364 = vld [vmem:[%s327 + $0x50] sm:$0xf]
        %v365 = vld [vmem:[%s327 + $0x54] sm:$0xf]
        %v366 = vld [vmem:[%s327 + $0x58] sm:$0xf]
        %v367 = vld [vmem:[%s327 + $0x5c] sm:$0xf]
        %v368 = vld [vmem:[%s327 + $0x60] sm:$0xf]
        %v369 = vld [vmem:[%s327 + $0x64] sm:$0xf]
        %v370 = vld [vmem:[%s327 + $0x68] sm:$0xf]
        %v371 = vld [vmem:[%s327 + $0x6c] sm:$0xf]
        %v372 = vld [vmem:[%s327 + $0x70] sm:$0xf]
        %v373 = vld [vmem:[%s327 + $0x74] sm:$0xf]
        %v374 = vld [vmem:[%s327 + $0x78] sm:$0xf]
        %v375 = vld [vmem:[%s327 + $0x7c] sm:$0xf]
        %v376 = vld [vmem:[%s327 + $0x80] sm:$0xf]
        %v377 = vld [vmem:[%s327 + $0x84] sm:$0xf]
        %v378 = vld [vmem:[%s327 + $0x88] sm:$0xf]
        %v379 = vld [vmem:[%s327 + $0x8c] sm:$0xf]
        %v380 = vunpack.c.l.bf16 %v344
        %v381 = vunpack.c.l.bf16 %v345
        %v382 = vunpack.c.l.bf16 %v346
        %v383 = vunpack.c.l.bf16 %v347
        %v384 = vunpack.c.l.bf16 %v348
        %v385 = vunpack.c.l.bf16 %v349
        %v386 = vunpack.c.l.bf16 %v350
        %v387 = vunpack.c.l.bf16 %v351
        %v388 = vunpack.c.l.bf16 %v352
        %v389 = vunpack.c.l.bf16 %v353
        %v390 = vunpack.c.l.bf16 %v354
        %v391 = vunpack.c.l.bf16 %v355
        %v392 = vunpack.c.l.bf16 %v356
        %v393 = vunpack.c.l.bf16 %v357
        %v394 = vunpack.c.l.bf16 %v358
        %v395 = vunpack.c.l.bf16 %v359
        %v396 = vunpack.c.l.bf16 %v360
        %v397 = vunpack.c.l.bf16 %v361
        %v398 = vunpack.c.l.bf16 %v362
        %v399 = vunpack.c.l.bf16 %v363
        %v400 = vunpack.c.l.bf16 %v364
        %v401 = vunpack.c.l.bf16 %v365
        %v402 = vunpack.c.l.bf16 %v366
        %v403 = vunpack.c.l.bf16 %v367
        %v404 = vunpack.c.l.bf16 %v368
        %v405 = vunpack.c.l.bf16 %v369
        %v406 = vunpack.c.l.bf16 %v370
        %v407 = vunpack.c.l.bf16 %v371
        %v408 = vunpack.c.l.bf16 %v372
        %v409 = vunpack.c.l.bf16 %v373
        %v410 = vunpack.c.l.bf16 %v374
        %v411 = vunpack.c.l.bf16 %v375
        %v412 = vunpack.c.l.bf16 %v376
        %v413 = vunpack.c.l.bf16 %v377
        %v414 = vunpack.c.l.bf16 %v378
        %v415 = vunpack.c.l.bf16 %v379
        %v416 = vld [vmem:[%s337] sm:$0xf]
        %v417 = vld [vmem:[%s337 + $0x4] sm:$0xf]
        %v418 = vld [vmem:[%s337 + $0x8] sm:$0xf]
        %v419 = vld [vmem:[%s337 + $0xc] sm:$0xf]
        %v420 = vld [vmem:[%s337 + $0x10] sm:$0xf]
        %v421 = vunpack.c.l.bf16 %v416
        %v422 = vunpack.c.l.bf16 %v417
        %v423 = vunpack.c.l.bf16 %v418
        %v424 = vunpack.c.l.bf16 %v419
        %v425 = vunpack.c.l.bf16 %v420
        %v426 = vpack.c.bf16 %v381, %v380
        %v427 = vpack.c.bf16 %v383, %v382
        %v428 = vpack.c.bf16 %v385, %v384
        %v429 = vpack.c.bf16 %v387, %v386
        %v430 = vpack.c.bf16 %v389, %v388
        %v431 = vpack.c.bf16 %v391, %v390
        %v432 = vpack.c.bf16 %v393, %v392
        %v433 = vpack.c.bf16 %v395, %v394
        %v434 = vpack.c.bf16 %v397, %v396
        %v435 = vpack.c.bf16 %v399, %v398
        %v436 = vpack.c.bf16 %v401, %v400
        %v437 = vpack.c.bf16 %v403, %v402
        %v438 = vpack.c.bf16 %v405, %v404
        %v439 = vpack.c.bf16 %v407, %v406
        %v440 = vpack.c.bf16 %v409, %v408
        %v441 = vpack.c.bf16 %v411, %v410
        %v442 = vpack.c.bf16 %v413, %v412
        %v443 = vpack.c.bf16 %v415, %v414
        %v444 = vld [vmem:[%s3] sm:$0x3]
        %v445 = vpack.c.bf16 %v421, %v421
        %v446 = vld [vmem:[%s3] sm:$0xc]
        %vm447 = vsmask.f32 7424
        %v449 = vshrl.u32 %v426, 16
        %v451 = vshll.u32 %v426, 16
        %v453 = vrot.slane %v451, 1
        %v454 = vor.u32 %v449, %v453
        %v456 = vshll.u32 %v427, 16
        %v458 = vrot.slane %v456, 1
        %v459 = vsel %vm447, %v454, %v458
        %v460 = vshrl.u32 %v427, 16
        %v462 = vor.u32 %v460, %v458
        %v464 = vshll.u32 %v428, 16
        %v466 = vrot.slane %v464, 1
        %v467 = vsel %vm447, %v462, %v466
        %v468 = vshrl.u32 %v428, 16
        %v470 = vor.u32 %v468, %v466
        %v472 = vshll.u32 %v429, 16
        %v474 = vrot.slane %v472, 1
        %v475 = vsel %vm447, %v470, %v474
        %v476 = vshrl.u32 %v429, 16
        %v478 = vor.u32 %v476, %v474
        %v480 = vshll.u32 %v430, 16
        %v482 = vrot.slane %v480, 1
        %v483 = vsel %vm447, %v478, %v482
        %v484 = vshrl.u32 %v430, 16
        %v486 = vor.u32 %v484, %v482
        %v488 = vshll.u32 %v431, 16
        %v490 = vrot.slane %v488, 1
        %v491 = vsel %vm447, %v486, %v490
        %v492 = vshrl.u32 %v431, 16
        %v494 = vor.u32 %v492, %v490
        %v496 = vshll.u32 %v432, 16
        %v498 = vrot.slane %v496, 1
        %v499 = vsel %vm447, %v494, %v498
        %v500 = vshrl.u32 %v432, 16
        %v502 = vor.u32 %v500, %v498
        %v504 = vshll.u32 %v433, 16
        %v506 = vrot.slane %v504, 1
        %v507 = vsel %vm447, %v502, %v506
        %v508 = vshrl.u32 %v433, 16
        %v510 = vor.u32 %v508, %v506
        %v512 = vshll.u32 %v434, 16
        %v514 = vrot.slane %v512, 1
        %v515 = vsel %vm447, %v510, %v514
        %v516 = vshrl.u32 %v434, 16
        %v518 = vor.u32 %v516, %v514
        %v520 = vshll.u32 %v435, 16
        %v522 = vrot.slane %v520, 1
        %v523 = vsel %vm447, %v518, %v522
        %v524 = vshrl.u32 %v435, 16
        %v526 = vor.u32 %v524, %v522
        %v528 = vshll.u32 %v436, 16
        %v530 = vrot.slane %v528, 1
        %v531 = vsel %vm447, %v526, %v530
        %v532 = vshrl.u32 %v436, 16
        %v534 = vor.u32 %v532, %v530
        %v536 = vshll.u32 %v437, 16
        %v538 = vrot.slane %v536, 1
        %v539 = vsel %vm447, %v534, %v538
        %v540 = vshrl.u32 %v437, 16
        %v542 = vor.u32 %v540, %v538
        %v544 = vshll.u32 %v438, 16
        %v546 = vrot.slane %v544, 1
        %v547 = vsel %vm447, %v542, %v546
        %v548 = vshrl.u32 %v438, 16
        %v550 = vor.u32 %v548, %v546
        %v552 = vshll.u32 %v439, 16
        %v554 = vrot.slane %v552, 1
        %v555 = vsel %vm447, %v550, %v554
        %v556 = vshrl.u32 %v439, 16
        %v558 = vor.u32 %v556, %v554
        %v560 = vshll.u32 %v440, 16
        %v562 = vrot.slane %v560, 1
        %v563 = vsel %vm447, %v558, %v562
        %v564 = vshrl.u32 %v440, 16
        %v566 = vor.u32 %v564, %v562
        %v568 = vshll.u32 %v441, 16
        %v570 = vrot.slane %v568, 1
        %v571 = vsel %vm447, %v566, %v570
        %v572 = vshrl.u32 %v441, 16
        %v574 = vor.u32 %v572, %v570
        %v576 = vshll.u32 %v442, 16
        %v578 = vrot.slane %v576, 1
        %v579 = vsel %vm447, %v574, %v578
        %v580 = vshrl.u32 %v442, 16
        %v582 = vor.u32 %v580, %v578
        %v584 = vshll.u32 %v443, 16
        %v586 = vrot.slane %v584, 1
        %v587 = vsel %vm447, %v582, %v586
        %v588 = vshrl.u32 %v443, 16
        %v590 = vor.u32 %v588, %v586
        %v592 = vshll.u32 %v445, 16
        %v594 = vrot.slane %v592, 1
        %v595 = vsel %vm447, %v590, %v594
        %v597 = vunpack.c.l.b16 %v446
        %v598 = vpack.c.b16 %v597, %v597
        %v599 = vrot.slane %v598, 2
        %vm600 = vcmask 31744
        %v602 = vsel %vm600, %v459, 0
        %v605 = vsel %vm600, %v467, 0
        %v608 = vsel %vm600, %v475, 0
        %v611 = vsel %vm600, %v483, 0
        %v614 = vsel %vm600, %v491, 0
        %v617 = vsel %vm600, %v499, 0
        %v620 = vsel %vm600, %v507, 0
        %v623 = vsel %vm600, %v515, 0
        %v626 = vsel %vm600, %v523, 0
        %v629 = vsel %vm600, %v531, 0
        %v632 = vsel %vm600, %v539, 0
        %v635 = vsel %vm600, %v547, 0
        %v638 = vsel %vm600, %v555, 0
        %v641 = vsel %vm600, %v563, 0
        %v644 = vsel %vm600, %v571, 0
        %v647 = vsel %vm600, %v579, 0
        %v650 = vsel %vm600, %v587, 0
        %v653 = vsel %vm600, %v595, 0
        %vm655 = vcmask 1041408
        %v657 = vsel %vm655, %v599, 0
        %659 = vmatprep.subr.bf16.mxu0 0
        %660 = vmatpush1.bf16.msra.mxu0 %v657
        %661 = vmatprep.subr.bf16.mxu0 0
        %662 = vmatpush1.bf16.msra.mxu0 0
        %663 = vmatprep.subr.bf16.mxu0 0
        %664 = vmatpush1.bf16.msra.mxu0 0
        %665 = vmatprep.subr.bf16.mxu0 0
        %666 = vmatpush1.bf16.msra.mxu0 0
        %667 = vmatprep.subr.bf16.mxu0 0
        %668 = vmatpush1.bf16.msra.mxu0 0
        %669 = vmatprep.subr.bf16.mxu0 0
        %670 = vmatpush1.bf16.msra.mxu0 0
        %671 = vmatprep.subr.bf16.mxu0 0
        %672 = vmatpush1.bf16.msra.mxu0 0
        %673 = vmatprep.subr.bf16.mxu0 0
        %674 = vmatpush1.bf16.msra.mxu0 0
        %675 = vmatprep.subr.bf16.mxu0 0
        %676 = vmatpush1.bf16.msra.mxu0 0
        %677 = vmatprep.subr.bf16.mxu0 0
        %678 = vmatpush1.bf16.msra.mxu0 0
        %679 = vmatprep.subr.bf16.mxu0 0
        %680 = vmatpush1.bf16.msra.mxu0 0
        %681 = vmatprep.subr.bf16.mxu0 0
        %682 = vmatpush1.bf16.msra.mxu0 0
        %683 = vmatprep.subr.bf16.mxu0 0
        %684 = vmatpush1.bf16.msra.mxu0 0
        %685 = vmatprep.subr.bf16.mxu0 0
        %686 = vmatpush1.bf16.msra.mxu0 0
        %687 = vmatprep.subr.bf16.mxu0 0
        %688 = vmatpush1.bf16.msra.mxu0 0
        %689 = vmatprep.subr.bf16.mxu0 0
        %690 = vmatpush1.bf16.msra.mxu0 0
        %691 = vmatprep.mubr.bf16.mxu0 0
        %692 = vmatmul.mubr.bf16.gmra.mrb[0].mxu0 %v602
        %v693 = vpop.f32.mrb[0].mxu0
        %v694 = vadd.f32 0.0, %v693
        %v695 = vpop.f32.mrb[0].mxu0
        %v696 = vpop.f32.mrb[0].mxu0
        %v697 = vadd.f32 0.0, %v696
        %v698 = vpop.f32.mrb[0].mxu0
        %699 = vmatprep.mubr.bf16.mxu0 0
        %700 = vmatmul.mubr.bf16.gmra.mrb[0].mxu0 %v605
        %v701 = vpop.f32.mrb[0].mxu0
        %v702 = vadd.f32 0.0, %v701
        %v703 = vpop.f32.mrb[0].mxu0
        %v704 = vpop.f32.mrb[0].mxu0
        %v705 = vadd.f32 0.0, %v704
        %v706 = vpop.f32.mrb[0].mxu0
        %707 = vmatprep.mubr.bf16.mxu0 0
        %708 = vmatmul.mubr.bf16.gmra.mrb[0].mxu0 %v608
        %v709 = vpop.f32.mrb[0].mxu0
        %v710 = vadd.f32 0.0, %v709
        %v711 = vpop.f32.mrb[0].mxu0
        %v712 = vpop.f32.mrb[0].mxu0
        %v713 = vadd.f32 0.0, %v712
        %v714 = vpop.f32.mrb[0].mxu0
        %715 = vmatprep.mubr.bf16.mxu0 0
        %716 = vmatmul.mubr.bf16.gmra.mrb[0].mxu0 %v611
        %v717 = vpop.f32.mrb[0].mxu0
        %v718 = vadd.f32 0.0, %v717
        %v719 = vpop.f32.mrb[0].mxu0
        %v720 = vpop.f32.mrb[0].mxu0
        %v721 = vadd.f32 0.0, %v720
        %v722 = vpop.f32.mrb[0].mxu0
        %723 = vmatprep.mubr.bf16.mxu0 0
        %724 = vmatmul.mubr.bf16.gmra.mrb[0].mxu0 %v614
        %v725 = vpop.f32.mrb[0].mxu0
        %v726 = vadd.f32 0.0, %v725
        %v727 = vpop.f32.mrb[0].mxu0
        %v728 = vpop.f32.mrb[0].mxu0
        %v729 = vadd.f32 0.0, %v728
        %v730 = vpop.f32.mrb[0].mxu0
        %731 = vmatprep.mubr.bf16.mxu0 0
        %732 = vmatmul.mubr.bf16.gmra.mrb[0].mxu0 %v617
        %v733 = vpop.f32.mrb[0].mxu0
        %v734 = vadd.f32 0.0, %v733
        %v735 = vpop.f32.mrb[0].mxu0
        %v736 = vpop.f32.mrb[0].mxu0
        %v737 = vadd.f32 0.0, %v736
        %v738 = vpop.f32.mrb[0].mxu0
        %739 = vmatprep.mubr.bf16.mxu0 0
        %740 = vmatmul.mubr.bf16.gmra.mrb[0].mxu0 %v620
        %v741 = vpop.f32.mrb[0].mxu0
        %v742 = vadd.f32 0.0, %v741
        %v743 = vpop.f32.mrb[0].mxu0
        %v744 = vpop.f32.mrb[0].mxu0
        %v745 = vadd.f32 0.0, %v744
        %v746 = vpop.f32.mrb[0].mxu0
        %747 = vmatprep.mubr.bf16.mxu0 0
        %748 = vmatmul.mubr.bf16.gmra.mrb[0].mxu0 %v623
        %v749 = vpop.f32.mrb[0].mxu0
        %v750 = vadd.f32 0.0, %v749
        %v751 = vpop.f32.mrb[0].mxu0
        %v752 = vpop.f32.mrb[0].mxu0
        %v753 = vadd.f32 0.0, %v752
        %v754 = vpop.f32.mrb[0].mxu0
        %755 = vmatprep.mubr.bf16.mxu0 0
        %756 = vmatmul.mubr.bf16.gmra.mrb[0].mxu0 %v626
        %v757 = vpop.f32.mrb[0].mxu0
        %v758 = vadd.f32 0.0, %v757
        %v759 = vpop.f32.mrb[0].mxu0
        %v760 = vpop.f32.mrb[0].mxu0
        %v761 = vadd.f32 0.0, %v760
        %v762 = vpop.f32.mrb[0].mxu0
        %763 = vmatprep.mubr.bf16.mxu0 0
        %764 = vmatmul.mubr.bf16.gmra.mrb[0].mxu0 %v629
        %v765 = vpop.f32.mrb[0].mxu0
        %v766 = vadd.f32 0.0, %v765
        %v767 = vpop.f32.mrb[0].mxu0
        %v768 = vpop.f32.mrb[0].mxu0
        %v769 = vadd.f32 0.0, %v768
        %v770 = vpop.f32.mrb[0].mxu0
        %771 = vmatprep.mubr.bf16.mxu0 0
        %772 = vmatmul.mubr.bf16.gmra.mrb[0].mxu0 %v632
        %v773 = vpop.f32.mrb[0].mxu0
        %v774 = vadd.f32 0.0, %v773
        %v775 = vpop.f32.mrb[0].mxu0
        %v776 = vpop.f32.mrb[0].mxu0
        %v777 = vadd.f32 0.0, %v776
        %v778 = vpop.f32.mrb[0].mxu0
        %779 = vmatprep.mubr.bf16.mxu0 0
        %780 = vmatmul.mubr.bf16.gmra.mrb[0].mxu0 %v635
        %v781 = vpop.f32.mrb[0].mxu0
        %v782 = vadd.f32 0.0, %v781
        %v783 = vpop.f32.mrb[0].mxu0
        %v784 = vpop.f32.mrb[0].mxu0
        %v785 = vadd.f32 0.0, %v784
        %v786 = vpop.f32.mrb[0].mxu0
        %787 = vmatprep.mubr.bf16.mxu0 0
        %788 = vmatmul.mubr.bf16.gmra.mrb[0].mxu0 %v638
        %v789 = vpop.f32.mrb[0].mxu0
        %v790 = vadd.f32 0.0, %v789
        %v791 = vpop.f32.mrb[0].mxu0
        %v792 = vpop.f32.mrb[0].mxu0
        %v793 = vadd.f32 0.0, %v792
        %v794 = vpop.f32.mrb[0].mxu0
        %795 = vmatprep.mubr.bf16.mxu0 0
        %796 = vmatmul.mubr.bf16.gmra.mrb[0].mxu0 %v641
        %v797 = vpop.f32.mrb[0].mxu0
        %v798 = vadd.f32 0.0, %v797
        %v799 = vpop.f32.mrb[0].mxu0
        %v800 = vpop.f32.mrb[0].mxu0
        %v801 = vadd.f32 0.0, %v800
        %v802 = vpop.f32.mrb[0].mxu0
        %803 = vmatprep.mubr.bf16.mxu0 0
        %804 = vmatmul.mubr.bf16.gmra.mrb[0].mxu0 %v644
        %v805 = vpop.f32.mrb[0].mxu0
        %v806 = vadd.f32 0.0, %v805
        %v807 = vpop.f32.mrb[0].mxu0
        %v808 = vpop.f32.mrb[0].mxu0
        %v809 = vadd.f32 0.0, %v808
        %v810 = vpop.f32.mrb[0].mxu0
        %811 = vmatprep.mubr.bf16.mxu0 0
        %812 = vmatmul.mubr.bf16.gmra.mrb[0].mxu0 %v647
        %v813 = vpop.f32.mrb[0].mxu0
        %v814 = vadd.f32 0.0, %v813
        %v815 = vpop.f32.mrb[0].mxu0
        %v816 = vpop.f32.mrb[0].mxu0
        %v817 = vadd.f32 0.0, %v816
        %v818 = vpop.f32.mrb[0].mxu0
        %819 = vmatprep.mubr.bf16.mxu0 0
        %820 = vmatmul.mubr.bf16.gmra.mrb[0].mxu0 %v650
        %v821 = vpop.f32.mrb[0].mxu0
        %v822 = vadd.f32 0.0, %v821
        %v823 = vpop.f32.mrb[0].mxu0
        %v824 = vpop.f32.mrb[0].mxu0
        %v825 = vadd.f32 0.0, %v824
        %v826 = vpop.f32.mrb[0].mxu0
        %827 = vmatprep.mubr.bf16.mxu0 0
        %828 = vmatmul.mubr.bf16.gmra.mrb[0].mxu0 %v653
        %v829 = vpop.f32.mrb[0].mxu0
        %v830 = vadd.f32 0.0, %v829
        %v831 = vpop.f32.mrb[0].mxu0
        %v832 = vpop.f32.mrb[0].mxu0
        %v833 = vadd.f32 0.0, %v832
        %v834 = vpop.f32.mrb[0].mxu0
        %835 = vdwg.mxu0
        %v836 = vsel %vm600, %v426, 0
        %v838 = vsel %vm600, %v427, 0
        %v840 = vsel %vm600, %v428, 0
        %v842 = vsel %vm600, %v429, 0
        %v844 = vsel %vm600, %v430, 0
        %v846 = vsel %vm600, %v431, 0
        %v848 = vsel %vm600, %v432, 0
        %v850 = vsel %vm600, %v433, 0
        %v852 = vsel %vm600, %v434, 0
        %v854 = vsel %vm600, %v435, 0
        %v856 = vsel %vm600, %v436, 0
        %v858 = vsel %vm600, %v437, 0
        %v860 = vsel %vm600, %v438, 0
        %v862 = vsel %vm600, %v439, 0
        %v864 = vsel %vm600, %v440, 0
        %v866 = vsel %vm600, %v441, 0
        %v868 = vsel %vm600, %v442, 0
        %v870 = vsel %vm600, %v443, 0
        %v873 = vsel %vm655, %v444, 0
        %875 = vmatprep.subr.bf16.mxu0 0
        %876 = vmatpush1.bf16.msra.mxu0 %v873
        %877 = vmatprep.subr.bf16.mxu0 0
        %878 = vmatpush1.bf16.msra.mxu0 0
        %879 = vmatprep.subr.bf16.mxu0 0
        %880 = vmatpush1.bf16.msra.mxu0 0
        %881 = vmatprep.subr.bf16.mxu0 0
        %882 = vmatpush1.bf16.msra.mxu0 0
        %883 = vmatprep.subr.bf16.mxu0 0
        %884 = vmatpush1.bf16.msra.mxu0 0
        %885 = vmatprep.subr.bf16.mxu0 0
        %886 = vmatpush1.bf16.msra.mxu0 0
        %887 = vmatprep.subr.bf16.mxu0 0
        %888 = vmatpush1.bf16.msra.mxu0 0
        %889 = vmatprep.subr.bf16.mxu0 0
        %890 = vmatpush1.bf16.msra.mxu0 0
        %891 = vmatprep.subr.bf16.mxu0 0
        %892 = vmatpush1.bf16.msra.mxu0 0
        %893 = vmatprep.subr.bf16.mxu0 0
        %894 = vmatpush1.bf16.msra.mxu0 0
        %895 = vmatprep.subr.bf16.mxu0 0
        %896 = vmatpush1.bf16.msra.mxu0 0
        %897 = vmatprep.subr.bf16.mxu0 0
        %898 = vmatpush1.bf16.msra.mxu0 0
        %899 = vmatprep.subr.bf16.mxu0 0
        %900 = vmatpush1.bf16.msra.mxu0 0
        %901 = vmatprep.subr.bf16.mxu0 0
        %902 = vmatpush1.bf16.msra.mxu0 0
        %903 = vmatprep.subr.bf16.mxu0 0
        %904 = vmatpush1.bf16.msra.mxu0 0
        %905 = vmatprep.subr.bf16.mxu0 0
        %906 = vmatpush1.bf16.msra.mxu0 0
        %907 = vmatprep.mubr.bf16.mxu0 0
        %908 = vmatmul.mubr.bf16.gmra.mrb[0].mxu0 %v836
        %v909 = vpop.f32.mrb[0].mxu0
        %v910 = vadd.f32 %v694, %v909
        %v911 = vpop.f32.mrb[0].mxu0
        %v912 = vpop.f32.mrb[0].mxu0
        %v913 = vadd.f32 %v697, %v912
        %v914 = vpop.f32.mrb[0].mxu0
        %915 = vmatprep.mubr.bf16.mxu0 0
        %916 = vmatmul.mubr.bf16.gmra.mrb[0].mxu0 %v838
        %v917 = vpop.f32.mrb[0].mxu0
        %v918 = vadd.f32 %v702, %v917
        %v919 = vpop.f32.mrb[0].mxu0
        %v920 = vpop.f32.mrb[0].mxu0
        %v921 = vadd.f32 %v705, %v920
        %v922 = vpop.f32.mrb[0].mxu0
        %923 = vmatprep.mubr.bf16.mxu0 0
        %924 = vmatmul.mubr.bf16.gmra.mrb[0].mxu0 %v840
        %v925 = vpop.f32.mrb[0].mxu0
        %v926 = vadd.f32 %v710, %v925
        %v927 = vpop.f32.mrb[0].mxu0
        %v928 = vpop.f32.mrb[0].mxu0
        %v929 = vadd.f32 %v713, %v928
        %v930 = vpop.f32.mrb[0].mxu0
        %931 = vmatprep.mubr.bf16.mxu0 0
        %932 = vmatmul.mubr.bf16.gmra.mrb[0].mxu0 %v842
        %v933 = vpop.f32.mrb[0].mxu0
        %v934 = vadd.f32 %v718, %v933
        %v935 = vpop.f32.mrb[0].mxu0
        %v936 = vpop.f32.mrb[0].mxu0
        %v937 = vadd.f32 %v721, %v936
        %v938 = vpop.f32.mrb[0].mxu0
        %939 = vmatprep.mubr.bf16.mxu0 0
        %940 = vmatmul.mubr.bf16.gmra.mrb[0].mxu0 %v844
        %v941 = vpop.f32.mrb[0].mxu0
        %v942 = vadd.f32 %v726, %v941
        %v943 = vpop.f32.mrb[0].mxu0
        %v944 = vpop.f32.mrb[0].mxu0
        %v945 = vadd.f32 %v729, %v944
        %v946 = vpop.f32.mrb[0].mxu0
        %947 = vmatprep.mubr.bf16.mxu0 0
        %948 = vmatmul.mubr.bf16.gmra.mrb[0].mxu0 %v846
        %v949 = vpop.f32.mrb[0].mxu0
        %v950 = vadd.f32 %v734, %v949
        %v951 = vpop.f32.mrb[0].mxu0
        %v952 = vpop.f32.mrb[0].mxu0
        %v953 = vadd.f32 %v737, %v952
        %v954 = vpop.f32.mrb[0].mxu0
        %955 = vmatprep.mubr.bf16.mxu0 0
        %956 = vmatmul.mubr.bf16.gmra.mrb[0].mxu0 %v848
        %v957 = vpop.f32.mrb[0].mxu0
        %v958 = vadd.f32 %v742, %v957
        %v959 = vpop.f32.mrb[0].mxu0
        %v960 = vpop.f32.mrb[0].mxu0
        %v961 = vadd.f32 %v745, %v960
        %v962 = vpop.f32.mrb[0].mxu0
        %963 = vmatprep.mubr.bf16.mxu0 0
        %964 = vmatmul.mubr.bf16.gmra.mrb[0].mxu0 %v850
        %v965 = vpop.f32.mrb[0].mxu0
        %v966 = vadd.f32 %v750, %v965
        %v967 = vpop.f32.mrb[0].mxu0
        %v968 = vpop.f32.mrb[0].mxu0
        %v969 = vadd.f32 %v753, %v968
        %v970 = vpop.f32.mrb[0].mxu0
        %971 = vmatprep.mubr.bf16.mxu0 0
        %972 = vmatmul.mubr.bf16.gmra.mrb[0].mxu0 %v852
        %v973 = vpop.f32.mrb[0].mxu0
        %v974 = vadd.f32 %v758, %v973
        %v975 = vpop.f32.mrb[0].mxu0
        %v976 = vpop.f32.mrb[0].mxu0
        %v977 = vadd.f32 %v761, %v976
        %v978 = vpop.f32.mrb[0].mxu0
        %979 = vmatprep.mubr.bf16.mxu0 0
        %980 = vmatmul.mubr.bf16.gmra.mrb[0].mxu0 %v854
        %v981 = vpop.f32.mrb[0].mxu0
        %v982 = vadd.f32 %v766, %v981
        %v983 = vpop.f32.mrb[0].mxu0
        %v984 = vpop.f32.mrb[0].mxu0
        %v985 = vadd.f32 %v769, %v984
        %v986 = vpop.f32.mrb[0].mxu0
        %987 = vmatprep.mubr.bf16.mxu0 0
        %988 = vmatmul.mubr.bf16.gmra.mrb[0].mxu0 %v856
        %v989 = vpop.f32.mrb[0].mxu0
        %v990 = vadd.f32 %v774, %v989
        %v991 = vpop.f32.mrb[0].mxu0
        %v992 = vpop.f32.mrb[0].mxu0
        %v993 = vadd.f32 %v777, %v992
        %v994 = vpop.f32.mrb[0].mxu0
        %995 = vmatprep.mubr.bf16.mxu0 0
        %996 = vmatmul.mubr.bf16.gmra.mrb[0].mxu0 %v858
        %v997 = vpop.f32.mrb[0].mxu0
        %v998 = vadd.f32 %v782, %v997
        %v999 = vpop.f32.mrb[0].mxu0
        %v1000 = vpop.f32.mrb[0].mxu0
        %v1001 = vadd.f32 %v785, %v1000
        %v1002 = vpop.f32.mrb[0].mxu0
        %1003 = vmatprep.mubr.bf16.mxu0 0
        %1004 = vmatmul.mubr.bf16.gmra.mrb[0].mxu0 %v860
        %v1005 = vpop.f32.mrb[0].mxu0
        %v1006 = vadd.f32 %v790, %v1005
        %v1007 = vpop.f32.mrb[0].mxu0
        %v1008 = vpop.f32.mrb[0].mxu0
        %v1009 = vadd.f32 %v793, %v1008
        %v1010 = vpop.f32.mrb[0].mxu0
        %1011 = vmatprep.mubr.bf16.mxu0 0
        %1012 = vmatmul.mubr.bf16.gmra.mrb[0].mxu0 %v862
        %v1013 = vpop.f32.mrb[0].mxu0
        %v1014 = vadd.f32 %v798, %v1013
        %v1015 = vpop.f32.mrb[0].mxu0
        %v1016 = vpop.f32.mrb[0].mxu0
        %v1017 = vadd.f32 %v801, %v1016
        %v1018 = vpop.f32.mrb[0].mxu0
        %1019 = vmatprep.mubr.bf16.mxu0 0
        %1020 = vmatmul.mubr.bf16.gmra.mrb[0].mxu0 %v864
        %v1021 = vpop.f32.mrb[0].mxu0
        %v1022 = vadd.f32 %v806, %v1021
        %v1023 = vpop.f32.mrb[0].mxu0
        %v1024 = vpop.f32.mrb[0].mxu0
        %v1025 = vadd.f32 %v809, %v1024
        %v1026 = vpop.f32.mrb[0].mxu0
        %1027 = vmatprep.mubr.bf16.mxu0 0
        %1028 = vmatmul.mubr.bf16.gmra.mrb[0].mxu0 %v866
        %v1029 = vpop.f32.mrb[0].mxu0
        %v1030 = vadd.f32 %v814, %v1029
        %v1031 = vpop.f32.mrb[0].mxu0
        %v1032 = vpop.f32.mrb[0].mxu0
        %v1033 = vadd.f32 %v817, %v1032
        %v1034 = vpop.f32.mrb[0].mxu0
        %1035 = vmatprep.mubr.bf16.mxu0 0
        %1036 = vmatmul.mubr.bf16.gmra.mrb[0].mxu0 %v868
        %v1037 = vpop.f32.mrb[0].mxu0
        %v1038 = vadd.f32 %v822, %v1037
        %v1039 = vpop.f32.mrb[0].mxu0
        %v1040 = vpop.f32.mrb[0].mxu0
        %v1041 = vadd.f32 %v825, %v1040
        %v1042 = vpop.f32.mrb[0].mxu0
        %1043 = vmatprep.mubr.bf16.mxu0 0
        %1044 = vmatmul.mubr.bf16.gmra.mrb[0].mxu0 %v870
        %v1045 = vpop.f32.mrb[0].mxu0
        %v1046 = vadd.f32 %v830, %v1045
        %v1047 = vpop.f32.mrb[0].mxu0
        %v1048 = vpop.f32.mrb[0].mxu0
        %v1049 = vadd.f32 %v833, %v1048
        %v1050 = vpop.f32.mrb[0].mxu0
        %1051 = vdwg.mxu0
        %v1052 = vld [vmem:[%s3 + $0x4] sm:$0x3]
        %vm1072 = vcmask 1046528
        %v1073 = vrot.slane %v426, 1
        %v1074 = vrot.slane %v427, 1
        %v1075 = vsel %vm1072, %v1073, %v1074
        %v1076 = vrot.slane %v428, 1
        %v1077 = vsel %vm1072, %v1074, %v1076
        %v1078 = vrot.slane %v429, 1
        %v1079 = vsel %vm1072, %v1076, %v1078
        %v1080 = vrot.slane %v430, 1
        %v1081 = vsel %vm1072, %v1078, %v1080
        %v1082 = vrot.slane %v431, 1
        %v1083 = vsel %vm1072, %v1080, %v1082
        %v1084 = vrot.slane %v432, 1
        %v1085 = vsel %vm1072, %v1082, %v1084
        %v1086 = vrot.slane %v433, 1
        %v1087 = vsel %vm1072, %v1084, %v1086
        %v1088 = vrot.slane %v434, 1
        %v1089 = vsel %vm1072, %v1086, %v1088
        %v1090 = vrot.slane %v435, 1
        %v1091 = vsel %vm1072, %v1088, %v1090
        %v1092 = vrot.slane %v436, 1
        %v1093 = vsel %vm1072, %v1090, %v1092
        %v1094 = vrot.slane %v437, 1
        %v1095 = vsel %vm1072, %v1092, %v1094
        %v1096 = vrot.slane %v438, 1
        %v1097 = vsel %vm1072, %v1094, %v1096
        %v1098 = vrot.slane %v439, 1
        %v1099 = vsel %vm1072, %v1096, %v1098
        %v1100 = vrot.slane %v440, 1
        %v1101 = vsel %vm1072, %v1098, %v1100
        %v1102 = vrot.slane %v441, 1
        %v1103 = vsel %vm1072, %v1100, %v1102
        %v1104 = vrot.slane %v442, 1
        %v1105 = vsel %vm1072, %v1102, %v1104
        %v1106 = vrot.slane %v443, 1
        %v1107 = vsel %vm1072, %v1104, %v1106
        %v1108 = vrot.slane %v445, 1
        %v1109 = vsel %vm1072, %v1106, %v1108
        %v1111 = vsel %vm600, %v1075, 0
        %v1114 = vsel %vm600, %v1077, 0
        %v1117 = vsel %vm600, %v1079, 0
        %v1120 = vsel %vm600, %v1081, 0
        %v1123 = vsel %vm600, %v1083, 0
        %v1126 = vsel %vm600, %v1085, 0
        %v1129 = vsel %vm600, %v1087, 0
        %v1132 = vsel %vm600, %v1089, 0
        %v1135 = vsel %vm600, %v1091, 0
        %v1138 = vsel %vm600, %v1093, 0
        %v1141 = vsel %vm600, %v1095, 0
        %v1144 = vsel %vm600, %v1097, 0
        %v1147 = vsel %vm600, %v1099, 0
        %v1150 = vsel %vm600, %v1101, 0
        %v1153 = vsel %vm600, %v1103, 0
        %v1156 = vsel %vm600, %v1105, 0
        %v1159 = vsel %vm600, %v1107, 0
        %v1162 = vsel %vm600, %v1109, 0
        %v1165 = vsel %vm655, %v1052, 0
        %1167 = vmatprep.subr.bf16.mxu0 0
        %1168 = vmatpush1.bf16.msra.mxu0 %v1165
        %1169 = vmatprep.subr.bf16.mxu0 0
        %1170 = vmatpush1.bf16.msra.mxu0 0
        %1171 = vmatprep.subr.bf16.mxu0 0
        %1172 = vmatpush1.bf16.msra.mxu0 0
        %1173 = vmatprep.subr.bf16.mxu0 0
        %1174 = vmatpush1.bf16.msra.mxu0 0
        %1175 = vmatprep.subr.bf16.mxu0 0
        %1176 = vmatpush1.bf16.msra.mxu0 0
        %1177 = vmatprep.subr.bf16.mxu0 0
        %1178 = vmatpush1.bf16.msra.mxu0 0
        %1179 = vmatprep.subr.bf16.mxu0 0
        %1180 = vmatpush1.bf16.msra.mxu0 0
        %1181 = vmatprep.subr.bf16.mxu0 0
        %1182 = vmatpush1.bf16.msra.mxu0 0
        %1183 = vmatprep.subr.bf16.mxu0 0
        %1184 = vmatpush1.bf16.msra.mxu0 0
        %1185 = vmatprep.subr.bf16.mxu0 0
        %1186 = vmatpush1.bf16.msra.mxu0 0
        %1187 = vmatprep.subr.bf16.mxu0 0
        %1188 = vmatpush1.bf16.msra.mxu0 0
        %1189 = vmatprep.subr.bf16.mxu0 0
        %1190 = vmatpush1.bf16.msra.mxu0 0
        %1191 = vmatprep.subr.bf16.mxu0 0
        %1192 = vmatpush1.bf16.msra.mxu0 0
        %1193 = vmatprep.subr.bf16.mxu0 0
        %1194 = vmatpush1.bf16.msra.mxu0 0
        %1195 = vmatprep.subr.bf16.mxu0 0
        %1196 = vmatpush1.bf16.msra.mxu0 0
        %1197 = vmatprep.subr.bf16.mxu0 0
        %1198 = vmatpush1.bf16.msra.mxu0 0
        %1199 = vmatprep.mubr.bf16.mxu0 0
        %1200 = vmatmul.mubr.bf16.gmra.mrb[0].mxu0 %v1111
        %v1201 = vpop.f32.mrb[0].mxu0
        %v1202 = vadd.f32 0.0, %v1201
        %v1203 = vpop.f32.mrb[0].mxu0
        %v1204 = vpop.f32.mrb[0].mxu0
        %v1205 = vadd.f32 0.0, %v1204
        %v1206 = vpop.f32.mrb[0].mxu0
        %1207 = vmatprep.mubr.bf16.mxu0 0
        %1208 = vmatmul.mubr.bf16.gmra.mrb[0].mxu0 %v1114
        %v1209 = vpop.f32.mrb[0].mxu0
        %v1210 = vadd.f32 0.0, %v1209
        %v1211 = vpop.f32.mrb[0].mxu0
        %v1212 = vpop.f32.mrb[0].mxu0
        %v1213 = vadd.f32 0.0, %v1212
        %v1214 = vpop.f32.mrb[0].mxu0
        %1215 = vmatprep.mubr.bf16.mxu0 0
        %1216 = vmatmul.mubr.bf16.gmra.mrb[0].mxu0 %v1117
        %v1217 = vpop.f32.mrb[0].mxu0
        %v1218 = vadd.f32 0.0, %v1217
        %v1219 = vpop.f32.mrb[0].mxu0
        %v1220 = vpop.f32.mrb[0].mxu0
        %v1221 = vadd.f32 0.0, %v1220
        %v1222 = vpop.f32.mrb[0].mxu0
        %1223 = vmatprep.mubr.bf16.mxu0 0
        %1224 = vmatmul.mubr.bf16.gmra.mrb[0].mxu0 %v1120
        %v1225 = vpop.f32.mrb[0].mxu0
        %v1226 = vadd.f32 0.0, %v1225
        %v1227 = vpop.f32.mrb[0].mxu0
        %v1228 = vpop.f32.mrb[0].mxu0
        %v1229 = vadd.f32 0.0, %v1228
        %v1230 = vpop.f32.mrb[0].mxu0
        %1231 = vmatprep.mubr.bf16.mxu0 0
        %1232 = vmatmul.mubr.bf16.gmra.mrb[0].mxu0 %v1123
        %v1233 = vpop.f32.mrb[0].mxu0
        %v1234 = vadd.f32 0.0, %v1233
        %v1235 = vpop.f32.mrb[0].mxu0
        %v1236 = vpop.f32.mrb[0].mxu0
        %v1237 = vadd.f32 0.0, %v1236
        %v1238 = vpop.f32.mrb[0].mxu0
        %1239 = vmatprep.mubr.bf16.mxu0 0
        %1240 = vmatmul.mubr.bf16.gmra.mrb[0].mxu0 %v1126
        %v1241 = vpop.f32.mrb[0].mxu0
        %v1242 = vadd.f32 0.0, %v1241
        %v1243 = vpop.f32.mrb[0].mxu0
        %v1244 = vpop.f32.mrb[0].mxu0
        %v1245 = vadd.f32 0.0, %v1244
        %v1246 = vpop.f32.mrb[0].mxu0
        %1247 = vmatprep.mubr.bf16.mxu0 0
        %1248 = vmatmul.mubr.bf16.gmra.mrb[0].mxu0 %v1129
        %v1249 = vpop.f32.mrb[0].mxu0
        %v1250 = vadd.f32 0.0, %v1249
        %v1251 = vpop.f32.mrb[0].mxu0
        %v1252 = vpop.f32.mrb[0].mxu0
        %v1253 = vadd.f32 0.0, %v1252
        %v1254 = vpop.f32.mrb[0].mxu0
        %1255 = vmatprep.mubr.bf16.mxu0 0
        %1256 = vmatmul.mubr.bf16.gmra.mrb[0].mxu0 %v1132
        %v1257 = vpop.f32.mrb[0].mxu0
        %v1258 = vadd.f32 0.0, %v1257
        %v1259 = vpop.f32.mrb[0].mxu0
        %v1260 = vpop.f32.mrb[0].mxu0
        %v1261 = vadd.f32 0.0, %v1260
        %v1262 = vpop.f32.mrb[0].mxu0
        %1263 = vmatprep.mubr.bf16.mxu0 0
        %1264 = vmatmul.mubr.bf16.gmra.mrb[0].mxu0 %v1135
        %v1265 = vpop.f32.mrb[0].mxu0
        %v1266 = vadd.f32 0.0, %v1265
        %v1267 = vpop.f32.mrb[0].mxu0
        %v1268 = vpop.f32.mrb[0].mxu0
        %v1269 = vadd.f32 0.0, %v1268
        %v1270 = vpop.f32.mrb[0].mxu0
        %1271 = vmatprep.mubr.bf16.mxu0 0
        %1272 = vmatmul.mubr.bf16.gmra.mrb[0].mxu0 %v1138
        %v1273 = vpop.f32.mrb[0].mxu0
        %v1274 = vadd.f32 0.0, %v1273
        %v1275 = vpop.f32.mrb[0].mxu0
        %v1276 = vpop.f32.mrb[0].mxu0
        %v1277 = vadd.f32 0.0, %v1276
        %v1278 = vpop.f32.mrb[0].mxu0
        %1279 = vmatprep.mubr.bf16.mxu0 0
        %1280 = vmatmul.mubr.bf16.gmra.mrb[0].mxu0 %v1141
        %v1281 = vpop.f32.mrb[0].mxu0
        %v1282 = vadd.f32 0.0, %v1281
        %v1283 = vpop.f32.mrb[0].mxu0
        %v1284 = vpop.f32.mrb[0].mxu0
        %v1285 = vadd.f32 0.0, %v1284
        %v1286 = vpop.f32.mrb[0].mxu0
        %1287 = vmatprep.mubr.bf16.mxu0 0
        %1288 = vmatmul.mubr.bf16.gmra.mrb[0].mxu0 %v1144
        %v1289 = vpop.f32.mrb[0].mxu0
        %v1290 = vadd.f32 0.0, %v1289
        %v1291 = vpop.f32.mrb[0].mxu0
        %v1292 = vpop.f32.mrb[0].mxu0
        %v1293 = vadd.f32 0.0, %v1292
        %v1294 = vpop.f32.mrb[0].mxu0
        %1295 = vmatprep.mubr.bf16.mxu0 0
        %1296 = vmatmul.mubr.bf16.gmra.mrb[0].mxu0 %v1147
        %v1297 = vpop.f32.mrb[0].mxu0
        %v1298 = vadd.f32 0.0, %v1297
        %v1299 = vpop.f32.mrb[0].mxu0
        %v1300 = vpop.f32.mrb[0].mxu0
        %v1301 = vadd.f32 0.0, %v1300
        %v1302 = vpop.f32.mrb[0].mxu0
        %1303 = vmatprep.mubr.bf16.mxu0 0
        %1304 = vmatmul.mubr.bf16.gmra.mrb[0].mxu0 %v1150
        %v1305 = vpop.f32.mrb[0].mxu0
        %v1306 = vadd.f32 0.0, %v1305
        %v1307 = vpop.f32.mrb[0].mxu0
        %v1308 = vpop.f32.mrb[0].mxu0
        %v1309 = vadd.f32 0.0, %v1308
        %v1310 = vpop.f32.mrb[0].mxu0
        %1311 = vmatprep.mubr.bf16.mxu0 0
        %1312 = vmatmul.mubr.bf16.gmra.mrb[0].mxu0 %v1153
        %v1313 = vpop.f32.mrb[0].mxu0
        %v1314 = vadd.f32 0.0, %v1313
        %v1315 = vpop.f32.mrb[0].mxu0
        %v1316 = vpop.f32.mrb[0].mxu0
        %v1317 = vadd.f32 0.0, %v1316
        %v1318 = vpop.f32.mrb[0].mxu0
        %1319 = vmatprep.mubr.bf16.mxu0 0
        %1320 = vmatmul.mubr.bf16.gmra.mrb[0].mxu0 %v1156
        %v1321 = vpop.f32.mrb[0].mxu0
        %v1322 = vadd.f32 0.0, %v1321
        %v1323 = vpop.f32.mrb[0].mxu0
        %v1324 = vpop.f32.mrb[0].mxu0
        %v1325 = vadd.f32 0.0, %v1324
        %v1326 = vpop.f32.mrb[0].mxu0
        %1327 = vmatprep.mubr.bf16.mxu0 0
        %1328 = vmatmul.mubr.bf16.gmra.mrb[0].mxu0 %v1159
        %v1329 = vpop.f32.mrb[0].mxu0
        %v1330 = vadd.f32 0.0, %v1329
        %v1331 = vpop.f32.mrb[0].mxu0
        %v1332 = vpop.f32.mrb[0].mxu0
        %v1333 = vadd.f32 0.0, %v1332
        %v1334 = vpop.f32.mrb[0].mxu0
        %1335 = vmatprep.mubr.bf16.mxu0 0
        %1336 = vmatmul.mubr.bf16.gmra.mrb[0].mxu0 %v1162
        %v1337 = vpop.f32.mrb[0].mxu0
        %v1338 = vadd.f32 0.0, %v1337
        %v1339 = vpop.f32.mrb[0].mxu0
        %v1340 = vpop.f32.mrb[0].mxu0
        %v1341 = vadd.f32 0.0, %v1340
        %v1342 = vpop.f32.mrb[0].mxu0
        %1343 = vdwg.mxu0
        %v1344 = vadd.f32 %v910, %v1202
        %v1345 = vadd.f32 %v913, %v1205
        %v1346 = vadd.f32 %v918, %v1210
        %v1347 = vadd.f32 %v921, %v1213
        %v1348 = vadd.f32 %v926, %v1218
        %v1349 = vadd.f32 %v929, %v1221
        %v1350 = vadd.f32 %v934, %v1226
        %v1351 = vadd.f32 %v937, %v1229
        %v1352 = vadd.f32 %v942, %v1234
        %v1353 = vadd.f32 %v945, %v1237
        %v1354 = vadd.f32 %v950, %v1242
        %v1355 = vadd.f32 %v953, %v1245
        %v1356 = vadd.f32 %v958, %v1250
        %v1357 = vadd.f32 %v961, %v1253
        %v1358 = vadd.f32 %v966, %v1258
        %v1359 = vadd.f32 %v969, %v1261
        %v1360 = vadd.f32 %v974, %v1266
        %v1361 = vadd.f32 %v977, %v1269
        %v1362 = vadd.f32 %v982, %v1274
        %v1363 = vadd.f32 %v985, %v1277
        %v1364 = vadd.f32 %v990, %v1282
        %v1365 = vadd.f32 %v993, %v1285
        %v1366 = vadd.f32 %v998, %v1290
        %v1367 = vadd.f32 %v1001, %v1293
        %v1368 = vadd.f32 %v1006, %v1298
        %v1369 = vadd.f32 %v1009, %v1301
        %v1370 = vadd.f32 %v1014, %v1306
        %v1371 = vadd.f32 %v1017, %v1309
        %v1372 = vadd.f32 %v1022, %v1314
        %v1373 = vadd.f32 %v1025, %v1317
        %v1374 = vadd.f32 %v1030, %v1322
        %v1375 = vadd.f32 %v1033, %v1325
        %v1376 = vadd.f32 %v1038, %v1330
        %v1377 = vadd.f32 %v1041, %v1333
        %v1378 = vadd.f32 %v1046, %v1338
        %v1379 = vadd.f32 %v1049, %v1341
        %v1380 = vpack.c.bf16 %v422, %v421
        %v1381 = vpack.c.bf16 %v423, %v423
        %v1382 = vld [vmem:[%s3 + $0x4] sm:$0xc]
        %v1385 = vrot.slane %v1380, 1
        %v1386 = vsel %vm1072, %v1106, %v1385
        %v1387 = vrot.slane %v1381, 1
        %v1388 = vsel %vm1072, %v1385, %v1387
        %v1390 = vunpack.c.l.b16 %v1382
        %v1391 = vpack.c.b16 %v1390, %v1390
        %v1392 = vrot.slane %v1391, 2
        %v1394 = vsel %vm600, %v1386, 0
        %v1397 = vsel %vm600, %v1388, 0
        %v1400 = vsel %vm655, %v1392, 0
        %1402 = vmatprep.subr.bf16.mxu0 0
        %1403 = vmatpush1.bf16.msra.mxu0 %v1400
        %1404 = vmatprep.subr.bf16.mxu0 0
        %1405 = vmatpush1.bf16.msra.mxu0 0
        %1406 = vmatprep.subr.bf16.mxu0 0
        %1407 = vmatpush1.bf16.msra.mxu0 0
        %1408 = vmatprep.subr.bf16.mxu0 0
        %1409 = vmatpush1.bf16.msra.mxu0 0
        %1410 = vmatprep.subr.bf16.mxu0 0
        %1411 = vmatpush1.bf16.msra.mxu0 0
        %1412 = vmatprep.subr.bf16.mxu0 0
        %1413 = vmatpush1.bf16.msra.mxu0 0
        %1414 = vmatprep.subr.bf16.mxu0 0
        %1415 = vmatpush1.bf16.msra.mxu0 0
        %1416 = vmatprep.subr.bf16.mxu0 0
        %1417 = vmatpush1.bf16.msra.mxu0 0
        %1418 = vmatprep.subr.bf16.mxu0 0
        %1419 = vmatpush1.bf16.msra.mxu0 0
        %1420 = vmatprep.subr.bf16.mxu0 0
        %1421 = vmatpush1.bf16.msra.mxu0 0
        %1422 = vmatprep.subr.bf16.mxu0 0
        %1423 = vmatpush1.bf16.msra.mxu0 0
        %1424 = vmatprep.subr.bf16.mxu0 0
        %1425 = vmatpush1.bf16.msra.mxu0 0
        %1426 = vmatprep.subr.bf16.mxu0 0
        %1427 = vmatpush1.bf16.msra.mxu0 0
        %1428 = vmatprep.subr.bf16.mxu0 0
        %1429 = vmatpush1.bf16.msra.mxu0 0
        %1430 = vmatprep.subr.bf16.mxu0 0
        %1431 = vmatpush1.bf16.msra.mxu0 0
        %1432 = vmatprep.subr.bf16.mxu0 0
        %1433 = vmatpush1.bf16.msra.mxu0 0
        %1434 = vmatprep.mubr.bf16.mxu0 0
        %1435 = vmatmul.mubr.bf16.gmra.mrb[0].mxu0 %v1114
        %v1436 = vpop.f32.mrb[0].mxu0
        %v1437 = vadd.f32 0.0, %v1436
        %v1438 = vpop.f32.mrb[0].mxu0
        %v1439 = vpop.f32.mrb[0].mxu0
        %v1440 = vadd.f32 0.0, %v1439
        %v1441 = vpop.f32.mrb[0].mxu0
        %1442 = vmatprep.mubr.bf16.mxu0 0
        %1443 = vmatmul.mubr.bf16.gmra.mrb[0].mxu0 %v1117
        %v1444 = vpop.f32.mrb[0].mxu0
        %v1445 = vadd.f32 0.0, %v1444
        %v1446 = vpop.f32.mrb[0].mxu0
        %v1447 = vpop.f32.mrb[0].mxu0
        %v1448 = vadd.f32 0.0, %v1447
        %v1449 = vpop.f32.mrb[0].mxu0
        %1450 = vmatprep.mubr.bf16.mxu0 0
        %1451 = vmatmul.mubr.bf16.gmra.mrb[0].mxu0 %v1120
        %v1452 = vpop.f32.mrb[0].mxu0
        %v1453 = vadd.f32 0.0, %v1452
        %v1454 = vpop.f32.mrb[0].mxu0
        %v1455 = vpop.f32.mrb[0].mxu0
        %v1456 = vadd.f32 0.0, %v1455
        %v1457 = vpop.f32.mrb[0].mxu0
        %1458 = vmatprep.mubr.bf16.mxu0 0
        %1459 = vmatmul.mubr.bf16.gmra.mrb[0].mxu0 %v1123
        %v1460 = vpop.f32.mrb[0].mxu0
        %v1461 = vadd.f32 0.0, %v1460
        %v1462 = vpop.f32.mrb[0].mxu0
        %v1463 = vpop.f32.mrb[0].mxu0
        %v1464 = vadd.f32 0.0, %v1463
        %v1465 = vpop.f32.mrb[0].mxu0
        %1466 = vmatprep.mubr.bf16.mxu0 0
        %1467 = vmatmul.mubr.bf16.gmra.mrb[0].mxu0 %v1126
        %v1468 = vpop.f32.mrb[0].mxu0
        %v1469 = vadd.f32 0.0, %v1468
        %v1470 = vpop.f32.mrb[0].mxu0
        %v1471 = vpop.f32.mrb[0].mxu0
        %v1472 = vadd.f32 0.0, %v1471
        %v1473 = vpop.f32.mrb[0].mxu0
        %1474 = vmatprep.mubr.bf16.mxu0 0
        %1475 = vmatmul.mubr.bf16.gmra.mrb[0].mxu0 %v1129
        %v1476 = vpop.f32.mrb[0].mxu0
        %v1477 = vadd.f32 0.0, %v1476
        %v1478 = vpop.f32.mrb[0].mxu0
        %v1479 = vpop.f32.mrb[0].mxu0
        %v1480 = vadd.f32 0.0, %v1479
        %v1481 = vpop.f32.mrb[0].mxu0
        %1482 = vmatprep.mubr.bf16.mxu0 0
        %1483 = vmatmul.mubr.bf16.gmra.mrb[0].mxu0 %v1132
        %v1484 = vpop.f32.mrb[0].mxu0
        %v1485 = vadd.f32 0.0, %v1484
        %v1486 = vpop.f32.mrb[0].mxu0
        %v1487 = vpop.f32.mrb[0].mxu0
        %v1488 = vadd.f32 0.0, %v1487
        %v1489 = vpop.f32.mrb[0].mxu0
        %1490 = vmatprep.mubr.bf16.mxu0 0
        %1491 = vmatmul.mubr.bf16.gmra.mrb[0].mxu0 %v1135
        %v1492 = vpop.f32.mrb[0].mxu0
        %v1493 = vadd.f32 0.0, %v1492
        %v1494 = vpop.f32.mrb[0].mxu0
        %v1495 = vpop.f32.mrb[0].mxu0
        %v1496 = vadd.f32 0.0, %v1495
        %v1497 = vpop.f32.mrb[0].mxu0
        %1498 = vmatprep.mubr.bf16.mxu0 0
        %1499 = vmatmul.mubr.bf16.gmra.mrb[0].mxu0 %v1138
        %v1500 = vpop.f32.mrb[0].mxu0
        %v1501 = vadd.f32 0.0, %v1500
        %v1502 = vpop.f32.mrb[0].mxu0
        %v1503 = vpop.f32.mrb[0].mxu0
        %v1504 = vadd.f32 0.0, %v1503
        %v1505 = vpop.f32.mrb[0].mxu0
        %1506 = vmatprep.mubr.bf16.mxu0 0
        %1507 = vmatmul.mubr.bf16.gmra.mrb[0].mxu0 %v1141
        %v1508 = vpop.f32.mrb[0].mxu0
        %v1509 = vadd.f32 0.0, %v1508
        %v1510 = vpop.f32.mrb[0].mxu0
        %v1511 = vpop.f32.mrb[0].mxu0
        %v1512 = vadd.f32 0.0, %v1511
        %v1513 = vpop.f32.mrb[0].mxu0
        %1514 = vmatprep.mubr.bf16.mxu0 0
        %1515 = vmatmul.mubr.bf16.gmra.mrb[0].mxu0 %v1144
        %v1516 = vpop.f32.mrb[0].mxu0
        %v1517 = vadd.f32 0.0, %v1516
        %v1518 = vpop.f32.mrb[0].mxu0
        %v1519 = vpop.f32.mrb[0].mxu0
        %v1520 = vadd.f32 0.0, %v1519
        %v1521 = vpop.f32.mrb[0].mxu0
        %1522 = vmatprep.mubr.bf16.mxu0 0
        %1523 = vmatmul.mubr.bf16.gmra.mrb[0].mxu0 %v1147
        %v1524 = vpop.f32.mrb[0].mxu0
        %v1525 = vadd.f32 0.0, %v1524
        %v1526 = vpop.f32.mrb[0].mxu0
        %v1527 = vpop.f32.mrb[0].mxu0
        %v1528 = vadd.f32 0.0, %v1527
        %v1529 = vpop.f32.mrb[0].mxu0
        %1530 = vmatprep.mubr.bf16.mxu0 0
        %1531 = vmatmul.mubr.bf16.gmra.mrb[0].mxu0 %v1150
        %v1532 = vpop.f32.mrb[0].mxu0
        %v1533 = vadd.f32 0.0, %v1532
        %v1534 = vpop.f32.mrb[0].mxu0
        %v1535 = vpop.f32.mrb[0].mxu0
        %v1536 = vadd.f32 0.0, %v1535
        %v1537 = vpop.f32.mrb[0].mxu0
        %1538 = vmatprep.mubr.bf16.mxu0 0
        %1539 = vmatmul.mubr.bf16.gmra.mrb[0].mxu0 %v1153
        %v1540 = vpop.f32.mrb[0].mxu0
        %v1541 = vadd.f32 0.0, %v1540
        %v1542 = vpop.f32.mrb[0].mxu0
        %v1543 = vpop.f32.mrb[0].mxu0
        %v1544 = vadd.f32 0.0, %v1543
        %v1545 = vpop.f32.mrb[0].mxu0
        %1546 = vmatprep.mubr.bf16.mxu0 0
        %1547 = vmatmul.mubr.bf16.gmra.mrb[0].mxu0 %v1156
        %v1548 = vpop.f32.mrb[0].mxu0
        %v1549 = vadd.f32 0.0, %v1548
        %v1550 = vpop.f32.mrb[0].mxu0
        %v1551 = vpop.f32.mrb[0].mxu0
        %v1552 = vadd.f32 0.0, %v1551
        %v1553 = vpop.f32.mrb[0].mxu0
        %1554 = vmatprep.mubr.bf16.mxu0 0
        %1555 = vmatmul.mubr.bf16.gmra.mrb[0].mxu0 %v1159
        %v1556 = vpop.f32.mrb[0].mxu0
        %v1557 = vadd.f32 0.0, %v1556
        %v1558 = vpop.f32.mrb[0].mxu0
        %v1559 = vpop.f32.mrb[0].mxu0
        %v1560 = vadd.f32 0.0, %v1559
        %v1561 = vpop.f32.mrb[0].mxu0
        %1562 = vmatprep.mubr.bf16.mxu0 0
        %1563 = vmatmul.mubr.bf16.gmra.mrb[0].mxu0 %v1394
        %v1564 = vpop.f32.mrb[0].mxu0
        %v1565 = vadd.f32 0.0, %v1564
        %v1566 = vpop.f32.mrb[0].mxu0
        %v1567 = vpop.f32.mrb[0].mxu0
        %v1568 = vadd.f32 0.0, %v1567
        %v1569 = vpop.f32.mrb[0].mxu0
        %1570 = vmatprep.mubr.bf16.mxu0 0
        %1571 = vmatmul.mubr.bf16.gmra.mrb[0].mxu0 %v1397
        %v1572 = vpop.f32.mrb[0].mxu0
        %v1573 = vadd.f32 0.0, %v1572
        %v1574 = vpop.f32.mrb[0].mxu0
        %v1575 = vpop.f32.mrb[0].mxu0
        %v1576 = vadd.f32 0.0, %v1575
        %v1577 = vpop.f32.mrb[0].mxu0
        %1578 = vdwg.mxu0
        %v1579 = vadd.f32 %v1344, %v1437
        %v1580 = vadd.f32 %v1345, %v1440
        %v1581 = vadd.f32 %v1346, %v1445
        %v1582 = vadd.f32 %v1347, %v1448
        %v1583 = vadd.f32 %v1348, %v1453
        %v1584 = vadd.f32 %v1349, %v1456
        %v1585 = vadd.f32 %v1350, %v1461
        %v1586 = vadd.f32 %v1351, %v1464
        %v1587 = vadd.f32 %v1352, %v1469
        %v1588 = vadd.f32 %v1353, %v1472
        %v1589 = vadd.f32 %v1354, %v1477
        %v1590 = vadd.f32 %v1355, %v1480
        %v1591 = vadd.f32 %v1356, %v1485
        %v1592 = vadd.f32 %v1357, %v1488
        %v1593 = vadd.f32 %v1358, %v1493
        %v1594 = vadd.f32 %v1359, %v1496
        %v1595 = vadd.f32 %v1360, %v1501
        %v1596 = vadd.f32 %v1361, %v1504
        %v1597 = vadd.f32 %v1362, %v1509
        %v1598 = vadd.f32 %v1363, %v1512
        %v1599 = vadd.f32 %v1364, %v1517
        %v1600 = vadd.f32 %v1365, %v1520
        %v1601 = vadd.f32 %v1366, %v1525
        %v1602 = vadd.f32 %v1367, %v1528
        %v1603 = vadd.f32 %v1368, %v1533
        %v1604 = vadd.f32 %v1369, %v1536
        %v1605 = vadd.f32 %v1370, %v1541
        %v1606 = vadd.f32 %v1371, %v1544
        %v1607 = vadd.f32 %v1372, %v1549
        %v1608 = vadd.f32 %v1373, %v1552
        %v1609 = vadd.f32 %v1374, %v1557
        %v1610 = vadd.f32 %v1375, %v1560
        %v1611 = vadd.f32 %v1376, %v1565
        %v1612 = vadd.f32 %v1377, %v1568
        %v1613 = vadd.f32 %v1378, %v1573
        %v1614 = vadd.f32 %v1379, %v1576
        %v1615 = vld [vmem:[%s3 + $0x8] sm:$0x3]
        %vm1616 = vsmask.f32 6400
        %v1617 = vrot.slane %v460, 1
        %v1618 = vrot.slane %v456, 2
        %v1619 = vor.u32 %v1617, %v1618
        %v1620 = vrot.slane %v468, 1
        %v1621 = vrot.slane %v464, 2
        %v1622 = vor.u32 %v1620, %v1621
        %v1623 = vsel %vm1616, %v1619, %v1622
        %v1624 = vrot.slane %v476, 1
        %v1625 = vrot.slane %v472, 2
        %v1626 = vor.u32 %v1624, %v1625
        %v1627 = vsel %vm1616, %v1622, %v1626
        %v1628 = vrot.slane %v484, 1
        %v1629 = vrot.slane %v480, 2
        %v1630 = vor.u32 %v1628, %v1629
        %v1631 = vsel %vm1616, %v1626, %v1630
        %v1632 = vrot.slane %v492, 1
        %v1633 = vrot.slane %v488, 2
        %v1634 = vor.u32 %v1632, %v1633
        %v1635 = vsel %vm1616, %v1630, %v1634
        %v1636 = vrot.slane %v500, 1
        %v1637 = vrot.slane %v496, 2
        %v1638 = vor.u32 %v1636, %v1637
        %v1639 = vsel %vm1616, %v1634, %v1638
        %v1640 = vrot.slane %v508, 1
        %v1641 = vrot.slane %v504, 2
        %v1642 = vor.u32 %v1640, %v1641
        %v1643 = vsel %vm1616, %v1638, %v1642
        %v1644 = vrot.slane %v516, 1
        %v1645 = vrot.slane %v512, 2
        %v1646 = vor.u32 %v1644, %v1645
        %v1647 = vsel %vm1616, %v1642, %v1646
        %v1648 = vrot.slane %v524, 1
        %v1649 = vrot.slane %v520, 2
        %v1650 = vor.u32 %v1648, %v1649
        %v1651 = vsel %vm1616, %v1646, %v1650
        %v1652 = vrot.slane %v532, 1
        %v1653 = vrot.slane %v528, 2
        %v1654 = vor.u32 %v1652, %v1653
        %v1655 = vsel %vm1616, %v1650, %v1654
        %v1656 = vrot.slane %v540, 1
        %v1657 = vrot.slane %v536, 2
        %v1658 = vor.u32 %v1656, %v1657
        %v1659 = vsel %vm1616, %v1654, %v1658
        %v1660 = vrot.slane %v548, 1
        %v1661 = vrot.slane %v544, 2
        %v1662 = vor.u32 %v1660, %v1661
        %v1663 = vsel %vm1616, %v1658, %v1662
        %v1664 = vrot.slane %v556, 1
        %v1665 = vrot.slane %v552, 2
        %v1666 = vor.u32 %v1664, %v1665
        %v1667 = vsel %vm1616, %v1662, %v1666
        %v1668 = vrot.slane %v564, 1
        %v1669 = vrot.slane %v560, 2
        %v1670 = vor.u32 %v1668, %v1669
        %v1671 = vsel %vm1616, %v1666, %v1670
        %v1672 = vrot.slane %v572, 1
        %v1673 = vrot.slane %v568, 2
        %v1674 = vor.u32 %v1672, %v1673
        %v1675 = vsel %vm1616, %v1670, %v1674
        %v1676 = vrot.slane %v580, 1
        %v1677 = vrot.slane %v576, 2
        %v1678 = vor.u32 %v1676, %v1677
        %v1679 = vsel %vm1616, %v1674, %v1678
        %v1680 = vrot.slane %v588, 1
        %v1681 = vrot.slane %v584, 2
        %v1682 = vor.u32 %v1680, %v1681
        %v1683 = vsel %vm1616, %v1678, %v1682
        %v1685 = vshrl.u32 %v1380, 16
        %v1687 = vrot.slane %v1685, 1
        %v1688 = vshll.u32 %v1380, 16
        %v1690 = vrot.slane %v1688, 2
        %v1691 = vor.u32 %v1687, %v1690
        %v1692 = vsel %vm1616, %v1682, %v1691
        %v1694 = vshrl.u32 %v1381, 16
        %v1696 = vrot.slane %v1694, 1
        %v1697 = vshll.u32 %v1381, 16
        %v1699 = vrot.slane %v1697, 2
        %v1700 = vor.u32 %v1696, %v1699
        %v1701 = vsel %vm1616, %v1691, %v1700
        %v1703 = vsel %vm600, %v1623, 0
        %v1706 = vsel %vm600, %v1627, 0
        %v1709 = vsel %vm600, %v1631, 0
        %v1712 = vsel %vm600, %v1635, 0
        %v1715 = vsel %vm600, %v1639, 0
        %v1718 = vsel %vm600, %v1643, 0
        %v1721 = vsel %vm600, %v1647, 0
        %v1724 = vsel %vm600, %v1651, 0
        %v1727 = vsel %vm600, %v1655, 0
        %v1730 = vsel %vm600, %v1659, 0
        %v1733 = vsel %vm600, %v1663, 0
        %v1736 = vsel %vm600, %v1667, 0
        %v1739 = vsel %vm600, %v1671, 0
        %v1742 = vsel %vm600, %v1675, 0
        %v1745 = vsel %vm600, %v1679, 0
        %v1748 = vsel %vm600, %v1683, 0
        %v1751 = vsel %vm600, %v1692, 0
        %v1754 = vsel %vm600, %v1701, 0
        %v1757 = vsel %vm655, %v1615, 0
        %1759 = vmatprep.subr.bf16.mxu0 0
        %1760 = vmatpush1.bf16.msra.mxu0 %v1757
        %1761 = vmatprep.subr.bf16.mxu0 0
        %1762 = vmatpush1.bf16.msra.mxu0 0
        %1763 = vmatprep.subr.bf16.mxu0 0
        %1764 = vmatpush1.bf16.msra.mxu0 0
        %1765 = vmatprep.subr.bf16.mxu0 0
        %1766 = vmatpush1.bf16.msra.mxu0 0
        %1767 = vmatprep.subr.bf16.mxu0 0
        %1768 = vmatpush1.bf16.msra.mxu0 0
        %1769 = vmatprep.subr.bf16.mxu0 0
        %1770 = vmatpush1.bf16.msra.mxu0 0
        %1771 = vmatprep.subr.bf16.mxu0 0
        %1772 = vmatpush1.bf16.msra.mxu0 0
        %1773 = vmatprep.subr.bf16.mxu0 0
        %1774 = vmatpush1.bf16.msra.mxu0 0
        %1775 = vmatprep.subr.bf16.mxu0 0
        %1776 = vmatpush1.bf16.msra.mxu0 0
        %1777 = vmatprep.subr.bf16.mxu0 0
        %1778 = vmatpush1.bf16.msra.mxu0 0
        %1779 = vmatprep.subr.bf16.mxu0 0
        %1780 = vmatpush1.bf16.msra.mxu0 0
        %1781 = vmatprep.subr.bf16.mxu0 0
        %1782 = vmatpush1.bf16.msra.mxu0 0
        %1783 = vmatprep.subr.bf16.mxu0 0
        %1784 = vmatpush1.bf16.msra.mxu0 0
        %1785 = vmatprep.subr.bf16.mxu0 0
        %1786 = vmatpush1.bf16.msra.mxu0 0
        %1787 = vmatprep.subr.bf16.mxu0 0
        %1788 = vmatpush1.bf16.msra.mxu0 0
        %1789 = vmatprep.subr.bf16.mxu0 0
        %1790 = vmatpush1.bf16.msra.mxu0 0
        %1791 = vmatprep.mubr.bf16.mxu0 0
        %1792 = vmatmul.mubr.bf16.gmra.mrb[0].mxu0 %v1703
        %v1793 = vpop.f32.mrb[0].mxu0
        %v1794 = vadd.f32 0.0, %v1793
        %v1795 = vpop.f32.mrb[0].mxu0
        %v1796 = vpop.f32.mrb[0].mxu0
        %v1797 = vadd.f32 0.0, %v1796
        %v1798 = vpop.f32.mrb[0].mxu0
        %1799 = vmatprep.mubr.bf16.mxu0 0
        %1800 = vmatmul.mubr.bf16.gmra.mrb[0].mxu0 %v1706
        %v1801 = vpop.f32.mrb[0].mxu0
        %v1802 = vadd.f32 0.0, %v1801
        %v1803 = vpop.f32.mrb[0].mxu0
        %v1804 = vpop.f32.mrb[0].mxu0
        %v1805 = vadd.f32 0.0, %v1804
        %v1806 = vpop.f32.mrb[0].mxu0
        %1807 = vmatprep.mubr.bf16.mxu0 0
        %1808 = vmatmul.mubr.bf16.gmra.mrb[0].mxu0 %v1709
        %v1809 = vpop.f32.mrb[0].mxu0
        %v1810 = vadd.f32 0.0, %v1809
        %v1811 = vpop.f32.mrb[0].mxu0
        %v1812 = vpop.f32.mrb[0].mxu0
        %v1813 = vadd.f32 0.0, %v1812
        %v1814 = vpop.f32.mrb[0].mxu0
        %1815 = vmatprep.mubr.bf16.mxu0 0
        %1816 = vmatmul.mubr.bf16.gmra.mrb[0].mxu0 %v1712
        %v1817 = vpop.f32.mrb[0].mxu0
        %v1818 = vadd.f32 0.0, %v1817
        %v1819 = vpop.f32.mrb[0].mxu0
        %v1820 = vpop.f32.mrb[0].mxu0
        %v1821 = vadd.f32 0.0, %v1820
        %v1822 = vpop.f32.mrb[0].mxu0
        %1823 = vmatprep.mubr.bf16.mxu0 0
        %1824 = vmatmul.mubr.bf16.gmra.mrb[0].mxu0 %v1715
        %v1825 = vpop.f32.mrb[0].mxu0
        %v1826 = vadd.f32 0.0, %v1825
        %v1827 = vpop.f32.mrb[0].mxu0
        %v1828 = vpop.f32.mrb[0].mxu0
        %v1829 = vadd.f32 0.0, %v1828
        %v1830 = vpop.f32.mrb[0].mxu0
        %1831 = vmatprep.mubr.bf16.mxu0 0
        %1832 = vmatmul.mubr.bf16.gmra.mrb[0].mxu0 %v1718
        %v1833 = vpop.f32.mrb[0].mxu0
        %v1834 = vadd.f32 0.0, %v1833
        %v1835 = vpop.f32.mrb[0].mxu0
        %v1836 = vpop.f32.mrb[0].mxu0
        %v1837 = vadd.f32 0.0, %v1836
        %v1838 = vpop.f32.mrb[0].mxu0
        %1839 = vmatprep.mubr.bf16.mxu0 0
        %1840 = vmatmul.mubr.bf16.gmra.mrb[0].mxu0 %v1721
        %v1841 = vpop.f32.mrb[0].mxu0
        %v1842 = vadd.f32 0.0, %v1841
        %v1843 = vpop.f32.mrb[0].mxu0
        %v1844 = vpop.f32.mrb[0].mxu0
        %v1845 = vadd.f32 0.0, %v1844
        %v1846 = vpop.f32.mrb[0].mxu0
        %1847 = vmatprep.mubr.bf16.mxu0 0
        %1848 = vmatmul.mubr.bf16.gmra.mrb[0].mxu0 %v1724
        %v1849 = vpop.f32.mrb[0].mxu0
        %v1850 = vadd.f32 0.0, %v1849
        %v1851 = vpop.f32.mrb[0].mxu0
        %v1852 = vpop.f32.mrb[0].mxu0
        %v1853 = vadd.f32 0.0, %v1852
        %v1854 = vpop.f32.mrb[0].mxu0
        %1855 = vmatprep.mubr.bf16.mxu0 0
        %1856 = vmatmul.mubr.bf16.gmra.mrb[0].mxu0 %v1727
        %v1857 = vpop.f32.mrb[0].mxu0
        %v1858 = vadd.f32 0.0, %v1857
        %v1859 = vpop.f32.mrb[0].mxu0
        %v1860 = vpop.f32.mrb[0].mxu0
        %v1861 = vadd.f32 0.0, %v1860
        %v1862 = vpop.f32.mrb[0].mxu0
        %1863 = vmatprep.mubr.bf16.mxu0 0
        %1864 = vmatmul.mubr.bf16.gmra.mrb[0].mxu0 %v1730
        %v1865 = vpop.f32.mrb[0].mxu0
        %v1866 = vadd.f32 0.0, %v1865
        %v1867 = vpop.f32.mrb[0].mxu0
        %v1868 = vpop.f32.mrb[0].mxu0
        %v1869 = vadd.f32 0.0, %v1868
        %v1870 = vpop.f32.mrb[0].mxu0
        %1871 = vmatprep.mubr.bf16.mxu0 0
        %1872 = vmatmul.mubr.bf16.gmra.mrb[0].mxu0 %v1733
        %v1873 = vpop.f32.mrb[0].mxu0
        %v1874 = vadd.f32 0.0, %v1873
        %v1875 = vpop.f32.mrb[0].mxu0
        %v1876 = vpop.f32.mrb[0].mxu0
        %v1877 = vadd.f32 0.0, %v1876
        %v1878 = vpop.f32.mrb[0].mxu0
        %1879 = vmatprep.mubr.bf16.mxu0 0
        %1880 = vmatmul.mubr.bf16.gmra.mrb[0].mxu0 %v1736
        %v1881 = vpop.f32.mrb[0].mxu0
        %v1882 = vadd.f32 0.0, %v1881
        %v1883 = vpop.f32.mrb[0].mxu0
        %v1884 = vpop.f32.mrb[0].mxu0
        %v1885 = vadd.f32 0.0, %v1884
        %v1886 = vpop.f32.mrb[0].mxu0
        %1887 = vmatprep.mubr.bf16.mxu0 0
        %1888 = vmatmul.mubr.bf16.gmra.mrb[0].mxu0 %v1739
        %v1889 = vpop.f32.mrb[0].mxu0
        %v1890 = vadd.f32 0.0, %v1889
        %v1891 = vpop.f32.mrb[0].mxu0
        %v1892 = vpop.f32.mrb[0].mxu0
        %v1893 = vadd.f32 0.0, %v1892
        %v1894 = vpop.f32.mrb[0].mxu0
        %1895 = vmatprep.mubr.bf16.mxu0 0
        %1896 = vmatmul.mubr.bf16.gmra.mrb[0].mxu0 %v1742
        %v1897 = vpop.f32.mrb[0].mxu0
        %v1898 = vadd.f32 0.0, %v1897
        %v1899 = vpop.f32.mrb[0].mxu0
        %v1900 = vpop.f32.mrb[0].mxu0
        %v1901 = vadd.f32 0.0, %v1900
        %v1902 = vpop.f32.mrb[0].mxu0
        %1903 = vmatprep.mubr.bf16.mxu0 0
        %1904 = vmatmul.mubr.bf16.gmra.mrb[0].mxu0 %v1745
        %v1905 = vpop.f32.mrb[0].mxu0
        %v1906 = vadd.f32 0.0, %v1905
        %v1907 = vpop.f32.mrb[0].mxu0
        %v1908 = vpop.f32.mrb[0].mxu0
        %v1909 = vadd.f32 0.0, %v1908
        %v1910 = vpop.f32.mrb[0].mxu0
        %1911 = vmatprep.mubr.bf16.mxu0 0
        %1912 = vmatmul.mubr.bf16.gmra.mrb[0].mxu0 %v1748
        %v1913 = vpop.f32.mrb[0].mxu0
        %v1914 = vadd.f32 0.0, %v1913
        %v1915 = vpop.f32.mrb[0].mxu0
        %v1916 = vpop.f32.mrb[0].mxu0
        %v1917 = vadd.f32 0.0, %v1916
        %v1918 = vpop.f32.mrb[0].mxu0
        %1919 = vmatprep.mubr.bf16.mxu0 0
        %1920 = vmatmul.mubr.bf16.gmra.mrb[0].mxu0 %v1751
        %v1921 = vpop.f32.mrb[0].mxu0
        %v1922 = vadd.f32 0.0, %v1921
        %v1923 = vpop.f32.mrb[0].mxu0
        %v1924 = vpop.f32.mrb[0].mxu0
        %v1925 = vadd.f32 0.0, %v1924
        %v1926 = vpop.f32.mrb[0].mxu0
        %1927 = vmatprep.mubr.bf16.mxu0 0
        %1928 = vmatmul.mubr.bf16.gmra.mrb[0].mxu0 %v1754
        %v1929 = vpop.f32.mrb[0].mxu0
        %v1930 = vadd.f32 0.0, %v1929
        %v1931 = vpop.f32.mrb[0].mxu0
        %v1932 = vpop.f32.mrb[0].mxu0
        %v1933 = vadd.f32 0.0, %v1932
        %v1934 = vpop.f32.mrb[0].mxu0
        %1935 = vdwg.mxu0
        %v1936 = vadd.f32 %v1579, %v1794
        %v1937 = vadd.f32 %v1580, %v1797
        %v1938 = vadd.f32 %v1581, %v1802
        %v1939 = vadd.f32 %v1582, %v1805
        %v1940 = vadd.f32 %v1583, %v1810
        %v1941 = vadd.f32 %v1584, %v1813
        %v1942 = vadd.f32 %v1585, %v1818
        %v1943 = vadd.f32 %v1586, %v1821
        %v1944 = vadd.f32 %v1587, %v1826
        %v1945 = vadd.f32 %v1588, %v1829
        %v1946 = vadd.f32 %v1589, %v1834
        %v1947 = vadd.f32 %v1590, %v1837
        %v1948 = vadd.f32 %v1591, %v1842
        %v1949 = vadd.f32 %v1592, %v1845
        %v1950 = vadd.f32 %v1593, %v1850
        %v1951 = vadd.f32 %v1594, %v1853
        %v1952 = vadd.f32 %v1595, %v1858
        %v1953 = vadd.f32 %v1596, %v1861
        %v1954 = vadd.f32 %v1597, %v1866
        %v1955 = vadd.f32 %v1598, %v1869
        %v1956 = vadd.f32 %v1599, %v1874
        %v1957 = vadd.f32 %v1600, %v1877
        %v1958 = vadd.f32 %v1601, %v1882
        %v1959 = vadd.f32 %v1602, %v1885
        %v1960 = vadd.f32 %v1603, %v1890
        %v1961 = vadd.f32 %v1604, %v1893
        %v1962 = vadd.f32 %v1605, %v1898
        %v1963 = vadd.f32 %v1606, %v1901
        %v1964 = vadd.f32 %v1607, %v1906
        %v1965 = vadd.f32 %v1608, %v1909
        %v1966 = vadd.f32 %v1609, %v1914
        %v1967 = vadd.f32 %v1610, %v1917
        %v1968 = vadd.f32 %v1611, %v1922
        %v1969 = vadd.f32 %v1612, %v1925
        %v1970 = vadd.f32 %v1613, %v1930
        %v1971 = vadd.f32 %v1614, %v1933
        %v1972 = vld [vmem:[%s3 + $0x8] sm:$0xc]
        %vm1973 = vcmask 1045504
        %v1974 = vrot.slane %v427, 2
        %v1975 = vrot.slane %v428, 2
        %v1976 = vsel %vm1973, %v1974, %v1975
        %v1977 = vrot.slane %v429, 2
        %v1978 = vsel %vm1973, %v1975, %v1977
        %v1979 = vrot.slane %v430, 2
        %v1980 = vsel %vm1973, %v1977, %v1979
        %v1981 = vrot.slane %v431, 2
        %v1982 = vsel %vm1973, %v1979, %v1981
        %v1983 = vrot.slane %v432, 2
        %v1984 = vsel %vm1973, %v1981, %v1983
        %v1985 = vrot.slane %v433, 2
        %v1986 = vsel %vm1973, %v1983, %v1985
        %v1987 = vrot.slane %v434, 2
        %v1988 = vsel %vm1973, %v1985, %v1987
        %v1989 = vrot.slane %v435, 2
        %v1990 = vsel %vm1973, %v1987, %v1989
        %v1991 = vrot.slane %v436, 2
        %v1992 = vsel %vm1973, %v1989, %v1991
        %v1993 = vrot.slane %v437, 2
        %v1994 = vsel %vm1973, %v1991, %v1993
        %v1995 = vrot.slane %v438, 2
        %v1996 = vsel %vm1973, %v1993, %v1995
        %v1997 = vrot.slane %v439, 2
        %v1998 = vsel %vm1973, %v1995, %v1997
        %v1999 = vrot.slane %v440, 2
        %v2000 = vsel %vm1973, %v1997, %v1999
        %v2001 = vrot.slane %v441, 2
        %v2002 = vsel %vm1973, %v1999, %v2001
        %v2003 = vrot.slane %v442, 2
        %v2004 = vsel %vm1973, %v2001, %v2003
        %v2005 = vrot.slane %v443, 2
        %v2006 = vsel %vm1973, %v2003, %v2005
        %v2007 = vrot.slane %v1380, 2
        %v2008 = vsel %vm1973, %v2005, %v2007
        %v2009 = vrot.slane %v1381, 2
        %v2010 = vsel %vm1973, %v2007, %v2009
        %v2012 = vunpack.c.l.b16 %v1972
        %v2013 = vpack.c.b16 %v2012, %v2012
        %v2014 = vrot.slane %v2013, 2
        %v2016 = vsel %vm600, %v1976, 0
        %v2019 = vsel %vm600, %v1978, 0
        %v2022 = vsel %vm600, %v1980, 0
        %v2025 = vsel %vm600, %v1982, 0
        %v2028 = vsel %vm600, %v1984, 0
        %v2031 = vsel %vm600, %v1986, 0
        %v2034 = vsel %vm600, %v1988, 0
        %v2037 = vsel %vm600, %v1990, 0
        %v2040 = vsel %vm600, %v1992, 0
        %v2043 = vsel %vm600, %v1994, 0
        %v2046 = vsel %vm600, %v1996, 0
        %v2049 = vsel %vm600, %v1998, 0
        %v2052 = vsel %vm600, %v2000, 0
        %v2055 = vsel %vm600, %v2002, 0
        %v2058 = vsel %vm600, %v2004, 0
        %v2061 = vsel %vm600, %v2006, 0
        %v2064 = vsel %vm600, %v2008, 0
        %v2067 = vsel %vm600, %v2010, 0
        %v2070 = vsel %vm655, %v2014, 0
        %2072 = vmatprep.subr.bf16.mxu0 0
        %2073 = vmatpush1.bf16.msra.mxu0 %v2070
        %2074 = vmatprep.subr.bf16.mxu0 0
        %2075 = vmatpush1.bf16.msra.mxu0 0
        %2076 = vmatprep.subr.bf16.mxu0 0
        %2077 = vmatpush1.bf16.msra.mxu0 0
        %2078 = vmatprep.subr.bf16.mxu0 0
        %2079 = vmatpush1.bf16.msra.mxu0 0
        %2080 = vmatprep.subr.bf16.mxu0 0
        %2081 = vmatpush1.bf16.msra.mxu0 0
        %2082 = vmatprep.subr.bf16.mxu0 0
        %2083 = vmatpush1.bf16.msra.mxu0 0
        %2084 = vmatprep.subr.bf16.mxu0 0
        %2085 = vmatpush1.bf16.msra.mxu0 0
        %2086 = vmatprep.subr.bf16.mxu0 0
        %2087 = vmatpush1.bf16.msra.mxu0 0
        %2088 = vmatprep.subr.bf16.mxu0 0
        %2089 = vmatpush1.bf16.msra.mxu0 0
        %2090 = vmatprep.subr.bf16.mxu0 0
        %2091 = vmatpush1.bf16.msra.mxu0 0
        %2092 = vmatprep.subr.bf16.mxu0 0
        %2093 = vmatpush1.bf16.msra.mxu0 0
        %2094 = vmatprep.subr.bf16.mxu0 0
        %2095 = vmatpush1.bf16.msra.mxu0 0
        %2096 = vmatprep.subr.bf16.mxu0 0
        %2097 = vmatpush1.bf16.msra.mxu0 0
        %2098 = vmatprep.subr.bf16.mxu0 0
        %2099 = vmatpush1.bf16.msra.mxu0 0
        %2100 = vmatprep.subr.bf16.mxu0 0
        %2101 = vmatpush1.bf16.msra.mxu0 0
        %2102 = vmatprep.subr.bf16.mxu0 0
        %2103 = vmatpush1.bf16.msra.mxu0 0
        %2104 = vmatprep.mubr.bf16.mxu0 0
        %2105 = vmatmul.mubr.bf16.gmra.mrb[0].mxu0 %v2016
        %v2106 = vpop.f32.mrb[0].mxu0
        %v2107 = vadd.f32 0.0, %v2106
        %v2108 = vpop.f32.mrb[0].mxu0
        %v2109 = vpop.f32.mrb[0].mxu0
        %v2110 = vadd.f32 0.0, %v2109
        %v2111 = vpop.f32.mrb[0].mxu0
        %2112 = vmatprep.mubr.bf16.mxu0 0
        %2113 = vmatmul.mubr.bf16.gmra.mrb[0].mxu0 %v2019
        %v2114 = vpop.f32.mrb[0].mxu0
        %v2115 = vadd.f32 0.0, %v2114
        %v2116 = vpop.f32.mrb[0].mxu0
        %v2117 = vpop.f32.mrb[0].mxu0
        %v2118 = vadd.f32 0.0, %v2117
        %v2119 = vpop.f32.mrb[0].mxu0
        %2120 = vmatprep.mubr.bf16.mxu0 0
        %2121 = vmatmul.mubr.bf16.gmra.mrb[0].mxu0 %v2022
        %v2122 = vpop.f32.mrb[0].mxu0
        %v2123 = vadd.f32 0.0, %v2122
        %v2124 = vpop.f32.mrb[0].mxu0
        %v2125 = vpop.f32.mrb[0].mxu0
        %v2126 = vadd.f32 0.0, %v2125
        %v2127 = vpop.f32.mrb[0].mxu0
        %2128 = vmatprep.mubr.bf16.mxu0 0
        %2129 = vmatmul.mubr.bf16.gmra.mrb[0].mxu0 %v2025
        %v2130 = vpop.f32.mrb[0].mxu0
        %v2131 = vadd.f32 0.0, %v2130
        %v2132 = vpop.f32.mrb[0].mxu0
        %v2133 = vpop.f32.mrb[0].mxu0
        %v2134 = vadd.f32 0.0, %v2133
        %v2135 = vpop.f32.mrb[0].mxu0
        %2136 = vmatprep.mubr.bf16.mxu0 0
        %2137 = vmatmul.mubr.bf16.gmra.mrb[0].mxu0 %v2028
        %v2138 = vpop.f32.mrb[0].mxu0
        %v2139 = vadd.f32 0.0, %v2138
        %v2140 = vpop.f32.mrb[0].mxu0
        %v2141 = vpop.f32.mrb[0].mxu0
        %v2142 = vadd.f32 0.0, %v2141
        %v2143 = vpop.f32.mrb[0].mxu0
        %2144 = vmatprep.mubr.bf16.mxu0 0
        %2145 = vmatmul.mubr.bf16.gmra.mrb[0].mxu0 %v2031
        %v2146 = vpop.f32.mrb[0].mxu0
        %v2147 = vadd.f32 0.0, %v2146
        %v2148 = vpop.f32.mrb[0].mxu0
        %v2149 = vpop.f32.mrb[0].mxu0
        %v2150 = vadd.f32 0.0, %v2149
        %v2151 = vpop.f32.mrb[0].mxu0
        %2152 = vmatprep.mubr.bf16.mxu0 0
        %2153 = vmatmul.mubr.bf16.gmra.mrb[0].mxu0 %v2034
        %v2154 = vpop.f32.mrb[0].mxu0
        %v2155 = vadd.f32 0.0, %v2154
        %v2156 = vpop.f32.mrb[0].mxu0
        %v2157 = vpop.f32.mrb[0].mxu0
        %v2158 = vadd.f32 0.0, %v2157
        %v2159 = vpop.f32.mrb[0].mxu0
        %2160 = vmatprep.mubr.bf16.mxu0 0
        %2161 = vmatmul.mubr.bf16.gmra.mrb[0].mxu0 %v2037
        %v2162 = vpop.f32.mrb[0].mxu0
        %v2163 = vadd.f32 0.0, %v2162
        %v2164 = vpop.f32.mrb[0].mxu0
        %v2165 = vpop.f32.mrb[0].mxu0
        %v2166 = vadd.f32 0.0, %v2165
        %v2167 = vpop.f32.mrb[0].mxu0
        %2168 = vmatprep.mubr.bf16.mxu0 0
        %2169 = vmatmul.mubr.bf16.gmra.mrb[0].mxu0 %v2040
        %v2170 = vpop.f32.mrb[0].mxu0
        %v2171 = vadd.f32 0.0, %v2170
        %v2172 = vpop.f32.mrb[0].mxu0
        %v2173 = vpop.f32.mrb[0].mxu0
        %v2174 = vadd.f32 0.0, %v2173
        %v2175 = vpop.f32.mrb[0].mxu0
        %2176 = vmatprep.mubr.bf16.mxu0 0
        %2177 = vmatmul.mubr.bf16.gmra.mrb[0].mxu0 %v2043
        %v2178 = vpop.f32.mrb[0].mxu0
        %v2179 = vadd.f32 0.0, %v2178
        %v2180 = vpop.f32.mrb[0].mxu0
        %v2181 = vpop.f32.mrb[0].mxu0
        %v2182 = vadd.f32 0.0, %v2181
        %v2183 = vpop.f32.mrb[0].mxu0
        %2184 = vmatprep.mubr.bf16.mxu0 0
        %2185 = vmatmul.mubr.bf16.gmra.mrb[0].mxu0 %v2046
        %v2186 = vpop.f32.mrb[0].mxu0
        %v2187 = vadd.f32 0.0, %v2186
        %v2188 = vpop.f32.mrb[0].mxu0
        %v2189 = vpop.f32.mrb[0].mxu0
        %v2190 = vadd.f32 0.0, %v2189
        %v2191 = vpop.f32.mrb[0].mxu0
        %2192 = vmatprep.mubr.bf16.mxu0 0
        %2193 = vmatmul.mubr.bf16.gmra.mrb[0].mxu0 %v2049
        %v2194 = vpop.f32.mrb[0].mxu0
        %v2195 = vadd.f32 0.0, %v2194
        %v2196 = vpop.f32.mrb[0].mxu0
        %v2197 = vpop.f32.mrb[0].mxu0
        %v2198 = vadd.f32 0.0, %v2197
        %v2199 = vpop.f32.mrb[0].mxu0
        %2200 = vmatprep.mubr.bf16.mxu0 0
        %2201 = vmatmul.mubr.bf16.gmra.mrb[0].mxu0 %v2052
        %v2202 = vpop.f32.mrb[0].mxu0
        %v2203 = vadd.f32 0.0, %v2202
        %v2204 = vpop.f32.mrb[0].mxu0
        %v2205 = vpop.f32.mrb[0].mxu0
        %v2206 = vadd.f32 0.0, %v2205
        %v2207 = vpop.f32.mrb[0].mxu0
        %2208 = vmatprep.mubr.bf16.mxu0 0
        %2209 = vmatmul.mubr.bf16.gmra.mrb[0].mxu0 %v2055
        %v2210 = vpop.f32.mrb[0].mxu0
        %v2211 = vadd.f32 0.0, %v2210
        %v2212 = vpop.f32.mrb[0].mxu0
        %v2213 = vpop.f32.mrb[0].mxu0
        %v2214 = vadd.f32 0.0, %v2213
        %v2215 = vpop.f32.mrb[0].mxu0
        %2216 = vmatprep.mubr.bf16.mxu0 0
        %2217 = vmatmul.mubr.bf16.gmra.mrb[0].mxu0 %v2058
        %v2218 = vpop.f32.mrb[0].mxu0
        %v2219 = vadd.f32 0.0, %v2218
        %v2220 = vpop.f32.mrb[0].mxu0
        %v2221 = vpop.f32.mrb[0].mxu0
        %v2222 = vadd.f32 0.0, %v2221
        %v2223 = vpop.f32.mrb[0].mxu0
        %2224 = vmatprep.mubr.bf16.mxu0 0
        %2225 = vmatmul.mubr.bf16.gmra.mrb[0].mxu0 %v2061
        %v2226 = vpop.f32.mrb[0].mxu0
        %v2227 = vadd.f32 0.0, %v2226
        %v2228 = vpop.f32.mrb[0].mxu0
        %v2229 = vpop.f32.mrb[0].mxu0
        %v2230 = vadd.f32 0.0, %v2229
        %v2231 = vpop.f32.mrb[0].mxu0
        %2232 = vmatprep.mubr.bf16.mxu0 0
        %2233 = vmatmul.mubr.bf16.gmra.mrb[0].mxu0 %v2064
        %v2234 = vpop.f32.mrb[0].mxu0
        %v2235 = vadd.f32 0.0, %v2234
        %v2236 = vpop.f32.mrb[0].mxu0
        %v2237 = vpop.f32.mrb[0].mxu0
        %v2238 = vadd.f32 0.0, %v2237
        %v2239 = vpop.f32.mrb[0].mxu0
        %2240 = vmatprep.mubr.bf16.mxu0 0
        %2241 = vmatmul.mubr.bf16.gmra.mrb[0].mxu0 %v2067
        %v2242 = vpop.f32.mrb[0].mxu0
        %v2243 = vadd.f32 0.0, %v2242
        %v2244 = vpop.f32.mrb[0].mxu0
        %v2245 = vpop.f32.mrb[0].mxu0
        %v2246 = vadd.f32 0.0, %v2245
        %v2247 = vpop.f32.mrb[0].mxu0
        %2248 = vdwg.mxu0
        %v2249 = vadd.f32 %v1936, %v2107
        %v2250 = vadd.f32 %v1937, %v2110
        %v2251 = vadd.f32 %v1938, %v2115
        %v2252 = vadd.f32 %v1939, %v2118
        %v2253 = vadd.f32 %v1940, %v2123
        %v2254 = vadd.f32 %v1941, %v2126
        %v2255 = vadd.f32 %v1942, %v2131
        %v2256 = vadd.f32 %v1943, %v2134
        %v2257 = vadd.f32 %v1944, %v2139
        %v2258 = vadd.f32 %v1945, %v2142
        %v2259 = vadd.f32 %v1946, %v2147
        %v2260 = vadd.f32 %v1947, %v2150
        %v2261 = vadd.f32 %v1948, %v2155
        %v2262 = vadd.f32 %v1949, %v2158
        %v2263 = vadd.f32 %v1950, %v2163
        %v2264 = vadd.f32 %v1951, %v2166
        %v2265 = vadd.f32 %v1952, %v2171
        %v2266 = vadd.f32 %v1953, %v2174
        %v2267 = vadd.f32 %v1954, %v2179
        %v2268 = vadd.f32 %v1955, %v2182
        %v2269 = vadd.f32 %v1956, %v2187
        %v2270 = vadd.f32 %v1957, %v2190
        %v2271 = vadd.f32 %v1958, %v2195
        %v2272 = vadd.f32 %v1959, %v2198
        %v2273 = vadd.f32 %v1960, %v2203
        %v2274 = vadd.f32 %v1961, %v2206
        %v2275 = vadd.f32 %v1962, %v2211
        %v2276 = vadd.f32 %v1963, %v2214
        %v2277 = vadd.f32 %v1964, %v2219
        %v2278 = vadd.f32 %v1965, %v2222
        %v2279 = vadd.f32 %v1966, %v2227
        %v2280 = vadd.f32 %v1967, %v2230
        %v2281 = vadd.f32 %v1968, %v2235
        %v2282 = vadd.f32 %v1969, %v2238
        %v2283 = vadd.f32 %v1970, %v2243
        %v2284 = vadd.f32 %v1971, %v2246
        %v2285 = vpack.c.bf16 %v424, %v423
        %v2286 = vpack.c.bf16 %v425, %v425
        %v2287 = vld [vmem:[%s3 + $0xc] sm:$0x3]
        %v2290 = vrot.slane %v2285, 2
        %v2291 = vsel %vm1973, %v2007, %v2290
        %v2292 = vrot.slane %v2286, 2
        %v2293 = vsel %vm1973, %v2290, %v2292
        %v2295 = vsel %vm600, %v2291, 0
        %v2298 = vsel %vm600, %v2293, 0
        %v2301 = vsel %vm655, %v2287, 0
        %2303 = vmatprep.subr.bf16.mxu0 0
        %2304 = vmatpush1.bf16.msra.mxu0 %v2301
        %2305 = vmatprep.subr.bf16.mxu0 0
        %2306 = vmatpush1.bf16.msra.mxu0 0
        %2307 = vmatprep.subr.bf16.mxu0 0
        %2308 = vmatpush1.bf16.msra.mxu0 0
        %2309 = vmatprep.subr.bf16.mxu0 0
        %2310 = vmatpush1.bf16.msra.mxu0 0
        %2311 = vmatprep.subr.bf16.mxu0 0
        %2312 = vmatpush1.bf16.msra.mxu0 0
        %2313 = vmatprep.subr.bf16.mxu0 0
        %2314 = vmatpush1.bf16.msra.mxu0 0
        %2315 = vmatprep.subr.bf16.mxu0 0
        %2316 = vmatpush1.bf16.msra.mxu0 0
        %2317 = vmatprep.subr.bf16.mxu0 0
        %2318 = vmatpush1.bf16.msra.mxu0 0
        %2319 = vmatprep.subr.bf16.mxu0 0
        %2320 = vmatpush1.bf16.msra.mxu0 0
        %2321 = vmatprep.subr.bf16.mxu0 0
        %2322 = vmatpush1.bf16.msra.mxu0 0
        %2323 = vmatprep.subr.bf16.mxu0 0
        %2324 = vmatpush1.bf16.msra.mxu0 0
        %2325 = vmatprep.subr.bf16.mxu0 0
        %2326 = vmatpush1.bf16.msra.mxu0 0
        %2327 = vmatprep.subr.bf16.mxu0 0
        %2328 = vmatpush1.bf16.msra.mxu0 0
        %2329 = vmatprep.subr.bf16.mxu0 0
        %2330 = vmatpush1.bf16.msra.mxu0 0
        %2331 = vmatprep.subr.bf16.mxu0 0
        %2332 = vmatpush1.bf16.msra.mxu0 0
        %2333 = vmatprep.subr.bf16.mxu0 0
        %2334 = vmatpush1.bf16.msra.mxu0 0
        %2335 = vmatprep.mubr.bf16.mxu0 0
        %2336 = vmatmul.mubr.bf16.gmra.mrb[0].mxu0 %v2019
        %v2337 = vpop.f32.mrb[0].mxu0
        %v2338 = vadd.f32 0.0, %v2337
        %v2339 = vpop.f32.mrb[0].mxu0
        %v2340 = vpop.f32.mrb[0].mxu0
        %v2341 = vadd.f32 0.0, %v2340
        %v2342 = vpop.f32.mrb[0].mxu0
        %2343 = vmatprep.mubr.bf16.mxu0 0
        %2344 = vmatmul.mubr.bf16.gmra.mrb[0].mxu0 %v2022
        %v2345 = vpop.f32.mrb[0].mxu0
        %v2346 = vadd.f32 0.0, %v2345
        %v2347 = vpop.f32.mrb[0].mxu0
        %v2348 = vpop.f32.mrb[0].mxu0
        %v2349 = vadd.f32 0.0, %v2348
        %v2350 = vpop.f32.mrb[0].mxu0
        %2351 = vmatprep.mubr.bf16.mxu0 0
        %2352 = vmatmul.mubr.bf16.gmra.mrb[0].mxu0 %v2025
        %v2353 = vpop.f32.mrb[0].mxu0
        %v2354 = vadd.f32 0.0, %v2353
        %v2355 = vpop.f32.mrb[0].mxu0
        %v2356 = vpop.f32.mrb[0].mxu0
        %v2357 = vadd.f32 0.0, %v2356
        %v2358 = vpop.f32.mrb[0].mxu0
        %2359 = vmatprep.mubr.bf16.mxu0 0
        %2360 = vmatmul.mubr.bf16.gmra.mrb[0].mxu0 %v2028
        %v2361 = vpop.f32.mrb[0].mxu0
        %v2362 = vadd.f32 0.0, %v2361
        %v2363 = vpop.f32.mrb[0].mxu0
        %v2364 = vpop.f32.mrb[0].mxu0
        %v2365 = vadd.f32 0.0, %v2364
        %v2366 = vpop.f32.mrb[0].mxu0
        %2367 = vmatprep.mubr.bf16.mxu0 0
        %2368 = vmatmul.mubr.bf16.gmra.mrb[0].mxu0 %v2031
        %v2369 = vpop.f32.mrb[0].mxu0
        %v2370 = vadd.f32 0.0, %v2369
        %v2371 = vpop.f32.mrb[0].mxu0
        %v2372 = vpop.f32.mrb[0].mxu0
        %v2373 = vadd.f32 0.0, %v2372
        %v2374 = vpop.f32.mrb[0].mxu0
        %2375 = vmatprep.mubr.bf16.mxu0 0
        %2376 = vmatmul.mubr.bf16.gmra.mrb[0].mxu0 %v2034
        %v2377 = vpop.f32.mrb[0].mxu0
        %v2378 = vadd.f32 0.0, %v2377
        %v2379 = vpop.f32.mrb[0].mxu0
        %v2380 = vpop.f32.mrb[0].mxu0
        %v2381 = vadd.f32 0.0, %v2380
        %v2382 = vpop.f32.mrb[0].mxu0
        %2383 = vmatprep.mubr.bf16.mxu0 0
        %2384 = vmatmul.mubr.bf16.gmra.mrb[0].mxu0 %v2037
        %v2385 = vpop.f32.mrb[0].mxu0
        %v2386 = vadd.f32 0.0, %v2385
        %v2387 = vpop.f32.mrb[0].mxu0
        %v2388 = vpop.f32.mrb[0].mxu0
        %v2389 = vadd.f32 0.0, %v2388
        %v2390 = vpop.f32.mrb[0].mxu0
        %2391 = vmatprep.mubr.bf16.mxu0 0
        %2392 = vmatmul.mubr.bf16.gmra.mrb[0].mxu0 %v2040
        %v2393 = vpop.f32.mrb[0].mxu0
        %v2394 = vadd.f32 0.0, %v2393
        %v2395 = vpop.f32.mrb[0].mxu0
        %v2396 = vpop.f32.mrb[0].mxu0
        %v2397 = vadd.f32 0.0, %v2396
        %v2398 = vpop.f32.mrb[0].mxu0
        %2399 = vmatprep.mubr.bf16.mxu0 0
        %2400 = vmatmul.mubr.bf16.gmra.mrb[0].mxu0 %v2043
        %v2401 = vpop.f32.mrb[0].mxu0
        %v2402 = vadd.f32 0.0, %v2401
        %v2403 = vpop.f32.mrb[0].mxu0
        %v2404 = vpop.f32.mrb[0].mxu0
        %v2405 = vadd.f32 0.0, %v2404
        %v2406 = vpop.f32.mrb[0].mxu0
        %2407 = vmatprep.mubr.bf16.mxu0 0
        %2408 = vmatmul.mubr.bf16.gmra.mrb[0].mxu0 %v2046
        %v2409 = vpop.f32.mrb[0].mxu0
        %v2410 = vadd.f32 0.0, %v2409
        %v2411 = vpop.f32.mrb[0].mxu0
        %v2412 = vpop.f32.mrb[0].mxu0
        %v2413 = vadd.f32 0.0, %v2412
        %v2414 = vpop.f32.mrb[0].mxu0
        %2415 = vmatprep.mubr.bf16.mxu0 0
        %2416 = vmatmul.mubr.bf16.gmra.mrb[0].mxu0 %v2049
        %v2417 = vpop.f32.mrb[0].mxu0
        %v2418 = vadd.f32 0.0, %v2417
        %v2419 = vpop.f32.mrb[0].mxu0
        %v2420 = vpop.f32.mrb[0].mxu0
        %v2421 = vadd.f32 0.0, %v2420
        %v2422 = vpop.f32.mrb[0].mxu0
        %2423 = vmatprep.mubr.bf16.mxu0 0
        %2424 = vmatmul.mubr.bf16.gmra.mrb[0].mxu0 %v2052
        %v2425 = vpop.f32.mrb[0].mxu0
        %v2426 = vadd.f32 0.0, %v2425
        %v2427 = vpop.f32.mrb[0].mxu0
        %v2428 = vpop.f32.mrb[0].mxu0
        %v2429 = vadd.f32 0.0, %v2428
        %v2430 = vpop.f32.mrb[0].mxu0
        %2431 = vmatprep.mubr.bf16.mxu0 0
        %2432 = vmatmul.mubr.bf16.gmra.mrb[0].mxu0 %v2055
        %v2433 = vpop.f32.mrb[0].mxu0
        %v2434 = vadd.f32 0.0, %v2433
        %v2435 = vpop.f32.mrb[0].mxu0
        %v2436 = vpop.f32.mrb[0].mxu0
        %v2437 = vadd.f32 0.0, %v2436
        %v2438 = vpop.f32.mrb[0].mxu0
        %2439 = vmatprep.mubr.bf16.mxu0 0
        %2440 = vmatmul.mubr.bf16.gmra.mrb[0].mxu0 %v2058
        %v2441 = vpop.f32.mrb[0].mxu0
        %v2442 = vadd.f32 0.0, %v2441
        %v2443 = vpop.f32.mrb[0].mxu0
        %v2444 = vpop.f32.mrb[0].mxu0
        %v2445 = vadd.f32 0.0, %v2444
        %v2446 = vpop.f32.mrb[0].mxu0
        %2447 = vmatprep.mubr.bf16.mxu0 0
        %2448 = vmatmul.mubr.bf16.gmra.mrb[0].mxu0 %v2061
        %v2449 = vpop.f32.mrb[0].mxu0
        %v2450 = vadd.f32 0.0, %v2449
        %v2451 = vpop.f32.mrb[0].mxu0
        %v2452 = vpop.f32.mrb[0].mxu0
        %v2453 = vadd.f32 0.0, %v2452
        %v2454 = vpop.f32.mrb[0].mxu0
        %2455 = vmatprep.mubr.bf16.mxu0 0
        %2456 = vmatmul.mubr.bf16.gmra.mrb[0].mxu0 %v2064
        %v2457 = vpop.f32.mrb[0].mxu0
        %v2458 = vadd.f32 0.0, %v2457
        %v2459 = vpop.f32.mrb[0].mxu0
        %v2460 = vpop.f32.mrb[0].mxu0
        %v2461 = vadd.f32 0.0, %v2460
        %v2462 = vpop.f32.mrb[0].mxu0
        %2463 = vmatprep.mubr.bf16.mxu0 0
        %2464 = vmatmul.mubr.bf16.gmra.mrb[0].mxu0 %v2295
        %v2465 = vpop.f32.mrb[0].mxu0
        %v2466 = vadd.f32 0.0, %v2465
        %v2467 = vpop.f32.mrb[0].mxu0
        %v2468 = vpop.f32.mrb[0].mxu0
        %v2469 = vadd.f32 0.0, %v2468
        %v2470 = vpop.f32.mrb[0].mxu0
        %2471 = vmatprep.mubr.bf16.mxu0 0
        %2472 = vmatmul.mubr.bf16.gmra.mrb[0].mxu0 %v2298
        %v2473 = vpop.f32.mrb[0].mxu0
        %v2474 = vadd.f32 0.0, %v2473
        %v2475 = vpop.f32.mrb[0].mxu0
        %v2476 = vpop.f32.mrb[0].mxu0
        %v2477 = vadd.f32 0.0, %v2476
        %v2478 = vpop.f32.mrb[0].mxu0
        %2479 = vdwg.mxu0
        %v2480 = vadd.f32 %v2249, %v2338
        %v2481 = vadd.f32 %v2250, %v2341
        %v2482 = vadd.f32 %v2251, %v2346
        %v2483 = vadd.f32 %v2252, %v2349
        %v2484 = vadd.f32 %v2253, %v2354
        %v2485 = vadd.f32 %v2254, %v2357
        %v2486 = vadd.f32 %v2255, %v2362
        %v2487 = vadd.f32 %v2256, %v2365
        %v2488 = vadd.f32 %v2257, %v2370
        %v2489 = vadd.f32 %v2258, %v2373
        %v2490 = vadd.f32 %v2259, %v2378
        %v2491 = vadd.f32 %v2260, %v2381
        %v2492 = vadd.f32 %v2261, %v2386
        %v2493 = vadd.f32 %v2262, %v2389
        %v2494 = vadd.f32 %v2263, %v2394
        %v2495 = vadd.f32 %v2264, %v2397
        %v2496 = vadd.f32 %v2265, %v2402
        %v2497 = vadd.f32 %v2266, %v2405
        %v2498 = vadd.f32 %v2267, %v2410
        %v2499 = vadd.f32 %v2268, %v2413
        %v2500 = vadd.f32 %v2269, %v2418
        %v2501 = vadd.f32 %v2270, %v2421
        %v2502 = vadd.f32 %v2271, %v2426
        %v2503 = vadd.f32 %v2272, %v2429
        %v2504 = vadd.f32 %v2273, %v2434
        %v2505 = vadd.f32 %v2274, %v2437
        %v2506 = vadd.f32 %v2275, %v2442
        %v2507 = vadd.f32 %v2276, %v2445
        %v2508 = vadd.f32 %v2277, %v2450
        %v2509 = vadd.f32 %v2278, %v2453
        %v2510 = vadd.f32 %v2279, %v2458
        %v2511 = vadd.f32 %v2280, %v2461
        %v2512 = vadd.f32 %v2281, %v2466
        %v2513 = vadd.f32 %v2282, %v2469
        %v2514 = vadd.f32 %v2283, %v2474
        %v2515 = vadd.f32 %v2284, %v2477
        %v2516 = vld [vmem:[%s3 + $0xc] sm:$0xc]
        %vm2517 = vsmask.f32 5376
        %v2518 = vrot.slane %v468, 2
        %v2519 = vrot.slane %v464, 3
        %v2520 = vor.u32 %v2518, %v2519
        %v2521 = vrot.slane %v476, 2
        %v2522 = vrot.slane %v472, 3
        %v2523 = vor.u32 %v2521, %v2522
        %v2524 = vsel %vm2517, %v2520, %v2523
        %v2525 = vrot.slane %v484, 2
        %v2526 = vrot.slane %v480, 3
        %v2527 = vor.u32 %v2525, %v2526
        %v2528 = vsel %vm2517, %v2523, %v2527
        %v2529 = vrot.slane %v492, 2
        %v2530 = vrot.slane %v488, 3
        %v2531 = vor.u32 %v2529, %v2530
        %v2532 = vsel %vm2517, %v2527, %v2531
        %v2533 = vrot.slane %v500, 2
        %v2534 = vrot.slane %v496, 3
        %v2535 = vor.u32 %v2533, %v2534
        %v2536 = vsel %vm2517, %v2531, %v2535
        %v2537 = vrot.slane %v508, 2
        %v2538 = vrot.slane %v504, 3
        %v2539 = vor.u32 %v2537, %v2538
        %v2540 = vsel %vm2517, %v2535, %v2539
        %v2541 = vrot.slane %v516, 2
        %v2542 = vrot.slane %v512, 3
        %v2543 = vor.u32 %v2541, %v2542
        %v2544 = vsel %vm2517, %v2539, %v2543
        %v2545 = vrot.slane %v524, 2
        %v2546 = vrot.slane %v520, 3
        %v2547 = vor.u32 %v2545, %v2546
        %v2548 = vsel %vm2517, %v2543, %v2547
        %v2549 = vrot.slane %v532, 2
        %v2550 = vrot.slane %v528, 3
        %v2551 = vor.u32 %v2549, %v2550
        %v2552 = vsel %vm2517, %v2547, %v2551
        %v2553 = vrot.slane %v540, 2
        %v2554 = vrot.slane %v536, 3
        %v2555 = vor.u32 %v2553, %v2554
        %v2556 = vsel %vm2517, %v2551, %v2555
        %v2557 = vrot.slane %v548, 2
        %v2558 = vrot.slane %v544, 3
        %v2559 = vor.u32 %v2557, %v2558
        %v2560 = vsel %vm2517, %v2555, %v2559
        %v2561 = vrot.slane %v556, 2
        %v2562 = vrot.slane %v552, 3
        %v2563 = vor.u32 %v2561, %v2562
        %v2564 = vsel %vm2517, %v2559, %v2563
        %v2565 = vrot.slane %v564, 2
        %v2566 = vrot.slane %v560, 3
        %v2567 = vor.u32 %v2565, %v2566
        %v2568 = vsel %vm2517, %v2563, %v2567
        %v2569 = vrot.slane %v572, 2
        %v2570 = vrot.slane %v568, 3
        %v2571 = vor.u32 %v2569, %v2570
        %v2572 = vsel %vm2517, %v2567, %v2571
        %v2573 = vrot.slane %v580, 2
        %v2574 = vrot.slane %v576, 3
        %v2575 = vor.u32 %v2573, %v2574
        %v2576 = vsel %vm2517, %v2571, %v2575
        %v2577 = vrot.slane %v588, 2
        %v2578 = vrot.slane %v584, 3
        %v2579 = vor.u32 %v2577, %v2578
        %v2580 = vsel %vm2517, %v2575, %v2579
        %v2581 = vrot.slane %v1685, 2
        %v2582 = vrot.slane %v1688, 3
        %v2583 = vor.u32 %v2581, %v2582
        %v2584 = vsel %vm2517, %v2579, %v2583
        %v2586 = vshrl.u32 %v2285, 16
        %v2588 = vrot.slane %v2586, 2
        %v2589 = vshll.u32 %v2285, 16
        %v2591 = vrot.slane %v2589, 3
        %v2592 = vor.u32 %v2588, %v2591
        %v2593 = vsel %vm2517, %v2583, %v2592
        %v2595 = vshrl.u32 %v2286, 16
        %v2597 = vrot.slane %v2595, 2
        %v2598 = vshll.u32 %v2286, 16
        %v2600 = vrot.slane %v2598, 3
        %v2601 = vor.u32 %v2597, %v2600
        %v2602 = vsel %vm2517, %v2592, %v2601
        %v2604 = vunpack.c.l.b16 %v2516
        %v2605 = vpack.c.b16 %v2604, %v2604
        %v2606 = vrot.slane %v2605, 2
        %v2608 = vsel %vm600, %v2524, 0
        %v2611 = vsel %vm600, %v2528, 0
        %v2614 = vsel %vm600, %v2532, 0
        %v2617 = vsel %vm600, %v2536, 0
        %v2620 = vsel %vm600, %v2540, 0
        %v2623 = vsel %vm600, %v2544, 0
        %v2626 = vsel %vm600, %v2548, 0
        %v2629 = vsel %vm600, %v2552, 0
        %v2632 = vsel %vm600, %v2556, 0
        %v2635 = vsel %vm600, %v2560, 0
        %v2638 = vsel %vm600, %v2564, 0
        %v2641 = vsel %vm600, %v2568, 0
        %v2644 = vsel %vm600, %v2572, 0
        %v2647 = vsel %vm600, %v2576, 0
        %v2650 = vsel %vm600, %v2580, 0
        %v2653 = vsel %vm600, %v2584, 0
        %v2656 = vsel %vm600, %v2593, 0
        %v2659 = vsel %vm600, %v2602, 0
        %v2662 = vsel %vm655, %v2606, 0
        %2664 = vmatprep.subr.bf16.mxu0 0
        %2665 = vmatpush1.bf16.msra.mxu0 %v2662
        %2666 = vmatprep.subr.bf16.mxu0 0
        %2667 = vmatpush1.bf16.msra.mxu0 0
        %2668 = vmatprep.subr.bf16.mxu0 0
        %2669 = vmatpush1.bf16.msra.mxu0 0
        %2670 = vmatprep.subr.bf16.mxu0 0
        %2671 = vmatpush1.bf16.msra.mxu0 0
        %2672 = vmatprep.subr.bf16.mxu0 0
        %2673 = vmatpush1.bf16.msra.mxu0 0
        %2674 = vmatprep.subr.bf16.mxu0 0
        %2675 = vmatpush1.bf16.msra.mxu0 0
        %2676 = vmatprep.subr.bf16.mxu0 0
        %2677 = vmatpush1.bf16.msra.mxu0 0
        %2678 = vmatprep.subr.bf16.mxu0 0
        %2679 = vmatpush1.bf16.msra.mxu0 0
        %2680 = vmatprep.subr.bf16.mxu0 0
        %2681 = vmatpush1.bf16.msra.mxu0 0
        %2682 = vmatprep.subr.bf16.mxu0 0
        %2683 = vmatpush1.bf16.msra.mxu0 0
        %2684 = vmatprep.subr.bf16.mxu0 0
        %2685 = vmatpush1.bf16.msra.mxu0 0
        %2686 = vmatprep.subr.bf16.mxu0 0
        %2687 = vmatpush1.bf16.msra.mxu0 0
        %2688 = vmatprep.subr.bf16.mxu0 0
        %2689 = vmatpush1.bf16.msra.mxu0 0
        %2690 = vmatprep.subr.bf16.mxu0 0
        %2691 = vmatpush1.bf16.msra.mxu0 0
        %2692 = vmatprep.subr.bf16.mxu0 0
        %2693 = vmatpush1.bf16.msra.mxu0 0
        %2694 = vmatprep.subr.bf16.mxu0 0
        %2695 = vmatpush1.bf16.msra.mxu0 0
        %2696 = vmatprep.mubr.bf16.mxu0 0
        %2697 = vmatmul.mubr.bf16.gmra.mrb[0].mxu0 %v2608
        %v2698 = vpop.f32.mrb[0].mxu0
        %v2699 = vadd.f32 0.0, %v2698
        %v2700 = vpop.f32.mrb[0].mxu0
        %v2701 = vpop.f32.mrb[0].mxu0
        %v2702 = vadd.f32 0.0, %v2701
        %v2703 = vpop.f32.mrb[0].mxu0
        %2704 = vmatprep.mubr.bf16.mxu0 0
        %2705 = vmatmul.mubr.bf16.gmra.mrb[0].mxu0 %v2611
        %v2706 = vpop.f32.mrb[0].mxu0
        %v2707 = vadd.f32 0.0, %v2706
        %v2708 = vpop.f32.mrb[0].mxu0
        %v2709 = vpop.f32.mrb[0].mxu0
        %v2710 = vadd.f32 0.0, %v2709
        %v2711 = vpop.f32.mrb[0].mxu0
        %2712 = vmatprep.mubr.bf16.mxu0 0
        %2713 = vmatmul.mubr.bf16.gmra.mrb[0].mxu0 %v2614
        %v2714 = vpop.f32.mrb[0].mxu0
        %v2715 = vadd.f32 0.0, %v2714
        %v2716 = vpop.f32.mrb[0].mxu0
        %v2717 = vpop.f32.mrb[0].mxu0
        %v2718 = vadd.f32 0.0, %v2717
        %v2719 = vpop.f32.mrb[0].mxu0
        %2720 = vmatprep.mubr.bf16.mxu0 0
        %2721 = vmatmul.mubr.bf16.gmra.mrb[0].mxu0 %v2617
        %v2722 = vpop.f32.mrb[0].mxu0
        %v2723 = vadd.f32 0.0, %v2722
        %v2724 = vpop.f32.mrb[0].mxu0
        %v2725 = vpop.f32.mrb[0].mxu0
        %v2726 = vadd.f32 0.0, %v2725
        %v2727 = vpop.f32.mrb[0].mxu0
        %2728 = vmatprep.mubr.bf16.mxu0 0
        %2729 = vmatmul.mubr.bf16.gmra.mrb[0].mxu0 %v2620
        %v2730 = vpop.f32.mrb[0].mxu0
        %v2731 = vadd.f32 0.0, %v2730
        %v2732 = vpop.f32.mrb[0].mxu0
        %v2733 = vpop.f32.mrb[0].mxu0
        %v2734 = vadd.f32 0.0, %v2733
        %v2735 = vpop.f32.mrb[0].mxu0
        %2736 = vmatprep.mubr.bf16.mxu0 0
        %2737 = vmatmul.mubr.bf16.gmra.mrb[0].mxu0 %v2623
        %v2738 = vpop.f32.mrb[0].mxu0
        %v2739 = vadd.f32 0.0, %v2738
        %v2740 = vpop.f32.mrb[0].mxu0
        %v2741 = vpop.f32.mrb[0].mxu0
        %v2742 = vadd.f32 0.0, %v2741
        %v2743 = vpop.f32.mrb[0].mxu0
        %2744 = vmatprep.mubr.bf16.mxu0 0
        %2745 = vmatmul.mubr.bf16.gmra.mrb[0].mxu0 %v2626
        %v2746 = vpop.f32.mrb[0].mxu0
        %v2747 = vadd.f32 0.0, %v2746
        %v2748 = vpop.f32.mrb[0].mxu0
        %v2749 = vpop.f32.mrb[0].mxu0
        %v2750 = vadd.f32 0.0, %v2749
        %v2751 = vpop.f32.mrb[0].mxu0
        %2752 = vmatprep.mubr.bf16.mxu0 0
        %2753 = vmatmul.mubr.bf16.gmra.mrb[0].mxu0 %v2629
        %v2754 = vpop.f32.mrb[0].mxu0
        %v2755 = vadd.f32 0.0, %v2754
        %v2756 = vpop.f32.mrb[0].mxu0
        %v2757 = vpop.f32.mrb[0].mxu0
        %v2758 = vadd.f32 0.0, %v2757
        %v2759 = vpop.f32.mrb[0].mxu0
        %2760 = vmatprep.mubr.bf16.mxu0 0
        %2761 = vmatmul.mubr.bf16.gmra.mrb[0].mxu0 %v2632
        %v2762 = vpop.f32.mrb[0].mxu0
        %v2763 = vadd.f32 0.0, %v2762
        %v2764 = vpop.f32.mrb[0].mxu0
        %v2765 = vpop.f32.mrb[0].mxu0
        %v2766 = vadd.f32 0.0, %v2765
        %v2767 = vpop.f32.mrb[0].mxu0
        %2768 = vmatprep.mubr.bf16.mxu0 0
        %2769 = vmatmul.mubr.bf16.gmra.mrb[0].mxu0 %v2635
        %v2770 = vpop.f32.mrb[0].mxu0
        %v2771 = vadd.f32 0.0, %v2770
        %v2772 = vpop.f32.mrb[0].mxu0
        %v2773 = vpop.f32.mrb[0].mxu0
        %v2774 = vadd.f32 0.0, %v2773
        %v2775 = vpop.f32.mrb[0].mxu0
        %2776 = vmatprep.mubr.bf16.mxu0 0
        %2777 = vmatmul.mubr.bf16.gmra.mrb[0].mxu0 %v2638
        %v2778 = vpop.f32.mrb[0].mxu0
        %v2779 = vadd.f32 0.0, %v2778
        %v2780 = vpop.f32.mrb[0].mxu0
        %v2781 = vpop.f32.mrb[0].mxu0
        %v2782 = vadd.f32 0.0, %v2781
        %v2783 = vpop.f32.mrb[0].mxu0
        %2784 = vmatprep.mubr.bf16.mxu0 0
        %2785 = vmatmul.mubr.bf16.gmra.mrb[0].mxu0 %v2641
        %v2786 = vpop.f32.mrb[0].mxu0
        %v2787 = vadd.f32 0.0, %v2786
        %v2788 = vpop.f32.mrb[0].mxu0
        %v2789 = vpop.f32.mrb[0].mxu0
        %v2790 = vadd.f32 0.0, %v2789
        %v2791 = vpop.f32.mrb[0].mxu0
        %2792 = vmatprep.mubr.bf16.mxu0 0
        %2793 = vmatmul.mubr.bf16.gmra.mrb[0].mxu0 %v2644
        %v2794 = vpop.f32.mrb[0].mxu0
        %v2795 = vadd.f32 0.0, %v2794
        %v2796 = vpop.f32.mrb[0].mxu0
        %v2797 = vpop.f32.mrb[0].mxu0
        %v2798 = vadd.f32 0.0, %v2797
        %v2799 = vpop.f32.mrb[0].mxu0
        %2800 = vmatprep.mubr.bf16.mxu0 0
        %2801 = vmatmul.mubr.bf16.gmra.mrb[0].mxu0 %v2647
        %v2802 = vpop.f32.mrb[0].mxu0
        %v2803 = vadd.f32 0.0, %v2802
        %v2804 = vpop.f32.mrb[0].mxu0
        %v2805 = vpop.f32.mrb[0].mxu0
        %v2806 = vadd.f32 0.0, %v2805
        %v2807 = vpop.f32.mrb[0].mxu0
        %2808 = vmatprep.mubr.bf16.mxu0 0
        %2809 = vmatmul.mubr.bf16.gmra.mrb[0].mxu0 %v2650
        %v2810 = vpop.f32.mrb[0].mxu0
        %v2811 = vadd.f32 0.0, %v2810
        %v2812 = vpop.f32.mrb[0].mxu0
        %v2813 = vpop.f32.mrb[0].mxu0
        %v2814 = vadd.f32 0.0, %v2813
        %v2815 = vpop.f32.mrb[0].mxu0
        %2816 = vmatprep.mubr.bf16.mxu0 0
        %2817 = vmatmul.mubr.bf16.gmra.mrb[0].mxu0 %v2653
        %v2818 = vpop.f32.mrb[0].mxu0
        %v2819 = vadd.f32 0.0, %v2818
        %v2820 = vpop.f32.mrb[0].mxu0
        %v2821 = vpop.f32.mrb[0].mxu0
        %v2822 = vadd.f32 0.0, %v2821
        %v2823 = vpop.f32.mrb[0].mxu0
        %2824 = vmatprep.mubr.bf16.mxu0 0
        %2825 = vmatmul.mubr.bf16.gmra.mrb[0].mxu0 %v2656
        %v2826 = vpop.f32.mrb[0].mxu0
        %v2827 = vadd.f32 0.0, %v2826
        %v2828 = vpop.f32.mrb[0].mxu0
        %v2829 = vpop.f32.mrb[0].mxu0
        %v2830 = vadd.f32 0.0, %v2829
        %v2831 = vpop.f32.mrb[0].mxu0
        %2832 = vmatprep.mubr.bf16.mxu0 0
        %2833 = vmatmul.mubr.bf16.gmra.mrb[0].mxu0 %v2659
        %v2834 = vpop.f32.mrb[0].mxu0
        %v2835 = vadd.f32 0.0, %v2834
        %v2836 = vpop.f32.mrb[0].mxu0
        %v2837 = vpop.f32.mrb[0].mxu0
        %v2838 = vadd.f32 0.0, %v2837
        %v2839 = vpop.f32.mrb[0].mxu0
        %2840 = vdwg.mxu0
        %v2841 = vadd.f32 %v2480, %v2699
        %v2842 = vadd.f32 %v2481, %v2702
        %v2843 = vadd.f32 %v2482, %v2707
        %v2844 = vadd.f32 %v2483, %v2710
        %v2845 = vadd.f32 %v2484, %v2715
        %v2846 = vadd.f32 %v2485, %v2718
        %v2847 = vadd.f32 %v2486, %v2723
        %v2848 = vadd.f32 %v2487, %v2726
        %v2849 = vadd.f32 %v2488, %v2731
        %v2850 = vadd.f32 %v2489, %v2734
        %v2851 = vadd.f32 %v2490, %v2739
        %v2852 = vadd.f32 %v2491, %v2742
        %v2853 = vadd.f32 %v2492, %v2747
        %v2854 = vadd.f32 %v2493, %v2750
        %v2855 = vadd.f32 %v2494, %v2755
        %v2856 = vadd.f32 %v2495, %v2758
        %v2857 = vadd.f32 %v2496, %v2763
        %v2858 = vadd.f32 %v2497, %v2766
        %v2859 = vadd.f32 %v2498, %v2771
        %v2860 = vadd.f32 %v2499, %v2774
        %v2861 = vadd.f32 %v2500, %v2779
        %v2862 = vadd.f32 %v2501, %v2782
        %v2863 = vadd.f32 %v2502, %v2787
        %v2864 = vadd.f32 %v2503, %v2790
        %v2865 = vadd.f32 %v2504, %v2795
        %v2866 = vadd.f32 %v2505, %v2798
        %v2867 = vadd.f32 %v2506, %v2803
        %v2868 = vadd.f32 %v2507, %v2806
        %v2869 = vadd.f32 %v2508, %v2811
        %v2870 = vadd.f32 %v2509, %v2814
        %v2871 = vadd.f32 %v2510, %v2819
        %v2872 = vadd.f32 %v2511, %v2822
        %v2873 = vadd.f32 %v2512, %v2827
        %v2874 = vadd.f32 %v2513, %v2830
        %v2875 = vadd.f32 %v2514, %v2835
        %v2876 = vadd.f32 %v2515, %v2838
        %v2877 = vld [vmem:[%s3 + $0x10] sm:$0x3]
        %vm2878 = vcmask 1044480
        %v2879 = vrot.slane %v428, 3
        %v2880 = vrot.slane %v429, 3
        %v2881 = vsel %vm2878, %v2879, %v2880
        %v2882 = vrot.slane %v430, 3
        %v2883 = vsel %vm2878, %v2880, %v2882
        %v2884 = vrot.slane %v431, 3
        %v2885 = vsel %vm2878, %v2882, %v2884
        %v2886 = vrot.slane %v432, 3
        %v2887 = vsel %vm2878, %v2884, %v2886
        %v2888 = vrot.slane %v433, 3
        %v2889 = vsel %vm2878, %v2886, %v2888
        %v2890 = vrot.slane %v434, 3
        %v2891 = vsel %vm2878, %v2888, %v2890
        %v2892 = vrot.slane %v435, 3
        %v2893 = vsel %vm2878, %v2890, %v2892
        %v2894 = vrot.slane %v436, 3
        %v2895 = vsel %vm2878, %v2892, %v2894
        %v2896 = vrot.slane %v437, 3
        %v2897 = vsel %vm2878, %v2894, %v2896
        %v2898 = vrot.slane %v438, 3
        %v2899 = vsel %vm2878, %v2896, %v2898
        %v2900 = vrot.slane %v439, 3
        %v2901 = vsel %vm2878, %v2898, %v2900
        %v2902 = vrot.slane %v440, 3
        %v2903 = vsel %vm2878, %v2900, %v2902
        %v2904 = vrot.slane %v441, 3
        %v2905 = vsel %vm2878, %v2902, %v2904
        %v2906 = vrot.slane %v442, 3
        %v2907 = vsel %vm2878, %v2904, %v2906
        %v2908 = vrot.slane %v443, 3
        %v2909 = vsel %vm2878, %v2906, %v2908
        %v2910 = vrot.slane %v1380, 3
        %v2911 = vsel %vm2878, %v2908, %v2910
        %v2912 = vrot.slane %v2285, 3
        %v2913 = vsel %vm2878, %v2910, %v2912
        %v2914 = vrot.slane %v2286, 3
        %v2915 = vsel %vm2878, %v2912, %v2914
        %v2917 = vsel %vm600, %v2881, 0
        %v2920 = vsel %vm600, %v2883, 0
        %v2923 = vsel %vm600, %v2885, 0
        %v2926 = vsel %vm600, %v2887, 0
        %v2929 = vsel %vm600, %v2889, 0
        %v2932 = vsel %vm600, %v2891, 0
        %v2935 = vsel %vm600, %v2893, 0
        %v2938 = vsel %vm600, %v2895, 0
        %v2941 = vsel %vm600, %v2897, 0
        %v2944 = vsel %vm600, %v2899, 0
        %v2947 = vsel %vm600, %v2901, 0
        %v2950 = vsel %vm600, %v2903, 0
        %v2953 = vsel %vm600, %v2905, 0
        %v2956 = vsel %vm600, %v2907, 0
        %v2959 = vsel %vm600, %v2909, 0
        %v2962 = vsel %vm600, %v2911, 0
        %v2965 = vsel %vm600, %v2913, 0
        %v2968 = vsel %vm600, %v2915, 0
        %v2971 = vsel %vm655, %v2877, 0
        %2973 = vmatprep.subr.bf16.mxu0 0
        %2974 = vmatpush1.bf16.msra.mxu0 %v2971
        %2975 = vmatprep.subr.bf16.mxu0 0
        %2976 = vmatpush1.bf16.msra.mxu0 0
        %2977 = vmatprep.subr.bf16.mxu0 0
        %2978 = vmatpush1.bf16.msra.mxu0 0
        %2979 = vmatprep.subr.bf16.mxu0 0
        %2980 = vmatpush1.bf16.msra.mxu0 0
        %2981 = vmatprep.subr.bf16.mxu0 0
        %2982 = vmatpush1.bf16.msra.mxu0 0
        %2983 = vmatprep.subr.bf16.mxu0 0
        %2984 = vmatpush1.bf16.msra.mxu0 0
        %2985 = vmatprep.subr.bf16.mxu0 0
        %2986 = vmatpush1.bf16.msra.mxu0 0
        %2987 = vmatprep.subr.bf16.mxu0 0
        %2988 = vmatpush1.bf16.msra.mxu0 0
        %2989 = vmatprep.subr.bf16.mxu0 0
        %2990 = vmatpush1.bf16.msra.mxu0 0
        %2991 = vmatprep.subr.bf16.mxu0 0
        %2992 = vmatpush1.bf16.msra.mxu0 0
        %2993 = vmatprep.subr.bf16.mxu0 0
        %2994 = vmatpush1.bf16.msra.mxu0 0
        %2995 = vmatprep.subr.bf16.mxu0 0
        %2996 = vmatpush1.bf16.msra.mxu0 0
        %2997 = vmatprep.subr.bf16.mxu0 0
        %2998 = vmatpush1.bf16.msra.mxu0 0
        %2999 = vmatprep.subr.bf16.mxu0 0
        %3000 = vmatpush1.bf16.msra.mxu0 0
        %3001 = vmatprep.subr.bf16.mxu0 0
        %3002 = vmatpush1.bf16.msra.mxu0 0
        %3003 = vmatprep.subr.bf16.mxu0 0
        %3004 = vmatpush1.bf16.msra.mxu0 0
        %3005 = vmatprep.mubr.bf16.mxu0 0
        %3006 = vmatmul.mubr.bf16.gmra.mrb[0].mxu0 %v2917
        %v3007 = vpop.f32.mrb[0].mxu0
        %v3008 = vadd.f32 0.0, %v3007
        %v3009 = vpop.f32.mrb[0].mxu0
        %v3010 = vpop.f32.mrb[0].mxu0
        %v3011 = vadd.f32 0.0, %v3010
        %v3012 = vpop.f32.mrb[0].mxu0
        %3013 = vmatprep.mubr.bf16.mxu0 0
        %3014 = vmatmul.mubr.bf16.gmra.mrb[0].mxu0 %v2920
        %v3015 = vpop.f32.mrb[0].mxu0
        %v3016 = vadd.f32 0.0, %v3015
        %v3017 = vpop.f32.mrb[0].mxu0
        %v3018 = vpop.f32.mrb[0].mxu0
        %v3019 = vadd.f32 0.0, %v3018
        %v3020 = vpop.f32.mrb[0].mxu0
        %3021 = vmatprep.mubr.bf16.mxu0 0
        %3022 = vmatmul.mubr.bf16.gmra.mrb[0].mxu0 %v2923
        %v3023 = vpop.f32.mrb[0].mxu0
        %v3024 = vadd.f32 0.0, %v3023
        %v3025 = vpop.f32.mrb[0].mxu0
        %v3026 = vpop.f32.mrb[0].mxu0
        %v3027 = vadd.f32 0.0, %v3026
        %v3028 = vpop.f32.mrb[0].mxu0
        %3029 = vmatprep.mubr.bf16.mxu0 0
        %3030 = vmatmul.mubr.bf16.gmra.mrb[0].mxu0 %v2926
        %v3031 = vpop.f32.mrb[0].mxu0
        %v3032 = vadd.f32 0.0, %v3031
        %v3033 = vpop.f32.mrb[0].mxu0
        %v3034 = vpop.f32.mrb[0].mxu0
        %v3035 = vadd.f32 0.0, %v3034
        %v3036 = vpop.f32.mrb[0].mxu0
        %3037 = vmatprep.mubr.bf16.mxu0 0
        %3038 = vmatmul.mubr.bf16.gmra.mrb[0].mxu0 %v2929
        %v3039 = vpop.f32.mrb[0].mxu0
        %v3040 = vadd.f32 0.0, %v3039
        %v3041 = vpop.f32.mrb[0].mxu0
        %v3042 = vpop.f32.mrb[0].mxu0
        %v3043 = vadd.f32 0.0, %v3042
        %v3044 = vpop.f32.mrb[0].mxu0
        %3045 = vmatprep.mubr.bf16.mxu0 0
        %3046 = vmatmul.mubr.bf16.gmra.mrb[0].mxu0 %v2932
        %v3047 = vpop.f32.mrb[0].mxu0
        %v3048 = vadd.f32 0.0, %v3047
        %v3049 = vpop.f32.mrb[0].mxu0
        %v3050 = vpop.f32.mrb[0].mxu0
        %v3051 = vadd.f32 0.0, %v3050
        %v3052 = vpop.f32.mrb[0].mxu0
        %3053 = vmatprep.mubr.bf16.mxu0 0
        %3054 = vmatmul.mubr.bf16.gmra.mrb[0].mxu0 %v2935
        %v3055 = vpop.f32.mrb[0].mxu0
        %v3056 = vadd.f32 0.0, %v3055
        %v3057 = vpop.f32.mrb[0].mxu0
        %v3058 = vpop.f32.mrb[0].mxu0
        %v3059 = vadd.f32 0.0, %v3058
        %v3060 = vpop.f32.mrb[0].mxu0
        %3061 = vmatprep.mubr.bf16.mxu0 0
        %3062 = vmatmul.mubr.bf16.gmra.mrb[0].mxu0 %v2938
        %v3063 = vpop.f32.mrb[0].mxu0
        %v3064 = vadd.f32 0.0, %v3063
        %v3065 = vpop.f32.mrb[0].mxu0
        %v3066 = vpop.f32.mrb[0].mxu0
        %v3067 = vadd.f32 0.0, %v3066
        %v3068 = vpop.f32.mrb[0].mxu0
        %3069 = vmatprep.mubr.bf16.mxu0 0
        %3070 = vmatmul.mubr.bf16.gmra.mrb[0].mxu0 %v2941
        %v3071 = vpop.f32.mrb[0].mxu0
        %v3072 = vadd.f32 0.0, %v3071
        %v3073 = vpop.f32.mrb[0].mxu0
        %v3074 = vpop.f32.mrb[0].mxu0
        %v3075 = vadd.f32 0.0, %v3074
        %v3076 = vpop.f32.mrb[0].mxu0
        %3077 = vmatprep.mubr.bf16.mxu0 0
        %3078 = vmatmul.mubr.bf16.gmra.mrb[0].mxu0 %v2944
        %v3079 = vpop.f32.mrb[0].mxu0
        %v3080 = vadd.f32 0.0, %v3079
        %v3081 = vpop.f32.mrb[0].mxu0
        %v3082 = vpop.f32.mrb[0].mxu0
        %v3083 = vadd.f32 0.0, %v3082
        %v3084 = vpop.f32.mrb[0].mxu0
        %3085 = vmatprep.mubr.bf16.mxu0 0
        %3086 = vmatmul.mubr.bf16.gmra.mrb[0].mxu0 %v2947
        %v3087 = vpop.f32.mrb[0].mxu0
        %v3088 = vadd.f32 0.0, %v3087
        %v3089 = vpop.f32.mrb[0].mxu0
        %v3090 = vpop.f32.mrb[0].mxu0
        %v3091 = vadd.f32 0.0, %v3090
        %v3092 = vpop.f32.mrb[0].mxu0
        %3093 = vmatprep.mubr.bf16.mxu0 0
        %3094 = vmatmul.mubr.bf16.gmra.mrb[0].mxu0 %v2950
        %v3095 = vpop.f32.mrb[0].mxu0
        %v3096 = vadd.f32 0.0, %v3095
        %v3097 = vpop.f32.mrb[0].mxu0
        %v3098 = vpop.f32.mrb[0].mxu0
        %v3099 = vadd.f32 0.0, %v3098
        %v3100 = vpop.f32.mrb[0].mxu0
        %3101 = vmatprep.mubr.bf16.mxu0 0
        %3102 = vmatmul.mubr.bf16.gmra.mrb[0].mxu0 %v2953
        %v3103 = vpop.f32.mrb[0].mxu0
        %v3104 = vadd.f32 0.0, %v3103
        %v3105 = vpop.f32.mrb[0].mxu0
        %v3106 = vpop.f32.mrb[0].mxu0
        %v3107 = vadd.f32 0.0, %v3106
        %v3108 = vpop.f32.mrb[0].mxu0
        %3109 = vmatprep.mubr.bf16.mxu0 0
        %3110 = vmatmul.mubr.bf16.gmra.mrb[0].mxu0 %v2956
        %v3111 = vpop.f32.mrb[0].mxu0
        %v3112 = vadd.f32 0.0, %v3111
        %v3113 = vpop.f32.mrb[0].mxu0
        %v3114 = vpop.f32.mrb[0].mxu0
        %v3115 = vadd.f32 0.0, %v3114
        %v3116 = vpop.f32.mrb[0].mxu0
        %3117 = vmatprep.mubr.bf16.mxu0 0
        %3118 = vmatmul.mubr.bf16.gmra.mrb[0].mxu0 %v2959
        %v3119 = vpop.f32.mrb[0].mxu0
        %v3120 = vadd.f32 0.0, %v3119
        %v3121 = vpop.f32.mrb[0].mxu0
        %v3122 = vpop.f32.mrb[0].mxu0
        %v3123 = vadd.f32 0.0, %v3122
        %v3124 = vpop.f32.mrb[0].mxu0
        %3125 = vmatprep.mubr.bf16.mxu0 0
        %3126 = vmatmul.mubr.bf16.gmra.mrb[0].mxu0 %v2962
        %v3127 = vpop.f32.mrb[0].mxu0
        %v3128 = vadd.f32 0.0, %v3127
        %v3129 = vpop.f32.mrb[0].mxu0
        %v3130 = vpop.f32.mrb[0].mxu0
        %v3131 = vadd.f32 0.0, %v3130
        %v3132 = vpop.f32.mrb[0].mxu0
        %3133 = vmatprep.mubr.bf16.mxu0 0
        %3134 = vmatmul.mubr.bf16.gmra.mrb[0].mxu0 %v2965
        %v3135 = vpop.f32.mrb[0].mxu0
        %v3136 = vadd.f32 0.0, %v3135
        %v3137 = vpop.f32.mrb[0].mxu0
        %v3138 = vpop.f32.mrb[0].mxu0
        %v3139 = vadd.f32 0.0, %v3138
        %v3140 = vpop.f32.mrb[0].mxu0
        %3141 = vmatprep.mubr.bf16.mxu0 0
        %3142 = vmatmul.mubr.bf16.gmra.mrb[0].mxu0 %v2968
        %v3143 = vpop.f32.mrb[0].mxu0
        %v3144 = vadd.f32 0.0, %v3143
        %v3145 = vpop.f32.mrb[0].mxu0
        %v3146 = vpop.f32.mrb[0].mxu0
        %v3147 = vadd.f32 0.0, %v3146
        %v3148 = vpop.f32.mrb[0].mxu0
        %3149 = vdwg.mxu0
        %v3150 = vadd.f32 %v2841, %v3008
        %v3151 = vadd.f32 %v2842, %v3011
        %v3152 = vadd.f32 %v2843, %v3016
        %v3153 = vadd.f32 %v2844, %v3019
        %v3154 = vadd.f32 %v2845, %v3024
        %v3155 = vadd.f32 %v2846, %v3027
        %v3156 = vadd.f32 %v2847, %v3032
        %v3157 = vadd.f32 %v2848, %v3035
        %v3158 = vadd.f32 %v2849, %v3040
        %v3159 = vadd.f32 %v2850, %v3043
        %v3160 = vadd.f32 %v2851, %v3048
        %v3161 = vadd.f32 %v2852, %v3051
        %v3162 = vadd.f32 %v2853, %v3056
        %v3163 = vadd.f32 %v2854, %v3059
        %v3164 = vadd.f32 %v2855, %v3064
        %v3165 = vadd.f32 %v2856, %v3067
        %v3166 = vadd.f32 %v2857, %v3072
        %v3167 = vadd.f32 %v2858, %v3075
        %v3168 = vadd.f32 %v2859, %v3080
        %v3169 = vadd.f32 %v2860, %v3083
        %v3170 = vadd.f32 %v2861, %v3088
        %v3171 = vadd.f32 %v2862, %v3091
        %v3172 = vadd.f32 %v2863, %v3096
        %v3173 = vadd.f32 %v2864, %v3099
        %v3174 = vadd.f32 %v2865, %v3104
        %v3175 = vadd.f32 %v2866, %v3107
        %v3176 = vadd.f32 %v2867, %v3112
        %v3177 = vadd.f32 %v2868, %v3115
        %v3178 = vadd.f32 %v2869, %v3120
        %v3179 = vadd.f32 %v2870, %v3123
        %v3180 = vadd.f32 %v2871, %v3128
        %v3181 = vadd.f32 %v2872, %v3131
        %v3182 = vadd.f32 %v2873, %v3136
        %v3183 = vadd.f32 %v2874, %v3139
        %v3184 = vadd.f32 %v2875, %v3144
        %v3185 = vadd.f32 %v2876, %v3147
        %v3186 = vld [vmem:[%s4] sm:$0x1]
        %v3188 = vlaneseq
        %v3189 = vshrl.u32 %v3188, 7
        %v3190 = vsub.s32 0, %v3189
        %v3191 = vrot.slane %v3186, %v3190
        %v3193 = vadd.f32 %v3150, %v3191
        %v3194 = vadd.f32 %v3151, %v3191
        %v3195 = vadd.f32 %v3152, %v3191
        %v3196 = vadd.f32 %v3153, %v3191
        %v3197 = vadd.f32 %v3154, %v3191
        %v3198 = vadd.f32 %v3155, %v3191
        %v3199 = vadd.f32 %v3156, %v3191
        %v3200 = vadd.f32 %v3157, %v3191
        %v3201 = vadd.f32 %v3158, %v3191
        %v3202 = vadd.f32 %v3159, %v3191
        %v3203 = vadd.f32 %v3160, %v3191
        %v3204 = vadd.f32 %v3161, %v3191
        %v3205 = vadd.f32 %v3162, %v3191
        %v3206 = vadd.f32 %v3163, %v3191
        %v3207 = vadd.f32 %v3164, %v3191
        %v3208 = vadd.f32 %v3165, %v3191
        %v3209 = vadd.f32 %v3166, %v3191
        %v3210 = vadd.f32 %v3167, %v3191
        %v3211 = vadd.f32 %v3168, %v3191
        %v3212 = vadd.f32 %v3169, %v3191
        %v3213 = vadd.f32 %v3170, %v3191
        %v3214 = vadd.f32 %v3171, %v3191
        %v3215 = vadd.f32 %v3172, %v3191
        %v3216 = vadd.f32 %v3173, %v3191
        %v3217 = vadd.f32 %v3174, %v3191
        %v3218 = vadd.f32 %v3175, %v3191
        %v3219 = vadd.f32 %v3176, %v3191
        %v3220 = vadd.f32 %v3177, %v3191
        %v3221 = vadd.f32 %v3178, %v3191
        %v3222 = vadd.f32 %v3179, %v3191
        %v3223 = vadd.f32 %v3180, %v3191
        %v3224 = vadd.f32 %v3181, %v3191
        %v3225 = vadd.f32 %v3182, %v3191
        %v3226 = vadd.f32 %v3183, %v3191
        %v3227 = vadd.f32 %v3184, %v3191
        %v3228 = vadd.f32 %v3185, %v3191
        %v3229 = vmax.f32 %v3193, 1e-06
        %v3230 = vmax.f32 %v3194, 1e-06
        %v3231 = vmax.f32 %v3195, 1e-06
        %v3232 = vmax.f32 %v3196, 1e-06
        %v3233 = vmax.f32 %v3197, 1e-06
        %v3234 = vmax.f32 %v3198, 1e-06
        %v3235 = vmax.f32 %v3199, 1e-06
        %v3236 = vmax.f32 %v3200, 1e-06
        %v3237 = vmax.f32 %v3201, 1e-06
        %v3238 = vmax.f32 %v3202, 1e-06
        %v3239 = vmax.f32 %v3203, 1e-06
        %v3240 = vmax.f32 %v3204, 1e-06
        %v3241 = vmax.f32 %v3205, 1e-06
        %v3242 = vmax.f32 %v3206, 1e-06
        %v3243 = vmax.f32 %v3207, 1e-06
        %v3244 = vmax.f32 %v3208, 1e-06
        %v3245 = vmax.f32 %v3209, 1e-06
        %v3246 = vmax.f32 %v3210, 1e-06
        %v3247 = vmax.f32 %v3211, 1e-06
        %v3248 = vmax.f32 %v3212, 1e-06
        %v3249 = vmax.f32 %v3213, 1e-06
        %v3250 = vmax.f32 %v3214, 1e-06
        %v3251 = vmax.f32 %v3215, 1e-06
        %v3252 = vmax.f32 %v3216, 1e-06
        %v3253 = vmax.f32 %v3217, 1e-06
        %v3254 = vmax.f32 %v3218, 1e-06
        %v3255 = vmax.f32 %v3219, 1e-06
        %v3256 = vmax.f32 %v3220, 1e-06
        %v3257 = vmax.f32 %v3221, 1e-06
        %v3258 = vmax.f32 %v3222, 1e-06
        %v3259 = vmax.f32 %v3223, 1e-06
        %v3260 = vmax.f32 %v3224, 1e-06
        %v3261 = vmax.f32 %v3225, 1e-06
        %v3262 = vmax.f32 %v3226, 1e-06
        %v3263 = vmax.f32 %v3227, 1e-06
        %v3264 = vmax.f32 %v3228, 1e-06
        %v3265 = vld [vmem:[%s2] sm:$0xff]
        %v3266 = vld [vmem:[%s2 + $0x8] sm:$0xff]
        %v3267 = vld [vmem:[%s2 + $0x10] sm:$0xff]
        %v3268 = vld [vmem:[%s2 + $0x18] sm:$0xff]
        %v3269 = vld [vmem:[%s2 + $0x20] sm:$0xff]
        %v3270 = vld [vmem:[%s2 + $0x28] sm:$0xff]
        %v3271 = vld [vmem:[%s2 + $0x30] sm:$0xff]
        %v3272 = vld [vmem:[%s2 + $0x38] sm:$0xff]
        %v3273 = vld [vmem:[%s2 + $0x40] sm:$0xff]
        %v3274 = vld [vmem:[%s2 + $0x48] sm:$0xff]
        %v3275 = vld [vmem:[%s2 + $0x50] sm:$0xff]
        %v3276 = vld [vmem:[%s2 + $0x58] sm:$0xff]
        %v3277 = vld [vmem:[%s2 + $0x60] sm:$0xff]
        %v3278 = vld [vmem:[%s2 + $0x68] sm:$0xff]
        %v3279 = vld [vmem:[%s2 + $0x70] sm:$0xff]
        %v3280 = vld [vmem:[%s2 + $0x78] sm:$0xff]
        %v3281 = vld [vmem:[%s2 + $0x80] sm:$0xff]
        %v3282 = vld [vmem:[%s2 + $0x88] sm:$0xff]
        %v3283 = vld [vmem:[%s2 + $0x90] sm:$0xff]
        %v3284 = vld [vmem:[%s2 + $0x98] sm:$0xff]
        %v3285 = vld [vmem:[%s2 + $0xa0] sm:$0xff]
        %v3286 = vld [vmem:[%s2 + $0xa8] sm:$0xff]
        %v3287 = vld [vmem:[%s2 + $0xb0] sm:$0xff]
        %v3288 = vld [vmem:[%s2 + $0xb8] sm:$0xff]
        %v3289 = vld [vmem:[%s2 + $0xc0] sm:$0xff]
        %v3290 = vld [vmem:[%s2 + $0xc8] sm:$0xff]
        %v3291 = vld [vmem:[%s2 + $0xd0] sm:$0xff]
        %v3292 = vld [vmem:[%s2 + $0xd8] sm:$0xff]
        %v3293 = vld [vmem:[%s2 + $0xe0] sm:$0xff]
        %v3294 = vld [vmem:[%s2 + $0xe8] sm:$0xff]
        %v3295 = vld [vmem:[%s2 + $0xf0] sm:$0xff]
        %v3296 = vld [vmem:[%s2 + $0xf8] sm:$0xff]
        %v3297 = vld [vmem:[%s2 + $0x100] sm:$0xff]
        %v3298 = vld [vmem:[%s2 + $0x108] sm:$0xff]
        %v3299 = vld [vmem:[%s2 + $0x110] sm:$0xff]
        %v3300 = vld [vmem:[%s2 + $0x118] sm:$0xff]
        %3302 = vset.pattern.permute.xlu0 0
        %3303 = vperm.xlu0 %3302, %v3265
        %v3304 = vpop.permute.xlu0 %3303
        %3307 = vset.pattern.permute.xlu0 0
        %3308 = vperm.xlu0 %3307, %v3266
        %v3309 = vpop.permute.xlu0 %3308
        %3312 = vset.pattern.permute.xlu0 0
        %3313 = vperm.xlu0 %3312, %v3267
        %v3314 = vpop.permute.xlu0 %3313
        %3317 = vset.pattern.permute.xlu0 0
        %3318 = vperm.xlu0 %3317, %v3268
        %v3319 = vpop.permute.xlu0 %3318
        %3322 = vset.pattern.permute.xlu0 0
        %3323 = vperm.xlu0 %3322, %v3269
        %v3324 = vpop.permute.xlu0 %3323
        %3327 = vset.pattern.permute.xlu0 0
        %3328 = vperm.xlu0 %3327, %v3270
        %v3329 = vpop.permute.xlu0 %3328
        %3332 = vset.pattern.permute.xlu0 0
        %3333 = vperm.xlu0 %3332, %v3271
        %v3334 = vpop.permute.xlu0 %3333
        %3337 = vset.pattern.permute.xlu0 0
        %3338 = vperm.xlu0 %3337, %v3272
        %v3339 = vpop.permute.xlu0 %3338
        %3342 = vset.pattern.permute.xlu0 0
        %3343 = vperm.xlu0 %3342, %v3273
        %v3344 = vpop.permute.xlu0 %3343
        %3347 = vset.pattern.permute.xlu0 0
        %3348 = vperm.xlu0 %3347, %v3274
        %v3349 = vpop.permute.xlu0 %3348
        %3352 = vset.pattern.permute.xlu0 0
        %3353 = vperm.xlu0 %3352, %v3275
        %v3354 = vpop.permute.xlu0 %3353
        %3357 = vset.pattern.permute.xlu0 0
        %3358 = vperm.xlu0 %3357, %v3276
        %v3359 = vpop.permute.xlu0 %3358
        %3362 = vset.pattern.permute.xlu0 0
        %3363 = vperm.xlu0 %3362, %v3277
        %v3364 = vpop.permute.xlu0 %3363
        %3367 = vset.pattern.permute.xlu0 0
        %3368 = vperm.xlu0 %3367, %v3278
        %v3369 = vpop.permute.xlu0 %3368
        %3372 = vset.pattern.permute.xlu0 0
        %3373 = vperm.xlu0 %3372, %v3279
        %v3374 = vpop.permute.xlu0 %3373
        %3377 = vset.pattern.permute.xlu0 0
        %3378 = vperm.xlu0 %3377, %v3280
        %v3379 = vpop.permute.xlu0 %3378
        %3382 = vset.pattern.permute.xlu0 0
        %3383 = vperm.xlu0 %3382, %v3281
        %v3384 = vpop.permute.xlu0 %3383
        %3387 = vset.pattern.permute.xlu0 0
        %3388 = vperm.xlu0 %3387, %v3282
        %v3389 = vpop.permute.xlu0 %3388
        %3392 = vset.pattern.permute.xlu0 0
        %3393 = vperm.xlu0 %3392, %v3283
        %v3394 = vpop.permute.xlu0 %3393
        %3397 = vset.pattern.permute.xlu0 0
        %3398 = vperm.xlu0 %3397, %v3284
        %v3399 = vpop.permute.xlu0 %3398
        %3402 = vset.pattern.permute.xlu0 0
        %3403 = vperm.xlu0 %3402, %v3285
        %v3404 = vpop.permute.xlu0 %3403
        %3407 = vset.pattern.permute.xlu0 0
        %3408 = vperm.xlu0 %3407, %v3286
        %v3409 = vpop.permute.xlu0 %3408
        %3412 = vset.pattern.permute.xlu0 0
        %3413 = vperm.xlu0 %3412, %v3287
        %v3414 = vpop.permute.xlu0 %3413
        %3417 = vset.pattern.permute.xlu0 0
        %3418 = vperm.xlu0 %3417, %v3288
        %v3419 = vpop.permute.xlu0 %3418
        %3422 = vset.pattern.permute.xlu0 0
        %3423 = vperm.xlu0 %3422, %v3289
        %v3424 = vpop.permute.xlu0 %3423
        %3427 = vset.pattern.permute.xlu0 0
        %3428 = vperm.xlu0 %3427, %v3290
        %v3429 = vpop.permute.xlu0 %3428
        %3432 = vset.pattern.permute.xlu0 0
        %3433 = vperm.xlu0 %3432, %v3291
        %v3434 = vpop.permute.xlu0 %3433
        %3437 = vset.pattern.permute.xlu0 0
        %3438 = vperm.xlu0 %3437, %v3292
        %v3439 = vpop.permute.xlu0 %3438
        %3442 = vset.pattern.permute.xlu0 0
        %3443 = vperm.xlu0 %3442, %v3293
        %v3444 = vpop.permute.xlu0 %3443
        %3447 = vset.pattern.permute.xlu0 0
        %3448 = vperm.xlu0 %3447, %v3294
        %v3449 = vpop.permute.xlu0 %3448
        %3452 = vset.pattern.permute.xlu0 0
        %3453 = vperm.xlu0 %3452, %v3295
        %v3454 = vpop.permute.xlu0 %3453
        %3457 = vset.pattern.permute.xlu0 0
        %3458 = vperm.xlu0 %3457, %v3296
        %v3459 = vpop.permute.xlu0 %3458
        %3462 = vset.pattern.permute.xlu0 0
        %3463 = vperm.xlu0 %3462, %v3297
        %v3464 = vpop.permute.xlu0 %3463
        %3467 = vset.pattern.permute.xlu0 0
        %3468 = vperm.xlu0 %3467, %v3298
        %v3469 = vpop.permute.xlu0 %3468
        %3472 = vset.pattern.permute.xlu0 0
        %3473 = vperm.xlu0 %3472, %v3299
        %v3474 = vpop.permute.xlu0 %3473
        %3477 = vset.pattern.permute.xlu0 0
        %3478 = vperm.xlu0 %3477, %v3300
        %v3479 = vpop.permute.xlu0 %3478
        %v3481 = vmul.f32 %v3229, %v3304
        %v3482 = vmul.f32 %v3230, %v3309
        %v3483 = vmul.f32 %v3231, %v3314
        %v3484 = vmul.f32 %v3232, %v3319
        %v3485 = vmul.f32 %v3233, %v3324
        %v3486 = vmul.f32 %v3234, %v3329
        %v3487 = vmul.f32 %v3235, %v3334
        %v3488 = vmul.f32 %v3236, %v3339
        %v3489 = vmul.f32 %v3237, %v3344
        %v3490 = vmul.f32 %v3238, %v3349
        %v3491 = vmul.f32 %v3239, %v3354
        %v3492 = vmul.f32 %v3240, %v3359
        %v3493 = vmul.f32 %v3241, %v3364
        %v3494 = vmul.f32 %v3242, %v3369
        %v3495 = vmul.f32 %v3243, %v3374
        %v3496 = vmul.f32 %v3244, %v3379
        %v3497 = vmul.f32 %v3245, %v3384
        %v3498 = vmul.f32 %v3246, %v3389
        %v3499 = vmul.f32 %v3247, %v3394
        %v3500 = vmul.f32 %v3248, %v3399
        %v3501 = vmul.f32 %v3249, %v3404
        %v3502 = vmul.f32 %v3250, %v3409
        %v3503 = vmul.f32 %v3251, %v3414
        %v3504 = vmul.f32 %v3252, %v3419
        %v3505 = vmul.f32 %v3253, %v3424
        %v3506 = vmul.f32 %v3254, %v3429
        %v3507 = vmul.f32 %v3255, %v3434
        %v3508 = vmul.f32 %v3256, %v3439
        %v3509 = vmul.f32 %v3257, %v3444
        %v3510 = vmul.f32 %v3258, %v3449
        %v3511 = vmul.f32 %v3259, %v3454
        %v3512 = vmul.f32 %v3260, %v3459
        %v3513 = vmul.f32 %v3261, %v3464
        %v3514 = vmul.f32 %v3262, %v3469
        %v3515 = vmul.f32 %v3263, %v3474
        %v3516 = vmul.f32 %v3264, %v3479
        %v3517 = vmul.f32 %v3229, %v3229
        %v3518 = vmul.f32 %v3230, %v3230
        %v3519 = vmul.f32 %v3231, %v3231
        %v3520 = vmul.f32 %v3232, %v3232
        %v3521 = vmul.f32 %v3233, %v3233
        %v3522 = vmul.f32 %v3234, %v3234
        %v3523 = vmul.f32 %v3235, %v3235
        %v3524 = vmul.f32 %v3236, %v3236
        %v3525 = vmul.f32 %v3237, %v3237
        %v3526 = vmul.f32 %v3238, %v3238
        %v3527 = vmul.f32 %v3239, %v3239
        %v3528 = vmul.f32 %v3240, %v3240
        %v3529 = vmul.f32 %v3241, %v3241
        %v3530 = vmul.f32 %v3242, %v3242
        %v3531 = vmul.f32 %v3243, %v3243
        %v3532 = vmul.f32 %v3244, %v3244
        %v3533 = vmul.f32 %v3245, %v3245
        %v3534 = vmul.f32 %v3246, %v3246
        %v3535 = vmul.f32 %v3247, %v3247
        %v3536 = vmul.f32 %v3248, %v3248
        %v3537 = vmul.f32 %v3249, %v3249
        %v3538 = vmul.f32 %v3250, %v3250
        %v3539 = vmul.f32 %v3251, %v3251
        %v3540 = vmul.f32 %v3252, %v3252
        %v3541 = vmul.f32 %v3253, %v3253
        %v3542 = vmul.f32 %v3254, %v3254
        %v3543 = vmul.f32 %v3255, %v3255
        %v3544 = vmul.f32 %v3256, %v3256
        %v3545 = vmul.f32 %v3257, %v3257
        %v3546 = vmul.f32 %v3258, %v3258
        %v3547 = vmul.f32 %v3259, %v3259
        %v3548 = vmul.f32 %v3260, %v3260
        %v3549 = vmul.f32 %v3261, %v3261
        %v3550 = vmul.f32 %v3262, %v3262
        %v3551 = vmul.f32 %v3263, %v3263
        %v3552 = vmul.f32 %v3264, %v3264
        %v3553 = vmul.f32 %v3481, %v3517
        %v3554 = vmul.f32 %v3482, %v3518
        %v3555 = vmul.f32 %v3483, %v3519
        %v3556 = vmul.f32 %v3484, %v3520
        %v3557 = vmul.f32 %v3485, %v3521
        %v3558 = vmul.f32 %v3486, %v3522
        %v3559 = vmul.f32 %v3487, %v3523
        %v3560 = vmul.f32 %v3488, %v3524
        %v3561 = vmul.f32 %v3489, %v3525
        %v3562 = vmul.f32 %v3490, %v3526
        %v3563 = vmul.f32 %v3491, %v3527
        %v3564 = vmul.f32 %v3492, %v3528
        %v3565 = vmul.f32 %v3493, %v3529
        %v3566 = vmul.f32 %v3494, %v3530
        %v3567 = vmul.f32 %v3495, %v3531
        %v3568 = vmul.f32 %v3496, %v3532
        %v3569 = vmul.f32 %v3497, %v3533
        %v3570 = vmul.f32 %v3498, %v3534
        %v3571 = vmul.f32 %v3499, %v3535
        %v3572 = vmul.f32 %v3500, %v3536
        %v3573 = vmul.f32 %v3501, %v3537
        %v3574 = vmul.f32 %v3502, %v3538
        %v3575 = vmul.f32 %v3503, %v3539
        %v3576 = vmul.f32 %v3504, %v3540
        %v3577 = vmul.f32 %v3505, %v3541
        %v3578 = vmul.f32 %v3506, %v3542
        %v3579 = vmul.f32 %v3507, %v3543
        %v3580 = vmul.f32 %v3508, %v3544
        %v3581 = vmul.f32 %v3509, %v3545
        %v3582 = vmul.f32 %v3510, %v3546
        %v3583 = vmul.f32 %v3511, %v3547
        %v3584 = vmul.f32 %v3512, %v3548
        %v3585 = vmul.f32 %v3513, %v3549
        %v3586 = vmul.f32 %v3514, %v3550
        %v3587 = vmul.f32 %v3515, %v3551
        %v3588 = vmul.f32 %v3516, %v3552
        %v3589 = vld [vmem:[#allocation2] sm:$0x1]
        %v3590 = vadd.f32 %v3553, %v3554
        %v3591 = vadd.f32 %v3590, %v3555
        %v3592 = vadd.f32 %v3591, %v3556
        %v3593 = vadd.f32 %v3592, %v3557
        %v3594 = vadd.f32 %v3593, %v3558
        %v3595 = vadd.f32 %v3594, %v3559
        %v3596 = vadd.f32 %v3595, %v3560
        %v3597 = vadd.f32 %v3596, %v3561
        %v3598 = vadd.f32 %v3597, %v3562
        %v3599 = vadd.f32 %v3598, %v3563
        %v3600 = vadd.f32 %v3599, %v3564
        %v3601 = vadd.f32 %v3600, %v3565
        %v3602 = vadd.f32 %v3601, %v3566
        %v3603 = vadd.f32 %v3602, %v3567
        %v3604 = vadd.f32 %v3603, %v3568
        %v3605 = vadd.f32 %v3604, %v3569
        %v3606 = vadd.f32 %v3605, %v3570
        %v3607 = vadd.f32 %v3606, %v3571
        %v3608 = vadd.f32 %v3607, %v3572
        %v3609 = vadd.f32 %v3608, %v3573
        %v3610 = vadd.f32 %v3609, %v3574
        %v3611 = vadd.f32 %v3610, %v3575
        %v3612 = vadd.f32 %v3611, %v3576
        %v3613 = vadd.f32 %v3612, %v3577
        %v3614 = vadd.f32 %v3613, %v3578
        %v3615 = vadd.f32 %v3614, %v3579
        %v3616 = vadd.f32 %v3615, %v3580
        %v3617 = vadd.f32 %v3616, %v3581
        %v3618 = vadd.f32 %v3617, %v3582
        %v3619 = vadd.f32 %v3618, %v3583
        %v3620 = vadd.f32 %v3619, %v3584
        %v3621 = vadd.f32 %v3620, %v3585
        %v3622 = vadd.f32 %v3621, %v3586
        %v3623 = vadd.f32 %v3622, %v3587
        %v3624 = vadd.f32 %v3623, %v3588
        %v3625 = vrot.slane %v3624, 4
        %v3626 = vadd.f32 %v3624, %v3625
        %v3627 = vrot.slane %v3626, 2
        %v3628 = vadd.f32 %v3626, %v3627
        %v3629 = vrot.slane %v3628, 1
        %v3630 = vadd.f32 %v3628, %v3629
        %v3631 = vadd.f32 %v3589, %v3630
        %3632 = vst [vmem:[#allocation2] sm:$0x1] %v3631
        // Predicated region
        $region53: #{tpu_custom_call.1} parent=47 // pred_check
          %p3633 = pneg %p339
        $region54: #{tpu_custom_call.1} parent=47 // pred_check_branch
          %3635 = sbr.rel (%p3633) target = $region56
        $region55: #{tpu_custom_call.1} parent=47 // pred_region
          %v3636 = vld [vmem:[#allocation2] sm:$0x1]
          %v3637 = vmul.f32 %v3636, 0.00390625
          %v3638 = vlog2.pop %v3637
          %v3639 = vmul.f32 %v3638, 0.6931472
          %v3640 = vmul.f32 %v3639, 0.33333334
          %v3641 = vmul.f32 %v3640, 1.442695
          %v3642 = vpow.pop %v3641
          %v3643 = vlaneseq
          %v3644 = vand.u32 %v3643, 127
          %vm3645 = vcmp.lt.s32.totalorder %v3644, 32
          %v3646 = vsel %vm3645, %v3642, 0.0
          %v3647 = vmul.f32 %v3646, %v3646
          %vm3648 = vcmask 1040384
          %v3649 = vsel %vm3648, %v3647, 0.0
          %3650 = vadd.xlane.f32.xlu0 %v3649
          %v3651 = vpop.xlane.xlu0 %3650
          %v3652 = vrsqrt.pop %v3651
          %v3653 = vmul.f32 %v3651, %v3652
          %vm3654 = vcmp.eq.f32.partialorder %v3651, inf
          %v3655 = vsel %vm3654, %v3651, %v3653
          %vm3656 = vcmp.eq.f32.partialorder %v3651, 0.0
          %v3657 = vand.u32 %v3651, 2147483648
          %v3658 = vsel %vm3656, %v3657, %v3655
          %v3659 = vadd.f32 %v3658, 1e-06
          %v3660 = vrcp.pop %v3659
          %v3661 = vmul.f32 %v3646, %v3660
          %v3662 = vpack.c.bf16 %v3661, %v3661
          %v3663 = vld [vmem:[%s5] sm:$0xf]
          %v3664 = vld [vmem:[%s5 + $0x4] sm:$0xf]
          %v3665 = vld [vmem:[%s5 + $0x8] sm:$0xf]
          %v3666 = vld [vmem:[%s5 + $0xc] sm:$0xf]
          %v3667 = vld [vmem:[%s5 + $0x10] sm:$0xf]
          %v3668 = vld [vmem:[%s5 + $0x14] sm:$0xf]
          %v3669 = vld [vmem:[%s5 + $0x18] sm:$0xf]
          %v3670 = vld [vmem:[%s5 + $0x1c] sm:$0xf]
          %v3671 = vld [vmem:[%s5 + $0x20] sm:$0xf]
          %v3672 = vld [vmem:[%s5 + $0x24] sm:$0xf]
          %v3673 = vld [vmem:[%s5 + $0x28] sm:$0xf]
          %v3674 = vld [vmem:[%s5 + $0x2c] sm:$0xf]
          %v3675 = vld [vmem:[%s5 + $0x30] sm:$0xf]
          %v3676 = vld [vmem:[%s5 + $0x34] sm:$0xf]
          %v3677 = vld [vmem:[%s5 + $0x38] sm:$0xf]
          %v3678 = vld [vmem:[%s5 + $0x3c] sm:$0xf]
          %v3679 = vld [vmem:[%s6] sm:$0x1]
          %v3696 = vunpack.c.l.b16 %v3663
          %v3697 = vunpack.c.l.b16 %v3664
          %v3698 = vunpack.c.l.b16 %v3665
          %v3699 = vunpack.c.l.b16 %v3666
          %v3700 = vunpack.c.l.b16 %v3667
          %v3701 = vunpack.c.l.b16 %v3668
          %v3702 = vunpack.c.l.b16 %v3669
          %v3703 = vunpack.c.l.b16 %v3670
          %v3704 = vunpack.c.l.b16 %v3671
          %v3705 = vunpack.c.l.b16 %v3672
          %v3706 = vunpack.c.l.b16 %v3673
          %v3707 = vunpack.c.l.b16 %v3674
          %v3708 = vunpack.c.l.b16 %v3675
          %v3709 = vunpack.c.l.b16 %v3676
          %v3710 = vunpack.c.l.b16 %v3677
          %v3711 = vunpack.c.l.b16 %v3678
          %v3712 = vpack.c.b16 %v3697, %v3696
          %v3713 = vpack.c.b16 %v3699, %v3698
          %v3714 = vpack.c.b16 %v3701, %v3700
          %v3715 = vpack.c.b16 %v3703, %v3702
          %v3716 = vpack.c.b16 %v3705, %v3704
          %v3717 = vpack.c.b16 %v3707, %v3706
          %v3718 = vpack.c.b16 %v3709, %v3708
          %v3719 = vpack.c.b16 %v3711, %v3710
          %3728 = vmatprep.subr.bf16.mxu0 0
          %3729 = vmatpush1.bf16.msra.mxu0 %v3712
          %3730 = vmatprep.subr.bf16.mxu0 0
          %3731 = vmatpush1.bf16.msra.mxu0 %v3713
          %3732 = vmatprep.subr.bf16.mxu0 0
          %3733 = vmatpush1.bf16.msra.mxu0 %v3714
          %3734 = vmatprep.subr.bf16.mxu0 0
          %3735 = vmatpush1.bf16.msra.mxu0 %v3715
          %3736 = vmatprep.subr.bf16.mxu0 0
          %3737 = vmatpush1.bf16.msra.mxu0 %v3716
          %3738 = vmatprep.subr.bf16.mxu0 0
          %3739 = vmatpush1.bf16.msra.mxu0 %v3717
          %3740 = vmatprep.subr.bf16.mxu0 0
          %3741 = vmatpush1.bf16.msra.mxu0 %v3718
          %3742 = vmatprep.subr.bf16.mxu0 0
          %3743 = vmatpush1.bf16.msra.mxu0 %v3719
          %3744 = vmatprep.subr.bf16.mxu0 0
          %3745 = vmatpush1.bf16.msra.mxu0 0
          %3746 = vmatprep.subr.bf16.mxu0 0
          %3747 = vmatpush1.bf16.msra.mxu0 0
          %3748 = vmatprep.subr.bf16.mxu0 0
          %3749 = vmatpush1.bf16.msra.mxu0 0
          %3750 = vmatprep.subr.bf16.mxu0 0
          %3751 = vmatpush1.bf16.msra.mxu0 0
          %3752 = vmatprep.subr.bf16.mxu0 0
          %3753 = vmatpush1.bf16.msra.mxu0 0
          %3754 = vmatprep.subr.bf16.mxu0 0
          %3755 = vmatpush1.bf16.msra.mxu0 0
          %3756 = vmatprep.subr.bf16.mxu0 0
          %3757 = vmatpush1.bf16.msra.mxu0 0
          %3758 = vmatprep.subr.bf16.mxu0 0
          %3759 = vmatpush1.bf16.msra.mxu0 0
          %3760 = vmatprep.mubr.bf16.mxu0 0
          %3761 = vmatmul.mubr.bf16.gmra.mrb[0].mxu0 %v3662
          %v3762 = vpop.f32.mrb[0].mxu0
          %v3763 = vadd.f32 %v3679, %v3762
          %v3764 = vpop.f32.mrb[0].mxu0
          %v3765 = vpop.f32.mrb[0].mxu0
          %v3766 = vpop.f32.mrb[0].mxu0
          %3767 = vdwg.mxu0
          %v3768 = vmul.f32 %v3763, %v3763
          %v3769 = vsel %vm3648, %v3768, 0.0
          %3770 = vadd.xlane.f32.xlu0 %v3769
          %v3771 = vpop.xlane.xlu0 %3770
          %v3772 = vrsqrt.pop %v3771
          %v3773 = vmul.f32 %v3771, %v3772
          %vm3774 = vcmp.eq.f32.partialorder %v3771, inf
          %v3775 = vsel %vm3774, %v3771, %v3773
          %vm3776 = vcmp.eq.f32.partialorder %v3771, 0.0
          %v3777 = vand.u32 %v3771, 2147483648
          %v3778 = vsel %vm3776, %v3777, %v3775
          %v3779 = vadd.f32 %v3778, 1e-06
          %v3780 = vrcp.pop %v3779
          %v3781 = vmul.f32 %v3763, %v3780
          %3782 = vst [vmem:[%s318] sm:$0x1] %v3781
        $region56: #{tpu_custom_call.1} parent=47 // pred_fallthru
          _
        %s3783 = sand.u32 %s202, 1
        %s3784 = scalar_lea.sflag [#allocation4], %s3783
        %s3785 = sand.u32 %s202, 1
        %s3786 = scalar_lea.vmem [#allocation3], %s3785
        // Predicated region
        $region57: #{tpu_custom_call.1} parent=47 // pred_check
          %p3787 = pneg %p212
        $region58: #{tpu_custom_call.1} parent=47 // pred_check_branch
          %3789 = sbr.rel (%p3787) target = $region60
        $region59: #{tpu_custom_call.1} parent=47 // pred_region
          %s3791 = ssub.s32 16, 16
          %3792 = vsyncadd %s3784, %s3791
          %s3793 = smul.addr %s25, 16
          %s3794 = scalar_lea.hbm %s7, %s3793
          %s3796 = sshll.u32 %s3786, 4
          %s3797 = int_to_ptr.vmem [resolvable:$true] %s3796
          %3799 = dma.vmem_to_hbm [thread:$0]  %s3797, 16, %s3794, %s3784
        $region60: #{tpu_custom_call.1} parent=47 // pred_fallthru
          _
      $region48: #{tpu_custom_call.1} parent=5 // pred_fallthru
        _
      %p3800 = scmp.le.s32.totalorder 2, %s16
      // Predicated region
      $region61: #{tpu_custom_call.1} parent=5 // pred_check
        %p3801 = pneg %p3800
      $region62: #{tpu_custom_call.1} parent=5 // pred_check_branch
        %3803 = sbr.rel (%p3801) target = $region64
      $region63: #{tpu_custom_call.1} parent=5 // pred_region
        %s3804 = ssub.s32 %s16, 2
        // Predicated region
        $region65: #{tpu_custom_call.1} parent=63 // pred_check
          %p3805 = pneg %p218
        $region66: #{tpu_custom_call.1} parent=63 // pred_check_branch
          %3807 = sbr.rel (%p3805) target = $region68
        $region67: #{tpu_custom_call.1} parent=63 // pred_region
          %s3808 = sand.u32 %s203, 1
          %s3809 = scalar_lea.sflag [#allocation4], %s3808
          %s3810 = sand.u32 %s203, 1
          %s3811 = scalar_lea.vmem [#allocation3], %s3810
          %3812 = dma.done %s3809, 16
        $region68: #{tpu_custom_call.1} parent=63 // pred_fallthru
          _
      $region64: #{tpu_custom_call.1} parent=5 // pred_fallthru
        _
    $region6: #{tpu_custom_call.1} parent=1 // loop_footer
      %s20 = sadd.s32 1, %s16
    $region7: #{tpu_custom_call.1} parent=1 // loop_footer_branch
      %15 = sbr.rel target = $region3
    $region8: #{tpu_custom_call.1} parent=1 // loop_exit
      _
    %3813 = vsyncpa [#allocation4], 1
    %s3814 = scalar_lea.sflag [#allocation4], 1
    %3815 = vsyncpa %s3814, 1

</llo_original>
